<compile_context>
chip_gen: v7x
topology: tpu7x:2x2x1
jax: 0.10.0
libtpu: 0.0.40
codegen_flags: <defaults>
</compile_context>

<pallas_src>
import functools

import jax
import jax.numpy as jnp
import numpy as np
from jax.experimental import pallas as pl
from jax.experimental.pallas import tpu as pltpu


def _rdb_kernel(*refs, G0, C, G, W, Sh, halo, feat_dtype, compute_dtype):
    """Fused RDB forward for one (batch, row-strip) grid point.

    refs layout:
      refs[0]              : x_hbm    (N, G0, (H+2*halo)*W)  -- raw HBM (pl.ANY)
      refs[1], refs[2]     : mask_l, mask_r   (1, L*W) f32   -- dx boundary masks
      refs[3]              : rowmask  (1, 1, L*W) f32        -- per-strip frame-row mask
      refs[4+2i], refs[5+2i]: conv-i weight (9G, cin_i) compute_dtype, bias (G, 1) f32
      refs[4+2C], refs[5+2C]: lff_w (G0, Ctot) compute_dtype, lff_b (G0, 1) f32
      refs[6+2C]           : out (1, G0, Sh*W)
      refs[7+2C]           : feat scratch VMEM (Ctot, L*W) feat_dtype
      refs[8+2C]           : x slab scratch VMEM (G0, L*W) f32
    """
    L = Sh + 2 * halo
    LW = L * W
    ShW = Sh * W
    n = pl.program_id(0)
    s = pl.program_id(1)

    x_hbm = refs[0]
    mask_l = refs[1][...]          # (1, LW): 0 in column 0   (dx = -1 neighbor invalid)
    mask_r = refs[2][...]          # (1, LW): 0 in column W-1 (dx = +1 neighbor invalid)
    rowmask = refs[3][0]           # (1, LW): 0 on out-of-frame slab rows (zero padding)
    lffw_ref = refs[4 + 2 * C]
    lffb_ref = refs[5 + 2 * C]
    o_ref = refs[6 + 2 * C]
    feat_ref = refs[7 + 2 * C]
    xbuf_ref = refs[8 + 2 * C]

    # ---- fetch the C-row-haloed x strip (slab) from HBM into VMEM ----
    col0 = s * ShW
    if ShW % 128 == 0:
        col0 = pl.multiple_of(col0, 128)
    pltpu.sync_copy(x_hbm.at[n, :, pl.ds(col0, LW)], xbuf_ref)
    # TODO(synk): double-buffer/prefetch this strip DMA across grid steps.

    x_slab = xbuf_ref[...]                                    # (G0, LW) f32, zero outside frame
    feat_ref[0:G0, :] = x_slab.astype(feat_dtype)

    col_mask = {-1: mask_l, 0: None, 1: mask_r}

    # ---- C dense layers: 3x3 conv (pad=1, bias) + LeakyReLU(0.1), appended
    # in-place into the VMEM feature scratch (the channel "concat").
    for i in range(C):
        cin = G0 + i * G
        w_ref = refs[4 + 2 * i]                               # (9G, cin)
        b_ref = refs[5 + 2 * i]                               # (G, 1) f32
        feat_in = feat_ref[0:cin, :].astype(compute_dtype)    # (cin, LW)

        acc = None
        for gi, dy in enumerate((-1, 0, 1)):
            # One (3G, cin) @ (cin, LW) matmul per dy-group (smaller live temp).
            w_grp = w_ref[gi * 3 * G:(gi + 1) * 3 * G, :]
            big = jnp.dot(w_grp, feat_in,
                          preferred_element_type=jnp.float32)  # (3G, LW) f32
            for ti, dx in enumerate((-1, 0, 1)):
                chunk = big[ti * G:(ti + 1) * G, :]            # (G, LW)
                if dy == 0 and dx == 0:
                    contrib = chunk
                else:
                    # Vertical zero padding is automatic: out-of-frame feat
                    # columns are zero, so the rolled matmul output is zero
                    # there; only horizontal (dx) wrap needs masking.
                    shift = (-(dy * W + dx)) % LW
                    rolled = pltpu.roll(chunk, shift=shift, axis=1)
                    m = col_mask[dx]
                    contrib = rolled if m is None else rolled * m
                if acc is None:
                    acc = contrib + b_ref[...]                 # bias folded into init
                else:
                    acc = acc + contrib

        # LeakyReLU(0.1); zero out-of-frame rows so later layers see true zeros.
        acc = jnp.maximum(acc, 0.1 * acc) * rowmask
        feat_ref[cin:cin + G, :] = acc.astype(feat_dtype)

    # ---- LFF 1x1 conv over the in-frame strip columns + residual add ----
    c0 = halo * W
    feat_strip = feat_ref[:, c0:c0 + ShW].astype(compute_dtype)   # (Ctot, ShW)
    y = jnp.dot(lffw_ref[...], feat_strip,
                preferred_element_type=jnp.float32)                # (G0, ShW) f32
    y = y + lffb_ref[...]
    y = y + x_slab[:, c0:c0 + ShW]                                 # exact f32 residual
    o_ref[0] = y.astype(o_ref.dtype)


@functools.partial(jax.jit, static_argnames=("strip_rows", "compute_dtype"))
def rdb_forward_nchw(x_nchw, params, *, strip_rows=None,
                     compute_dtype=jnp.bfloat16):
    """RDB forward. x_nchw: (N, G0, H, W) -> (N, G0, H, W)."""
    N, G0, H, W = x_nchw.shape
    C = len(params["convs"])
    G = params["convs"][0][0].shape[0]
    Ctot = G0 + C * G
    assert G0 % 8 == 0 and G % 8 == 0, "channel counts must be 8-aligned (sublane)"

    Sh = H if strip_rows is None else strip_rows
    assert H % Sh == 0, "H must be divisible by the strip height"
    S = H // Sh
    ShW = Sh * W
    # Output blocks along the flattened spatial axis must be lane-aligned.
    assert ShW % 128 == 0 or S == 1, "strip_rows * W must be a multiple of 128"
    halo = C                      # exact receptive field of C stacked 3x3 convs
    L = Sh + 2 * halo
    LW = L * W

    # bf16-resident feature map only when per-layer row offsets land on the
    # bf16 (16, 128) sublane tile; otherwise keep the scratch f32 and cast at
    # the matmul operands.
    if compute_dtype == jnp.bfloat16 and not (G0 % 16 == 0 and G % 16 == 0):
        feat_dtype = jnp.float32
    else:
        feat_dtype = compute_dtype

    # Host-side layout plumbing only: zero-pad H by the halo (gives exact zero
    # padding rows to the slab DMA) and flatten the spatial dims (lane-dense).
    x_pad = jnp.pad(x_nchw, ((0, 0), (0, 0), (halo, halo), (0, 0)))
    x_flat = x_pad.reshape(N, G0, (H + 2 * halo) * W)

    # Hoisted boundary masks (no per-step iota / div / mod in the kernel).
    ww = np.tile(np.arange(W, dtype=np.int64), L)
    mask_l = jnp.asarray((ww >= 1).astype(np.float32).reshape(1, LW))
    mask_r = jnp.asarray((ww <= W - 2).astype(np.float32).reshape(1, LW))
    rm = np.zeros((S, 1, LW), np.float32)
    for si in range(S):
        gr = si * Sh + np.arange(L) - halo
        rm[si, 0] = np.repeat(((gr >= 0) & (gr < H)).astype(np.float32), W)
    rowmask = jnp.asarray(rm)

    inputs = [x_flat, mask_l, mask_r, rowmask]
    in_specs = [
        pl.BlockSpec(memory_space=pl.ANY),                    # x stays in HBM
        pl.BlockSpec((1, LW), lambda n, s: (0, 0)),
        pl.BlockSpec((1, LW), lambda n, s: (0, 0)),
        pl.BlockSpec((1, 1, LW), lambda n, s: (s, 0, 0)),
    ]
    for (w_oihw, b) in params["convs"]:
        cin = w_oihw.shape[1]
        # (G, cin, 3, 3) OIHW -> (3, 3, G, cin) -> (9G, cin), taps row-major.
        wcat = jnp.transpose(w_oihw, (2, 3, 0, 1)).reshape(9 * G, cin)
        inputs += [wcat.astype(compute_dtype), b.reshape(G, 1).astype(jnp.float32)]
        in_specs += [pl.BlockSpec((9 * G, cin), lambda n, s: (0, 0)),
                     pl.BlockSpec((G, 1), lambda n, s: (0, 0))]
    inputs += [params["lff_w"].astype(compute_dtype),
               params["lff_b"].reshape(G0, 1).astype(jnp.float32)]
    in_specs += [pl.BlockSpec((G0, Ctot), lambda n, s: (0, 0)),
                 pl.BlockSpec((G0, 1), lambda n, s: (0, 0))]

    kernel = functools.partial(_rdb_kernel, G0=G0, C=C, G=G, W=W, Sh=Sh,
                               halo=halo, feat_dtype=feat_dtype,
                               compute_dtype=compute_dtype)

    y_flat = pl.pallas_call(
        kernel,
        out_shape=jax.ShapeDtypeStruct((N, G0, H * W), x_nchw.dtype),
        grid=(N, S),
        in_specs=in_specs,
        out_specs=pl.BlockSpec((1, G0, ShW), lambda n, s: (n, 0, s)),
        scratch_shapes=[pltpu.VMEM((Ctot, LW), feat_dtype),
                        pltpu.VMEM((G0, LW), x_nchw.dtype)],
        compiler_params=pltpu.CompilerParams(
            dimension_semantics=("parallel", "parallel")),
    )(*inputs)
    return y_flat.reshape(N, G0, H, W)


def init_rdb_params(key, G0, C, G):
    """Parameters in PyTorch-like layouts: conv weights OIHW, LFF (G0, Ctot)."""
    convs = []
    for i in range(C):
        cin = G0 + i * G
        key, k1, k2 = jax.random.split(key, 3)
        w = jax.random.normal(k1, (G, cin, 3, 3), jnp.float32) / np.sqrt(cin * 9)
        b = jax.random.normal(k2, (G,), jnp.float32) * 0.01
        convs.append((w, b))
    cin = G0 + C * G
    key, k1, k2 = jax.random.split(key, 3)
    lff_w = jax.random.normal(k1, (G0, cin), jnp.float32) / np.sqrt(cin)
    lff_b = jax.random.normal(k2, (G0,), jnp.float32) * 0.01
    return {"convs": convs, "lff_w": lff_w, "lff_b": lff_b}


def rdb_reference_nchw(x_nchw, params):
    """Pure-JAX f32 reference using lax.conv (NCHW/OIHW, matches PyTorch)."""
    feat = x_nchw
    for (w, b) in params["convs"]:
        o = jax.lax.conv_general_dilated(
            feat, w, window_strides=(1, 1), padding=((1, 1), (1, 1)),
            dimension_numbers=("NCHW", "OIHW", "NCHW"))
        o = o + b[None, :, None, None]
        o = jnp.where(o >= 0, o, 0.1 * o)            # LeakyReLU(0.1)
        feat = jnp.concatenate([feat, o], axis=1)
    lff_w = params["lff_w"][:, :, None, None]         # (G0, Ctot, 1, 1) OIHW
    lff = jax.lax.conv_general_dilated(
        feat, lff_w, window_strides=(1, 1), padding=((0, 0), (0, 0)),
        dimension_numbers=("NCHW", "OIHW", "NCHW"))
    lff = lff + params["lff_b"][None, :, None, None]
    return lff + x_nchw


if __name__ == "__main__":
    # Small demo shapes; chosen so both the strip width (Sh*W) and the haloed
    # slab width ((Sh+2C)*W) are 128-lane aligned and channels are 16-aligned.
    G0, C, G = 16, 3, 16
    N, H, W = 2, 16, 64

    key = jax.random.PRNGKey(0)
    key, kx = jax.random.split(key)
    x = jax.random.normal(kx, (N, G0, H, W), jnp.float32)
    params = init_rdb_params(key, G0, C, G)

    ref = rdb_reference_nchw(x, params)

    # Exact structural check (f32 MXU operands, same strip-tiled kernel).
    out_f32 = jax.block_until_ready(
        rdb_forward_nchw(x, params, strip_rows=8, compute_dtype=jnp.float32))
    assert out_f32.shape == (N, G0, H, W)
    assert jnp.allclose(out_f32, ref, atol=1e-4, rtol=1e-4)

    # Fast path: bf16 MXU operands + bf16-resident feature map (looser tol).
    out_bf16 = jax.block_until_ready(
        rdb_forward_nchw(x, params, strip_rows=8, compute_dtype=jnp.bfloat16))
    assert out_bf16.shape == (N, G0, H, W)
    assert jnp.allclose(out_bf16, ref, atol=1e-1, rtol=1e-1)

    print("KERNEL_OK")
</pallas_src>

<mosaic_0001>
module attributes {stable_mosaic.version = 11 : i64} {
  func.func @_rdb_kernel(%arg0: i32, %arg1: i32, %arg2: memref<2x16x1408xf32, #tpu.memory_space<any>>, %arg3: memref<1x896xf32, #tpu.memory_space<vmem>>, %arg4: memref<1x896xf32, #tpu.memory_space<vmem>>, %arg5: memref<1x1x896xf32, #tpu.memory_space<vmem>>, %arg6: memref<144x16xf32, #tpu.memory_space<vmem>>, %arg7: memref<16x1xf32, #tpu.memory_space<vmem>>, %arg8: memref<144x32xf32, #tpu.memory_space<vmem>>, %arg9: memref<16x1xf32, #tpu.memory_space<vmem>>, %arg10: memref<144x48xf32, #tpu.memory_space<vmem>>, %arg11: memref<16x1xf32, #tpu.memory_space<vmem>>, %arg12: memref<16x64xf32, #tpu.memory_space<vmem>>, %arg13: memref<16x1xf32, #tpu.memory_space<vmem>>, %arg14: memref<1x16x512xf32, #tpu.memory_space<vmem>>, %arg15: memref<64x896xf32, #tpu.memory_space<vmem>>, %arg16: memref<16x896xf32, #tpu.memory_space<vmem>>) attributes {dimension_semantics = [#tpu.dimension_semantics<parallel>, #tpu.dimension_semantics<parallel>], iteration_bounds = array<i64: 2, 2>, scalar_prefetch = 0 : i64, scratch_operands = 2 : i64, tpu.core_type = #tpu.core_type<tc>, window_params = [{}, {pipeline_mode = #tpu.pipeline_mode<synchronous>, transform_indices = @transform_1, window_bounds = array<i64: 1, 896>}, {pipeline_mode = #tpu.pipeline_mode<synchronous>, transform_indices = @transform_2, window_bounds = array<i64: 1, 896>}, {transform_indices = @transform_3, window_bounds = array<i64: 1, 1, 896>}, {pipeline_mode = #tpu.pipeline_mode<synchronous>, transform_indices = @transform_4, window_bounds = array<i64: 144, 16>}, {pipeline_mode = #tpu.pipeline_mode<synchronous>, transform_indices = @transform_5, window_bounds = array<i64: 16, 1>}, {pipeline_mode = #tpu.pipeline_mode<synchronous>, transform_indices = @transform_6, window_bounds = array<i64: 144, 32>}, {pipeline_mode = #tpu.pipeline_mode<synchronous>, transform_indices = @transform_7, window_bounds = array<i64: 16, 1>}, {pipeline_mode = #tpu.pipeline_mode<synchronous>, transform_indices = @transform_8, window_bounds = array<i64: 144, 48>}, {pipeline_mode = #tpu.pipeline_mode<synchronous>, transform_indices = @transform_9, window_bounds = array<i64: 16, 1>}, {pipeline_mode = #tpu.pipeline_mode<synchronous>, transform_indices = @transform_10, window_bounds = array<i64: 16, 64>}, {pipeline_mode = #tpu.pipeline_mode<synchronous>, transform_indices = @transform_11, window_bounds = array<i64: 16, 1>}, {transform_indices = @transform_12, window_bounds = array<i64: 1, 16, 512>}]} {
    %c0 = arith.constant 0 : index
    %c0_0 = arith.constant 0 : index
    %0 = vector.load %arg3[%c0, %c0_0] : memref<1x896xf32, #tpu.memory_space<vmem>>, vector<1x896xf32>
    %c0_1 = arith.constant 0 : index
    %c0_2 = arith.constant 0 : index
    %1 = vector.load %arg4[%c0_1, %c0_2] : memref<1x896xf32, #tpu.memory_space<vmem>>, vector<1x896xf32>
    %c0_3 = arith.constant 0 : index
    %c0_4 = arith.constant 0 : index
    %c0_5 = arith.constant 0 : index
    %2 = vector.load %arg5[%c0_3, %c0_4, %c0_5] : memref<1x1x896xf32, #tpu.memory_space<vmem>>, vector<1x1x896xf32>
    %3 = vector.shape_cast %2 : vector<1x1x896xf32> to vector<1x896xf32>
    %c512_i32 = arith.constant 512 : i32
    %4 = arith.muli %arg1, %c512_i32 : i32
    %5 = tpu.assume_multiple %4, 128 : i32
    "tpu.region"() ({
      %178 = tpu.sem_alloc : memref<!tpu.dma_semaphore, #tpu.memory_space<semaphore_mem>>
      %c0_i32 = arith.constant 0 : i32
      %179 = tpu.memref_slice %arg2[%arg0, %c0_i32, %5] : memref<2x16x1408xf32, #tpu.memory_space<any>> -> memref<1x16x896xf32, #tpu.memory_space<any>>
      %180 = tpu.memref_squeeze %179 : memref<1x16x896xf32, #tpu.memory_space<any>> -> memref<16x896xf32, #tpu.memory_space<any>>
      tpu.enqueue_dma source(%180 : memref<16x896xf32, #tpu.memory_space<any>>) target(%arg16 : memref<16x896xf32, #tpu.memory_space<vmem>>) target_semaphore(%178 : memref<!tpu.dma_semaphore, #tpu.memory_space<semaphore_mem>>)
      %c0_i32_78 = arith.constant 0 : i32
      %181 = tpu.memref_slice %arg2[%arg0, %c0_i32_78, %5] : memref<2x16x1408xf32, #tpu.memory_space<any>> -> memref<1x16x896xf32, #tpu.memory_space<any>>
      %182 = tpu.memref_squeeze %181 : memref<1x16x896xf32, #tpu.memory_space<any>> -> memref<16x896xf32, #tpu.memory_space<any>>
      tpu.wait_dma2 semaphore(%178 : memref<!tpu.dma_semaphore, #tpu.memory_space<semaphore_mem>>) src(%182 : memref<16x896xf32, #tpu.memory_space<any>>) dst(%arg16 : memref<16x896xf32, #tpu.memory_space<vmem>>)
      tpu.yield
    }) : () -> ()
    %c0_6 = arith.constant 0 : index
    %c0_7 = arith.constant 0 : index
    %6 = vector.load %arg16[%c0_6, %c0_7] : memref<16x896xf32, #tpu.memory_space<vmem>>, vector<16x896xf32>
    %c0_8 = arith.constant 0 : index
    %c0_9 = arith.constant 0 : index
    %7 = vector.load %arg15[%c0_8, %c0_9] : memref<64x896xf32, #tpu.memory_space<vmem>>, vector<16x896xf32>
    tpu.vector_store %arg15[%c0_8, %c0_9], %6 {strides = array<i32>} : memref<64x896xf32, #tpu.memory_space<vmem>>, vector<16x896xf32>,
    %c0_10 = arith.constant 0 : index
    %c0_11 = arith.constant 0 : index
    %8 = vector.load %arg15[%c0_10, %c0_11] : memref<64x896xf32, #tpu.memory_space<vmem>>, vector<16x896xf32>
    %c0_12 = arith.constant 0 : index
    %c0_13 = arith.constant 0 : index
    %9 = vector.load %arg6[%c0_12, %c0_13] : memref<144x16xf32, #tpu.memory_space<vmem>>, vector<48x16xf32>
    %cst = arith.constant dense<0.000000e+00> : vector<48x896xf32>
    %10 = tpu.matmul %9, %8, %cst {dimension_numbers = #tpu.dot_dimension_numbers<[1], [0], [0], [1], [0, 0, 1, 1], [], []>} : vector<48x16xf32>, vector<16x896xf32>, vector<48x896xf32> -> vector<48x896xf32>
    %11 = vector.extract_strided_slice %10 {offsets = [0, 0], sizes = [16, 896], strides = [1, 1]} : vector<48x896xf32> to vector<16x896xf32>
    %c65_i32 = arith.constant 65 : i32
    %12 = tpu.dynamic_rotate %11 by %c65_i32 dim 1 : vector<16x896xf32>, i32 -> vector<16x896xf32>
    %13 = vector.broadcast %0 : vector<1x896xf32> to vector<16x896xf32>
    %14 = arith.mulf %12, %13 : vector<16x896xf32>
    %c0_14 = arith.constant 0 : index
    %c0_15 = arith.constant 0 : index
    %15 = vector.load %arg7[%c0_14, %c0_15] : memref<16x1xf32, #tpu.memory_space<vmem>>, vector<16x1xf32>
    %16 = vector.broadcast %15 : vector<16x1xf32> to vector<16x896xf32>
    %17 = arith.addf %14, %16 : vector<16x896xf32>
    %18 = vector.extract_strided_slice %10 {offsets = [16, 0], sizes = [16, 896], strides = [1, 1]} : vector<48x896xf32> to vector<16x896xf32>
    %c64_i32 = arith.constant 64 : i32
    %19 = tpu.dynamic_rotate %18 by %c64_i32 dim 1 : vector<16x896xf32>, i32 -> vector<16x896xf32>
    %20 = arith.addf %17, %19 : vector<16x896xf32>
    %21 = vector.extract_strided_slice %10 {offsets = [32, 0], sizes = [16, 896], strides = [1, 1]} : vector<48x896xf32> to vector<16x896xf32>
    %c63_i32 = arith.constant 63 : i32
    %22 = tpu.dynamic_rotate %21 by %c63_i32 dim 1 : vector<16x896xf32>, i32 -> vector<16x896xf32>
    %23 = vector.broadcast %1 : vector<1x896xf32> to vector<16x896xf32>
    %24 = arith.mulf %22, %23 : vector<16x896xf32>
    %25 = arith.addf %20, %24 : vector<16x896xf32>
    %c48 = arith.constant 48 : index
    %c0_16 = arith.constant 0 : index
    %26 = vector.load %arg6[%c48, %c0_16] : memref<144x16xf32, #tpu.memory_space<vmem>>, vector<48x16xf32>
    %cst_17 = arith.constant dense<0.000000e+00> : vector<48x896xf32>
    %27 = tpu.matmul %26, %8, %cst_17 {dimension_numbers = #tpu.dot_dimension_numbers<[1], [0], [0], [1], [0, 0, 1, 1], [], []>} : vector<48x16xf32>, vector<16x896xf32>, vector<48x896xf32> -> vector<48x896xf32>
    %28 = vector.extract_strided_slice %27 {offsets = [0, 0], sizes = [16, 896], strides = [1, 1]} : vector<48x896xf32> to vector<16x896xf32>
    %c1_i32 = arith.constant 1 : i32
    %29 = tpu.dynamic_rotate %28 by %c1_i32 dim 1 : vector<16x896xf32>, i32 -> vector<16x896xf32>
    %30 = vector.broadcast %0 : vector<1x896xf32> to vector<16x896xf32>
    %31 = arith.mulf %29, %30 : vector<16x896xf32>
    %32 = arith.addf %25, %31 : vector<16x896xf32>
    %33 = vector.extract_strided_slice %27 {offsets = [16, 0], sizes = [16, 896], strides = [1, 1]} : vector<48x896xf32> to vector<16x896xf32>
    %34 = arith.addf %32, %33 : vector<16x896xf32>
    %35 = vector.extract_strided_slice %27 {offsets = [32, 0], sizes = [16, 896], strides = [1, 1]} : vector<48x896xf32> to vector<16x896xf32>
    %c895_i32 = arith.constant 895 : i32
    %36 = tpu.dynamic_rotate %35 by %c895_i32 dim 1 : vector<16x896xf32>, i32 -> vector<16x896xf32>
    %37 = vector.broadcast %1 : vector<1x896xf32> to vector<16x896xf32>
    %38 = arith.mulf %36, %37 : vector<16x896xf32>
    %39 = arith.addf %34, %38 : vector<16x896xf32>
    %c96 = arith.constant 96 : index
    %c0_18 = arith.constant 0 : index
    %40 = vector.load %arg6[%c96, %c0_18] : memref<144x16xf32, #tpu.memory_space<vmem>>, vector<48x16xf32>
    %cst_19 = arith.constant dense<0.000000e+00> : vector<48x896xf32>
    %41 = tpu.matmul %40, %8, %cst_19 {dimension_numbers = #tpu.dot_dimension_numbers<[1], [0], [0], [1], [0, 0, 1, 1], [], []>} : vector<48x16xf32>, vector<16x896xf32>, vector<48x896xf32> -> vector<48x896xf32>
    %42 = vector.extract_strided_slice %41 {offsets = [0, 0], sizes = [16, 896], strides = [1, 1]} : vector<48x896xf32> to vector<16x896xf32>
    %c833_i32 = arith.constant 833 : i32
    %43 = tpu.dynamic_rotate %42 by %c833_i32 dim 1 : vector<16x896xf32>, i32 -> vector<16x896xf32>
    %44 = vector.broadcast %0 : vector<1x896xf32> to vector<16x896xf32>
    %45 = arith.mulf %43, %44 : vector<16x896xf32>
    %46 = arith.addf %39, %45 : vector<16x896xf32>
    %47 = vector.extract_strided_slice %41 {offsets = [16, 0], sizes = [16, 896], strides = [1, 1]} : vector<48x896xf32> to vector<16x896xf32>
    %c832_i32 = arith.constant 832 : i32
    %48 = tpu.dynamic_rotate %47 by %c832_i32 dim 1 : vector<16x896xf32>, i32 -> vector<16x896xf32>
    %49 = arith.addf %46, %48 : vector<16x896xf32>
    %50 = vector.extract_strided_slice %41 {offsets = [32, 0], sizes = [16, 896], strides = [1, 1]} : vector<48x896xf32> to vector<16x896xf32>
    %c831_i32 = arith.constant 831 : i32
    %51 = tpu.dynamic_rotate %50 by %c831_i32 dim 1 : vector<16x896xf32>, i32 -> vector<16x896xf32>
    %52 = vector.broadcast %1 : vector<1x896xf32> to vector<16x896xf32>
    %53 = arith.mulf %51, %52 : vector<16x896xf32>
    %54 = arith.addf %49, %53 : vector<16x896xf32>
    %cst_20 = arith.constant 1.000000e-01 : f32
    %55 = vector.broadcast %cst_20 : f32 to vector<16x896xf32>
    %56 = arith.mulf %55, %54 : vector<16x896xf32>
    %57 = arith.maximumf %54, %56 : vector<16x896xf32>
    %58 = vector.broadcast %3 : vector<1x896xf32> to vector<16x896xf32>
    %59 = arith.mulf %57, %58 : vector<16x896xf32>
    %c16 = arith.constant 16 : index
    %c0_21 = arith.constant 0 : index
    %60 = vector.load %arg15[%c16, %c0_21] : memref<64x896xf32, #tpu.memory_space<vmem>>, vector<16x896xf32>
    tpu.vector_store %arg15[%c16, %c0_21], %59 {strides = array<i32>} : memref<64x896xf32, #tpu.memory_space<vmem>>, vector<16x896xf32>,
    %c0_22 = arith.constant 0 : index
    %c0_23 = arith.constant 0 : index
    %61 = vector.load %arg15[%c0_22, %c0_23] : memref<64x896xf32, #tpu.memory_space<vmem>>, vector<32x896xf32>
    %c0_24 = arith.constant 0 : index
    %c0_25 = arith.constant 0 : index
    %62 = vector.load %arg8[%c0_24, %c0_25] : memref<144x32xf32, #tpu.memory_space<vmem>>, vector<48x32xf32>
    %cst_26 = arith.constant dense<0.000000e+00> : vector<48x896xf32>
    %63 = tpu.matmul %62, %61, %cst_26 {dimension_numbers = #tpu.dot_dimension_numbers<[1], [0], [0], [1], [0, 0, 1, 1], [], []>} : vector<48x32xf32>, vector<32x896xf32>, vector<48x896xf32> -> vector<48x896xf32>
    %64 = vector.extract_strided_slice %63 {offsets = [0, 0], sizes = [16, 896], strides = [1, 1]} : vector<48x896xf32> to vector<16x896xf32>
    %c65_i32_27 = arith.constant 65 : i32
    %65 = tpu.dynamic_rotate %64 by %c65_i32_27 dim 1 : vector<16x896xf32>, i32 -> vector<16x896xf32>
    %66 = vector.broadcast %0 : vector<1x896xf32> to vector<16x896xf32>
    %67 = arith.mulf %65, %66 : vector<16x896xf32>
    %c0_28 = arith.constant 0 : index
    %c0_29 = arith.constant 0 : index
    %68 = vector.load %arg9[%c0_28, %c0_29] : memref<16x1xf32, #tpu.memory_space<vmem>>, vector<16x1xf32>
    %69 = vector.broadcast %68 : vector<16x1xf32> to vector<16x896xf32>
    %70 = arith.addf %67, %69 : vector<16x896xf32>
    %71 = vector.extract_strided_slice %63 {offsets = [16, 0], sizes = [16, 896], strides = [1, 1]} : vector<48x896xf32> to vector<16x896xf32>
    %c64_i32_30 = arith.constant 64 : i32
    %72 = tpu.dynamic_rotate %71 by %c64_i32_30 dim 1 : vector<16x896xf32>, i32 -> vector<16x896xf32>
    %73 = arith.addf %70, %72 : vector<16x896xf32>
    %74 = vector.extract_strided_slice %63 {offsets = [32, 0], sizes = [16, 896], strides = [1, 1]} : vector<48x896xf32> to vector<16x896xf32>
    %c63_i32_31 = arith.constant 63 : i32
    %75 = tpu.dynamic_rotate %74 by %c63_i32_31 dim 1 : vector<16x896xf32>, i32 -> vector<16x896xf32>
    %76 = vector.broadcast %1 : vector<1x896xf32> to vector<16x896xf32>
    %77 = arith.mulf %75, %76 : vector<16x896xf32>
    %78 = arith.addf %73, %77 : vector<16x896xf32>
    %c48_32 = arith.constant 48 : index
    %c0_33 = arith.constant 0 : index
    %79 = vector.load %arg8[%c48_32, %c0_33] : memref<144x32xf32, #tpu.memory_space<vmem>>, vector<48x32xf32>
    %cst_34 = arith.constant dense<0.000000e+00> : vector<48x896xf32>
    %80 = tpu.matmul %79, %61, %cst_34 {dimension_numbers = #tpu.dot_dimension_numbers<[1], [0], [0], [1], [0, 0, 1, 1], [], []>} : vector<48x32xf32>, vector<32x896xf32>, vector<48x896xf32> -> vector<48x896xf32>
    %81 = vector.extract_strided_slice %80 {offsets = [0, 0], sizes = [16, 896], strides = [1, 1]} : vector<48x896xf32> to vector<16x896xf32>
    %c1_i32_35 = arith.constant 1 : i32
    %82 = tpu.dynamic_rotate %81 by %c1_i32_35 dim 1 : vector<16x896xf32>, i32 -> vector<16x896xf32>
    %83 = vector.broadcast %0 : vector<1x896xf32> to vector<16x896xf32>
    %84 = arith.mulf %82, %83 : vector<16x896xf32>
    %85 = arith.addf %78, %84 : vector<16x896xf32>
    %86 = vector.extract_strided_slice %80 {offsets = [16, 0], sizes = [16, 896], strides = [1, 1]} : vector<48x896xf32> to vector<16x896xf32>
    %87 = arith.addf %85, %86 : vector<16x896xf32>
    %88 = vector.extract_strided_slice %80 {offsets = [32, 0], sizes = [16, 896], strides = [1, 1]} : vector<48x896xf32> to vector<16x896xf32>
    %c895_i32_36 = arith.constant 895 : i32
    %89 = tpu.dynamic_rotate %88 by %c895_i32_36 dim 1 : vector<16x896xf32>, i32 -> vector<16x896xf32>
    %90 = vector.broadcast %1 : vector<1x896xf32> to vector<16x896xf32>
    %91 = arith.mulf %89, %90 : vector<16x896xf32>
    %92 = arith.addf %87, %91 : vector<16x896xf32>
    %c96_37 = arith.constant 96 : index
    %c0_38 = arith.constant 0 : index
    %93 = vector.load %arg8[%c96_37, %c0_38] : memref<144x32xf32, #tpu.memory_space<vmem>>, vector<48x32xf32>
    %cst_39 = arith.constant dense<0.000000e+00> : vector<48x896xf32>
    %94 = tpu.matmul %93, %61, %cst_39 {dimension_numbers = #tpu.dot_dimension_numbers<[1], [0], [0], [1], [0, 0, 1, 1], [], []>} : vector<48x32xf32>, vector<32x896xf32>, vector<48x896xf32> -> vector<48x896xf32>
    %95 = vector.extract_strided_slice %94 {offsets = [0, 0], sizes = [16, 896], strides = [1, 1]} : vector<48x896xf32> to vector<16x896xf32>
    %c833_i32_40 = arith.constant 833 : i32
    %96 = tpu.dynamic_rotate %95 by %c833_i32_40 dim 1 : vector<16x896xf32>, i32 -> vector<16x896xf32>
    %97 = vector.broadcast %0 : vector<1x896xf32> to vector<16x896xf32>
    %98 = arith.mulf %96, %97 : vector<16x896xf32>
    %99 = arith.addf %92, %98 : vector<16x896xf32>
    %100 = vector.extract_strided_slice %94 {offsets = [16, 0], sizes = [16, 896], strides = [1, 1]} : vector<48x896xf32> to vector<16x896xf32>
    %c832_i32_41 = arith.constant 832 : i32
    %101 = tpu.dynamic_rotate %100 by %c832_i32_41 dim 1 : vector<16x896xf32>, i32 -> vector<16x896xf32>
    %102 = arith.addf %99, %101 : vector<16x896xf32>
    %103 = vector.extract_strided_slice %94 {offsets = [32, 0], sizes = [16, 896], strides = [1, 1]} : vector<48x896xf32> to vector<16x896xf32>
    %c831_i32_42 = arith.constant 831 : i32
    %104 = tpu.dynamic_rotate %103 by %c831_i32_42 dim 1 : vector<16x896xf32>, i32 -> vector<16x896xf32>
    %105 = vector.broadcast %1 : vector<1x896xf32> to vector<16x896xf32>
    %106 = arith.mulf %104, %105 : vector<16x896xf32>
    %107 = arith.addf %102, %106 : vector<16x896xf32>
    %cst_43 = arith.constant 1.000000e-01 : f32
    %108 = vector.broadcast %cst_43 : f32 to vector<16x896xf32>
    %109 = arith.mulf %108, %107 : vector<16x896xf32>
    %110 = arith.maximumf %107, %109 : vector<16x896xf32>
    %111 = vector.broadcast %3 : vector<1x896xf32> to vector<16x896xf32>
    %112 = arith.mulf %110, %111 : vector<16x896xf32>
    %c32 = arith.constant 32 : index
    %c0_44 = arith.constant 0 : index
    %113 = vector.load %arg15[%c32, %c0_44] : memref<64x896xf32, #tpu.memory_space<vmem>>, vector<16x896xf32>
    tpu.vector_store %arg15[%c32, %c0_44], %112 {strides = array<i32>} : memref<64x896xf32, #tpu.memory_space<vmem>>, vector<16x896xf32>,
    %c0_45 = arith.constant 0 : index
    %c0_46 = arith.constant 0 : index
    %114 = vector.load %arg15[%c0_45, %c0_46] : memref<64x896xf32, #tpu.memory_space<vmem>>, vector<48x896xf32>
    %c0_47 = arith.constant 0 : index
    %c0_48 = arith.constant 0 : index
    %115 = vector.load %arg10[%c0_47, %c0_48] : memref<144x48xf32, #tpu.memory_space<vmem>>, vector<48x48xf32>
    %cst_49 = arith.constant dense<0.000000e+00> : vector<48x896xf32>
    %116 = tpu.matmul %115, %114, %cst_49 {dimension_numbers = #tpu.dot_dimension_numbers<[1], [0], [0], [1], [0, 0, 1, 1], [], []>} : vector<48x48xf32>, vector<48x896xf32>, vector<48x896xf32> -> vector<48x896xf32>
    %117 = vector.extract_strided_slice %116 {offsets = [0, 0], sizes = [16, 896], strides = [1, 1]} : vector<48x896xf32> to vector<16x896xf32>
    %c65_i32_50 = arith.constant 65 : i32
    %118 = tpu.dynamic_rotate %117 by %c65_i32_50 dim 1 : vector<16x896xf32>, i32 -> vector<16x896xf32>
    %119 = vector.broadcast %0 : vector<1x896xf32> to vector<16x896xf32>
    %120 = arith.mulf %118, %119 : vector<16x896xf32>
    %c0_51 = arith.constant 0 : index
    %c0_52 = arith.constant 0 : index
    %121 = vector.load %arg11[%c0_51, %c0_52] : memref<16x1xf32, #tpu.memory_space<vmem>>, vector<16x1xf32>
    %122 = vector.broadcast %121 : vector<16x1xf32> to vector<16x896xf32>
    %123 = arith.addf %120, %122 : vector<16x896xf32>
    %124 = vector.extract_strided_slice %116 {offsets = [16, 0], sizes = [16, 896], strides = [1, 1]} : vector<48x896xf32> to vector<16x896xf32>
    %c64_i32_53 = arith.constant 64 : i32
    %125 = tpu.dynamic_rotate %124 by %c64_i32_53 dim 1 : vector<16x896xf32>, i32 -> vector<16x896xf32>
    %126 = arith.addf %123, %125 : vector<16x896xf32>
    %127 = vector.extract_strided_slice %116 {offsets = [32, 0], sizes = [16, 896], strides = [1, 1]} : vector<48x896xf32> to vector<16x896xf32>
    %c63_i32_54 = arith.constant 63 : i32
    %128 = tpu.dynamic_rotate %127 by %c63_i32_54 dim 1 : vector<16x896xf32>, i32 -> vector<16x896xf32>
    %129 = vector.broadcast %1 : vector<1x896xf32> to vector<16x896xf32>
    %130 = arith.mulf %128, %129 : vector<16x896xf32>
    %131 = arith.addf %126, %130 : vector<16x896xf32>
    %c48_55 = arith.constant 48 : index
    %c0_56 = arith.constant 0 : index
    %132 = vector.load %arg10[%c48_55, %c0_56] : memref<144x48xf32, #tpu.memory_space<vmem>>, vector<48x48xf32>
    %cst_57 = arith.constant dense<0.000000e+00> : vector<48x896xf32>
    %133 = tpu.matmul %132, %114, %cst_57 {dimension_numbers = #tpu.dot_dimension_numbers<[1], [0], [0], [1], [0, 0, 1, 1], [], []>} : vector<48x48xf32>, vector<48x896xf32>, vector<48x896xf32> -> vector<48x896xf32>
    %134 = vector.extract_strided_slice %133 {offsets = [0, 0], sizes = [16, 896], strides = [1, 1]} : vector<48x896xf32> to vector<16x896xf32>
    %c1_i32_58 = arith.constant 1 : i32
    %135 = tpu.dynamic_rotate %134 by %c1_i32_58 dim 1 : vector<16x896xf32>, i32 -> vector<16x896xf32>
    %136 = vector.broadcast %0 : vector<1x896xf32> to vector<16x896xf32>
    %137 = arith.mulf %135, %136 : vector<16x896xf32>
    %138 = arith.addf %131, %137 : vector<16x896xf32>
    %139 = vector.extract_strided_slice %133 {offsets = [16, 0], sizes = [16, 896], strides = [1, 1]} : vector<48x896xf32> to vector<16x896xf32>
    %140 = arith.addf %138, %139 : vector<16x896xf32>
    %141 = vector.extract_strided_slice %133 {offsets = [32, 0], sizes = [16, 896], strides = [1, 1]} : vector<48x896xf32> to vector<16x896xf32>
    %c895_i32_59 = arith.constant 895 : i32
    %142 = tpu.dynamic_rotate %141 by %c895_i32_59 dim 1 : vector<16x896xf32>, i32 -> vector<16x896xf32>
    %143 = vector.broadcast %1 : vector<1x896xf32> to vector<16x896xf32>
    %144 = arith.mulf %142, %143 : vector<16x896xf32>
    %145 = arith.addf %140, %144 : vector<16x896xf32>
    %c96_60 = arith.constant 96 : index
    %c0_61 = arith.constant 0 : index
    %146 = vector.load %arg10[%c96_60, %c0_61] : memref<144x48xf32, #tpu.memory_space<vmem>>, vector<48x48xf32>
    %cst_62 = arith.constant dense<0.000000e+00> : vector<48x896xf32>
    %147 = tpu.matmul %146, %114, %cst_62 {dimension_numbers = #tpu.dot_dimension_numbers<[1], [0], [0], [1], [0, 0, 1, 1], [], []>} : vector<48x48xf32>, vector<48x896xf32>, vector<48x896xf32> -> vector<48x896xf32>
    %148 = vector.extract_strided_slice %147 {offsets = [0, 0], sizes = [16, 896], strides = [1, 1]} : vector<48x896xf32> to vector<16x896xf32>
    %c833_i32_63 = arith.constant 833 : i32
    %149 = tpu.dynamic_rotate %148 by %c833_i32_63 dim 1 : vector<16x896xf32>, i32 -> vector<16x896xf32>
    %150 = vector.broadcast %0 : vector<1x896xf32> to vector<16x896xf32>
    %151 = arith.mulf %149, %150 : vector<16x896xf32>
    %152 = arith.addf %145, %151 : vector<16x896xf32>
    %153 = vector.extract_strided_slice %147 {offsets = [16, 0], sizes = [16, 896], strides = [1, 1]} : vector<48x896xf32> to vector<16x896xf32>
    %c832_i32_64 = arith.constant 832 : i32
    %154 = tpu.dynamic_rotate %153 by %c832_i32_64 dim 1 : vector<16x896xf32>, i32 -> vector<16x896xf32>
    %155 = arith.addf %152, %154 : vector<16x896xf32>
    %156 = vector.extract_strided_slice %147 {offsets = [32, 0], sizes = [16, 896], strides = [1, 1]} : vector<48x896xf32> to vector<16x896xf32>
    %c831_i32_65 = arith.constant 831 : i32
    %157 = tpu.dynamic_rotate %156 by %c831_i32_65 dim 1 : vector<16x896xf32>, i32 -> vector<16x896xf32>
    %158 = vector.broadcast %1 : vector<1x896xf32> to vector<16x896xf32>
    %159 = arith.mulf %157, %158 : vector<16x896xf32>
    %160 = arith.addf %155, %159 : vector<16x896xf32>
    %cst_66 = arith.constant 1.000000e-01 : f32
    %161 = vector.broadcast %cst_66 : f32 to vector<16x896xf32>
    %162 = arith.mulf %161, %160 : vector<16x896xf32>
    %163 = arith.maximumf %160, %162 : vector<16x896xf32>
    %164 = vector.broadcast %3 : vector<1x896xf32> to vector<16x896xf32>
    %165 = arith.mulf %163, %164 : vector<16x896xf32>
    %c48_67 = arith.constant 48 : index
    %c0_68 = arith.constant 0 : index
    %166 = vector.load %arg15[%c48_67, %c0_68] : memref<64x896xf32, #tpu.memory_space<vmem>>, vector<16x896xf32>
    tpu.vector_store %arg15[%c48_67, %c0_68], %165 {strides = array<i32>} : memref<64x896xf32, #tpu.memory_space<vmem>>, vector<16x896xf32>,
    %c0_69 = arith.constant 0 : index
    %c192 = arith.constant 192 : index
    %167 = vector.load %arg15[%c0_69, %c192] : memref<64x896xf32, #tpu.memory_space<vmem>>, vector<64x512xf32>
    %c0_70 = arith.constant 0 : index
    %c0_71 = arith.constant 0 : index
    %168 = vector.load %arg12[%c0_70, %c0_71] : memref<16x64xf32, #tpu.memory_space<vmem>>, vector<16x64xf32>
    %cst_72 = arith.constant dense<0.000000e+00> : vector<16x512xf32>
    %169 = tpu.matmul %168, %167, %cst_72 {dimension_numbers = #tpu.dot_dimension_numbers<[1], [0], [0], [1], [0, 0, 1, 1], [], []>} : vector<16x64xf32>, vector<64x512xf32>, vector<16x512xf32> -> vector<16x512xf32>
    %c0_73 = arith.constant 0 : index
    %c0_74 = arith.constant 0 : index
    %170 = vector.load %arg13[%c0_73, %c0_74] : memref<16x1xf32, #tpu.memory_space<vmem>>, vector<16x1xf32>
    %171 = vector.broadcast %170 : vector<16x1xf32> to vector<16x512xf32>
    %172 = arith.addf %169, %171 : vector<16x512xf32>
    %173 = vector.extract_strided_slice %6 {offsets = [0, 192], sizes = [16, 512], strides = [1, 1]} : vector<16x896xf32> to vector<16x512xf32>
    %174 = arith.addf %172, %173 : vector<16x512xf32>
    %c0_75 = arith.constant 0 : index
    %c0_76 = arith.constant 0 : index
    %c0_77 = arith.constant 0 : index
    %175 = vector.load %arg14[%c0_75, %c0_76, %c0_77] : memref<1x16x512xf32, #tpu.memory_space<vmem>>, vector<1x16x512xf32>
    %176 = vector.shape_cast %175 : vector<1x16x512xf32> to vector<16x512xf32>
    %177 = vector.shape_cast %174 : vector<16x512xf32> to vector<1x16x512xf32>
    tpu.vector_store %arg14[%c0_75, %c0_76, %c0_77], %177 {strides = array<i32>} : memref<1x16x512xf32, #tpu.memory_space<vmem>>, vector<1x16x512xf32>,
    return
  }
  func.func @transform_1(%arg0: i32, %arg1: i32) -> (i32, i32) {
    %c0_i32 = arith.constant 0 : i32
    %c0_i32_0 = arith.constant 0 : i32
    %c0_i32_1 = arith.constant 0 : i32
    return %c0_i32, %c0_i32_0 : i32, i32
  }
  func.func @transform_2(%arg0: i32, %arg1: i32) -> (i32, i32) {
    %c0_i32 = arith.constant 0 : i32
    %c0_i32_0 = arith.constant 0 : i32
    %c0_i32_1 = arith.constant 0 : i32
    return %c0_i32, %c0_i32_0 : i32, i32
  }
  func.func @transform_3(%arg0: i32, %arg1: i32) -> (i32, i32, i32) {
    %c0_i32 = arith.constant 0 : i32
    %c0_i32_0 = arith.constant 0 : i32
    %c0_i32_1 = arith.constant 0 : i32
    return %arg1, %c0_i32, %c0_i32_0 : i32, i32, i32
  }
  func.func @transform_4(%arg0: i32, %arg1: i32) -> (i32, i32) {
    %c0_i32 = arith.constant 0 : i32
    %c0_i32_0 = arith.constant 0 : i32
    %c0_i32_1 = arith.constant 0 : i32
    return %c0_i32, %c0_i32_0 : i32, i32
  }
  func.func @transform_5(%arg0: i32, %arg1: i32) -> (i32, i32) {
    %c0_i32 = arith.constant 0 : i32
    %c0_i32_0 = arith.constant 0 : i32
    %c0_i32_1 = arith.constant 0 : i32
    return %c0_i32, %c0_i32_0 : i32, i32
  }
  func.func @transform_6(%arg0: i32, %arg1: i32) -> (i32, i32) {
    %c0_i32 = arith.constant 0 : i32
    %c0_i32_0 = arith.constant 0 : i32
    %c0_i32_1 = arith.constant 0 : i32
    return %c0_i32, %c0_i32_0 : i32, i32
  }
  func.func @transform_7(%arg0: i32, %arg1: i32) -> (i32, i32) {
    %c0_i32 = arith.constant 0 : i32
    %c0_i32_0 = arith.constant 0 : i32
    %c0_i32_1 = arith.constant 0 : i32
    return %c0_i32, %c0_i32_0 : i32, i32
  }
  func.func @transform_8(%arg0: i32, %arg1: i32) -> (i32, i32) {
    %c0_i32 = arith.constant 0 : i32
    %c0_i32_0 = arith.constant 0 : i32
    %c0_i32_1 = arith.constant 0 : i32
    return %c0_i32, %c0_i32_0 : i32, i32
  }
  func.func @transform_9(%arg0: i32, %arg1: i32) -> (i32, i32) {
    %c0_i32 = arith.constant 0 : i32
    %c0_i32_0 = arith.constant 0 : i32
    %c0_i32_1 = arith.constant 0 : i32
    return %c0_i32, %c0_i32_0 : i32, i32
  }
  func.func @transform_10(%arg0: i32, %arg1: i32) -> (i32, i32) {
    %c0_i32 = arith.constant 0 : i32
    %c0_i32_0 = arith.constant 0 : i32
    %c0_i32_1 = arith.constant 0 : i32
    return %c0_i32, %c0_i32_0 : i32, i32
  }
  func.func @transform_11(%arg0: i32, %arg1: i32) -> (i32, i32) {
    %c0_i32 = arith.constant 0 : i32
    %c0_i32_0 = arith.constant 0 : i32
    %c0_i32_1 = arith.constant 0 : i32
    return %c0_i32, %c0_i32_0 : i32, i32
  }
  func.func @transform_12(%arg0: i32, %arg1: i32) -> (i32, i32, i32) {
    %c0_i32 = arith.constant 0 : i32
    %c0_i32_0 = arith.constant 0 : i32
    return %arg0, %c0_i32, %arg1 : i32, i32, i32
  }
}

</mosaic_0001>

<llo_original>
// kernel: rdb_forward_nchw.1
$region0: #{rdb_forward_nchw.1}
  #allocation0 [shape = 'u32[]', space=smem, size = 0x4, offset = 0x4, fixed_abs, tag = 'smem constant byte address 0x4 - core index']
  #allocation1 [shape = 'u32[144,128]{1,0:T(1,128)}', space=vmem, size = 0x12000, scoped, tag = 'internal scratch']
  #allocation2 [shape = 'f32[64,896]{1,0:T(8,128)}', space=vmem, size = 0x38000, scoped, tag = 'scratch operand']
  #allocation3 [shape = 'f32[16,896]{1,0:T(8,128)}', space=vmem, size = 0xe000, scoped, tag = 'scratch operand']
  #allocation6 [shape = 's32[]', space=sflag, size = 0x4, offset = 0, fixed_abs, tag = 'sflag constant byte address 0x0 - dummy sync flag']
  %s0 = inlined_call_operand.vmem [shape: f32[2,16,1408], index: 0, kind: input, shape index: {}]
  %s1 = inlined_call_operand.vmem [shape: f32[1,896], index: 1, kind: input, shape index: {}]
  %s2 = inlined_call_operand.vmem [shape: f32[1,896], index: 2, kind: input, shape index: {}]
  %s3 = inlined_call_operand.vmem [shape: f32[2,1,896], index: 3, kind: input, shape index: {}]
  %s4 = inlined_call_operand.vmem [shape: f32[144,16], index: 4, kind: input, shape index: {}]
  %s5 = inlined_call_operand.vmem [shape: f32[16,1], index: 5, kind: input, shape index: {}]
  %s6 = inlined_call_operand.vmem [shape: f32[144,32], index: 6, kind: input, shape index: {}]
  %s7 = inlined_call_operand.vmem [shape: f32[16,1], index: 7, kind: input, shape index: {}]
  %s8 = inlined_call_operand.vmem [shape: f32[144,48], index: 8, kind: input, shape index: {}]
  %s9 = inlined_call_operand.vmem [shape: f32[16,1], index: 9, kind: input, shape index: {}]
  %s10 = inlined_call_operand.vmem [shape: f32[16,64], index: 10, kind: input, shape index: {}]
  %s11 = inlined_call_operand.vmem [shape: f32[16,1], index: 11, kind: input, shape index: {}]
  %s12 = inlined_call_operand.vmem [shape: f32[2,16,1024], index: 12, kind: output, shape index: {}]
  %s13 = sld [smem:[#allocation0]]
  $region131: #{rdb_forward_nchw.1} parent=0
    _
  %s15 = ssub.s32 1, %s13
  %s16 = scalar_select 0, %s15, %s13
  $region1: #{rdb_forward_nchw.1} parent=0
    #allocation4 [shape = 'u8[65536]{0}', space=vmem, size = 0x10000, scoped, tag = 'output window, operand 0']
    loop: start=0, step=1, limit=6
    $region2: #{rdb_forward_nchw.1} parent=1 // loop_pre_header
      _
    $region3: #{rdb_forward_nchw.1} parent=1 // loop_header
      %s18 = sphi 0, %s22
      %p19 = scmp.ge.s32.totalorder %s18, 6
      %s25 = sphi 0, %s37
      %s26 = sphi 0, %s33
      %s27 = sphi 0, %s25
      %s28 = sphi 0, %s26
      %s29 = sphi 0, %s27
      %s30 = sphi 0, %s28
      %s38 = sphi 0, %s38
      %s40 = sphi 0, %s38
      %s41 = sphi 0, %s40
      %s55 = sphi 0, %s41
      %s59 = sphi 0, %s59
      %s61 = sphi 0, %s59
      %s62 = sphi 0, %s61
      %s76 = sphi 0, %s62
      %s82 = sphi 0, %s84
      %s85 = sphi 0, %s82
      %s86 = sphi 0, %s85
      %s102 = sphi 0, %s86
      %s106 = sphi 0, %s106
      %s108 = sphi 0, %s106
      %s109 = sphi 0, %s108
      %s123 = sphi 0, %s109
      %s127 = sphi 0, %s127
      %s129 = sphi 0, %s127
      %s130 = sphi 0, %s129
      %s144 = sphi 0, %s130
      %s148 = sphi 0, %s148
      %s150 = sphi 0, %s148
      %s151 = sphi 0, %s150
      %s165 = sphi 0, %s151
      %s169 = sphi 0, %s169
      %s171 = sphi 0, %s169
      %s172 = sphi 0, %s171
      %s186 = sphi 0, %s172
      %s190 = sphi 0, %s190
      %s192 = sphi 0, %s190
      %s193 = sphi 0, %s192
      %s207 = sphi 0, %s193
      %s211 = sphi 0, %s211
      %s213 = sphi 0, %s211
      %s214 = sphi 0, %s213
      %s228 = sphi 0, %s214
      %s232 = sphi 0, %s232
      %s234 = sphi 0, %s232
      %s235 = sphi 0, %s234
      %s249 = sphi 0, %s235
      %s253 = sphi 0, %s253
      %s255 = sphi 0, %s253
      %s256 = sphi 0, %s255
      %s270 = sphi 0, %s256
      %s278 = sphi 0, %s280
      %s281 = sphi 0, %s278
      %s282 = sphi 0, %s281
      %s298 = sphi 0, %s282
    $region4: #{rdb_forward_nchw.1} parent=1 // loop_header_branch
      %21 = sbr.rel (%p19) target = $region8
    $region5: #{rdb_forward_nchw.1} parent=1 // loop_body
      %s23 = ssub.s32 %s18, 1
      %s24 = ssub.s32 %s18, 2
      %s31 = sadd.s32 1, %s26
      %p32 = scmp.ge.s32.totalorder %s31, 2
      %s33 = scalar_select %p32, 0, %s31
      %s34 = sadd.s32 1, %s25
      %s35 = scalar_select %p32, %s34, %s25
      %p36 = scmp.ge.s32.totalorder %s35, 2
      %s37 = scalar_select %p36, 0, %s35
      %s39 = sadd.s32 %s38, 1
      %p42 = scmp.eq.s32.totalorder %s18, 3
      %p43 = scmp.ne.s32.totalorder %s38, %s40
      %p44 = scmp.eq.s32.totalorder %s18, 0
      %p45 = por %p43, %p44
      %p46 = scmp.ne.s32.totalorder %s38, %s40
      %p47 = scmp.eq.s32.totalorder %s23, 3
      %p48 = por %p46, %p47
      %p49 = scmp.ne.s32.totalorder %s40, %s41
      %p50 = scmp.eq.s32.totalorder %s23, 0
      %p51 = por %p49, %p50
      %p52 = scmp.ne.s32.totalorder %s40, %s41
      %p53 = scmp.eq.s32.totalorder %s24, 3
      %p54 = por %p52, %p53
      %p56 = scmp.ne.s32.totalorder %s41, %s55
      %p57 = scmp.eq.s32.totalorder %s24, 0
      %p58 = por %p56, %p57
      %s60 = sadd.s32 %s59, 1
      %p63 = scmp.eq.s32.totalorder %s18, 3
      %p64 = scmp.ne.s32.totalorder %s59, %s61
      %p65 = scmp.eq.s32.totalorder %s18, 0
      %p66 = por %p64, %p65
      %p67 = scmp.ne.s32.totalorder %s59, %s61
      %p68 = scmp.eq.s32.totalorder %s23, 3
      %p69 = por %p67, %p68
      %p70 = scmp.ne.s32.totalorder %s61, %s62
      %p71 = scmp.eq.s32.totalorder %s23, 0
      %p72 = por %p70, %p71
      %p73 = scmp.ne.s32.totalorder %s61, %s62
      %p74 = scmp.eq.s32.totalorder %s24, 3
      %p75 = por %p73, %p74
      %p77 = scmp.ne.s32.totalorder %s62, %s76
      %p78 = scmp.eq.s32.totalorder %s24, 0
      %p79 = por %p77, %p78
      %s80 = ssub.s32 %s26, %s33
      %p81 = scmp.eq.s32.totalorder %s80, 0
      %s83 = sadd.s32 %s82, 1
      %s84 = scalar_select %p81, %s82, %s83
      %p87 = pneg %p81
      %p88 = scmp.eq.s32.totalorder %s18, 3
      %p89 = por %p87, %p88
      %p90 = scmp.ne.s32.totalorder %s82, %s85
      %p91 = scmp.eq.s32.totalorder %s18, 0
      %p92 = por %p90, %p91
      %p93 = scmp.ne.s32.totalorder %s82, %s85
      %p94 = scmp.eq.s32.totalorder %s23, 3
      %p95 = por %p93, %p94
      %p96 = scmp.ne.s32.totalorder %s85, %s86
      %p97 = scmp.eq.s32.totalorder %s23, 0
      %p98 = por %p96, %p97
      %p99 = scmp.ne.s32.totalorder %s85, %s86
      %p100 = scmp.eq.s32.totalorder %s24, 3
      %p101 = por %p99, %p100
      %p103 = scmp.ne.s32.totalorder %s86, %s102
      %p104 = scmp.eq.s32.totalorder %s24, 0
      %p105 = por %p103, %p104
      %s107 = sadd.s32 %s106, 1
      %p110 = scmp.eq.s32.totalorder %s18, 3
      %p111 = scmp.ne.s32.totalorder %s106, %s108
      %p112 = scmp.eq.s32.totalorder %s18, 0
      %p113 = por %p111, %p112
      %p114 = scmp.ne.s32.totalorder %s106, %s108
      %p115 = scmp.eq.s32.totalorder %s23, 3
      %p116 = por %p114, %p115
      %p117 = scmp.ne.s32.totalorder %s108, %s109
      %p118 = scmp.eq.s32.totalorder %s23, 0
      %p119 = por %p117, %p118
      %p120 = scmp.ne.s32.totalorder %s108, %s109
      %p121 = scmp.eq.s32.totalorder %s24, 3
      %p122 = por %p120, %p121
      %p124 = scmp.ne.s32.totalorder %s109, %s123
      %p125 = scmp.eq.s32.totalorder %s24, 0
      %p126 = por %p124, %p125
      %s128 = sadd.s32 %s127, 1
      %p131 = scmp.eq.s32.totalorder %s18, 3
      %p132 = scmp.ne.s32.totalorder %s127, %s129
      %p133 = scmp.eq.s32.totalorder %s18, 0
      %p134 = por %p132, %p133
      %p135 = scmp.ne.s32.totalorder %s127, %s129
      %p136 = scmp.eq.s32.totalorder %s23, 3
      %p137 = por %p135, %p136
      %p138 = scmp.ne.s32.totalorder %s129, %s130
      %p139 = scmp.eq.s32.totalorder %s23, 0
      %p140 = por %p138, %p139
      %p141 = scmp.ne.s32.totalorder %s129, %s130
      %p142 = scmp.eq.s32.totalorder %s24, 3
      %p143 = por %p141, %p142
      %p145 = scmp.ne.s32.totalorder %s130, %s144
      %p146 = scmp.eq.s32.totalorder %s24, 0
      %p147 = por %p145, %p146
      %s149 = sadd.s32 %s148, 1
      %p152 = scmp.eq.s32.totalorder %s18, 3
      %p153 = scmp.ne.s32.totalorder %s148, %s150
      %p154 = scmp.eq.s32.totalorder %s18, 0
      %p155 = por %p153, %p154
      %p156 = scmp.ne.s32.totalorder %s148, %s150
      %p157 = scmp.eq.s32.totalorder %s23, 3
      %p158 = por %p156, %p157
      %p159 = scmp.ne.s32.totalorder %s150, %s151
      %p160 = scmp.eq.s32.totalorder %s23, 0
      %p161 = por %p159, %p160
      %p162 = scmp.ne.s32.totalorder %s150, %s151
      %p163 = scmp.eq.s32.totalorder %s24, 3
      %p164 = por %p162, %p163
      %p166 = scmp.ne.s32.totalorder %s151, %s165
      %p167 = scmp.eq.s32.totalorder %s24, 0
      %p168 = por %p166, %p167
      %s170 = sadd.s32 %s169, 1
      %p173 = scmp.eq.s32.totalorder %s18, 3
      %p174 = scmp.ne.s32.totalorder %s169, %s171
      %p175 = scmp.eq.s32.totalorder %s18, 0
      %p176 = por %p174, %p175
      %p177 = scmp.ne.s32.totalorder %s169, %s171
      %p178 = scmp.eq.s32.totalorder %s23, 3
      %p179 = por %p177, %p178
      %p180 = scmp.ne.s32.totalorder %s171, %s172
      %p181 = scmp.eq.s32.totalorder %s23, 0
      %p182 = por %p180, %p181
      %p183 = scmp.ne.s32.totalorder %s171, %s172
      %p184 = scmp.eq.s32.totalorder %s24, 3
      %p185 = por %p183, %p184
      %p187 = scmp.ne.s32.totalorder %s172, %s186
      %p188 = scmp.eq.s32.totalorder %s24, 0
      %p189 = por %p187, %p188
      %s191 = sadd.s32 %s190, 1
      %p194 = scmp.eq.s32.totalorder %s18, 3
      %p195 = scmp.ne.s32.totalorder %s190, %s192
      %p196 = scmp.eq.s32.totalorder %s18, 0
      %p197 = por %p195, %p196
      %p198 = scmp.ne.s32.totalorder %s190, %s192
      %p199 = scmp.eq.s32.totalorder %s23, 3
      %p200 = por %p198, %p199
      %p201 = scmp.ne.s32.totalorder %s192, %s193
      %p202 = scmp.eq.s32.totalorder %s23, 0
      %p203 = por %p201, %p202
      %p204 = scmp.ne.s32.totalorder %s192, %s193
      %p205 = scmp.eq.s32.totalorder %s24, 3
      %p206 = por %p204, %p205
      %p208 = scmp.ne.s32.totalorder %s193, %s207
      %p209 = scmp.eq.s32.totalorder %s24, 0
      %p210 = por %p208, %p209
      %s212 = sadd.s32 %s211, 1
      %p215 = scmp.eq.s32.totalorder %s18, 3
      %p216 = scmp.ne.s32.totalorder %s211, %s213
      %p217 = scmp.eq.s32.totalorder %s18, 0
      %p218 = por %p216, %p217
      %p219 = scmp.ne.s32.totalorder %s211, %s213
      %p220 = scmp.eq.s32.totalorder %s23, 3
      %p221 = por %p219, %p220
      %p222 = scmp.ne.s32.totalorder %s213, %s214
      %p223 = scmp.eq.s32.totalorder %s23, 0
      %p224 = por %p222, %p223
      %p225 = scmp.ne.s32.totalorder %s213, %s214
      %p226 = scmp.eq.s32.totalorder %s24, 3
      %p227 = por %p225, %p226
      %p229 = scmp.ne.s32.totalorder %s214, %s228
      %p230 = scmp.eq.s32.totalorder %s24, 0
      %p231 = por %p229, %p230
      %s233 = sadd.s32 %s232, 1
      %p236 = scmp.eq.s32.totalorder %s18, 3
      %p237 = scmp.ne.s32.totalorder %s232, %s234
      %p238 = scmp.eq.s32.totalorder %s18, 0
      %p239 = por %p237, %p238
      %p240 = scmp.ne.s32.totalorder %s232, %s234
      %p241 = scmp.eq.s32.totalorder %s23, 3
      %p242 = por %p240, %p241
      %p243 = scmp.ne.s32.totalorder %s234, %s235
      %p244 = scmp.eq.s32.totalorder %s23, 0
      %p245 = por %p243, %p244
      %p246 = scmp.ne.s32.totalorder %s234, %s235
      %p247 = scmp.eq.s32.totalorder %s24, 3
      %p248 = por %p246, %p247
      %p250 = scmp.ne.s32.totalorder %s235, %s249
      %p251 = scmp.eq.s32.totalorder %s24, 0
      %p252 = por %p250, %p251
      %s254 = sadd.s32 %s253, 1
      %p257 = scmp.eq.s32.totalorder %s18, 3
      %p258 = scmp.ne.s32.totalorder %s253, %s255
      %p259 = scmp.eq.s32.totalorder %s18, 0
      %p260 = por %p258, %p259
      %p261 = scmp.ne.s32.totalorder %s253, %s255
      %p262 = scmp.eq.s32.totalorder %s23, 3
      %p263 = por %p261, %p262
      %p264 = scmp.ne.s32.totalorder %s255, %s256
      %p265 = scmp.eq.s32.totalorder %s23, 0
      %p266 = por %p264, %p265
      %p267 = scmp.ne.s32.totalorder %s255, %s256
      %p268 = scmp.eq.s32.totalorder %s24, 3
      %p269 = por %p267, %p268
      %p271 = scmp.ne.s32.totalorder %s256, %s270
      %p272 = scmp.eq.s32.totalorder %s24, 0
      %p273 = por %p271, %p272
      %s274 = ssub.s32 %s25, %s37
      %s275 = ssub.s32 %s26, %s33
      %s276 = sor.u32 %s274, %s275
      %p277 = scmp.eq.s32.totalorder %s276, 0
      %s279 = sadd.s32 %s278, 1
      %s280 = scalar_select %p277, %s278, %s279
      %p283 = pneg %p277
      %p284 = scmp.eq.s32.totalorder %s18, 3
      %p285 = por %p283, %p284
      %p286 = scmp.ne.s32.totalorder %s278, %s281
      %p287 = scmp.eq.s32.totalorder %s18, 0
      %p288 = por %p286, %p287
      %p289 = scmp.ne.s32.totalorder %s278, %s281
      %p290 = scmp.eq.s32.totalorder %s23, 3
      %p291 = por %p289, %p290
      %p292 = scmp.ne.s32.totalorder %s281, %s282
      %p293 = scmp.eq.s32.totalorder %s23, 0
      %p294 = por %p292, %p293
      %p295 = scmp.ne.s32.totalorder %s281, %s282
      %p296 = scmp.eq.s32.totalorder %s24, 3
      %p297 = por %p295, %p296
      %p299 = scmp.ne.s32.totalorder %s282, %s298
      %p300 = scmp.eq.s32.totalorder %s24, 0
      %p301 = por %p299, %p300
      %p302 = scmp.le.s32.totalorder 1, %s18
      %p303 = scmp.lt.s32.totalorder %s18, 5
      %p304 = pnand %p302, %p303
      %p305 = pneg %p304
      // Predicated region
      $region9: #{rdb_forward_nchw.1} parent=5 // pred_check
        _
      $region10: #{rdb_forward_nchw.1} parent=5 // pred_check_branch
        %307 = sbr.rel (%p304) target = $region12
      $region11: #{rdb_forward_nchw.1} parent=5 // pred_region
        %s308 = ssub.s32 %s18, 1
        // Predicated region
        $region13: #{rdb_forward_nchw.1} parent=11 // pred_check
          %p309 = pneg %p51
        $region14: #{rdb_forward_nchw.1} parent=11 // pred_check_branch
          %311 = sbr.rel (%p309) target = $region16
        $region15: #{rdb_forward_nchw.1} parent=11 // pred_region
          _
        $region16: #{rdb_forward_nchw.1} parent=11 // pred_fallthru
          _
        // Predicated region
        $region17: #{rdb_forward_nchw.1} parent=11 // pred_check
          %p312 = pneg %p72
        $region18: #{rdb_forward_nchw.1} parent=11 // pred_check_branch
          %314 = sbr.rel (%p312) target = $region20
        $region19: #{rdb_forward_nchw.1} parent=11 // pred_region
          _
        $region20: #{rdb_forward_nchw.1} parent=11 // pred_fallthru
          _
        // Predicated region
        $region21: #{rdb_forward_nchw.1} parent=11 // pred_check
          %p315 = pneg %p119
        $region22: #{rdb_forward_nchw.1} parent=11 // pred_check_branch
          %317 = sbr.rel (%p315) target = $region24
        $region23: #{rdb_forward_nchw.1} parent=11 // pred_region
          _
        $region24: #{rdb_forward_nchw.1} parent=11 // pred_fallthru
          _
        // Predicated region
        $region25: #{rdb_forward_nchw.1} parent=11 // pred_check
          %p318 = pneg %p140
        $region26: #{rdb_forward_nchw.1} parent=11 // pred_check_branch
          %320 = sbr.rel (%p318) target = $region28
        $region27: #{rdb_forward_nchw.1} parent=11 // pred_region
          _
        $region28: #{rdb_forward_nchw.1} parent=11 // pred_fallthru
          _
        // Predicated region
        $region29: #{rdb_forward_nchw.1} parent=11 // pred_check
          %p321 = pneg %p161
        $region30: #{rdb_forward_nchw.1} parent=11 // pred_check_branch
          %323 = sbr.rel (%p321) target = $region32
        $region31: #{rdb_forward_nchw.1} parent=11 // pred_region
          _
        $region32: #{rdb_forward_nchw.1} parent=11 // pred_fallthru
          _
        // Predicated region
        $region33: #{rdb_forward_nchw.1} parent=11 // pred_check
          %p324 = pneg %p182
        $region34: #{rdb_forward_nchw.1} parent=11 // pred_check_branch
          %326 = sbr.rel (%p324) target = $region36
        $region35: #{rdb_forward_nchw.1} parent=11 // pred_region
          _
        $region36: #{rdb_forward_nchw.1} parent=11 // pred_fallthru
          _
        // Predicated region
        $region37: #{rdb_forward_nchw.1} parent=11 // pred_check
          %p327 = pneg %p203
        $region38: #{rdb_forward_nchw.1} parent=11 // pred_check_branch
          %329 = sbr.rel (%p327) target = $region40
        $region39: #{rdb_forward_nchw.1} parent=11 // pred_region
          _
        $region40: #{rdb_forward_nchw.1} parent=11 // pred_fallthru
          _
        // Predicated region
        $region41: #{rdb_forward_nchw.1} parent=11 // pred_check
          %p330 = pneg %p224
        $region42: #{rdb_forward_nchw.1} parent=11 // pred_check_branch
          %332 = sbr.rel (%p330) target = $region44
        $region43: #{rdb_forward_nchw.1} parent=11 // pred_region
          _
        $region44: #{rdb_forward_nchw.1} parent=11 // pred_fallthru
          _
        // Predicated region
        $region45: #{rdb_forward_nchw.1} parent=11 // pred_check
          %p333 = pneg %p245
        $region46: #{rdb_forward_nchw.1} parent=11 // pred_check_branch
          %335 = sbr.rel (%p333) target = $region48
        $region47: #{rdb_forward_nchw.1} parent=11 // pred_region
          _
        $region48: #{rdb_forward_nchw.1} parent=11 // pred_fallthru
          _
        // Predicated region
        $region49: #{rdb_forward_nchw.1} parent=11 // pred_check
          %p336 = pneg %p266
        $region50: #{rdb_forward_nchw.1} parent=11 // pred_check_branch
          %338 = sbr.rel (%p336) target = $region52
        $region51: #{rdb_forward_nchw.1} parent=11 // pred_region
          _
        $region52: #{rdb_forward_nchw.1} parent=11 // pred_fallthru
          _
      $region12: #{rdb_forward_nchw.1} parent=5 // pred_fallthru
        _
      %p339 = scmp.lt.s32.totalorder %s18, 4
      // Predicated region
      $region53: #{rdb_forward_nchw.1} parent=5 // pred_check
        %p340 = pneg %p339
      $region54: #{rdb_forward_nchw.1} parent=5 // pred_check_branch
        %342 = sbr.rel (%p340) target = $region56
      $region55: #{rdb_forward_nchw.1} parent=5 // pred_region
        // Predicated region
        $region57: #{rdb_forward_nchw.1} parent=55 // pred_check
          %p343 = pneg %p92
        $region58: #{rdb_forward_nchw.1} parent=55 // pred_check_branch
          %345 = sbr.rel (%p343) target = $region60
        $region59: #{rdb_forward_nchw.1} parent=55 // pred_region
          %p346 = scmp.lt.s32.totalorder %s26, 1
          %s347 = scalar_select %p346, %s26, 1
          %s348 = smul.addr %s347, 7
          %s349 = scalar_lea.vmem %s3, %s348
        $region60: #{rdb_forward_nchw.1} parent=55 // pred_fallthru
          _
      $region56: #{rdb_forward_nchw.1} parent=5 // pred_fallthru
        _
      %p350 = scmp.le.s32.totalorder 1, %s18
      %p351 = scmp.lt.s32.totalorder %s18, 5
      %p352 = pnand %p350, %p351
      %p353 = pneg %p352
      // Predicated region
      $region61: #{rdb_forward_nchw.1} parent=5 // pred_check
        _
      $region62: #{rdb_forward_nchw.1} parent=5 // pred_check_branch
        %355 = sbr.rel (%p352) target = $region64
      $region63: #{rdb_forward_nchw.1} parent=5 // pred_region
        %s356 = ssub.s32 %s18, 1
        %p357 = pneg %p51
        %p358 = pneg %p48
        %p359 = pneg %p72
        %p360 = pneg %p69
        %p361 = scmp.lt.s32.totalorder %s28, 1
        %s362 = scalar_select %p361, %s28, 1
        %s363 = smul.addr %s362, 7
        %s364 = scalar_lea.vmem %s3, %s363
        %p365 = pneg %p98
        %p366 = pneg %p95
        %p367 = pneg %p119
        %p368 = pneg %p116
        %p369 = pneg %p140
        %p370 = pneg %p137
        %p371 = pneg %p161
        %p372 = pneg %p158
        %p373 = pneg %p182
        %p374 = pneg %p179
        %p375 = pneg %p203
        %p376 = pneg %p200
        %p377 = pneg %p224
        %p378 = pneg %p221
        %p379 = pneg %p245
        %p380 = pneg %p242
        %p381 = pneg %p266
        %p382 = pneg %p263
        %p383 = pneg %p294
        %p384 = pneg %p291
        %s385 = sand.u32 %s281, 1
        %s386 = sand.u32 %s281, 1
        %s387 = smul.addr %s386, 64
        %s388 = scalar_lea.vmem [#allocation4], %s387
        %p389 = scmp.lt.s32.totalorder %s28, 1
        %s390 = scalar_select %p389, %s28, 1
        %s391 = smul.addr %s390, 7
        %s392 = scalar_lea.vmem %s3, %s391
        %s393 = smul.u32 4, %s28
        %v394 = vld [vmem:[%s1] sm:$0xff]
        %v395 = vld [vmem:[%s2] sm:$0xff]
        %v396 = vld [vmem:[%s392] sm:$0xff]
        %s397 = smul.u32 %s28, 512
        $region65: #{rdb_forward_nchw.1} parent=63
          #allocation5 [shape = 's32[1]{0}', space=sflag, size = 0x4, scoped, tag = 'scoped memory for rdb_forward_nchw.1']
          %s398 = sshra.s32 %s397, 7
          %s399 = sand.u32 %s397, 127
          %s400 = smul.u32 %s27, 22
          %s401 = sadd.s32 %s398, %s400
          %s402 = smul.addr %s401, 8
          %s403 = scalar_lea.vmem %s0, %s402
          %p405 = scmp.lt.u32.totalorder 56, 8
          %p406 = pneg %p405
          // Predicated region
          $region66: #{rdb_forward_nchw.1} parent=65 // pred_check
            _
          $region67: #{rdb_forward_nchw.1} parent=65 // pred_check_branch
            %408 = sbr.rel (%p405) target = $region69
          $region68: #{rdb_forward_nchw.1} parent=65 // pred_region
            %s425 = sand.u32 56, 7
            %p426 = scmp.eq.s32.totalorder %s425, 0
            // Predicated region
            $region81: #{rdb_forward_nchw.1} parent=68 // pred_check
              %p427 = pneg %p426
            $region82: #{rdb_forward_nchw.1} parent=68 // pred_check_branch
              %429 = sbr.rel (%p427) target = $region84
            $region83: #{rdb_forward_nchw.1} parent=68 // pred_region
              loop: start=0, step=1, limit=1
              $region85: #{rdb_forward_nchw.1} parent=83 // loop_pre_header
                _
              $region86: #{rdb_forward_nchw.1} parent=83 // loop_header
                %s431 = sphi 0, %s435
                %p432 = scmp.ge.s32.totalorder %s431, 1
                %s436 = sphi %s403, %s403
                %s437 = sphi [#allocation3], [#allocation3]
              $region87: #{rdb_forward_nchw.1} parent=83 // loop_header_branch
                %434 = sbr.rel (%p432) target = $region91
              $region88: #{rdb_forward_nchw.1} parent=83 // loop_body
                %v438 = vld [vmem:[%s436] sm:$0xff]
                %439 = vst [vmem:[%s437] sm:$0xff] %v438
                %v440 = vld [vmem:[%s436 + $0x8] sm:$0xff]
                %441 = vst [vmem:[%s437 + $0x8] sm:$0xff] %v440
                %v442 = vld [vmem:[%s436 + $0x10] sm:$0xff]
                %443 = vst [vmem:[%s437 + $0x10] sm:$0xff] %v442
                %v444 = vld [vmem:[%s436 + $0x18] sm:$0xff]
                %445 = vst [vmem:[%s437 + $0x18] sm:$0xff] %v444
                %v446 = vld [vmem:[%s436 + $0x20] sm:$0xff]
                %447 = vst [vmem:[%s437 + $0x20] sm:$0xff] %v446
                %v448 = vld [vmem:[%s436 + $0x28] sm:$0xff]
                %449 = vst [vmem:[%s437 + $0x28] sm:$0xff] %v448
                %v450 = vld [vmem:[%s436 + $0x30] sm:$0xff]
                %451 = vst [vmem:[%s437 + $0x30] sm:$0xff] %v450
                %v452 = vld [vmem:[%s436 + $0x58] sm:$0xff]
                %453 = vst [vmem:[%s437 + $0x38] sm:$0xff] %v452
                %v454 = vld [vmem:[%s436 + $0x60] sm:$0xff]
                %455 = vst [vmem:[%s437 + $0x40] sm:$0xff] %v454
                %v456 = vld [vmem:[%s436 + $0x68] sm:$0xff]
                %457 = vst [vmem:[%s437 + $0x48] sm:$0xff] %v456
                %v458 = vld [vmem:[%s436 + $0x70] sm:$0xff]
                %459 = vst [vmem:[%s437 + $0x50] sm:$0xff] %v458
                %v460 = vld [vmem:[%s436 + $0x78] sm:$0xff]
                %461 = vst [vmem:[%s437 + $0x58] sm:$0xff] %v460
                %v462 = vld [vmem:[%s436 + $0x80] sm:$0xff]
                %463 = vst [vmem:[%s437 + $0x60] sm:$0xff] %v462
                %v464 = vld [vmem:[%s436 + $0x88] sm:$0xff]
                %465 = vst [vmem:[%s437 + $0x68] sm:$0xff] %v464
              $region89: #{rdb_forward_nchw.1} parent=83 // loop_footer
                %s435 = sadd.s32 1, %s431
              $region90: #{rdb_forward_nchw.1} parent=83 // loop_footer_branch
                %430 = sbr.rel target = $region86
              $region91: #{rdb_forward_nchw.1} parent=83 // loop_exit
                _
            $region84: #{rdb_forward_nchw.1} parent=68 // pred_fallthru
              _
            %p466 = pneg %p426
            // Predicated region
            $region92: #{rdb_forward_nchw.1} parent=68 // pred_check
              _
            $region93: #{rdb_forward_nchw.1} parent=68 // pred_check_branch
              %468 = sbr.rel (%p426) target = $region95
            $region94: #{rdb_forward_nchw.1} parent=68 // pred_region
              %s469 = sand.u32 56, 7
            $region95: #{rdb_forward_nchw.1} parent=68 // pred_fallthru
              _
          $region69: #{rdb_forward_nchw.1} parent=65 // pred_fallthru
            _
          // Predicated region
          $region70: #{rdb_forward_nchw.1} parent=65 // pred_check
            %p409 = pneg %p405
          $region71: #{rdb_forward_nchw.1} parent=65 // pred_check_branch
            %411 = sbr.rel (%p409) target = $region73
          $region72: #{rdb_forward_nchw.1} parent=65 // pred_region
            %s412 = sshllo.u32 0, 56
            loop: start=0, step=1, limit=1
            $region74: #{rdb_forward_nchw.1} parent=72 // loop_pre_header
              _
            $region75: #{rdb_forward_nchw.1} parent=72 // loop_header
              %s414 = sphi 0, %s418
              %p415 = scmp.ge.s32.totalorder %s414, 1
              %s419 = sphi %s403, %s403
              %s420 = sphi [#allocation3], [#allocation3]
            $region76: #{rdb_forward_nchw.1} parent=72 // loop_header_branch
              %417 = sbr.rel (%p415) target = $region80
            $region77: #{rdb_forward_nchw.1} parent=72 // loop_body
              %v421 = vld [vmem:[%s419] sm:%s412]
              %422 = vst [vmem:[%s420] sm:%s412] %v421
              %v423 = vld [vmem:[%s419 + $0x58] sm:%s412]
              %424 = vst [vmem:[%s420 + $0x38] sm:%s412] %v423
            $region78: #{rdb_forward_nchw.1} parent=72 // loop_footer
              %s418 = sadd.s32 1, %s414
            $region79: #{rdb_forward_nchw.1} parent=72 // loop_footer_branch
              %413 = sbr.rel target = $region75
            $region80: #{rdb_forward_nchw.1} parent=72 // loop_exit
              _
          $region73: #{rdb_forward_nchw.1} parent=65 // pred_fallthru
            _
          // Predicated region
          $region96: #{rdb_forward_nchw.1} parent=65 // pred_check
            _
          $region97: #{rdb_forward_nchw.1} parent=65 // pred_check_branch
            %472 = sbr.rel (0) target = $region99
          $region98: #{rdb_forward_nchw.1} parent=65 // pred_region
            %473 = vsyncadd [#allocation5], 1792
          $region99: #{rdb_forward_nchw.1} parent=65 // pred_fallthru
            _
          %s474 = smul.u32 8, 2
          %s475 = smul.u32 %s474, 7
          %s476 = sshll.u32 %s475, 4
          %477 = dma.done [#allocation5], %s476
        %v478 = vld [vmem:[#allocation3] sm:$0xff]
        %v479 = vld [vmem:[#allocation3 + $0x8] sm:$0xff]
        %v480 = vld [vmem:[#allocation3 + $0x10] sm:$0xff]
        %v481 = vld [vmem:[#allocation3 + $0x18] sm:$0xff]
        %v482 = vld [vmem:[#allocation3 + $0x20] sm:$0xff]
        %v483 = vld [vmem:[#allocation3 + $0x28] sm:$0xff]
        %v484 = vld [vmem:[#allocation3 + $0x30] sm:$0xff]
        %v485 = vld [vmem:[#allocation3 + $0x38] sm:$0xff]
        %v486 = vld [vmem:[#allocation3 + $0x40] sm:$0xff]
        %v487 = vld [vmem:[#allocation3 + $0x48] sm:$0xff]
        %v488 = vld [vmem:[#allocation3 + $0x50] sm:$0xff]
        %v489 = vld [vmem:[#allocation3 + $0x58] sm:$0xff]
        %v490 = vld [vmem:[#allocation3 + $0x60] sm:$0xff]
        %v491 = vld [vmem:[#allocation3 + $0x68] sm:$0xff]
        %492 = vst [vmem:[#allocation2] sm:$0xff] %v478
        %493 = vst [vmem:[#allocation2 + $0x8] sm:$0xff] %v479
        %494 = vst [vmem:[#allocation2 + $0x10] sm:$0xff] %v480
        %495 = vst [vmem:[#allocation2 + $0x18] sm:$0xff] %v481
        %496 = vst [vmem:[#allocation2 + $0x20] sm:$0xff] %v482
        %497 = vst [vmem:[#allocation2 + $0x28] sm:$0xff] %v483
        %498 = vst [vmem:[#allocation2 + $0x30] sm:$0xff] %v484
        %499 = vst [vmem:[#allocation2 + $0x38] sm:$0xff] %v485
        %500 = vst [vmem:[#allocation2 + $0x40] sm:$0xff] %v486
        %501 = vst [vmem:[#allocation2 + $0x48] sm:$0xff] %v487
        %502 = vst [vmem:[#allocation2 + $0x50] sm:$0xff] %v488
        %503 = vst [vmem:[#allocation2 + $0x58] sm:$0xff] %v489
        %504 = vst [vmem:[#allocation2 + $0x60] sm:$0xff] %v490
        %505 = vst [vmem:[#allocation2 + $0x68] sm:$0xff] %v491
        %v506 = vld [vmem:[#allocation2] sm:$0xff]
        %v507 = vld [vmem:[#allocation2 + $0x8] sm:$0xff]
        %v508 = vld [vmem:[#allocation2 + $0x10] sm:$0xff]
        %v509 = vld [vmem:[#allocation2 + $0x18] sm:$0xff]
        %v510 = vld [vmem:[#allocation2 + $0x20] sm:$0xff]
        %v511 = vld [vmem:[#allocation2 + $0x28] sm:$0xff]
        %v512 = vld [vmem:[#allocation2 + $0x30] sm:$0xff]
        %v513 = vld [vmem:[#allocation2 + $0x38] sm:$0xff]
        %v514 = vld [vmem:[#allocation2 + $0x40] sm:$0xff]
        %v515 = vld [vmem:[#allocation2 + $0x48] sm:$0xff]
        %v516 = vld [vmem:[#allocation2 + $0x50] sm:$0xff]
        %v517 = vld [vmem:[#allocation2 + $0x58] sm:$0xff]
        %v518 = vld [vmem:[#allocation2 + $0x60] sm:$0xff]
        %v519 = vld [vmem:[#allocation2 + $0x68] sm:$0xff]
        %v520 = vld [vmem:[%s4] sm:$0xff]
        %v521 = vld [vmem:[%s4 + $0x8] sm:$0xff]
        %v522 = vld [vmem:[%s4 + $0x10] sm:$0xff]
        %v523 = vld [vmem:[%s4 + $0x18] sm:$0xff]
        %v524 = vld [vmem:[%s4 + $0x20] sm:$0xff]
        %v525 = vld [vmem:[%s4 + $0x28] sm:$0xff]
        %vm526 = vcmask 130048
        %v528 = vsel %vm526, %v520, 0
        %v531 = vsel %vm526, %v521, 0
        %v534 = vsel %vm526, %v522, 0
        %v537 = vsel %vm526, %v523, 0
        %v540 = vsel %vm526, %v524, 0
        %v543 = vsel %vm526, %v525, 0
        %545 = vmatprep.subr.mxu0 %v507
        %546 = vmatpush1.msra.mxu0 %v506
        %547 = vmatprep.subr.mxu0 %v514
        %548 = vmatpush1.msra.mxu0 %v513
        %549 = vmatprep.subr.mxu0 0.0
        %550 = vmatpush1.msra.mxu0 0.0
        %551 = vmatprep.subr.mxu0 0.0
        %552 = vmatpush1.msra.mxu0 0.0
        %553 = vmatprep.subr.mxu0 0.0
        %554 = vmatpush1.msra.mxu0 0.0
        %555 = vmatprep.subr.mxu0 0.0
        %556 = vmatpush1.msra.mxu0 0.0
        %557 = vmatprep.subr.mxu0 0.0
        %558 = vmatpush1.msra.mxu0 0.0
        %559 = vmatprep.subr.mxu0 0.0
        %560 = vmatpush1.msra.mxu0 0.0
        %561 = vmatprep.subr.mxu0 0.0
        %562 = vmatpush1.msra.mxu0 0.0
        %563 = vmatprep.subr.mxu0 0.0
        %564 = vmatpush1.msra.mxu0 0.0
        %565 = vmatprep.subr.mxu0 0.0
        %566 = vmatpush1.msra.mxu0 0.0
        %567 = vmatprep.subr.mxu0 0.0
        %568 = vmatpush1.msra.mxu0 0.0
        %569 = vmatprep.subr.mxu0 0.0
        %570 = vmatpush1.msra.mxu0 0.0
        %571 = vmatprep.subr.mxu0 0.0
        %572 = vmatpush1.msra.mxu0 0.0
        %573 = vmatprep.subr.mxu0 0.0
        %574 = vmatpush1.msra.mxu0 0.0
        %575 = vmatprep.subr.mxu0 0.0
        %576 = vmatpush1.msra.mxu0 0.0
        %577 = vmatprep.subr.mxu0 0.0
        %578 = vmatpush1.msra.mxu0 0.0
        %579 = vmatprep.subr.mxu0 0.0
        %580 = vmatpush1.msra.mxu0 0.0
        %581 = vmatprep.subr.mxu0 0.0
        %582 = vmatpush1.msra.mxu0 0.0
        %583 = vmatprep.subr.mxu0 0.0
        %584 = vmatpush1.msra.mxu0 0.0
        %585 = vmatprep.subr.mxu0 0.0
        %586 = vmatpush1.msra.mxu0 0.0
        %587 = vmatprep.subr.mxu0 0.0
        %588 = vmatpush1.msra.mxu0 0.0
        %589 = vmatprep.subr.mxu0 0.0
        %590 = vmatpush1.msra.mxu0 0.0
        %591 = vmatprep.subr.mxu0 0.0
        %592 = vmatpush1.msra.mxu0 0.0
        %593 = vmatprep.subr.mxu0 0.0
        %594 = vmatpush1.msra.mxu0 0.0
        %595 = vmatprep.subr.mxu0 0.0
        %596 = vmatpush1.msra.mxu0 0.0
        %597 = vmatprep.subr.mxu0 0.0
        %598 = vmatpush1.msra.mxu0 0.0
        %599 = vmatprep.subr.mxu0 0.0
        %600 = vmatpush1.msra.mxu0 0.0
        %601 = vmatprep.subr.mxu0 0.0
        %602 = vmatpush1.msra.mxu0 0.0
        %603 = vmatprep.subr.mxu0 0.0
        %604 = vmatpush1.msra.mxu0 0.0
        %605 = vmatprep.subr.mxu0 0.0
        %606 = vmatpush1.msra.mxu0 0.0
        %607 = vmatprep.subr.mxu0 0.0
        %608 = vmatpush1.msra.mxu0 0.0
        %609 = vmatprep.mubr.f32.mxu0 0.0
        %610 = vmatmul.mubr.f32.gmra.mrb[0].mxu0 %v528
        %v611 = vpop.f32.mrb[0].mxu0
        %v612 = vadd.f32 0.0, %v611
        %v613 = vpop.f32.mrb[0].mxu0
        %v614 = vadd.f32 0.0, %v613
        %615 = vmatprep.mubr.f32.mxu0 0.0
        %616 = vmatmul.mubr.f32.gmra.mrb[0].mxu0 %v531
        %v617 = vpop.f32.mrb[0].mxu0
        %v618 = vadd.f32 0.0, %v617
        %v619 = vpop.f32.mrb[0].mxu0
        %v620 = vadd.f32 0.0, %v619
        %621 = vmatprep.mubr.f32.mxu0 0.0
        %622 = vmatmul.mubr.f32.gmra.mrb[0].mxu0 %v534
        %v623 = vpop.f32.mrb[0].mxu0
        %v624 = vadd.f32 0.0, %v623
        %v625 = vpop.f32.mrb[0].mxu0
        %v626 = vadd.f32 0.0, %v625
        %627 = vmatprep.mubr.f32.mxu0 0.0
        %628 = vmatmul.mubr.f32.gmra.mrb[0].mxu0 %v537
        %v629 = vpop.f32.mrb[0].mxu0
        %v630 = vadd.f32 0.0, %v629
        %v631 = vpop.f32.mrb[0].mxu0
        %v632 = vadd.f32 0.0, %v631
        %633 = vmatprep.mubr.f32.mxu0 0.0
        %634 = vmatmul.mubr.f32.gmra.mrb[0].mxu0 %v540
        %v635 = vpop.f32.mrb[0].mxu0
        %v636 = vadd.f32 0.0, %v635
        %v637 = vpop.f32.mrb[0].mxu0
        %v638 = vadd.f32 0.0, %v637
        %639 = vmatprep.mubr.f32.mxu0 0.0
        %640 = vmatmul.mubr.f32.gmra.mrb[0].mxu0 %v543
        %v641 = vpop.f32.mrb[0].mxu0
        %v642 = vadd.f32 0.0, %v641
        %v643 = vpop.f32.mrb[0].mxu0
        %v644 = vadd.f32 0.0, %v643
        %645 = vdwg.mxu0
        %646 = vmatprep.subr.mxu0 %v509
        %647 = vmatpush1.msra.mxu0 %v508
        %648 = vmatprep.subr.mxu0 %v516
        %649 = vmatpush1.msra.mxu0 %v515
        %650 = vmatprep.subr.mxu0 0.0
        %651 = vmatpush1.msra.mxu0 0.0
        %652 = vmatprep.subr.mxu0 0.0
        %653 = vmatpush1.msra.mxu0 0.0
        %654 = vmatprep.subr.mxu0 0.0
        %655 = vmatpush1.msra.mxu0 0.0
        %656 = vmatprep.subr.mxu0 0.0
        %657 = vmatpush1.msra.mxu0 0.0
        %658 = vmatprep.subr.mxu0 0.0
        %659 = vmatpush1.msra.mxu0 0.0
        %660 = vmatprep.subr.mxu0 0.0
        %661 = vmatpush1.msra.mxu0 0.0
        %662 = vmatprep.subr.mxu0 0.0
        %663 = vmatpush1.msra.mxu0 0.0
        %664 = vmatprep.subr.mxu0 0.0
        %665 = vmatpush1.msra.mxu0 0.0
        %666 = vmatprep.subr.mxu0 0.0
        %667 = vmatpush1.msra.mxu0 0.0
        %668 = vmatprep.subr.mxu0 0.0
        %669 = vmatpush1.msra.mxu0 0.0
        %670 = vmatprep.subr.mxu0 0.0
        %671 = vmatpush1.msra.mxu0 0.0
        %672 = vmatprep.subr.mxu0 0.0
        %673 = vmatpush1.msra.mxu0 0.0
        %674 = vmatprep.subr.mxu0 0.0
        %675 = vmatpush1.msra.mxu0 0.0
        %676 = vmatprep.subr.mxu0 0.0
        %677 = vmatpush1.msra.mxu0 0.0
        %678 = vmatprep.subr.mxu0 0.0
        %679 = vmatpush1.msra.mxu0 0.0
        %680 = vmatprep.subr.mxu0 0.0
        %681 = vmatpush1.msra.mxu0 0.0
        %682 = vmatprep.subr.mxu0 0.0
        %683 = vmatpush1.msra.mxu0 0.0
        %684 = vmatprep.subr.mxu0 0.0
        %685 = vmatpush1.msra.mxu0 0.0
        %686 = vmatprep.subr.mxu0 0.0
        %687 = vmatpush1.msra.mxu0 0.0
        %688 = vmatprep.subr.mxu0 0.0
        %689 = vmatpush1.msra.mxu0 0.0
        %690 = vmatprep.subr.mxu0 0.0
        %691 = vmatpush1.msra.mxu0 0.0
        %692 = vmatprep.subr.mxu0 0.0
        %693 = vmatpush1.msra.mxu0 0.0
        %694 = vmatprep.subr.mxu0 0.0
        %695 = vmatpush1.msra.mxu0 0.0
        %696 = vmatprep.subr.mxu0 0.0
        %697 = vmatpush1.msra.mxu0 0.0
        %698 = vmatprep.subr.mxu0 0.0
        %699 = vmatpush1.msra.mxu0 0.0
        %700 = vmatprep.subr.mxu0 0.0
        %701 = vmatpush1.msra.mxu0 0.0
        %702 = vmatprep.subr.mxu0 0.0
        %703 = vmatpush1.msra.mxu0 0.0
        %704 = vmatprep.subr.mxu0 0.0
        %705 = vmatpush1.msra.mxu0 0.0
        %706 = vmatprep.subr.mxu0 0.0
        %707 = vmatpush1.msra.mxu0 0.0
        %708 = vmatprep.subr.mxu0 0.0
        %709 = vmatpush1.msra.mxu0 0.0
        %710 = vmatprep.mubr.f32.mxu0 0.0
        %711 = vmatmul.mubr.f32.gmra.mrb[0].mxu0 %v528
        %v712 = vpop.f32.mrb[0].mxu0
        %v713 = vadd.f32 0.0, %v712
        %v714 = vpop.f32.mrb[0].mxu0
        %v715 = vadd.f32 0.0, %v714
        %716 = vmatprep.mubr.f32.mxu0 0.0
        %717 = vmatmul.mubr.f32.gmra.mrb[0].mxu0 %v531
        %v718 = vpop.f32.mrb[0].mxu0
        %v719 = vadd.f32 0.0, %v718
        %v720 = vpop.f32.mrb[0].mxu0
        %v721 = vadd.f32 0.0, %v720
        %722 = vmatprep.mubr.f32.mxu0 0.0
        %723 = vmatmul.mubr.f32.gmra.mrb[0].mxu0 %v534
        %v724 = vpop.f32.mrb[0].mxu0
        %v725 = vadd.f32 0.0, %v724
        %v726 = vpop.f32.mrb[0].mxu0
        %v727 = vadd.f32 0.0, %v726
        %728 = vmatprep.mubr.f32.mxu0 0.0
        %729 = vmatmul.mubr.f32.gmra.mrb[0].mxu0 %v537
        %v730 = vpop.f32.mrb[0].mxu0
        %v731 = vadd.f32 0.0, %v730
        %v732 = vpop.f32.mrb[0].mxu0
        %v733 = vadd.f32 0.0, %v732
        %734 = vmatprep.mubr.f32.mxu0 0.0
        %735 = vmatmul.mubr.f32.gmra.mrb[0].mxu0 %v540
        %v736 = vpop.f32.mrb[0].mxu0
        %v737 = vadd.f32 0.0, %v736
        %v738 = vpop.f32.mrb[0].mxu0
        %v739 = vadd.f32 0.0, %v738
        %740 = vmatprep.mubr.f32.mxu0 0.0
        %741 = vmatmul.mubr.f32.gmra.mrb[0].mxu0 %v543
        %v742 = vpop.f32.mrb[0].mxu0
        %v743 = vadd.f32 0.0, %v742
        %v744 = vpop.f32.mrb[0].mxu0
        %v745 = vadd.f32 0.0, %v744
        %746 = vdwg.mxu0
        %747 = vmatprep.subr.mxu0 %v511
        %748 = vmatpush1.msra.mxu0 %v510
        %749 = vmatprep.subr.mxu0 %v518
        %750 = vmatpush1.msra.mxu0 %v517
        %751 = vmatprep.subr.mxu0 0.0
        %752 = vmatpush1.msra.mxu0 0.0
        %753 = vmatprep.subr.mxu0 0.0
        %754 = vmatpush1.msra.mxu0 0.0
        %755 = vmatprep.subr.mxu0 0.0
        %756 = vmatpush1.msra.mxu0 0.0
        %757 = vmatprep.subr.mxu0 0.0
        %758 = vmatpush1.msra.mxu0 0.0
        %759 = vmatprep.subr.mxu0 0.0
        %760 = vmatpush1.msra.mxu0 0.0
        %761 = vmatprep.subr.mxu0 0.0
        %762 = vmatpush1.msra.mxu0 0.0
        %763 = vmatprep.subr.mxu0 0.0
        %764 = vmatpush1.msra.mxu0 0.0
        %765 = vmatprep.subr.mxu0 0.0
        %766 = vmatpush1.msra.mxu0 0.0
        %767 = vmatprep.subr.mxu0 0.0
        %768 = vmatpush1.msra.mxu0 0.0
        %769 = vmatprep.subr.mxu0 0.0
        %770 = vmatpush1.msra.mxu0 0.0
        %771 = vmatprep.subr.mxu0 0.0
        %772 = vmatpush1.msra.mxu0 0.0
        %773 = vmatprep.subr.mxu0 0.0
        %774 = vmatpush1.msra.mxu0 0.0
        %775 = vmatprep.subr.mxu0 0.0
        %776 = vmatpush1.msra.mxu0 0.0
        %777 = vmatprep.subr.mxu0 0.0
        %778 = vmatpush1.msra.mxu0 0.0
        %779 = vmatprep.subr.mxu0 0.0
        %780 = vmatpush1.msra.mxu0 0.0
        %781 = vmatprep.subr.mxu0 0.0
        %782 = vmatpush1.msra.mxu0 0.0
        %783 = vmatprep.subr.mxu0 0.0
        %784 = vmatpush1.msra.mxu0 0.0
        %785 = vmatprep.subr.mxu0 0.0
        %786 = vmatpush1.msra.mxu0 0.0
        %787 = vmatprep.subr.mxu0 0.0
        %788 = vmatpush1.msra.mxu0 0.0
        %789 = vmatprep.subr.mxu0 0.0
        %790 = vmatpush1.msra.mxu0 0.0
        %791 = vmatprep.subr.mxu0 0.0
        %792 = vmatpush1.msra.mxu0 0.0
        %793 = vmatprep.subr.mxu0 0.0
        %794 = vmatpush1.msra.mxu0 0.0
        %795 = vmatprep.subr.mxu0 0.0
        %796 = vmatpush1.msra.mxu0 0.0
        %797 = vmatprep.subr.mxu0 0.0
        %798 = vmatpush1.msra.mxu0 0.0
        %799 = vmatprep.subr.mxu0 0.0
        %800 = vmatpush1.msra.mxu0 0.0
        %801 = vmatprep.subr.mxu0 0.0
        %802 = vmatpush1.msra.mxu0 0.0
        %803 = vmatprep.subr.mxu0 0.0
        %804 = vmatpush1.msra.mxu0 0.0
        %805 = vmatprep.subr.mxu0 0.0
        %806 = vmatpush1.msra.mxu0 0.0
        %807 = vmatprep.subr.mxu0 0.0
        %808 = vmatpush1.msra.mxu0 0.0
        %809 = vmatprep.subr.mxu0 0.0
        %810 = vmatpush1.msra.mxu0 0.0
        %811 = vmatprep.mubr.f32.mxu0 0.0
        %812 = vmatmul.mubr.f32.gmra.mrb[0].mxu0 %v528
        %v813 = vpop.f32.mrb[0].mxu0
        %v814 = vadd.f32 0.0, %v813
        %v815 = vpop.f32.mrb[0].mxu0
        %v816 = vadd.f32 0.0, %v815
        %817 = vmatprep.mubr.f32.mxu0 0.0
        %818 = vmatmul.mubr.f32.gmra.mrb[0].mxu0 %v531
        %v819 = vpop.f32.mrb[0].mxu0
        %v820 = vadd.f32 0.0, %v819
        %v821 = vpop.f32.mrb[0].mxu0
        %v822 = vadd.f32 0.0, %v821
        %823 = vmatprep.mubr.f32.mxu0 0.0
        %824 = vmatmul.mubr.f32.gmra.mrb[0].mxu0 %v534
        %v825 = vpop.f32.mrb[0].mxu0
        %v826 = vadd.f32 0.0, %v825
        %v827 = vpop.f32.mrb[0].mxu0
        %v828 = vadd.f32 0.0, %v827
        %829 = vmatprep.mubr.f32.mxu0 0.0
        %830 = vmatmul.mubr.f32.gmra.mrb[0].mxu0 %v537
        %v831 = vpop.f32.mrb[0].mxu0
        %v832 = vadd.f32 0.0, %v831
        %v833 = vpop.f32.mrb[0].mxu0
        %v834 = vadd.f32 0.0, %v833
        %835 = vmatprep.mubr.f32.mxu0 0.0
        %836 = vmatmul.mubr.f32.gmra.mrb[0].mxu0 %v540
        %v837 = vpop.f32.mrb[0].mxu0
        %v838 = vadd.f32 0.0, %v837
        %v839 = vpop.f32.mrb[0].mxu0
        %v840 = vadd.f32 0.0, %v839
        %841 = vmatprep.mubr.f32.mxu0 0.0
        %842 = vmatmul.mubr.f32.gmra.mrb[0].mxu0 %v543
        %v843 = vpop.f32.mrb[0].mxu0
        %v844 = vadd.f32 0.0, %v843
        %v845 = vpop.f32.mrb[0].mxu0
        %v846 = vadd.f32 0.0, %v845
        %847 = vdwg.mxu0
        %848 = vmatprep.subr.mxu0 0.0
        %849 = vmatpush1.msra.mxu0 %v512
        %850 = vmatprep.subr.mxu0 0.0
        %851 = vmatpush1.msra.mxu0 %v519
        %852 = vmatprep.subr.mxu0 0.0
        %853 = vmatpush1.msra.mxu0 0.0
        %854 = vmatprep.subr.mxu0 0.0
        %855 = vmatpush1.msra.mxu0 0.0
        %856 = vmatprep.subr.mxu0 0.0
        %857 = vmatpush1.msra.mxu0 0.0
        %858 = vmatprep.subr.mxu0 0.0
        %859 = vmatpush1.msra.mxu0 0.0
        %860 = vmatprep.subr.mxu0 0.0
        %861 = vmatpush1.msra.mxu0 0.0
        %862 = vmatprep.subr.mxu0 0.0
        %863 = vmatpush1.msra.mxu0 0.0
        %864 = vmatprep.subr.mxu0 0.0
        %865 = vmatpush1.msra.mxu0 0.0
        %866 = vmatprep.subr.mxu0 0.0
        %867 = vmatpush1.msra.mxu0 0.0
        %868 = vmatprep.subr.mxu0 0.0
        %869 = vmatpush1.msra.mxu0 0.0
        %870 = vmatprep.subr.mxu0 0.0
        %871 = vmatpush1.msra.mxu0 0.0
        %872 = vmatprep.subr.mxu0 0.0
        %873 = vmatpush1.msra.mxu0 0.0
        %874 = vmatprep.subr.mxu0 0.0
        %875 = vmatpush1.msra.mxu0 0.0
        %876 = vmatprep.subr.mxu0 0.0
        %877 = vmatpush1.msra.mxu0 0.0
        %878 = vmatprep.subr.mxu0 0.0
        %879 = vmatpush1.msra.mxu0 0.0
        %880 = vmatprep.subr.mxu0 0.0
        %881 = vmatpush1.msra.mxu0 0.0
        %882 = vmatprep.subr.mxu0 0.0
        %883 = vmatpush1.msra.mxu0 0.0
        %884 = vmatprep.subr.mxu0 0.0
        %885 = vmatpush1.msra.mxu0 0.0
        %886 = vmatprep.subr.mxu0 0.0
        %887 = vmatpush1.msra.mxu0 0.0
        %888 = vmatprep.subr.mxu0 0.0
        %889 = vmatpush1.msra.mxu0 0.0
        %890 = vmatprep.subr.mxu0 0.0
        %891 = vmatpush1.msra.mxu0 0.0
        %892 = vmatprep.subr.mxu0 0.0
        %893 = vmatpush1.msra.mxu0 0.0
        %894 = vmatprep.subr.mxu0 0.0
        %895 = vmatpush1.msra.mxu0 0.0
        %896 = vmatprep.subr.mxu0 0.0
        %897 = vmatpush1.msra.mxu0 0.0
        %898 = vmatprep.subr.mxu0 0.0
        %899 = vmatpush1.msra.mxu0 0.0
        %900 = vmatprep.subr.mxu0 0.0
        %901 = vmatpush1.msra.mxu0 0.0
        %902 = vmatprep.subr.mxu0 0.0
        %903 = vmatpush1.msra.mxu0 0.0
        %904 = vmatprep.subr.mxu0 0.0
        %905 = vmatpush1.msra.mxu0 0.0
        %906 = vmatprep.subr.mxu0 0.0
        %907 = vmatpush1.msra.mxu0 0.0
        %908 = vmatprep.subr.mxu0 0.0
        %909 = vmatpush1.msra.mxu0 0.0
        %910 = vmatprep.subr.mxu0 0.0
        %911 = vmatpush1.msra.mxu0 0.0
        %912 = vmatprep.mubr.f32.mxu0 0.0
        %913 = vmatmul.mubr.f32.gmra.mrb[0].mxu0 %v528
        %v914 = vpop.f32.mrb[0].mxu0
        %v915 = vadd.f32 0.0, %v914
        %v916 = vpop.f32.mrb[0].mxu0
        %917 = vmatprep.mubr.f32.mxu0 0.0
        %918 = vmatmul.mubr.f32.gmra.mrb[0].mxu0 %v531
        %v919 = vpop.f32.mrb[0].mxu0
        %v920 = vadd.f32 0.0, %v919
        %v921 = vpop.f32.mrb[0].mxu0
        %922 = vmatprep.mubr.f32.mxu0 0.0
        %923 = vmatmul.mubr.f32.gmra.mrb[0].mxu0 %v534
        %v924 = vpop.f32.mrb[0].mxu0
        %v925 = vadd.f32 0.0, %v924
        %v926 = vpop.f32.mrb[0].mxu0
        %927 = vmatprep.mubr.f32.mxu0 0.0
        %928 = vmatmul.mubr.f32.gmra.mrb[0].mxu0 %v537
        %v929 = vpop.f32.mrb[0].mxu0
        %v930 = vadd.f32 0.0, %v929
        %v931 = vpop.f32.mrb[0].mxu0
        %932 = vmatprep.mubr.f32.mxu0 0.0
        %933 = vmatmul.mubr.f32.gmra.mrb[0].mxu0 %v540
        %v934 = vpop.f32.mrb[0].mxu0
        %v935 = vadd.f32 0.0, %v934
        %v936 = vpop.f32.mrb[0].mxu0
        %937 = vmatprep.mubr.f32.mxu0 0.0
        %938 = vmatmul.mubr.f32.gmra.mrb[0].mxu0 %v543
        %v939 = vpop.f32.mrb[0].mxu0
        %v940 = vadd.f32 0.0, %v939
        %v941 = vpop.f32.mrb[0].mxu0
        %942 = vdwg.mxu0
        %943 = vrot.lane.b32.xlu0 %v612, 65
        %v944 = vpop.permute.xlu0 %943
        %945 = vrot.lane.b32.xlu0 %v618, 65
        %v946 = vpop.permute.xlu0 %945
        %947 = vrot.lane.b32.xlu0 %v614, 65
        %v948 = vpop.permute.xlu0 %947
        %949 = vrot.lane.b32.xlu0 %v620, 65
        %v950 = vpop.permute.xlu0 %949
        %951 = vrot.lane.b32.xlu0 %v713, 65
        %v952 = vpop.permute.xlu0 %951
        %953 = vrot.lane.b32.xlu0 %v719, 65
        %v954 = vpop.permute.xlu0 %953
        %955 = vrot.lane.b32.xlu0 %v715, 65
        %v956 = vpop.permute.xlu0 %955
        %957 = vrot.lane.b32.xlu0 %v721, 65
        %v958 = vpop.permute.xlu0 %957
        %959 = vrot.lane.b32.xlu0 %v814, 65
        %v960 = vpop.permute.xlu0 %959
        %961 = vrot.lane.b32.xlu0 %v820, 65
        %v962 = vpop.permute.xlu0 %961
        %963 = vrot.lane.b32.xlu0 %v816, 65
        %v964 = vpop.permute.xlu0 %963
        %965 = vrot.lane.b32.xlu0 %v822, 65
        %v966 = vpop.permute.xlu0 %965
        %967 = vrot.lane.b32.xlu0 %v915, 65
        %v968 = vpop.permute.xlu0 %967
        %969 = vrot.lane.b32.xlu0 %v920, 65
        %v970 = vpop.permute.xlu0 %969
        %v971 = vlaneseq
        %v972 = vand.u32 %v971, 127
        %vm973 = vcmp.lt.s32.totalorder %v972, 65
        %v974 = vsel %vm973, %v964, %v968
        %v975 = vsel %vm973, %v966, %v970
        %v976 = vsel %vm973, %v960, %v964
        %v977 = vsel %vm973, %v962, %v966
        %v978 = vsel %vm973, %v956, %v960
        %v979 = vsel %vm973, %v958, %v962
        %v980 = vsel %vm973, %v952, %v956
        %v981 = vsel %vm973, %v954, %v958
        %v982 = vsel %vm973, %v948, %v952
        %v983 = vsel %vm973, %v950, %v954
        %v984 = vsel %vm973, %v944, %v948
        %v985 = vsel %vm973, %v946, %v950
        %v986 = vsel %vm973, %v968, %v944
        %v987 = vsel %vm973, %v970, %v946
        %v989 = vlaneseq
        %v990 = vshrl.u32 %v989, 7
        %v991 = vsub.s32 0, %v990
        %v992 = vrot.slane %v394, %v991
        %v993 = vlaneseq
        %v994 = vshrl.u32 %v993, 7
        %v995 = vsub.s32 1, %v994
        %v996 = vrot.slane %v394, %v995
        %v997 = vlaneseq
        %v998 = vshrl.u32 %v997, 7
        %v999 = vsub.s32 2, %v998
        %v1000 = vrot.slane %v394, %v999
        %v1001 = vlaneseq
        %v1002 = vshrl.u32 %v1001, 7
        %v1003 = vsub.s32 3, %v1002
        %v1004 = vrot.slane %v394, %v1003
        %v1005 = vlaneseq
        %v1006 = vshrl.u32 %v1005, 7
        %v1007 = vsub.s32 4, %v1006
        %v1008 = vrot.slane %v394, %v1007
        %v1009 = vlaneseq
        %v1010 = vshrl.u32 %v1009, 7
        %v1011 = vsub.s32 5, %v1010
        %v1012 = vrot.slane %v394, %v1011
        %v1013 = vlaneseq
        %v1014 = vshrl.u32 %v1013, 7
        %v1015 = vsub.s32 6, %v1014
        %v1016 = vrot.slane %v394, %v1015
        %v1024 = vmul.f32 %v986, %v992
        %v1025 = vmul.f32 %v984, %v996
        %v1026 = vmul.f32 %v982, %v1000
        %v1027 = vmul.f32 %v980, %v1004
        %v1028 = vmul.f32 %v978, %v1008
        %v1029 = vmul.f32 %v976, %v1012
        %v1030 = vmul.f32 %v974, %v1016
        %v1031 = vmul.f32 %v987, %v992
        %v1032 = vmul.f32 %v985, %v996
        %v1033 = vmul.f32 %v983, %v1000
        %v1034 = vmul.f32 %v981, %v1004
        %v1035 = vmul.f32 %v979, %v1008
        %v1036 = vmul.f32 %v977, %v1012
        %v1037 = vmul.f32 %v975, %v1016
        %v1038 = vld [vmem:[%s5] sm:$0xff]
        %v1039 = vld [vmem:[%s5 + $0x8] sm:$0xff]
        %1041 = vset.pattern.permute.xlu0 0
        %1042 = vperm.xlu0 %1041, %v1038
        %v1043 = vpop.permute.xlu0 %1042
        %1046 = vset.pattern.permute.xlu0 0
        %1047 = vperm.xlu0 %1046, %v1039
        %v1048 = vpop.permute.xlu0 %1047
        %v1050 = vadd.f32 %v1024, %v1043
        %v1051 = vadd.f32 %v1025, %v1043
        %v1052 = vadd.f32 %v1026, %v1043
        %v1053 = vadd.f32 %v1027, %v1043
        %v1054 = vadd.f32 %v1028, %v1043
        %v1055 = vadd.f32 %v1029, %v1043
        %v1056 = vadd.f32 %v1030, %v1043
        %v1057 = vadd.f32 %v1031, %v1048
        %v1058 = vadd.f32 %v1032, %v1048
        %v1059 = vadd.f32 %v1033, %v1048
        %v1060 = vadd.f32 %v1034, %v1048
        %v1061 = vadd.f32 %v1035, %v1048
        %v1062 = vadd.f32 %v1036, %v1048
        %v1063 = vadd.f32 %v1037, %v1048
        %1064 = vrot.lane.b32.xlu0 %v624, 64
        %v1065 = vpop.permute.xlu0 %1064
        %1066 = vrot.lane.b32.xlu0 %v630, 64
        %v1067 = vpop.permute.xlu0 %1066
        %1068 = vrot.lane.b32.xlu0 %v626, 64
        %v1069 = vpop.permute.xlu0 %1068
        %1070 = vrot.lane.b32.xlu0 %v632, 64
        %v1071 = vpop.permute.xlu0 %1070
        %1072 = vrot.lane.b32.xlu0 %v725, 64
        %v1073 = vpop.permute.xlu0 %1072
        %1074 = vrot.lane.b32.xlu0 %v731, 64
        %v1075 = vpop.permute.xlu0 %1074
        %1076 = vrot.lane.b32.xlu0 %v727, 64
        %v1077 = vpop.permute.xlu0 %1076
        %1078 = vrot.lane.b32.xlu0 %v733, 64
        %v1079 = vpop.permute.xlu0 %1078
        %1080 = vrot.lane.b32.xlu0 %v826, 64
        %v1081 = vpop.permute.xlu0 %1080
        %1082 = vrot.lane.b32.xlu0 %v832, 64
        %v1083 = vpop.permute.xlu0 %1082
        %1084 = vrot.lane.b32.xlu0 %v828, 64
        %v1085 = vpop.permute.xlu0 %1084
        %1086 = vrot.lane.b32.xlu0 %v834, 64
        %v1087 = vpop.permute.xlu0 %1086
        %1088 = vrot.lane.b32.xlu0 %v925, 64
        %v1089 = vpop.permute.xlu0 %1088
        %1090 = vrot.lane.b32.xlu0 %v930, 64
        %v1091 = vpop.permute.xlu0 %1090
        %vm1092 = vcmp.lt.s32.totalorder %v972, 64
        %v1093 = vsel %vm1092, %v1085, %v1089
        %v1094 = vsel %vm1092, %v1087, %v1091
        %v1095 = vsel %vm1092, %v1081, %v1085
        %v1096 = vsel %vm1092, %v1083, %v1087
        %v1097 = vsel %vm1092, %v1077, %v1081
        %v1098 = vsel %vm1092, %v1079, %v1083
        %v1099 = vsel %vm1092, %v1073, %v1077
        %v1100 = vsel %vm1092, %v1075, %v1079
        %v1101 = vsel %vm1092, %v1069, %v1073
        %v1102 = vsel %vm1092, %v1071, %v1075
        %v1103 = vsel %vm1092, %v1065, %v1069
        %v1104 = vsel %vm1092, %v1067, %v1071
        %v1105 = vsel %vm1092, %v1089, %v1065
        %v1106 = vsel %vm1092, %v1091, %v1067
        %v1107 = vadd.f32 %v1050, %v1105
        %v1108 = vadd.f32 %v1051, %v1103
        %v1109 = vadd.f32 %v1052, %v1101
        %v1110 = vadd.f32 %v1053, %v1099
        %v1111 = vadd.f32 %v1054, %v1097
        %v1112 = vadd.f32 %v1055, %v1095
        %v1113 = vadd.f32 %v1056, %v1093
        %v1114 = vadd.f32 %v1057, %v1106
        %v1115 = vadd.f32 %v1058, %v1104
        %v1116 = vadd.f32 %v1059, %v1102
        %v1117 = vadd.f32 %v1060, %v1100
        %v1118 = vadd.f32 %v1061, %v1098
        %v1119 = vadd.f32 %v1062, %v1096
        %v1120 = vadd.f32 %v1063, %v1094
        %1121 = vrot.lane.b32.xlu0 %v636, 63
        %v1122 = vpop.permute.xlu0 %1121
        %1123 = vrot.lane.b32.xlu0 %v642, 63
        %v1124 = vpop.permute.xlu0 %1123
        %1125 = vrot.lane.b32.xlu0 %v638, 63
        %v1126 = vpop.permute.xlu0 %1125
        %1127 = vrot.lane.b32.xlu0 %v644, 63
        %v1128 = vpop.permute.xlu0 %1127
        %1129 = vrot.lane.b32.xlu0 %v737, 63
        %v1130 = vpop.permute.xlu0 %1129
        %1131 = vrot.lane.b32.xlu0 %v743, 63
        %v1132 = vpop.permute.xlu0 %1131
        %1133 = vrot.lane.b32.xlu0 %v739, 63
        %v1134 = vpop.permute.xlu0 %1133
        %1135 = vrot.lane.b32.xlu0 %v745, 63
        %v1136 = vpop.permute.xlu0 %1135
        %1137 = vrot.lane.b32.xlu0 %v838, 63
        %v1138 = vpop.permute.xlu0 %1137
        %1139 = vrot.lane.b32.xlu0 %v844, 63
        %v1140 = vpop.permute.xlu0 %1139
        %1141 = vrot.lane.b32.xlu0 %v840, 63
        %v1142 = vpop.permute.xlu0 %1141
        %1143 = vrot.lane.b32.xlu0 %v846, 63
        %v1144 = vpop.permute.xlu0 %1143
        %1145 = vrot.lane.b32.xlu0 %v935, 63
        %v1146 = vpop.permute.xlu0 %1145
        %1147 = vrot.lane.b32.xlu0 %v940, 63
        %v1148 = vpop.permute.xlu0 %1147
        %vm1149 = vcmp.lt.s32.totalorder %v972, 63
        %v1150 = vsel %vm1149, %v1142, %v1146
        %v1151 = vsel %vm1149, %v1144, %v1148
        %v1152 = vsel %vm1149, %v1138, %v1142
        %v1153 = vsel %vm1149, %v1140, %v1144
        %v1154 = vsel %vm1149, %v1134, %v1138
        %v1155 = vsel %vm1149, %v1136, %v1140
        %v1156 = vsel %vm1149, %v1130, %v1134
        %v1157 = vsel %vm1149, %v1132, %v1136
        %v1158 = vsel %vm1149, %v1126, %v1130
        %v1159 = vsel %vm1149, %v1128, %v1132
        %v1160 = vsel %vm1149, %v1122, %v1126
        %v1161 = vsel %vm1149, %v1124, %v1128
        %v1162 = vsel %vm1149, %v1146, %v1122
        %v1163 = vsel %vm1149, %v1148, %v1124
        %v1165 = vlaneseq
        %v1166 = vshrl.u32 %v1165, 7
        %v1167 = vsub.s32 0, %v1166
        %v1168 = vrot.slane %v395, %v1167
        %v1169 = vlaneseq
        %v1170 = vshrl.u32 %v1169, 7
        %v1171 = vsub.s32 1, %v1170
        %v1172 = vrot.slane %v395, %v1171
        %v1173 = vlaneseq
        %v1174 = vshrl.u32 %v1173, 7
        %v1175 = vsub.s32 2, %v1174
        %v1176 = vrot.slane %v395, %v1175
        %v1177 = vlaneseq
        %v1178 = vshrl.u32 %v1177, 7
        %v1179 = vsub.s32 3, %v1178
        %v1180 = vrot.slane %v395, %v1179
        %v1181 = vlaneseq
        %v1182 = vshrl.u32 %v1181, 7
        %v1183 = vsub.s32 4, %v1182
        %v1184 = vrot.slane %v395, %v1183
        %v1185 = vlaneseq
        %v1186 = vshrl.u32 %v1185, 7
        %v1187 = vsub.s32 5, %v1186
        %v1188 = vrot.slane %v395, %v1187
        %v1189 = vlaneseq
        %v1190 = vshrl.u32 %v1189, 7
        %v1191 = vsub.s32 6, %v1190
        %v1192 = vrot.slane %v395, %v1191
        %v1200 = vmul.f32 %v1162, %v1168
        %v1201 = vmul.f32 %v1160, %v1172
        %v1202 = vmul.f32 %v1158, %v1176
        %v1203 = vmul.f32 %v1156, %v1180
        %v1204 = vmul.f32 %v1154, %v1184
        %v1205 = vmul.f32 %v1152, %v1188
        %v1206 = vmul.f32 %v1150, %v1192
        %v1207 = vmul.f32 %v1163, %v1168
        %v1208 = vmul.f32 %v1161, %v1172
        %v1209 = vmul.f32 %v1159, %v1176
        %v1210 = vmul.f32 %v1157, %v1180
        %v1211 = vmul.f32 %v1155, %v1184
        %v1212 = vmul.f32 %v1153, %v1188
        %v1213 = vmul.f32 %v1151, %v1192
        %v1214 = vadd.f32 %v1107, %v1200
        %v1215 = vadd.f32 %v1108, %v1201
        %v1216 = vadd.f32 %v1109, %v1202
        %v1217 = vadd.f32 %v1110, %v1203
        %v1218 = vadd.f32 %v1111, %v1204
        %v1219 = vadd.f32 %v1112, %v1205
        %v1220 = vadd.f32 %v1113, %v1206
        %v1221 = vadd.f32 %v1114, %v1207
        %v1222 = vadd.f32 %v1115, %v1208
        %v1223 = vadd.f32 %v1116, %v1209
        %v1224 = vadd.f32 %v1117, %v1210
        %v1225 = vadd.f32 %v1118, %v1211
        %v1226 = vadd.f32 %v1119, %v1212
        %v1227 = vadd.f32 %v1120, %v1213
        %v1228 = vld [vmem:[%s4 + $0x30] sm:$0xff]
        %v1229 = vld [vmem:[%s4 + $0x38] sm:$0xff]
        %v1230 = vld [vmem:[%s4 + $0x40] sm:$0xff]
        %v1231 = vld [vmem:[%s4 + $0x48] sm:$0xff]
        %v1232 = vld [vmem:[%s4 + $0x50] sm:$0xff]
        %v1233 = vld [vmem:[%s4 + $0x58] sm:$0xff]
        %v1235 = vsel %vm526, %v1228, 0
        %v1238 = vsel %vm526, %v1229, 0
        %v1241 = vsel %vm526, %v1230, 0
        %v1244 = vsel %vm526, %v1231, 0
        %v1247 = vsel %vm526, %v1232, 0
        %v1250 = vsel %vm526, %v1233, 0
        %1252 = vmatprep.subr.mxu0 %v507
        %1253 = vmatpush1.msra.mxu0 %v506
        %1254 = vmatprep.subr.mxu0 %v514
        %1255 = vmatpush1.msra.mxu0 %v513
        %1256 = vmatprep.subr.mxu0 0.0
        %1257 = vmatpush1.msra.mxu0 0.0
        %1258 = vmatprep.subr.mxu0 0.0
        %1259 = vmatpush1.msra.mxu0 0.0
        %1260 = vmatprep.subr.mxu0 0.0
        %1261 = vmatpush1.msra.mxu0 0.0
        %1262 = vmatprep.subr.mxu0 0.0
        %1263 = vmatpush1.msra.mxu0 0.0
        %1264 = vmatprep.subr.mxu0 0.0
        %1265 = vmatpush1.msra.mxu0 0.0
        %1266 = vmatprep.subr.mxu0 0.0
        %1267 = vmatpush1.msra.mxu0 0.0
        %1268 = vmatprep.subr.mxu0 0.0
        %1269 = vmatpush1.msra.mxu0 0.0
        %1270 = vmatprep.subr.mxu0 0.0
        %1271 = vmatpush1.msra.mxu0 0.0
        %1272 = vmatprep.subr.mxu0 0.0
        %1273 = vmatpush1.msra.mxu0 0.0
        %1274 = vmatprep.subr.mxu0 0.0
        %1275 = vmatpush1.msra.mxu0 0.0
        %1276 = vmatprep.subr.mxu0 0.0
        %1277 = vmatpush1.msra.mxu0 0.0
        %1278 = vmatprep.subr.mxu0 0.0
        %1279 = vmatpush1.msra.mxu0 0.0
        %1280 = vmatprep.subr.mxu0 0.0
        %1281 = vmatpush1.msra.mxu0 0.0
        %1282 = vmatprep.subr.mxu0 0.0
        %1283 = vmatpush1.msra.mxu0 0.0
        %1284 = vmatprep.subr.mxu0 0.0
        %1285 = vmatpush1.msra.mxu0 0.0
        %1286 = vmatprep.subr.mxu0 0.0
        %1287 = vmatpush1.msra.mxu0 0.0
        %1288 = vmatprep.subr.mxu0 0.0
        %1289 = vmatpush1.msra.mxu0 0.0
        %1290 = vmatprep.subr.mxu0 0.0
        %1291 = vmatpush1.msra.mxu0 0.0
        %1292 = vmatprep.subr.mxu0 0.0
        %1293 = vmatpush1.msra.mxu0 0.0
        %1294 = vmatprep.subr.mxu0 0.0
        %1295 = vmatpush1.msra.mxu0 0.0
        %1296 = vmatprep.subr.mxu0 0.0
        %1297 = vmatpush1.msra.mxu0 0.0
        %1298 = vmatprep.subr.mxu0 0.0
        %1299 = vmatpush1.msra.mxu0 0.0
        %1300 = vmatprep.subr.mxu0 0.0
        %1301 = vmatpush1.msra.mxu0 0.0
        %1302 = vmatprep.subr.mxu0 0.0
        %1303 = vmatpush1.msra.mxu0 0.0
        %1304 = vmatprep.subr.mxu0 0.0
        %1305 = vmatpush1.msra.mxu0 0.0
        %1306 = vmatprep.subr.mxu0 0.0
        %1307 = vmatpush1.msra.mxu0 0.0
        %1308 = vmatprep.subr.mxu0 0.0
        %1309 = vmatpush1.msra.mxu0 0.0
        %1310 = vmatprep.subr.mxu0 0.0
        %1311 = vmatpush1.msra.mxu0 0.0
        %1312 = vmatprep.subr.mxu0 0.0
        %1313 = vmatpush1.msra.mxu0 0.0
        %1314 = vmatprep.subr.mxu0 0.0
        %1315 = vmatpush1.msra.mxu0 0.0
        %1316 = vmatprep.mubr.f32.mxu0 0.0
        %1317 = vmatmul.mubr.f32.gmra.mrb[0].mxu0 %v1235
        %v1318 = vpop.f32.mrb[0].mxu0
        %v1319 = vadd.f32 0.0, %v1318
        %v1320 = vpop.f32.mrb[0].mxu0
        %v1321 = vadd.f32 0.0, %v1320
        %1322 = vmatprep.mubr.f32.mxu0 0.0
        %1323 = vmatmul.mubr.f32.gmra.mrb[0].mxu0 %v1238
        %v1324 = vpop.f32.mrb[0].mxu0
        %v1325 = vadd.f32 0.0, %v1324
        %v1326 = vpop.f32.mrb[0].mxu0
        %v1327 = vadd.f32 0.0, %v1326
        %1328 = vmatprep.mubr.f32.mxu0 0.0
        %1329 = vmatmul.mubr.f32.gmra.mrb[0].mxu0 %v1241
        %v1330 = vpop.f32.mrb[0].mxu0
        %v1331 = vadd.f32 0.0, %v1330
        %v1332 = vpop.f32.mrb[0].mxu0
        %v1333 = vadd.f32 0.0, %v1332
        %1334 = vmatprep.mubr.f32.mxu0 0.0
        %1335 = vmatmul.mubr.f32.gmra.mrb[0].mxu0 %v1244
        %v1336 = vpop.f32.mrb[0].mxu0
        %v1337 = vadd.f32 0.0, %v1336
        %v1338 = vpop.f32.mrb[0].mxu0
        %v1339 = vadd.f32 0.0, %v1338
        %1340 = vmatprep.mubr.f32.mxu0 0.0
        %1341 = vmatmul.mubr.f32.gmra.mrb[0].mxu0 %v1247
        %v1342 = vpop.f32.mrb[0].mxu0
        %v1343 = vadd.f32 0.0, %v1342
        %v1344 = vpop.f32.mrb[0].mxu0
        %v1345 = vadd.f32 0.0, %v1344
        %1346 = vmatprep.mubr.f32.mxu0 0.0
        %1347 = vmatmul.mubr.f32.gmra.mrb[0].mxu0 %v1250
        %v1348 = vpop.f32.mrb[0].mxu0
        %v1349 = vadd.f32 0.0, %v1348
        %v1350 = vpop.f32.mrb[0].mxu0
        %v1351 = vadd.f32 0.0, %v1350
        %1352 = vdwg.mxu0
        %1353 = vmatprep.subr.mxu0 %v509
        %1354 = vmatpush1.msra.mxu0 %v508
        %1355 = vmatprep.subr.mxu0 %v516
        %1356 = vmatpush1.msra.mxu0 %v515
        %1357 = vmatprep.subr.mxu0 0.0
        %1358 = vmatpush1.msra.mxu0 0.0
        %1359 = vmatprep.subr.mxu0 0.0
        %1360 = vmatpush1.msra.mxu0 0.0
        %1361 = vmatprep.subr.mxu0 0.0
        %1362 = vmatpush1.msra.mxu0 0.0
        %1363 = vmatprep.subr.mxu0 0.0
        %1364 = vmatpush1.msra.mxu0 0.0
        %1365 = vmatprep.subr.mxu0 0.0
        %1366 = vmatpush1.msra.mxu0 0.0
        %1367 = vmatprep.subr.mxu0 0.0
        %1368 = vmatpush1.msra.mxu0 0.0
        %1369 = vmatprep.subr.mxu0 0.0
        %1370 = vmatpush1.msra.mxu0 0.0
        %1371 = vmatprep.subr.mxu0 0.0
        %1372 = vmatpush1.msra.mxu0 0.0
        %1373 = vmatprep.subr.mxu0 0.0
        %1374 = vmatpush1.msra.mxu0 0.0
        %1375 = vmatprep.subr.mxu0 0.0
        %1376 = vmatpush1.msra.mxu0 0.0
        %1377 = vmatprep.subr.mxu0 0.0
        %1378 = vmatpush1.msra.mxu0 0.0
        %1379 = vmatprep.subr.mxu0 0.0
        %1380 = vmatpush1.msra.mxu0 0.0
        %1381 = vmatprep.subr.mxu0 0.0
        %1382 = vmatpush1.msra.mxu0 0.0
        %1383 = vmatprep.subr.mxu0 0.0
        %1384 = vmatpush1.msra.mxu0 0.0
        %1385 = vmatprep.subr.mxu0 0.0
        %1386 = vmatpush1.msra.mxu0 0.0
        %1387 = vmatprep.subr.mxu0 0.0
        %1388 = vmatpush1.msra.mxu0 0.0
        %1389 = vmatprep.subr.mxu0 0.0
        %1390 = vmatpush1.msra.mxu0 0.0
        %1391 = vmatprep.subr.mxu0 0.0
        %1392 = vmatpush1.msra.mxu0 0.0
        %1393 = vmatprep.subr.mxu0 0.0
        %1394 = vmatpush1.msra.mxu0 0.0
        %1395 = vmatprep.subr.mxu0 0.0
        %1396 = vmatpush1.msra.mxu0 0.0
        %1397 = vmatprep.subr.mxu0 0.0
        %1398 = vmatpush1.msra.mxu0 0.0
        %1399 = vmatprep.subr.mxu0 0.0
        %1400 = vmatpush1.msra.mxu0 0.0
        %1401 = vmatprep.subr.mxu0 0.0
        %1402 = vmatpush1.msra.mxu0 0.0
        %1403 = vmatprep.subr.mxu0 0.0
        %1404 = vmatpush1.msra.mxu0 0.0
        %1405 = vmatprep.subr.mxu0 0.0
        %1406 = vmatpush1.msra.mxu0 0.0
        %1407 = vmatprep.subr.mxu0 0.0
        %1408 = vmatpush1.msra.mxu0 0.0
        %1409 = vmatprep.subr.mxu0 0.0
        %1410 = vmatpush1.msra.mxu0 0.0
        %1411 = vmatprep.subr.mxu0 0.0
        %1412 = vmatpush1.msra.mxu0 0.0
        %1413 = vmatprep.subr.mxu0 0.0
        %1414 = vmatpush1.msra.mxu0 0.0
        %1415 = vmatprep.subr.mxu0 0.0
        %1416 = vmatpush1.msra.mxu0 0.0
        %1417 = vmatprep.mubr.f32.mxu0 0.0
        %1418 = vmatmul.mubr.f32.gmra.mrb[0].mxu0 %v1235
        %v1419 = vpop.f32.mrb[0].mxu0
        %v1420 = vadd.f32 0.0, %v1419
        %v1421 = vpop.f32.mrb[0].mxu0
        %v1422 = vadd.f32 0.0, %v1421
        %1423 = vmatprep.mubr.f32.mxu0 0.0
        %1424 = vmatmul.mubr.f32.gmra.mrb[0].mxu0 %v1238
        %v1425 = vpop.f32.mrb[0].mxu0
        %v1426 = vadd.f32 0.0, %v1425
        %v1427 = vpop.f32.mrb[0].mxu0
        %v1428 = vadd.f32 0.0, %v1427
        %1429 = vmatprep.mubr.f32.mxu0 0.0
        %1430 = vmatmul.mubr.f32.gmra.mrb[0].mxu0 %v1241
        %v1431 = vpop.f32.mrb[0].mxu0
        %v1432 = vadd.f32 0.0, %v1431
        %v1433 = vpop.f32.mrb[0].mxu0
        %v1434 = vadd.f32 0.0, %v1433
        %1435 = vmatprep.mubr.f32.mxu0 0.0
        %1436 = vmatmul.mubr.f32.gmra.mrb[0].mxu0 %v1244
        %v1437 = vpop.f32.mrb[0].mxu0
        %v1438 = vadd.f32 0.0, %v1437
        %v1439 = vpop.f32.mrb[0].mxu0
        %v1440 = vadd.f32 0.0, %v1439
        %1441 = vmatprep.mubr.f32.mxu0 0.0
        %1442 = vmatmul.mubr.f32.gmra.mrb[0].mxu0 %v1247
        %v1443 = vpop.f32.mrb[0].mxu0
        %v1444 = vadd.f32 0.0, %v1443
        %v1445 = vpop.f32.mrb[0].mxu0
        %v1446 = vadd.f32 0.0, %v1445
        %1447 = vmatprep.mubr.f32.mxu0 0.0
        %1448 = vmatmul.mubr.f32.gmra.mrb[0].mxu0 %v1250
        %v1449 = vpop.f32.mrb[0].mxu0
        %v1450 = vadd.f32 0.0, %v1449
        %v1451 = vpop.f32.mrb[0].mxu0
        %v1452 = vadd.f32 0.0, %v1451
        %1453 = vdwg.mxu0
        %1454 = vmatprep.subr.mxu0 %v511
        %1455 = vmatpush1.msra.mxu0 %v510
        %1456 = vmatprep.subr.mxu0 %v518
        %1457 = vmatpush1.msra.mxu0 %v517
        %1458 = vmatprep.subr.mxu0 0.0
        %1459 = vmatpush1.msra.mxu0 0.0
        %1460 = vmatprep.subr.mxu0 0.0
        %1461 = vmatpush1.msra.mxu0 0.0
        %1462 = vmatprep.subr.mxu0 0.0
        %1463 = vmatpush1.msra.mxu0 0.0
        %1464 = vmatprep.subr.mxu0 0.0
        %1465 = vmatpush1.msra.mxu0 0.0
        %1466 = vmatprep.subr.mxu0 0.0
        %1467 = vmatpush1.msra.mxu0 0.0
        %1468 = vmatprep.subr.mxu0 0.0
        %1469 = vmatpush1.msra.mxu0 0.0
        %1470 = vmatprep.subr.mxu0 0.0
        %1471 = vmatpush1.msra.mxu0 0.0
        %1472 = vmatprep.subr.mxu0 0.0
        %1473 = vmatpush1.msra.mxu0 0.0
        %1474 = vmatprep.subr.mxu0 0.0
        %1475 = vmatpush1.msra.mxu0 0.0
        %1476 = vmatprep.subr.mxu0 0.0
        %1477 = vmatpush1.msra.mxu0 0.0
        %1478 = vmatprep.subr.mxu0 0.0
        %1479 = vmatpush1.msra.mxu0 0.0
        %1480 = vmatprep.subr.mxu0 0.0
        %1481 = vmatpush1.msra.mxu0 0.0
        %1482 = vmatprep.subr.mxu0 0.0
        %1483 = vmatpush1.msra.mxu0 0.0
        %1484 = vmatprep.subr.mxu0 0.0
        %1485 = vmatpush1.msra.mxu0 0.0
        %1486 = vmatprep.subr.mxu0 0.0
        %1487 = vmatpush1.msra.mxu0 0.0
        %1488 = vmatprep.subr.mxu0 0.0
        %1489 = vmatpush1.msra.mxu0 0.0
        %1490 = vmatprep.subr.mxu0 0.0
        %1491 = vmatpush1.msra.mxu0 0.0
        %1492 = vmatprep.subr.mxu0 0.0
        %1493 = vmatpush1.msra.mxu0 0.0
        %1494 = vmatprep.subr.mxu0 0.0
        %1495 = vmatpush1.msra.mxu0 0.0
        %1496 = vmatprep.subr.mxu0 0.0
        %1497 = vmatpush1.msra.mxu0 0.0
        %1498 = vmatprep.subr.mxu0 0.0
        %1499 = vmatpush1.msra.mxu0 0.0
        %1500 = vmatprep.subr.mxu0 0.0
        %1501 = vmatpush1.msra.mxu0 0.0
        %1502 = vmatprep.subr.mxu0 0.0
        %1503 = vmatpush1.msra.mxu0 0.0
        %1504 = vmatprep.subr.mxu0 0.0
        %1505 = vmatpush1.msra.mxu0 0.0
        %1506 = vmatprep.subr.mxu0 0.0
        %1507 = vmatpush1.msra.mxu0 0.0
        %1508 = vmatprep.subr.mxu0 0.0
        %1509 = vmatpush1.msra.mxu0 0.0
        %1510 = vmatprep.subr.mxu0 0.0
        %1511 = vmatpush1.msra.mxu0 0.0
        %1512 = vmatprep.subr.mxu0 0.0
        %1513 = vmatpush1.msra.mxu0 0.0
        %1514 = vmatprep.subr.mxu0 0.0
        %1515 = vmatpush1.msra.mxu0 0.0
        %1516 = vmatprep.subr.mxu0 0.0
        %1517 = vmatpush1.msra.mxu0 0.0
        %1518 = vmatprep.mubr.f32.mxu0 0.0
        %1519 = vmatmul.mubr.f32.gmra.mrb[0].mxu0 %v1235
        %v1520 = vpop.f32.mrb[0].mxu0
        %v1521 = vadd.f32 0.0, %v1520
        %v1522 = vpop.f32.mrb[0].mxu0
        %v1523 = vadd.f32 0.0, %v1522
        %1524 = vmatprep.mubr.f32.mxu0 0.0
        %1525 = vmatmul.mubr.f32.gmra.mrb[0].mxu0 %v1238
        %v1526 = vpop.f32.mrb[0].mxu0
        %v1527 = vadd.f32 0.0, %v1526
        %v1528 = vpop.f32.mrb[0].mxu0
        %v1529 = vadd.f32 0.0, %v1528
        %1530 = vmatprep.mubr.f32.mxu0 0.0
        %1531 = vmatmul.mubr.f32.gmra.mrb[0].mxu0 %v1241
        %v1532 = vpop.f32.mrb[0].mxu0
        %v1533 = vadd.f32 0.0, %v1532
        %v1534 = vpop.f32.mrb[0].mxu0
        %v1535 = vadd.f32 0.0, %v1534
        %1536 = vmatprep.mubr.f32.mxu0 0.0
        %1537 = vmatmul.mubr.f32.gmra.mrb[0].mxu0 %v1244
        %v1538 = vpop.f32.mrb[0].mxu0
        %v1539 = vadd.f32 0.0, %v1538
        %v1540 = vpop.f32.mrb[0].mxu0
        %v1541 = vadd.f32 0.0, %v1540
        %1542 = vmatprep.mubr.f32.mxu0 0.0
        %1543 = vmatmul.mubr.f32.gmra.mrb[0].mxu0 %v1247
        %v1544 = vpop.f32.mrb[0].mxu0
        %v1545 = vadd.f32 0.0, %v1544
        %v1546 = vpop.f32.mrb[0].mxu0
        %v1547 = vadd.f32 0.0, %v1546
        %1548 = vmatprep.mubr.f32.mxu0 0.0
        %1549 = vmatmul.mubr.f32.gmra.mrb[0].mxu0 %v1250
        %v1550 = vpop.f32.mrb[0].mxu0
        %v1551 = vadd.f32 0.0, %v1550
        %v1552 = vpop.f32.mrb[0].mxu0
        %v1553 = vadd.f32 0.0, %v1552
        %1554 = vdwg.mxu0
        %1555 = vmatprep.subr.mxu0 0.0
        %1556 = vmatpush1.msra.mxu0 %v512
        %1557 = vmatprep.subr.mxu0 0.0
        %1558 = vmatpush1.msra.mxu0 %v519
        %1559 = vmatprep.subr.mxu0 0.0
        %1560 = vmatpush1.msra.mxu0 0.0
        %1561 = vmatprep.subr.mxu0 0.0
        %1562 = vmatpush1.msra.mxu0 0.0
        %1563 = vmatprep.subr.mxu0 0.0
        %1564 = vmatpush1.msra.mxu0 0.0
        %1565 = vmatprep.subr.mxu0 0.0
        %1566 = vmatpush1.msra.mxu0 0.0
        %1567 = vmatprep.subr.mxu0 0.0
        %1568 = vmatpush1.msra.mxu0 0.0
        %1569 = vmatprep.subr.mxu0 0.0
        %1570 = vmatpush1.msra.mxu0 0.0
        %1571 = vmatprep.subr.mxu0 0.0
        %1572 = vmatpush1.msra.mxu0 0.0
        %1573 = vmatprep.subr.mxu0 0.0
        %1574 = vmatpush1.msra.mxu0 0.0
        %1575 = vmatprep.subr.mxu0 0.0
        %1576 = vmatpush1.msra.mxu0 0.0
        %1577 = vmatprep.subr.mxu0 0.0
        %1578 = vmatpush1.msra.mxu0 0.0
        %1579 = vmatprep.subr.mxu0 0.0
        %1580 = vmatpush1.msra.mxu0 0.0
        %1581 = vmatprep.subr.mxu0 0.0
        %1582 = vmatpush1.msra.mxu0 0.0
        %1583 = vmatprep.subr.mxu0 0.0
        %1584 = vmatpush1.msra.mxu0 0.0
        %1585 = vmatprep.subr.mxu0 0.0
        %1586 = vmatpush1.msra.mxu0 0.0
        %1587 = vmatprep.subr.mxu0 0.0
        %1588 = vmatpush1.msra.mxu0 0.0
        %1589 = vmatprep.subr.mxu0 0.0
        %1590 = vmatpush1.msra.mxu0 0.0
        %1591 = vmatprep.subr.mxu0 0.0
        %1592 = vmatpush1.msra.mxu0 0.0
        %1593 = vmatprep.subr.mxu0 0.0
        %1594 = vmatpush1.msra.mxu0 0.0
        %1595 = vmatprep.subr.mxu0 0.0
        %1596 = vmatpush1.msra.mxu0 0.0
        %1597 = vmatprep.subr.mxu0 0.0
        %1598 = vmatpush1.msra.mxu0 0.0
        %1599 = vmatprep.subr.mxu0 0.0
        %1600 = vmatpush1.msra.mxu0 0.0
        %1601 = vmatprep.subr.mxu0 0.0
        %1602 = vmatpush1.msra.mxu0 0.0
        %1603 = vmatprep.subr.mxu0 0.0
        %1604 = vmatpush1.msra.mxu0 0.0
        %1605 = vmatprep.subr.mxu0 0.0
        %1606 = vmatpush1.msra.mxu0 0.0
        %1607 = vmatprep.subr.mxu0 0.0
        %1608 = vmatpush1.msra.mxu0 0.0
        %1609 = vmatprep.subr.mxu0 0.0
        %1610 = vmatpush1.msra.mxu0 0.0
        %1611 = vmatprep.subr.mxu0 0.0
        %1612 = vmatpush1.msra.mxu0 0.0
        %1613 = vmatprep.subr.mxu0 0.0
        %1614 = vmatpush1.msra.mxu0 0.0
        %1615 = vmatprep.subr.mxu0 0.0
        %1616 = vmatpush1.msra.mxu0 0.0
        %1617 = vmatprep.subr.mxu0 0.0
        %1618 = vmatpush1.msra.mxu0 0.0
        %1619 = vmatprep.mubr.f32.mxu0 0.0
        %1620 = vmatmul.mubr.f32.gmra.mrb[0].mxu0 %v1235
        %v1621 = vpop.f32.mrb[0].mxu0
        %v1622 = vadd.f32 0.0, %v1621
        %v1623 = vpop.f32.mrb[0].mxu0
        %1624 = vmatprep.mubr.f32.mxu0 0.0
        %1625 = vmatmul.mubr.f32.gmra.mrb[0].mxu0 %v1238
        %v1626 = vpop.f32.mrb[0].mxu0
        %v1627 = vadd.f32 0.0, %v1626
        %v1628 = vpop.f32.mrb[0].mxu0
        %1629 = vmatprep.mubr.f32.mxu0 0.0
        %1630 = vmatmul.mubr.f32.gmra.mrb[0].mxu0 %v1241
        %v1631 = vpop.f32.mrb[0].mxu0
        %v1632 = vadd.f32 0.0, %v1631
        %v1633 = vpop.f32.mrb[0].mxu0
        %1634 = vmatprep.mubr.f32.mxu0 0.0
        %1635 = vmatmul.mubr.f32.gmra.mrb[0].mxu0 %v1244
        %v1636 = vpop.f32.mrb[0].mxu0
        %v1637 = vadd.f32 0.0, %v1636
        %v1638 = vpop.f32.mrb[0].mxu0
        %1639 = vmatprep.mubr.f32.mxu0 0.0
        %1640 = vmatmul.mubr.f32.gmra.mrb[0].mxu0 %v1247
        %v1641 = vpop.f32.mrb[0].mxu0
        %v1642 = vadd.f32 0.0, %v1641
        %v1643 = vpop.f32.mrb[0].mxu0
        %1644 = vmatprep.mubr.f32.mxu0 0.0
        %1645 = vmatmul.mubr.f32.gmra.mrb[0].mxu0 %v1250
        %v1646 = vpop.f32.mrb[0].mxu0
        %v1647 = vadd.f32 0.0, %v1646
        %v1648 = vpop.f32.mrb[0].mxu0
        %1649 = vdwg.mxu0
        %1650 = vrot.lane.b32.xlu0 %v1319, 1
        %v1651 = vpop.permute.xlu0 %1650
        %1652 = vrot.lane.b32.xlu0 %v1325, 1
        %v1653 = vpop.permute.xlu0 %1652
        %1654 = vrot.lane.b32.xlu0 %v1321, 1
        %v1655 = vpop.permute.xlu0 %1654
        %1656 = vrot.lane.b32.xlu0 %v1327, 1
        %v1657 = vpop.permute.xlu0 %1656
        %1658 = vrot.lane.b32.xlu0 %v1420, 1
        %v1659 = vpop.permute.xlu0 %1658
        %1660 = vrot.lane.b32.xlu0 %v1426, 1
        %v1661 = vpop.permute.xlu0 %1660
        %1662 = vrot.lane.b32.xlu0 %v1422, 1
        %v1663 = vpop.permute.xlu0 %1662
        %1664 = vrot.lane.b32.xlu0 %v1428, 1
        %v1665 = vpop.permute.xlu0 %1664
        %1666 = vrot.lane.b32.xlu0 %v1521, 1
        %v1667 = vpop.permute.xlu0 %1666
        %1668 = vrot.lane.b32.xlu0 %v1527, 1
        %v1669 = vpop.permute.xlu0 %1668
        %1670 = vrot.lane.b32.xlu0 %v1523, 1
        %v1671 = vpop.permute.xlu0 %1670
        %1672 = vrot.lane.b32.xlu0 %v1529, 1
        %v1673 = vpop.permute.xlu0 %1672
        %1674 = vrot.lane.b32.xlu0 %v1622, 1
        %v1675 = vpop.permute.xlu0 %1674
        %1676 = vrot.lane.b32.xlu0 %v1627, 1
        %v1677 = vpop.permute.xlu0 %1676
        %vm1678 = vcmp.lt.s32.totalorder %v972, 1
        %v1679 = vsel %vm1678, %v1671, %v1675
        %v1680 = vsel %vm1678, %v1673, %v1677
        %v1681 = vsel %vm1678, %v1667, %v1671
        %v1682 = vsel %vm1678, %v1669, %v1673
        %v1683 = vsel %vm1678, %v1663, %v1667
        %v1684 = vsel %vm1678, %v1665, %v1669
        %v1685 = vsel %vm1678, %v1659, %v1663
        %v1686 = vsel %vm1678, %v1661, %v1665
        %v1687 = vsel %vm1678, %v1655, %v1659
        %v1688 = vsel %vm1678, %v1657, %v1661
        %v1689 = vsel %vm1678, %v1651, %v1655
        %v1690 = vsel %vm1678, %v1653, %v1657
        %v1691 = vsel %vm1678, %v1675, %v1651
        %v1692 = vsel %vm1678, %v1677, %v1653
        %v1693 = vmul.f32 %v1691, %v992
        %v1694 = vmul.f32 %v1689, %v996
        %v1695 = vmul.f32 %v1687, %v1000
        %v1696 = vmul.f32 %v1685, %v1004
        %v1697 = vmul.f32 %v1683, %v1008
        %v1698 = vmul.f32 %v1681, %v1012
        %v1699 = vmul.f32 %v1679, %v1016
        %v1700 = vmul.f32 %v1692, %v992
        %v1701 = vmul.f32 %v1690, %v996
        %v1702 = vmul.f32 %v1688, %v1000
        %v1703 = vmul.f32 %v1686, %v1004
        %v1704 = vmul.f32 %v1684, %v1008
        %v1705 = vmul.f32 %v1682, %v1012
        %v1706 = vmul.f32 %v1680, %v1016
        %v1707 = vadd.f32 %v1214, %v1693
        %v1708 = vadd.f32 %v1215, %v1694
        %v1709 = vadd.f32 %v1216, %v1695
        %v1710 = vadd.f32 %v1217, %v1696
        %v1711 = vadd.f32 %v1218, %v1697
        %v1712 = vadd.f32 %v1219, %v1698
        %v1713 = vadd.f32 %v1220, %v1699
        %v1714 = vadd.f32 %v1221, %v1700
        %v1715 = vadd.f32 %v1222, %v1701
        %v1716 = vadd.f32 %v1223, %v1702
        %v1717 = vadd.f32 %v1224, %v1703
        %v1718 = vadd.f32 %v1225, %v1704
        %v1719 = vadd.f32 %v1226, %v1705
        %v1720 = vadd.f32 %v1227, %v1706
        %v1721 = vadd.f32 %v1707, %v1331
        %v1722 = vadd.f32 %v1708, %v1333
        %v1723 = vadd.f32 %v1709, %v1432
        %v1724 = vadd.f32 %v1710, %v1434
        %v1725 = vadd.f32 %v1711, %v1533
        %v1726 = vadd.f32 %v1712, %v1535
        %v1727 = vadd.f32 %v1713, %v1632
        %v1728 = vadd.f32 %v1714, %v1337
        %v1729 = vadd.f32 %v1715, %v1339
        %v1730 = vadd.f32 %v1716, %v1438
        %v1731 = vadd.f32 %v1717, %v1440
        %v1732 = vadd.f32 %v1718, %v1539
        %v1733 = vadd.f32 %v1719, %v1541
        %v1734 = vadd.f32 %v1720, %v1637
        %1735 = vrot.lane.b32.xlu0 %v1343, 127
        %v1736 = vpop.permute.xlu0 %1735
        %1737 = vrot.lane.b32.xlu0 %v1349, 127
        %v1738 = vpop.permute.xlu0 %1737
        %1739 = vrot.lane.b32.xlu0 %v1345, 127
        %v1740 = vpop.permute.xlu0 %1739
        %1741 = vrot.lane.b32.xlu0 %v1351, 127
        %v1742 = vpop.permute.xlu0 %1741
        %1743 = vrot.lane.b32.xlu0 %v1444, 127
        %v1744 = vpop.permute.xlu0 %1743
        %1745 = vrot.lane.b32.xlu0 %v1450, 127
        %v1746 = vpop.permute.xlu0 %1745
        %1747 = vrot.lane.b32.xlu0 %v1446, 127
        %v1748 = vpop.permute.xlu0 %1747
        %1749 = vrot.lane.b32.xlu0 %v1452, 127
        %v1750 = vpop.permute.xlu0 %1749
        %1751 = vrot.lane.b32.xlu0 %v1545, 127
        %v1752 = vpop.permute.xlu0 %1751
        %1753 = vrot.lane.b32.xlu0 %v1551, 127
        %v1754 = vpop.permute.xlu0 %1753
        %1755 = vrot.lane.b32.xlu0 %v1547, 127
        %v1756 = vpop.permute.xlu0 %1755
        %1757 = vrot.lane.b32.xlu0 %v1553, 127
        %v1758 = vpop.permute.xlu0 %1757
        %1759 = vrot.lane.b32.xlu0 %v1642, 127
        %v1760 = vpop.permute.xlu0 %1759
        %1761 = vrot.lane.b32.xlu0 %v1647, 127
        %v1762 = vpop.permute.xlu0 %1761
        %vm1763 = vcmp.lt.s32.totalorder %v972, 127
        %v1764 = vsel %vm1763, %v1756, %v1760
        %v1765 = vsel %vm1763, %v1758, %v1762
        %v1766 = vsel %vm1763, %v1752, %v1756
        %v1767 = vsel %vm1763, %v1754, %v1758
        %v1768 = vsel %vm1763, %v1748, %v1752
        %v1769 = vsel %vm1763, %v1750, %v1754
        %v1770 = vsel %vm1763, %v1744, %v1748
        %v1771 = vsel %vm1763, %v1746, %v1750
        %v1772 = vsel %vm1763, %v1740, %v1744
        %v1773 = vsel %vm1763, %v1742, %v1746
        %v1774 = vsel %vm1763, %v1736, %v1740
        %v1775 = vsel %vm1763, %v1738, %v1742
        %v1776 = vsel %vm1763, %v1760, %v1736
        %v1777 = vsel %vm1763, %v1762, %v1738
        %v1778 = vmul.f32 %v1774, %v1168
        %v1779 = vmul.f32 %v1772, %v1172
        %v1780 = vmul.f32 %v1770, %v1176
        %v1781 = vmul.f32 %v1768, %v1180
        %v1782 = vmul.f32 %v1766, %v1184
        %v1783 = vmul.f32 %v1764, %v1188
        %v1784 = vmul.f32 %v1776, %v1192
        %v1785 = vmul.f32 %v1775, %v1168
        %v1786 = vmul.f32 %v1773, %v1172
        %v1787 = vmul.f32 %v1771, %v1176
        %v1788 = vmul.f32 %v1769, %v1180
        %v1789 = vmul.f32 %v1767, %v1184
        %v1790 = vmul.f32 %v1765, %v1188
        %v1791 = vmul.f32 %v1777, %v1192
        %v1792 = vadd.f32 %v1721, %v1778
        %v1793 = vadd.f32 %v1722, %v1779
        %v1794 = vadd.f32 %v1723, %v1780
        %v1795 = vadd.f32 %v1724, %v1781
        %v1796 = vadd.f32 %v1725, %v1782
        %v1797 = vadd.f32 %v1726, %v1783
        %v1798 = vadd.f32 %v1727, %v1784
        %v1799 = vadd.f32 %v1728, %v1785
        %v1800 = vadd.f32 %v1729, %v1786
        %v1801 = vadd.f32 %v1730, %v1787
        %v1802 = vadd.f32 %v1731, %v1788
        %v1803 = vadd.f32 %v1732, %v1789
        %v1804 = vadd.f32 %v1733, %v1790
        %v1805 = vadd.f32 %v1734, %v1791
        %v1806 = vld [vmem:[%s4 + $0x60] sm:$0xff]
        %v1807 = vld [vmem:[%s4 + $0x68] sm:$0xff]
        %v1808 = vld [vmem:[%s4 + $0x70] sm:$0xff]
        %v1809 = vld [vmem:[%s4 + $0x78] sm:$0xff]
        %v1810 = vld [vmem:[%s4 + $0x80] sm:$0xff]
        %v1811 = vld [vmem:[%s4 + $0x88] sm:$0xff]
        %v1813 = vsel %vm526, %v1806, 0
        %v1816 = vsel %vm526, %v1807, 0
        %v1819 = vsel %vm526, %v1808, 0
        %v1822 = vsel %vm526, %v1809, 0
        %v1825 = vsel %vm526, %v1810, 0
        %v1828 = vsel %vm526, %v1811, 0
        %1830 = vmatprep.subr.mxu0 %v507
        %1831 = vmatpush1.msra.mxu0 %v506
        %1832 = vmatprep.subr.mxu0 %v514
        %1833 = vmatpush1.msra.mxu0 %v513
        %1834 = vmatprep.subr.mxu0 0.0
        %1835 = vmatpush1.msra.mxu0 0.0
        %1836 = vmatprep.subr.mxu0 0.0
        %1837 = vmatpush1.msra.mxu0 0.0
        %1838 = vmatprep.subr.mxu0 0.0
        %1839 = vmatpush1.msra.mxu0 0.0
        %1840 = vmatprep.subr.mxu0 0.0
        %1841 = vmatpush1.msra.mxu0 0.0
        %1842 = vmatprep.subr.mxu0 0.0
        %1843 = vmatpush1.msra.mxu0 0.0
        %1844 = vmatprep.subr.mxu0 0.0
        %1845 = vmatpush1.msra.mxu0 0.0
        %1846 = vmatprep.subr.mxu0 0.0
        %1847 = vmatpush1.msra.mxu0 0.0
        %1848 = vmatprep.subr.mxu0 0.0
        %1849 = vmatpush1.msra.mxu0 0.0
        %1850 = vmatprep.subr.mxu0 0.0
        %1851 = vmatpush1.msra.mxu0 0.0
        %1852 = vmatprep.subr.mxu0 0.0
        %1853 = vmatpush1.msra.mxu0 0.0
        %1854 = vmatprep.subr.mxu0 0.0
        %1855 = vmatpush1.msra.mxu0 0.0
        %1856 = vmatprep.subr.mxu0 0.0
        %1857 = vmatpush1.msra.mxu0 0.0
        %1858 = vmatprep.subr.mxu0 0.0
        %1859 = vmatpush1.msra.mxu0 0.0
        %1860 = vmatprep.subr.mxu0 0.0
        %1861 = vmatpush1.msra.mxu0 0.0
        %1862 = vmatprep.subr.mxu0 0.0
        %1863 = vmatpush1.msra.mxu0 0.0
        %1864 = vmatprep.subr.mxu0 0.0
        %1865 = vmatpush1.msra.mxu0 0.0
        %1866 = vmatprep.subr.mxu0 0.0
        %1867 = vmatpush1.msra.mxu0 0.0
        %1868 = vmatprep.subr.mxu0 0.0
        %1869 = vmatpush1.msra.mxu0 0.0
        %1870 = vmatprep.subr.mxu0 0.0
        %1871 = vmatpush1.msra.mxu0 0.0
        %1872 = vmatprep.subr.mxu0 0.0
        %1873 = vmatpush1.msra.mxu0 0.0
        %1874 = vmatprep.subr.mxu0 0.0
        %1875 = vmatpush1.msra.mxu0 0.0
        %1876 = vmatprep.subr.mxu0 0.0
        %1877 = vmatpush1.msra.mxu0 0.0
        %1878 = vmatprep.subr.mxu0 0.0
        %1879 = vmatpush1.msra.mxu0 0.0
        %1880 = vmatprep.subr.mxu0 0.0
        %1881 = vmatpush1.msra.mxu0 0.0
        %1882 = vmatprep.subr.mxu0 0.0
        %1883 = vmatpush1.msra.mxu0 0.0
        %1884 = vmatprep.subr.mxu0 0.0
        %1885 = vmatpush1.msra.mxu0 0.0
        %1886 = vmatprep.subr.mxu0 0.0
        %1887 = vmatpush1.msra.mxu0 0.0
        %1888 = vmatprep.subr.mxu0 0.0
        %1889 = vmatpush1.msra.mxu0 0.0
        %1890 = vmatprep.subr.mxu0 0.0
        %1891 = vmatpush1.msra.mxu0 0.0
        %1892 = vmatprep.subr.mxu0 0.0
        %1893 = vmatpush1.msra.mxu0 0.0
        %1894 = vmatprep.mubr.f32.mxu0 0.0
        %1895 = vmatmul.mubr.f32.gmra.mrb[0].mxu0 %v1813
        %v1896 = vpop.f32.mrb[0].mxu0
        %v1897 = vadd.f32 0.0, %v1896
        %v1898 = vpop.f32.mrb[0].mxu0
        %v1899 = vadd.f32 0.0, %v1898
        %1900 = vmatprep.mubr.f32.mxu0 0.0
        %1901 = vmatmul.mubr.f32.gmra.mrb[0].mxu0 %v1816
        %v1902 = vpop.f32.mrb[0].mxu0
        %v1903 = vadd.f32 0.0, %v1902
        %v1904 = vpop.f32.mrb[0].mxu0
        %v1905 = vadd.f32 0.0, %v1904
        %1906 = vmatprep.mubr.f32.mxu0 0.0
        %1907 = vmatmul.mubr.f32.gmra.mrb[0].mxu0 %v1819
        %v1908 = vpop.f32.mrb[0].mxu0
        %v1909 = vadd.f32 0.0, %v1908
        %v1910 = vpop.f32.mrb[0].mxu0
        %v1911 = vadd.f32 0.0, %v1910
        %1912 = vmatprep.mubr.f32.mxu0 0.0
        %1913 = vmatmul.mubr.f32.gmra.mrb[0].mxu0 %v1822
        %v1914 = vpop.f32.mrb[0].mxu0
        %v1915 = vadd.f32 0.0, %v1914
        %v1916 = vpop.f32.mrb[0].mxu0
        %v1917 = vadd.f32 0.0, %v1916
        %1918 = vmatprep.mubr.f32.mxu0 0.0
        %1919 = vmatmul.mubr.f32.gmra.mrb[0].mxu0 %v1825
        %v1920 = vpop.f32.mrb[0].mxu0
        %v1921 = vadd.f32 0.0, %v1920
        %v1922 = vpop.f32.mrb[0].mxu0
        %v1923 = vadd.f32 0.0, %v1922
        %1924 = vmatprep.mubr.f32.mxu0 0.0
        %1925 = vmatmul.mubr.f32.gmra.mrb[0].mxu0 %v1828
        %v1926 = vpop.f32.mrb[0].mxu0
        %v1927 = vadd.f32 0.0, %v1926
        %v1928 = vpop.f32.mrb[0].mxu0
        %v1929 = vadd.f32 0.0, %v1928
        %1930 = vdwg.mxu0
        %1931 = vmatprep.subr.mxu0 %v509
        %1932 = vmatpush1.msra.mxu0 %v508
        %1933 = vmatprep.subr.mxu0 %v516
        %1934 = vmatpush1.msra.mxu0 %v515
        %1935 = vmatprep.subr.mxu0 0.0
        %1936 = vmatpush1.msra.mxu0 0.0
        %1937 = vmatprep.subr.mxu0 0.0
        %1938 = vmatpush1.msra.mxu0 0.0
        %1939 = vmatprep.subr.mxu0 0.0
        %1940 = vmatpush1.msra.mxu0 0.0
        %1941 = vmatprep.subr.mxu0 0.0
        %1942 = vmatpush1.msra.mxu0 0.0
        %1943 = vmatprep.subr.mxu0 0.0
        %1944 = vmatpush1.msra.mxu0 0.0
        %1945 = vmatprep.subr.mxu0 0.0
        %1946 = vmatpush1.msra.mxu0 0.0
        %1947 = vmatprep.subr.mxu0 0.0
        %1948 = vmatpush1.msra.mxu0 0.0
        %1949 = vmatprep.subr.mxu0 0.0
        %1950 = vmatpush1.msra.mxu0 0.0
        %1951 = vmatprep.subr.mxu0 0.0
        %1952 = vmatpush1.msra.mxu0 0.0
        %1953 = vmatprep.subr.mxu0 0.0
        %1954 = vmatpush1.msra.mxu0 0.0
        %1955 = vmatprep.subr.mxu0 0.0
        %1956 = vmatpush1.msra.mxu0 0.0
        %1957 = vmatprep.subr.mxu0 0.0
        %1958 = vmatpush1.msra.mxu0 0.0
        %1959 = vmatprep.subr.mxu0 0.0
        %1960 = vmatpush1.msra.mxu0 0.0
        %1961 = vmatprep.subr.mxu0 0.0
        %1962 = vmatpush1.msra.mxu0 0.0
        %1963 = vmatprep.subr.mxu0 0.0
        %1964 = vmatpush1.msra.mxu0 0.0
        %1965 = vmatprep.subr.mxu0 0.0
        %1966 = vmatpush1.msra.mxu0 0.0
        %1967 = vmatprep.subr.mxu0 0.0
        %1968 = vmatpush1.msra.mxu0 0.0
        %1969 = vmatprep.subr.mxu0 0.0
        %1970 = vmatpush1.msra.mxu0 0.0
        %1971 = vmatprep.subr.mxu0 0.0
        %1972 = vmatpush1.msra.mxu0 0.0
        %1973 = vmatprep.subr.mxu0 0.0
        %1974 = vmatpush1.msra.mxu0 0.0
        %1975 = vmatprep.subr.mxu0 0.0
        %1976 = vmatpush1.msra.mxu0 0.0
        %1977 = vmatprep.subr.mxu0 0.0
        %1978 = vmatpush1.msra.mxu0 0.0
        %1979 = vmatprep.subr.mxu0 0.0
        %1980 = vmatpush1.msra.mxu0 0.0
        %1981 = vmatprep.subr.mxu0 0.0
        %1982 = vmatpush1.msra.mxu0 0.0
        %1983 = vmatprep.subr.mxu0 0.0
        %1984 = vmatpush1.msra.mxu0 0.0
        %1985 = vmatprep.subr.mxu0 0.0
        %1986 = vmatpush1.msra.mxu0 0.0
        %1987 = vmatprep.subr.mxu0 0.0
        %1988 = vmatpush1.msra.mxu0 0.0
        %1989 = vmatprep.subr.mxu0 0.0
        %1990 = vmatpush1.msra.mxu0 0.0
        %1991 = vmatprep.subr.mxu0 0.0
        %1992 = vmatpush1.msra.mxu0 0.0
        %1993 = vmatprep.subr.mxu0 0.0
        %1994 = vmatpush1.msra.mxu0 0.0
        %1995 = vmatprep.mubr.f32.mxu0 0.0
        %1996 = vmatmul.mubr.f32.gmra.mrb[0].mxu0 %v1813
        %v1997 = vpop.f32.mrb[0].mxu0
        %v1998 = vadd.f32 0.0, %v1997
        %v1999 = vpop.f32.mrb[0].mxu0
        %v2000 = vadd.f32 0.0, %v1999
        %2001 = vmatprep.mubr.f32.mxu0 0.0
        %2002 = vmatmul.mubr.f32.gmra.mrb[0].mxu0 %v1816
        %v2003 = vpop.f32.mrb[0].mxu0
        %v2004 = vadd.f32 0.0, %v2003
        %v2005 = vpop.f32.mrb[0].mxu0
        %v2006 = vadd.f32 0.0, %v2005
        %2007 = vmatprep.mubr.f32.mxu0 0.0
        %2008 = vmatmul.mubr.f32.gmra.mrb[0].mxu0 %v1819
        %v2009 = vpop.f32.mrb[0].mxu0
        %v2010 = vadd.f32 0.0, %v2009
        %v2011 = vpop.f32.mrb[0].mxu0
        %v2012 = vadd.f32 0.0, %v2011
        %2013 = vmatprep.mubr.f32.mxu0 0.0
        %2014 = vmatmul.mubr.f32.gmra.mrb[0].mxu0 %v1822
        %v2015 = vpop.f32.mrb[0].mxu0
        %v2016 = vadd.f32 0.0, %v2015
        %v2017 = vpop.f32.mrb[0].mxu0
        %v2018 = vadd.f32 0.0, %v2017
        %2019 = vmatprep.mubr.f32.mxu0 0.0
        %2020 = vmatmul.mubr.f32.gmra.mrb[0].mxu0 %v1825
        %v2021 = vpop.f32.mrb[0].mxu0
        %v2022 = vadd.f32 0.0, %v2021
        %v2023 = vpop.f32.mrb[0].mxu0
        %v2024 = vadd.f32 0.0, %v2023
        %2025 = vmatprep.mubr.f32.mxu0 0.0
        %2026 = vmatmul.mubr.f32.gmra.mrb[0].mxu0 %v1828
        %v2027 = vpop.f32.mrb[0].mxu0
        %v2028 = vadd.f32 0.0, %v2027
        %v2029 = vpop.f32.mrb[0].mxu0
        %v2030 = vadd.f32 0.0, %v2029
        %2031 = vdwg.mxu0
        %2032 = vmatprep.subr.mxu0 %v511
        %2033 = vmatpush1.msra.mxu0 %v510
        %2034 = vmatprep.subr.mxu0 %v518
        %2035 = vmatpush1.msra.mxu0 %v517
        %2036 = vmatprep.subr.mxu0 0.0
        %2037 = vmatpush1.msra.mxu0 0.0
        %2038 = vmatprep.subr.mxu0 0.0
        %2039 = vmatpush1.msra.mxu0 0.0
        %2040 = vmatprep.subr.mxu0 0.0
        %2041 = vmatpush1.msra.mxu0 0.0
        %2042 = vmatprep.subr.mxu0 0.0
        %2043 = vmatpush1.msra.mxu0 0.0
        %2044 = vmatprep.subr.mxu0 0.0
        %2045 = vmatpush1.msra.mxu0 0.0
        %2046 = vmatprep.subr.mxu0 0.0
        %2047 = vmatpush1.msra.mxu0 0.0
        %2048 = vmatprep.subr.mxu0 0.0
        %2049 = vmatpush1.msra.mxu0 0.0
        %2050 = vmatprep.subr.mxu0 0.0
        %2051 = vmatpush1.msra.mxu0 0.0
        %2052 = vmatprep.subr.mxu0 0.0
        %2053 = vmatpush1.msra.mxu0 0.0
        %2054 = vmatprep.subr.mxu0 0.0
        %2055 = vmatpush1.msra.mxu0 0.0
        %2056 = vmatprep.subr.mxu0 0.0
        %2057 = vmatpush1.msra.mxu0 0.0
        %2058 = vmatprep.subr.mxu0 0.0
        %2059 = vmatpush1.msra.mxu0 0.0
        %2060 = vmatprep.subr.mxu0 0.0
        %2061 = vmatpush1.msra.mxu0 0.0
        %2062 = vmatprep.subr.mxu0 0.0
        %2063 = vmatpush1.msra.mxu0 0.0
        %2064 = vmatprep.subr.mxu0 0.0
        %2065 = vmatpush1.msra.mxu0 0.0
        %2066 = vmatprep.subr.mxu0 0.0
        %2067 = vmatpush1.msra.mxu0 0.0
        %2068 = vmatprep.subr.mxu0 0.0
        %2069 = vmatpush1.msra.mxu0 0.0
        %2070 = vmatprep.subr.mxu0 0.0
        %2071 = vmatpush1.msra.mxu0 0.0
        %2072 = vmatprep.subr.mxu0 0.0
        %2073 = vmatpush1.msra.mxu0 0.0
        %2074 = vmatprep.subr.mxu0 0.0
        %2075 = vmatpush1.msra.mxu0 0.0
        %2076 = vmatprep.subr.mxu0 0.0
        %2077 = vmatpush1.msra.mxu0 0.0
        %2078 = vmatprep.subr.mxu0 0.0
        %2079 = vmatpush1.msra.mxu0 0.0
        %2080 = vmatprep.subr.mxu0 0.0
        %2081 = vmatpush1.msra.mxu0 0.0
        %2082 = vmatprep.subr.mxu0 0.0
        %2083 = vmatpush1.msra.mxu0 0.0
        %2084 = vmatprep.subr.mxu0 0.0
        %2085 = vmatpush1.msra.mxu0 0.0
        %2086 = vmatprep.subr.mxu0 0.0
        %2087 = vmatpush1.msra.mxu0 0.0
        %2088 = vmatprep.subr.mxu0 0.0
        %2089 = vmatpush1.msra.mxu0 0.0
        %2090 = vmatprep.subr.mxu0 0.0
        %2091 = vmatpush1.msra.mxu0 0.0
        %2092 = vmatprep.subr.mxu0 0.0
        %2093 = vmatpush1.msra.mxu0 0.0
        %2094 = vmatprep.subr.mxu0 0.0
        %2095 = vmatpush1.msra.mxu0 0.0
        %2096 = vmatprep.mubr.f32.mxu0 0.0
        %2097 = vmatmul.mubr.f32.gmra.mrb[0].mxu0 %v1813
        %v2098 = vpop.f32.mrb[0].mxu0
        %v2099 = vadd.f32 0.0, %v2098
        %v2100 = vpop.f32.mrb[0].mxu0
        %v2101 = vadd.f32 0.0, %v2100
        %2102 = vmatprep.mubr.f32.mxu0 0.0
        %2103 = vmatmul.mubr.f32.gmra.mrb[0].mxu0 %v1816
        %v2104 = vpop.f32.mrb[0].mxu0
        %v2105 = vadd.f32 0.0, %v2104
        %v2106 = vpop.f32.mrb[0].mxu0
        %v2107 = vadd.f32 0.0, %v2106
        %2108 = vmatprep.mubr.f32.mxu0 0.0
        %2109 = vmatmul.mubr.f32.gmra.mrb[0].mxu0 %v1819
        %v2110 = vpop.f32.mrb[0].mxu0
        %v2111 = vadd.f32 0.0, %v2110
        %v2112 = vpop.f32.mrb[0].mxu0
        %v2113 = vadd.f32 0.0, %v2112
        %2114 = vmatprep.mubr.f32.mxu0 0.0
        %2115 = vmatmul.mubr.f32.gmra.mrb[0].mxu0 %v1822
        %v2116 = vpop.f32.mrb[0].mxu0
        %v2117 = vadd.f32 0.0, %v2116
        %v2118 = vpop.f32.mrb[0].mxu0
        %v2119 = vadd.f32 0.0, %v2118
        %2120 = vmatprep.mubr.f32.mxu0 0.0
        %2121 = vmatmul.mubr.f32.gmra.mrb[0].mxu0 %v1825
        %v2122 = vpop.f32.mrb[0].mxu0
        %v2123 = vadd.f32 0.0, %v2122
        %v2124 = vpop.f32.mrb[0].mxu0
        %v2125 = vadd.f32 0.0, %v2124
        %2126 = vmatprep.mubr.f32.mxu0 0.0
        %2127 = vmatmul.mubr.f32.gmra.mrb[0].mxu0 %v1828
        %v2128 = vpop.f32.mrb[0].mxu0
        %v2129 = vadd.f32 0.0, %v2128
        %v2130 = vpop.f32.mrb[0].mxu0
        %v2131 = vadd.f32 0.0, %v2130
        %2132 = vdwg.mxu0
        %2133 = vmatprep.subr.mxu0 0.0
        %2134 = vmatpush1.msra.mxu0 %v512
        %2135 = vmatprep.subr.mxu0 0.0
        %2136 = vmatpush1.msra.mxu0 %v519
        %2137 = vmatprep.subr.mxu0 0.0
        %2138 = vmatpush1.msra.mxu0 0.0
        %2139 = vmatprep.subr.mxu0 0.0
        %2140 = vmatpush1.msra.mxu0 0.0
        %2141 = vmatprep.subr.mxu0 0.0
        %2142 = vmatpush1.msra.mxu0 0.0
        %2143 = vmatprep.subr.mxu0 0.0
        %2144 = vmatpush1.msra.mxu0 0.0
        %2145 = vmatprep.subr.mxu0 0.0
        %2146 = vmatpush1.msra.mxu0 0.0
        %2147 = vmatprep.subr.mxu0 0.0
        %2148 = vmatpush1.msra.mxu0 0.0
        %2149 = vmatprep.subr.mxu0 0.0
        %2150 = vmatpush1.msra.mxu0 0.0
        %2151 = vmatprep.subr.mxu0 0.0
        %2152 = vmatpush1.msra.mxu0 0.0
        %2153 = vmatprep.subr.mxu0 0.0
        %2154 = vmatpush1.msra.mxu0 0.0
        %2155 = vmatprep.subr.mxu0 0.0
        %2156 = vmatpush1.msra.mxu0 0.0
        %2157 = vmatprep.subr.mxu0 0.0
        %2158 = vmatpush1.msra.mxu0 0.0
        %2159 = vmatprep.subr.mxu0 0.0
        %2160 = vmatpush1.msra.mxu0 0.0
        %2161 = vmatprep.subr.mxu0 0.0
        %2162 = vmatpush1.msra.mxu0 0.0
        %2163 = vmatprep.subr.mxu0 0.0
        %2164 = vmatpush1.msra.mxu0 0.0
        %2165 = vmatprep.subr.mxu0 0.0
        %2166 = vmatpush1.msra.mxu0 0.0
        %2167 = vmatprep.subr.mxu0 0.0
        %2168 = vmatpush1.msra.mxu0 0.0
        %2169 = vmatprep.subr.mxu0 0.0
        %2170 = vmatpush1.msra.mxu0 0.0
        %2171 = vmatprep.subr.mxu0 0.0
        %2172 = vmatpush1.msra.mxu0 0.0
        %2173 = vmatprep.subr.mxu0 0.0
        %2174 = vmatpush1.msra.mxu0 0.0
        %2175 = vmatprep.subr.mxu0 0.0
        %2176 = vmatpush1.msra.mxu0 0.0
        %2177 = vmatprep.subr.mxu0 0.0
        %2178 = vmatpush1.msra.mxu0 0.0
        %2179 = vmatprep.subr.mxu0 0.0
        %2180 = vmatpush1.msra.mxu0 0.0
        %2181 = vmatprep.subr.mxu0 0.0
        %2182 = vmatpush1.msra.mxu0 0.0
        %2183 = vmatprep.subr.mxu0 0.0
        %2184 = vmatpush1.msra.mxu0 0.0
        %2185 = vmatprep.subr.mxu0 0.0
        %2186 = vmatpush1.msra.mxu0 0.0
        %2187 = vmatprep.subr.mxu0 0.0
        %2188 = vmatpush1.msra.mxu0 0.0
        %2189 = vmatprep.subr.mxu0 0.0
        %2190 = vmatpush1.msra.mxu0 0.0
        %2191 = vmatprep.subr.mxu0 0.0
        %2192 = vmatpush1.msra.mxu0 0.0
        %2193 = vmatprep.subr.mxu0 0.0
        %2194 = vmatpush1.msra.mxu0 0.0
        %2195 = vmatprep.subr.mxu0 0.0
        %2196 = vmatpush1.msra.mxu0 0.0
        %2197 = vmatprep.mubr.f32.mxu0 0.0
        %2198 = vmatmul.mubr.f32.gmra.mrb[0].mxu0 %v1813
        %v2199 = vpop.f32.mrb[0].mxu0
        %v2200 = vadd.f32 0.0, %v2199
        %v2201 = vpop.f32.mrb[0].mxu0
        %2202 = vmatprep.mubr.f32.mxu0 0.0
        %2203 = vmatmul.mubr.f32.gmra.mrb[0].mxu0 %v1816
        %v2204 = vpop.f32.mrb[0].mxu0
        %v2205 = vadd.f32 0.0, %v2204
        %v2206 = vpop.f32.mrb[0].mxu0
        %2207 = vmatprep.mubr.f32.mxu0 0.0
        %2208 = vmatmul.mubr.f32.gmra.mrb[0].mxu0 %v1819
        %v2209 = vpop.f32.mrb[0].mxu0
        %v2210 = vadd.f32 0.0, %v2209
        %v2211 = vpop.f32.mrb[0].mxu0
        %2212 = vmatprep.mubr.f32.mxu0 0.0
        %2213 = vmatmul.mubr.f32.gmra.mrb[0].mxu0 %v1822
        %v2214 = vpop.f32.mrb[0].mxu0
        %v2215 = vadd.f32 0.0, %v2214
        %v2216 = vpop.f32.mrb[0].mxu0
        %2217 = vmatprep.mubr.f32.mxu0 0.0
        %2218 = vmatmul.mubr.f32.gmra.mrb[0].mxu0 %v1825
        %v2219 = vpop.f32.mrb[0].mxu0
        %v2220 = vadd.f32 0.0, %v2219
        %v2221 = vpop.f32.mrb[0].mxu0
        %2222 = vmatprep.mubr.f32.mxu0 0.0
        %2223 = vmatmul.mubr.f32.gmra.mrb[0].mxu0 %v1828
        %v2224 = vpop.f32.mrb[0].mxu0
        %v2225 = vadd.f32 0.0, %v2224
        %v2226 = vpop.f32.mrb[0].mxu0
        %2227 = vdwg.mxu0
        %2228 = vrot.lane.b32.xlu0 %v1897, 65
        %v2229 = vpop.permute.xlu0 %2228
        %2230 = vrot.lane.b32.xlu0 %v1903, 65
        %v2231 = vpop.permute.xlu0 %2230
        %2232 = vrot.lane.b32.xlu0 %v1899, 65
        %v2233 = vpop.permute.xlu0 %2232
        %2234 = vrot.lane.b32.xlu0 %v1905, 65
        %v2235 = vpop.permute.xlu0 %2234
        %2236 = vrot.lane.b32.xlu0 %v1998, 65
        %v2237 = vpop.permute.xlu0 %2236
        %2238 = vrot.lane.b32.xlu0 %v2004, 65
        %v2239 = vpop.permute.xlu0 %2238
        %2240 = vrot.lane.b32.xlu0 %v2000, 65
        %v2241 = vpop.permute.xlu0 %2240
        %2242 = vrot.lane.b32.xlu0 %v2006, 65
        %v2243 = vpop.permute.xlu0 %2242
        %2244 = vrot.lane.b32.xlu0 %v2099, 65
        %v2245 = vpop.permute.xlu0 %2244
        %2246 = vrot.lane.b32.xlu0 %v2105, 65
        %v2247 = vpop.permute.xlu0 %2246
        %2248 = vrot.lane.b32.xlu0 %v2101, 65
        %v2249 = vpop.permute.xlu0 %2248
        %2250 = vrot.lane.b32.xlu0 %v2107, 65
        %v2251 = vpop.permute.xlu0 %2250
        %2252 = vrot.lane.b32.xlu0 %v2200, 65
        %v2253 = vpop.permute.xlu0 %2252
        %2254 = vrot.lane.b32.xlu0 %v2205, 65
        %v2255 = vpop.permute.xlu0 %2254
        %v2256 = vsel %vm973, %v2249, %v2253
        %v2257 = vsel %vm973, %v2251, %v2255
        %v2258 = vsel %vm973, %v2245, %v2249
        %v2259 = vsel %vm973, %v2247, %v2251
        %v2260 = vsel %vm973, %v2241, %v2245
        %v2261 = vsel %vm973, %v2243, %v2247
        %v2262 = vsel %vm973, %v2237, %v2241
        %v2263 = vsel %vm973, %v2239, %v2243
        %v2264 = vsel %vm973, %v2233, %v2237
        %v2265 = vsel %vm973, %v2235, %v2239
        %v2266 = vsel %vm973, %v2229, %v2233
        %v2267 = vsel %vm973, %v2231, %v2235
        %v2268 = vsel %vm973, %v2253, %v2229
        %v2269 = vsel %vm973, %v2255, %v2231
        %v2270 = vmul.f32 %v2266, %v992
        %v2271 = vmul.f32 %v2264, %v996
        %v2272 = vmul.f32 %v2262, %v1000
        %v2273 = vmul.f32 %v2260, %v1004
        %v2274 = vmul.f32 %v2258, %v1008
        %v2275 = vmul.f32 %v2256, %v1012
        %v2276 = vmul.f32 %v2268, %v1016
        %v2277 = vmul.f32 %v2267, %v992
        %v2278 = vmul.f32 %v2265, %v996
        %v2279 = vmul.f32 %v2263, %v1000
        %v2280 = vmul.f32 %v2261, %v1004
        %v2281 = vmul.f32 %v2259, %v1008
        %v2282 = vmul.f32 %v2257, %v1012
        %v2283 = vmul.f32 %v2269, %v1016
        %v2284 = vadd.f32 %v1792, %v2270
        %v2285 = vadd.f32 %v1793, %v2271
        %v2286 = vadd.f32 %v1794, %v2272
        %v2287 = vadd.f32 %v1795, %v2273
        %v2288 = vadd.f32 %v1796, %v2274
        %v2289 = vadd.f32 %v1797, %v2275
        %v2290 = vadd.f32 %v1798, %v2276
        %v2291 = vadd.f32 %v1799, %v2277
        %v2292 = vadd.f32 %v1800, %v2278
        %v2293 = vadd.f32 %v1801, %v2279
        %v2294 = vadd.f32 %v1802, %v2280
        %v2295 = vadd.f32 %v1803, %v2281
        %v2296 = vadd.f32 %v1804, %v2282
        %v2297 = vadd.f32 %v1805, %v2283
        %2298 = vrot.lane.b32.xlu0 %v1909, 64
        %v2299 = vpop.permute.xlu0 %2298
        %2300 = vrot.lane.b32.xlu0 %v1915, 64
        %v2301 = vpop.permute.xlu0 %2300
        %2302 = vrot.lane.b32.xlu0 %v1911, 64
        %v2303 = vpop.permute.xlu0 %2302
        %2304 = vrot.lane.b32.xlu0 %v1917, 64
        %v2305 = vpop.permute.xlu0 %2304
        %2306 = vrot.lane.b32.xlu0 %v2010, 64
        %v2307 = vpop.permute.xlu0 %2306
        %2308 = vrot.lane.b32.xlu0 %v2016, 64
        %v2309 = vpop.permute.xlu0 %2308
        %2310 = vrot.lane.b32.xlu0 %v2012, 64
        %v2311 = vpop.permute.xlu0 %2310
        %2312 = vrot.lane.b32.xlu0 %v2018, 64
        %v2313 = vpop.permute.xlu0 %2312
        %2314 = vrot.lane.b32.xlu0 %v2111, 64
        %v2315 = vpop.permute.xlu0 %2314
        %2316 = vrot.lane.b32.xlu0 %v2117, 64
        %v2317 = vpop.permute.xlu0 %2316
        %2318 = vrot.lane.b32.xlu0 %v2113, 64
        %v2319 = vpop.permute.xlu0 %2318
        %2320 = vrot.lane.b32.xlu0 %v2119, 64
        %v2321 = vpop.permute.xlu0 %2320
        %2322 = vrot.lane.b32.xlu0 %v2210, 64
        %v2323 = vpop.permute.xlu0 %2322
        %2324 = vrot.lane.b32.xlu0 %v2215, 64
        %v2325 = vpop.permute.xlu0 %2324
        %v2326 = vsel %vm1092, %v2319, %v2323
        %v2327 = vsel %vm1092, %v2321, %v2325
        %v2328 = vsel %vm1092, %v2315, %v2319
        %v2329 = vsel %vm1092, %v2317, %v2321
        %v2330 = vsel %vm1092, %v2311, %v2315
        %v2331 = vsel %vm1092, %v2313, %v2317
        %v2332 = vsel %vm1092, %v2307, %v2311
        %v2333 = vsel %vm1092, %v2309, %v2313
        %v2334 = vsel %vm1092, %v2303, %v2307
        %v2335 = vsel %vm1092, %v2305, %v2309
        %v2336 = vsel %vm1092, %v2299, %v2303
        %v2337 = vsel %vm1092, %v2301, %v2305
        %v2338 = vsel %vm1092, %v2323, %v2299
        %v2339 = vsel %vm1092, %v2325, %v2301
        %v2340 = vadd.f32 %v2284, %v2336
        %v2341 = vadd.f32 %v2285, %v2334
        %v2342 = vadd.f32 %v2286, %v2332
        %v2343 = vadd.f32 %v2287, %v2330
        %v2344 = vadd.f32 %v2288, %v2328
        %v2345 = vadd.f32 %v2289, %v2326
        %v2346 = vadd.f32 %v2290, %v2338
        %v2347 = vadd.f32 %v2291, %v2337
        %v2348 = vadd.f32 %v2292, %v2335
        %v2349 = vadd.f32 %v2293, %v2333
        %v2350 = vadd.f32 %v2294, %v2331
        %v2351 = vadd.f32 %v2295, %v2329
        %v2352 = vadd.f32 %v2296, %v2327
        %v2353 = vadd.f32 %v2297, %v2339
        %2354 = vrot.lane.b32.xlu0 %v1921, 63
        %v2355 = vpop.permute.xlu0 %2354
        %2356 = vrot.lane.b32.xlu0 %v1927, 63
        %v2357 = vpop.permute.xlu0 %2356
        %2358 = vrot.lane.b32.xlu0 %v1923, 63
        %v2359 = vpop.permute.xlu0 %2358
        %2360 = vrot.lane.b32.xlu0 %v1929, 63
        %v2361 = vpop.permute.xlu0 %2360
        %2362 = vrot.lane.b32.xlu0 %v2022, 63
        %v2363 = vpop.permute.xlu0 %2362
        %2364 = vrot.lane.b32.xlu0 %v2028, 63
        %v2365 = vpop.permute.xlu0 %2364
        %2366 = vrot.lane.b32.xlu0 %v2024, 63
        %v2367 = vpop.permute.xlu0 %2366
        %2368 = vrot.lane.b32.xlu0 %v2030, 63
        %v2369 = vpop.permute.xlu0 %2368
        %2370 = vrot.lane.b32.xlu0 %v2123, 63
        %v2371 = vpop.permute.xlu0 %2370
        %2372 = vrot.lane.b32.xlu0 %v2129, 63
        %v2373 = vpop.permute.xlu0 %2372
        %2374 = vrot.lane.b32.xlu0 %v2125, 63
        %v2375 = vpop.permute.xlu0 %2374
        %2376 = vrot.lane.b32.xlu0 %v2131, 63
        %v2377 = vpop.permute.xlu0 %2376
        %2378 = vrot.lane.b32.xlu0 %v2220, 63
        %v2379 = vpop.permute.xlu0 %2378
        %2380 = vrot.lane.b32.xlu0 %v2225, 63
        %v2381 = vpop.permute.xlu0 %2380
        %v2382 = vsel %vm1149, %v2375, %v2379
        %v2383 = vsel %vm1149, %v2377, %v2381
        %v2384 = vsel %vm1149, %v2371, %v2375
        %v2385 = vsel %vm1149, %v2373, %v2377
        %v2386 = vsel %vm1149, %v2367, %v2371
        %v2387 = vsel %vm1149, %v2369, %v2373
        %v2388 = vsel %vm1149, %v2363, %v2367
        %v2389 = vsel %vm1149, %v2365, %v2369
        %v2390 = vsel %vm1149, %v2359, %v2363
        %v2391 = vsel %vm1149, %v2361, %v2365
        %v2392 = vsel %vm1149, %v2355, %v2359
        %v2393 = vsel %vm1149, %v2357, %v2361
        %v2394 = vsel %vm1149, %v2379, %v2355
        %v2395 = vsel %vm1149, %v2381, %v2357
        %v2396 = vmul.f32 %v2392, %v1168
        %v2397 = vmul.f32 %v2390, %v1172
        %v2398 = vmul.f32 %v2388, %v1176
        %v2399 = vmul.f32 %v2386, %v1180
        %v2400 = vmul.f32 %v2384, %v1184
        %v2401 = vmul.f32 %v2382, %v1188
        %v2402 = vmul.f32 %v2394, %v1192
        %v2403 = vmul.f32 %v2393, %v1168
        %v2404 = vmul.f32 %v2391, %v1172
        %v2405 = vmul.f32 %v2389, %v1176
        %v2406 = vmul.f32 %v2387, %v1180
        %v2407 = vmul.f32 %v2385, %v1184
        %v2408 = vmul.f32 %v2383, %v1188
        %v2409 = vmul.f32 %v2395, %v1192
        %v2410 = vadd.f32 %v2340, %v2396
        %v2411 = vadd.f32 %v2341, %v2397
        %v2412 = vadd.f32 %v2342, %v2398
        %v2413 = vadd.f32 %v2343, %v2399
        %v2414 = vadd.f32 %v2344, %v2400
        %v2415 = vadd.f32 %v2345, %v2401
        %v2416 = vadd.f32 %v2346, %v2402
        %v2417 = vadd.f32 %v2347, %v2403
        %v2418 = vadd.f32 %v2348, %v2404
        %v2419 = vadd.f32 %v2349, %v2405
        %v2420 = vadd.f32 %v2350, %v2406
        %v2421 = vadd.f32 %v2351, %v2407
        %v2422 = vadd.f32 %v2352, %v2408
        %v2423 = vadd.f32 %v2353, %v2409
        %v2424 = vmul.f32 %v2410, 0.1
        %v2425 = vmul.f32 %v2411, 0.1
        %v2426 = vmul.f32 %v2412, 0.1
        %v2427 = vmul.f32 %v2413, 0.1
        %v2428 = vmul.f32 %v2414, 0.1
        %v2429 = vmul.f32 %v2415, 0.1
        %v2430 = vmul.f32 %v2416, 0.1
        %v2431 = vmul.f32 %v2417, 0.1
        %v2432 = vmul.f32 %v2418, 0.1
        %v2433 = vmul.f32 %v2419, 0.1
        %v2434 = vmul.f32 %v2420, 0.1
        %v2435 = vmul.f32 %v2421, 0.1
        %v2436 = vmul.f32 %v2422, 0.1
        %v2437 = vmul.f32 %v2423, 0.1
        %v2438 = vmax.f32 %v2410, %v2424
        %v2439 = vmax.f32 %v2411, %v2425
        %v2440 = vmax.f32 %v2412, %v2426
        %v2441 = vmax.f32 %v2413, %v2427
        %v2442 = vmax.f32 %v2414, %v2428
        %v2443 = vmax.f32 %v2415, %v2429
        %v2444 = vmax.f32 %v2416, %v2430
        %v2445 = vmax.f32 %v2417, %v2431
        %v2446 = vmax.f32 %v2418, %v2432
        %v2447 = vmax.f32 %v2419, %v2433
        %v2448 = vmax.f32 %v2420, %v2434
        %v2449 = vmax.f32 %v2421, %v2435
        %v2450 = vmax.f32 %v2422, %v2436
        %v2451 = vmax.f32 %v2423, %v2437
        %v2453 = vlaneseq
        %v2454 = vshrl.u32 %v2453, 7
        %v2455 = vsub.s32 0, %v2454
        %v2456 = vrot.slane %v396, %v2455
        %v2457 = vlaneseq
        %v2458 = vshrl.u32 %v2457, 7
        %v2459 = vsub.s32 1, %v2458
        %v2460 = vrot.slane %v396, %v2459
        %v2461 = vlaneseq
        %v2462 = vshrl.u32 %v2461, 7
        %v2463 = vsub.s32 2, %v2462
        %v2464 = vrot.slane %v396, %v2463
        %v2465 = vlaneseq
        %v2466 = vshrl.u32 %v2465, 7
        %v2467 = vsub.s32 3, %v2466
        %v2468 = vrot.slane %v396, %v2467
        %v2469 = vlaneseq
        %v2470 = vshrl.u32 %v2469, 7
        %v2471 = vsub.s32 4, %v2470
        %v2472 = vrot.slane %v396, %v2471
        %v2473 = vlaneseq
        %v2474 = vshrl.u32 %v2473, 7
        %v2475 = vsub.s32 5, %v2474
        %v2476 = vrot.slane %v396, %v2475
        %v2477 = vlaneseq
        %v2478 = vshrl.u32 %v2477, 7
        %v2479 = vsub.s32 6, %v2478
        %v2480 = vrot.slane %v396, %v2479
        %v2488 = vmul.f32 %v2438, %v2456
        %v2489 = vmul.f32 %v2439, %v2460
        %v2490 = vmul.f32 %v2440, %v2464
        %v2491 = vmul.f32 %v2441, %v2468
        %v2492 = vmul.f32 %v2442, %v2472
        %v2493 = vmul.f32 %v2443, %v2476
        %v2494 = vmul.f32 %v2444, %v2480
        %v2495 = vmul.f32 %v2445, %v2456
        %v2496 = vmul.f32 %v2446, %v2460
        %v2497 = vmul.f32 %v2447, %v2464
        %v2498 = vmul.f32 %v2448, %v2468
        %v2499 = vmul.f32 %v2449, %v2472
        %v2500 = vmul.f32 %v2450, %v2476
        %v2501 = vmul.f32 %v2451, %v2480
        %2502 = vst [vmem:[#allocation2 + $0x70] sm:$0xff] %v2488
        %2503 = vst [vmem:[#allocation2 + $0x78] sm:$0xff] %v2489
        %2504 = vst [vmem:[#allocation2 + $0x80] sm:$0xff] %v2490
        %2505 = vst [vmem:[#allocation2 + $0x88] sm:$0xff] %v2491
        %2506 = vst [vmem:[#allocation2 + $0x90] sm:$0xff] %v2492
        %2507 = vst [vmem:[#allocation2 + $0x98] sm:$0xff] %v2493
        %2508 = vst [vmem:[#allocation2 + $0xa0] sm:$0xff] %v2494
        %2509 = vst [vmem:[#allocation2 + $0xa8] sm:$0xff] %v2495
        %2510 = vst [vmem:[#allocation2 + $0xb0] sm:$0xff] %v2496
        %2511 = vst [vmem:[#allocation2 + $0xb8] sm:$0xff] %v2497
        %2512 = vst [vmem:[#allocation2 + $0xc0] sm:$0xff] %v2498
        %2513 = vst [vmem:[#allocation2 + $0xc8] sm:$0xff] %v2499
        %2514 = vst [vmem:[#allocation2 + $0xd0] sm:$0xff] %v2500
        %2515 = vst [vmem:[#allocation2 + $0xd8] sm:$0xff] %v2501
        %v2516 = vld [vmem:[#allocation2] sm:$0xff]
        %v2517 = vld [vmem:[#allocation2 + $0x8] sm:$0xff]
        %v2518 = vld [vmem:[#allocation2 + $0x10] sm:$0xff]
        %v2519 = vld [vmem:[#allocation2 + $0x18] sm:$0xff]
        %v2520 = vld [vmem:[#allocation2 + $0x20] sm:$0xff]
        %v2521 = vld [vmem:[#allocation2 + $0x28] sm:$0xff]
        %v2522 = vld [vmem:[#allocation2 + $0x30] sm:$0xff]
        %v2523 = vld [vmem:[#allocation2 + $0x38] sm:$0xff]
        %v2524 = vld [vmem:[#allocation2 + $0x40] sm:$0xff]
        %v2525 = vld [vmem:[#allocation2 + $0x48] sm:$0xff]
        %v2526 = vld [vmem:[#allocation2 + $0x50] sm:$0xff]
        %v2527 = vld [vmem:[#allocation2 + $0x58] sm:$0xff]
        %v2528 = vld [vmem:[#allocation2 + $0x60] sm:$0xff]
        %v2529 = vld [vmem:[#allocation2 + $0x68] sm:$0xff]
        %v2530 = vld [vmem:[#allocation2 + $0x70] sm:$0xff]
        %v2531 = vld [vmem:[#allocation2 + $0x78] sm:$0xff]
        %v2532 = vld [vmem:[#allocation2 + $0x80] sm:$0xff]
        %v2533 = vld [vmem:[#allocation2 + $0x88] sm:$0xff]
        %v2534 = vld [vmem:[#allocation2 + $0x90] sm:$0xff]
        %v2535 = vld [vmem:[#allocation2 + $0x98] sm:$0xff]
        %v2536 = vld [vmem:[#allocation2 + $0xa0] sm:$0xff]
        %v2537 = vld [vmem:[#allocation2 + $0xa8] sm:$0xff]
        %v2538 = vld [vmem:[#allocation2 + $0xb0] sm:$0xff]
        %v2539 = vld [vmem:[#allocation2 + $0xb8] sm:$0xff]
        %v2540 = vld [vmem:[#allocation2 + $0xc0] sm:$0xff]
        %v2541 = vld [vmem:[#allocation2 + $0xc8] sm:$0xff]
        %v2542 = vld [vmem:[#allocation2 + $0xd0] sm:$0xff]
        %v2543 = vld [vmem:[#allocation2 + $0xd8] sm:$0xff]
        %v2544 = vld [vmem:[%s6] sm:$0xff]
        %v2545 = vld [vmem:[%s6 + $0x8] sm:$0xff]
        %v2546 = vld [vmem:[%s6 + $0x10] sm:$0xff]
        %v2547 = vld [vmem:[%s6 + $0x18] sm:$0xff]
        %v2548 = vld [vmem:[%s6 + $0x20] sm:$0xff]
        %v2549 = vld [vmem:[%s6 + $0x28] sm:$0xff]
        %vm2550 = vcmask 261120
        %v2552 = vsel %vm2550, %v2544, 0
        %v2555 = vsel %vm2550, %v2545, 0
        %v2558 = vsel %vm2550, %v2546, 0
        %v2561 = vsel %vm2550, %v2547, 0
        %v2564 = vsel %vm2550, %v2548, 0
        %v2567 = vsel %vm2550, %v2549, 0
        %2569 = vmatprep.subr.mxu0 %v2517
        %2570 = vmatpush1.msra.mxu0 %v2516
        %2571 = vmatprep.subr.mxu0 %v2524
        %2572 = vmatpush1.msra.mxu0 %v2523
        %2573 = vmatprep.subr.mxu0 %v2531
        %2574 = vmatpush1.msra.mxu0 %v2530
        %2575 = vmatprep.subr.mxu0 %v2538
        %2576 = vmatpush1.msra.mxu0 %v2537
        %2577 = vmatprep.subr.mxu0 0.0
        %2578 = vmatpush1.msra.mxu0 0.0
        %2579 = vmatprep.subr.mxu0 0.0
        %2580 = vmatpush1.msra.mxu0 0.0
        %2581 = vmatprep.subr.mxu0 0.0
        %2582 = vmatpush1.msra.mxu0 0.0
        %2583 = vmatprep.subr.mxu0 0.0
        %2584 = vmatpush1.msra.mxu0 0.0
        %2585 = vmatprep.subr.mxu0 0.0
        %2586 = vmatpush1.msra.mxu0 0.0
        %2587 = vmatprep.subr.mxu0 0.0
        %2588 = vmatpush1.msra.mxu0 0.0
        %2589 = vmatprep.subr.mxu0 0.0
        %2590 = vmatpush1.msra.mxu0 0.0
        %2591 = vmatprep.subr.mxu0 0.0
        %2592 = vmatpush1.msra.mxu0 0.0
        %2593 = vmatprep.subr.mxu0 0.0
        %2594 = vmatpush1.msra.mxu0 0.0
        %2595 = vmatprep.subr.mxu0 0.0
        %2596 = vmatpush1.msra.mxu0 0.0
        %2597 = vmatprep.subr.mxu0 0.0
        %2598 = vmatpush1.msra.mxu0 0.0
        %2599 = vmatprep.subr.mxu0 0.0
        %2600 = vmatpush1.msra.mxu0 0.0
        %2601 = vmatprep.subr.mxu0 0.0
        %2602 = vmatpush1.msra.mxu0 0.0
        %2603 = vmatprep.subr.mxu0 0.0
        %2604 = vmatpush1.msra.mxu0 0.0
        %2605 = vmatprep.subr.mxu0 0.0
        %2606 = vmatpush1.msra.mxu0 0.0
        %2607 = vmatprep.subr.mxu0 0.0
        %2608 = vmatpush1.msra.mxu0 0.0
        %2609 = vmatprep.subr.mxu0 0.0
        %2610 = vmatpush1.msra.mxu0 0.0
        %2611 = vmatprep.subr.mxu0 0.0
        %2612 = vmatpush1.msra.mxu0 0.0
        %2613 = vmatprep.subr.mxu0 0.0
        %2614 = vmatpush1.msra.mxu0 0.0
        %2615 = vmatprep.subr.mxu0 0.0
        %2616 = vmatpush1.msra.mxu0 0.0
        %2617 = vmatprep.subr.mxu0 0.0
        %2618 = vmatpush1.msra.mxu0 0.0
        %2619 = vmatprep.subr.mxu0 0.0
        %2620 = vmatpush1.msra.mxu0 0.0
        %2621 = vmatprep.subr.mxu0 0.0
        %2622 = vmatpush1.msra.mxu0 0.0
        %2623 = vmatprep.subr.mxu0 0.0
        %2624 = vmatpush1.msra.mxu0 0.0
        %2625 = vmatprep.subr.mxu0 0.0
        %2626 = vmatpush1.msra.mxu0 0.0
        %2627 = vmatprep.subr.mxu0 0.0
        %2628 = vmatpush1.msra.mxu0 0.0
        %2629 = vmatprep.subr.mxu0 0.0
        %2630 = vmatpush1.msra.mxu0 0.0
        %2631 = vmatprep.subr.mxu0 0.0
        %2632 = vmatpush1.msra.mxu0 0.0
        %2633 = vmatprep.mubr.f32.mxu0 0.0
        %2634 = vmatmul.mubr.f32.gmra.mrb[0].mxu0 %v2552
        %v2635 = vpop.f32.mrb[0].mxu0
        %v2636 = vadd.f32 0.0, %v2635
        %v2637 = vpop.f32.mrb[0].mxu0
        %v2638 = vadd.f32 0.0, %v2637
        %2639 = vmatprep.mubr.f32.mxu0 0.0
        %2640 = vmatmul.mubr.f32.gmra.mrb[0].mxu0 %v2555
        %v2641 = vpop.f32.mrb[0].mxu0
        %v2642 = vadd.f32 0.0, %v2641
        %v2643 = vpop.f32.mrb[0].mxu0
        %v2644 = vadd.f32 0.0, %v2643
        %2645 = vmatprep.mubr.f32.mxu0 0.0
        %2646 = vmatmul.mubr.f32.gmra.mrb[0].mxu0 %v2558
        %v2647 = vpop.f32.mrb[0].mxu0
        %v2648 = vadd.f32 0.0, %v2647
        %v2649 = vpop.f32.mrb[0].mxu0
        %v2650 = vadd.f32 0.0, %v2649
        %2651 = vmatprep.mubr.f32.mxu0 0.0
        %2652 = vmatmul.mubr.f32.gmra.mrb[0].mxu0 %v2561
        %v2653 = vpop.f32.mrb[0].mxu0
        %v2654 = vadd.f32 0.0, %v2653
        %v2655 = vpop.f32.mrb[0].mxu0
        %v2656 = vadd.f32 0.0, %v2655
        %2657 = vmatprep.mubr.f32.mxu0 0.0
        %2658 = vmatmul.mubr.f32.gmra.mrb[0].mxu0 %v2564
        %v2659 = vpop.f32.mrb[0].mxu0
        %v2660 = vadd.f32 0.0, %v2659
        %v2661 = vpop.f32.mrb[0].mxu0
        %v2662 = vadd.f32 0.0, %v2661
        %2663 = vmatprep.mubr.f32.mxu0 0.0
        %2664 = vmatmul.mubr.f32.gmra.mrb[0].mxu0 %v2567
        %v2665 = vpop.f32.mrb[0].mxu0
        %v2666 = vadd.f32 0.0, %v2665
        %v2667 = vpop.f32.mrb[0].mxu0
        %v2668 = vadd.f32 0.0, %v2667
        %2669 = vdwg.mxu0
        %2670 = vmatprep.subr.mxu0 %v2519
        %2671 = vmatpush1.msra.mxu0 %v2518
        %2672 = vmatprep.subr.mxu0 %v2526
        %2673 = vmatpush1.msra.mxu0 %v2525
        %2674 = vmatprep.subr.mxu0 %v2533
        %2675 = vmatpush1.msra.mxu0 %v2532
        %2676 = vmatprep.subr.mxu0 %v2540
        %2677 = vmatpush1.msra.mxu0 %v2539
        %2678 = vmatprep.subr.mxu0 0.0
        %2679 = vmatpush1.msra.mxu0 0.0
        %2680 = vmatprep.subr.mxu0 0.0
        %2681 = vmatpush1.msra.mxu0 0.0
        %2682 = vmatprep.subr.mxu0 0.0
        %2683 = vmatpush1.msra.mxu0 0.0
        %2684 = vmatprep.subr.mxu0 0.0
        %2685 = vmatpush1.msra.mxu0 0.0
        %2686 = vmatprep.subr.mxu0 0.0
        %2687 = vmatpush1.msra.mxu0 0.0
        %2688 = vmatprep.subr.mxu0 0.0
        %2689 = vmatpush1.msra.mxu0 0.0
        %2690 = vmatprep.subr.mxu0 0.0
        %2691 = vmatpush1.msra.mxu0 0.0
        %2692 = vmatprep.subr.mxu0 0.0
        %2693 = vmatpush1.msra.mxu0 0.0
        %2694 = vmatprep.subr.mxu0 0.0
        %2695 = vmatpush1.msra.mxu0 0.0
        %2696 = vmatprep.subr.mxu0 0.0
        %2697 = vmatpush1.msra.mxu0 0.0
        %2698 = vmatprep.subr.mxu0 0.0
        %2699 = vmatpush1.msra.mxu0 0.0
        %2700 = vmatprep.subr.mxu0 0.0
        %2701 = vmatpush1.msra.mxu0 0.0
        %2702 = vmatprep.subr.mxu0 0.0
        %2703 = vmatpush1.msra.mxu0 0.0
        %2704 = vmatprep.subr.mxu0 0.0
        %2705 = vmatpush1.msra.mxu0 0.0
        %2706 = vmatprep.subr.mxu0 0.0
        %2707 = vmatpush1.msra.mxu0 0.0
        %2708 = vmatprep.subr.mxu0 0.0
        %2709 = vmatpush1.msra.mxu0 0.0
        %2710 = vmatprep.subr.mxu0 0.0
        %2711 = vmatpush1.msra.mxu0 0.0
        %2712 = vmatprep.subr.mxu0 0.0
        %2713 = vmatpush1.msra.mxu0 0.0
        %2714 = vmatprep.subr.mxu0 0.0
        %2715 = vmatpush1.msra.mxu0 0.0
        %2716 = vmatprep.subr.mxu0 0.0
        %2717 = vmatpush1.msra.mxu0 0.0
        %2718 = vmatprep.subr.mxu0 0.0
        %2719 = vmatpush1.msra.mxu0 0.0
        %2720 = vmatprep.subr.mxu0 0.0
        %2721 = vmatpush1.msra.mxu0 0.0
        %2722 = vmatprep.subr.mxu0 0.0
        %2723 = vmatpush1.msra.mxu0 0.0
        %2724 = vmatprep.subr.mxu0 0.0
        %2725 = vmatpush1.msra.mxu0 0.0
        %2726 = vmatprep.subr.mxu0 0.0
        %2727 = vmatpush1.msra.mxu0 0.0
        %2728 = vmatprep.subr.mxu0 0.0
        %2729 = vmatpush1.msra.mxu0 0.0
        %2730 = vmatprep.subr.mxu0 0.0
        %2731 = vmatpush1.msra.mxu0 0.0
        %2732 = vmatprep.subr.mxu0 0.0
        %2733 = vmatpush1.msra.mxu0 0.0
        %2734 = vmatprep.mubr.f32.mxu0 0.0
        %2735 = vmatmul.mubr.f32.gmra.mrb[0].mxu0 %v2552
        %v2736 = vpop.f32.mrb[0].mxu0
        %v2737 = vadd.f32 0.0, %v2736
        %v2738 = vpop.f32.mrb[0].mxu0
        %v2739 = vadd.f32 0.0, %v2738
        %2740 = vmatprep.mubr.f32.mxu0 0.0
        %2741 = vmatmul.mubr.f32.gmra.mrb[0].mxu0 %v2555
        %v2742 = vpop.f32.mrb[0].mxu0
        %v2743 = vadd.f32 0.0, %v2742
        %v2744 = vpop.f32.mrb[0].mxu0
        %v2745 = vadd.f32 0.0, %v2744
        %2746 = vmatprep.mubr.f32.mxu0 0.0
        %2747 = vmatmul.mubr.f32.gmra.mrb[0].mxu0 %v2558
        %v2748 = vpop.f32.mrb[0].mxu0
        %v2749 = vadd.f32 0.0, %v2748
        %v2750 = vpop.f32.mrb[0].mxu0
        %v2751 = vadd.f32 0.0, %v2750
        %2752 = vmatprep.mubr.f32.mxu0 0.0
        %2753 = vmatmul.mubr.f32.gmra.mrb[0].mxu0 %v2561
        %v2754 = vpop.f32.mrb[0].mxu0
        %v2755 = vadd.f32 0.0, %v2754
        %v2756 = vpop.f32.mrb[0].mxu0
        %v2757 = vadd.f32 0.0, %v2756
        %2758 = vmatprep.mubr.f32.mxu0 0.0
        %2759 = vmatmul.mubr.f32.gmra.mrb[0].mxu0 %v2564
        %v2760 = vpop.f32.mrb[0].mxu0
        %v2761 = vadd.f32 0.0, %v2760
        %v2762 = vpop.f32.mrb[0].mxu0
        %v2763 = vadd.f32 0.0, %v2762
        %2764 = vmatprep.mubr.f32.mxu0 0.0
        %2765 = vmatmul.mubr.f32.gmra.mrb[0].mxu0 %v2567
        %v2766 = vpop.f32.mrb[0].mxu0
        %v2767 = vadd.f32 0.0, %v2766
        %v2768 = vpop.f32.mrb[0].mxu0
        %v2769 = vadd.f32 0.0, %v2768
        %2770 = vdwg.mxu0
        %2771 = vmatprep.subr.mxu0 %v2521
        %2772 = vmatpush1.msra.mxu0 %v2520
        %2773 = vmatprep.subr.mxu0 %v2528
        %2774 = vmatpush1.msra.mxu0 %v2527
        %2775 = vmatprep.subr.mxu0 %v2535
        %2776 = vmatpush1.msra.mxu0 %v2534
        %2777 = vmatprep.subr.mxu0 %v2542
        %2778 = vmatpush1.msra.mxu0 %v2541
        %2779 = vmatprep.subr.mxu0 0.0
        %2780 = vmatpush1.msra.mxu0 0.0
        %2781 = vmatprep.subr.mxu0 0.0
        %2782 = vmatpush1.msra.mxu0 0.0
        %2783 = vmatprep.subr.mxu0 0.0
        %2784 = vmatpush1.msra.mxu0 0.0
        %2785 = vmatprep.subr.mxu0 0.0
        %2786 = vmatpush1.msra.mxu0 0.0
        %2787 = vmatprep.subr.mxu0 0.0
        %2788 = vmatpush1.msra.mxu0 0.0
        %2789 = vmatprep.subr.mxu0 0.0
        %2790 = vmatpush1.msra.mxu0 0.0
        %2791 = vmatprep.subr.mxu0 0.0
        %2792 = vmatpush1.msra.mxu0 0.0
        %2793 = vmatprep.subr.mxu0 0.0
        %2794 = vmatpush1.msra.mxu0 0.0
        %2795 = vmatprep.subr.mxu0 0.0
        %2796 = vmatpush1.msra.mxu0 0.0
        %2797 = vmatprep.subr.mxu0 0.0
        %2798 = vmatpush1.msra.mxu0 0.0
        %2799 = vmatprep.subr.mxu0 0.0
        %2800 = vmatpush1.msra.mxu0 0.0
        %2801 = vmatprep.subr.mxu0 0.0
        %2802 = vmatpush1.msra.mxu0 0.0
        %2803 = vmatprep.subr.mxu0 0.0
        %2804 = vmatpush1.msra.mxu0 0.0
        %2805 = vmatprep.subr.mxu0 0.0
        %2806 = vmatpush1.msra.mxu0 0.0
        %2807 = vmatprep.subr.mxu0 0.0
        %2808 = vmatpush1.msra.mxu0 0.0
        %2809 = vmatprep.subr.mxu0 0.0
        %2810 = vmatpush1.msra.mxu0 0.0
        %2811 = vmatprep.subr.mxu0 0.0
        %2812 = vmatpush1.msra.mxu0 0.0
        %2813 = vmatprep.subr.mxu0 0.0
        %2814 = vmatpush1.msra.mxu0 0.0
        %2815 = vmatprep.subr.mxu0 0.0
        %2816 = vmatpush1.msra.mxu0 0.0
        %2817 = vmatprep.subr.mxu0 0.0
        %2818 = vmatpush1.msra.mxu0 0.0
        %2819 = vmatprep.subr.mxu0 0.0
        %2820 = vmatpush1.msra.mxu0 0.0
        %2821 = vmatprep.subr.mxu0 0.0
        %2822 = vmatpush1.msra.mxu0 0.0
        %2823 = vmatprep.subr.mxu0 0.0
        %2824 = vmatpush1.msra.mxu0 0.0
        %2825 = vmatprep.subr.mxu0 0.0
        %2826 = vmatpush1.msra.mxu0 0.0
        %2827 = vmatprep.subr.mxu0 0.0
        %2828 = vmatpush1.msra.mxu0 0.0
        %2829 = vmatprep.subr.mxu0 0.0
        %2830 = vmatpush1.msra.mxu0 0.0
        %2831 = vmatprep.subr.mxu0 0.0
        %2832 = vmatpush1.msra.mxu0 0.0
        %2833 = vmatprep.subr.mxu0 0.0
        %2834 = vmatpush1.msra.mxu0 0.0
        %2835 = vmatprep.mubr.f32.mxu0 0.0
        %2836 = vmatmul.mubr.f32.gmra.mrb[0].mxu0 %v2552
        %v2837 = vpop.f32.mrb[0].mxu0
        %v2838 = vadd.f32 0.0, %v2837
        %v2839 = vpop.f32.mrb[0].mxu0
        %v2840 = vadd.f32 0.0, %v2839
        %2841 = vmatprep.mubr.f32.mxu0 0.0
        %2842 = vmatmul.mubr.f32.gmra.mrb[0].mxu0 %v2555
        %v2843 = vpop.f32.mrb[0].mxu0
        %v2844 = vadd.f32 0.0, %v2843
        %v2845 = vpop.f32.mrb[0].mxu0
        %v2846 = vadd.f32 0.0, %v2845
        %2847 = vmatprep.mubr.f32.mxu0 0.0
        %2848 = vmatmul.mubr.f32.gmra.mrb[0].mxu0 %v2558
        %v2849 = vpop.f32.mrb[0].mxu0
        %v2850 = vadd.f32 0.0, %v2849
        %v2851 = vpop.f32.mrb[0].mxu0
        %v2852 = vadd.f32 0.0, %v2851
        %2853 = vmatprep.mubr.f32.mxu0 0.0
        %2854 = vmatmul.mubr.f32.gmra.mrb[0].mxu0 %v2561
        %v2855 = vpop.f32.mrb[0].mxu0
        %v2856 = vadd.f32 0.0, %v2855
        %v2857 = vpop.f32.mrb[0].mxu0
        %v2858 = vadd.f32 0.0, %v2857
        %2859 = vmatprep.mubr.f32.mxu0 0.0
        %2860 = vmatmul.mubr.f32.gmra.mrb[0].mxu0 %v2564
        %v2861 = vpop.f32.mrb[0].mxu0
        %v2862 = vadd.f32 0.0, %v2861
        %v2863 = vpop.f32.mrb[0].mxu0
        %v2864 = vadd.f32 0.0, %v2863
        %2865 = vmatprep.mubr.f32.mxu0 0.0
        %2866 = vmatmul.mubr.f32.gmra.mrb[0].mxu0 %v2567
        %v2867 = vpop.f32.mrb[0].mxu0
        %v2868 = vadd.f32 0.0, %v2867
        %v2869 = vpop.f32.mrb[0].mxu0
        %v2870 = vadd.f32 0.0, %v2869
        %2871 = vdwg.mxu0
        %2872 = vmatprep.subr.mxu0 0.0
        %2873 = vmatpush1.msra.mxu0 %v2522
        %2874 = vmatprep.subr.mxu0 0.0
        %2875 = vmatpush1.msra.mxu0 %v2529
        %2876 = vmatprep.subr.mxu0 0.0
        %2877 = vmatpush1.msra.mxu0 %v2536
        %2878 = vmatprep.subr.mxu0 0.0
        %2879 = vmatpush1.msra.mxu0 %v2543
        %2880 = vmatprep.subr.mxu0 0.0
        %2881 = vmatpush1.msra.mxu0 0.0
        %2882 = vmatprep.subr.mxu0 0.0
        %2883 = vmatpush1.msra.mxu0 0.0
        %2884 = vmatprep.subr.mxu0 0.0
        %2885 = vmatpush1.msra.mxu0 0.0
        %2886 = vmatprep.subr.mxu0 0.0
        %2887 = vmatpush1.msra.mxu0 0.0
        %2888 = vmatprep.subr.mxu0 0.0
        %2889 = vmatpush1.msra.mxu0 0.0
        %2890 = vmatprep.subr.mxu0 0.0
        %2891 = vmatpush1.msra.mxu0 0.0
        %2892 = vmatprep.subr.mxu0 0.0
        %2893 = vmatpush1.msra.mxu0 0.0
        %2894 = vmatprep.subr.mxu0 0.0
        %2895 = vmatpush1.msra.mxu0 0.0
        %2896 = vmatprep.subr.mxu0 0.0
        %2897 = vmatpush1.msra.mxu0 0.0
        %2898 = vmatprep.subr.mxu0 0.0
        %2899 = vmatpush1.msra.mxu0 0.0
        %2900 = vmatprep.subr.mxu0 0.0
        %2901 = vmatpush1.msra.mxu0 0.0
        %2902 = vmatprep.subr.mxu0 0.0
        %2903 = vmatpush1.msra.mxu0 0.0
        %2904 = vmatprep.subr.mxu0 0.0
        %2905 = vmatpush1.msra.mxu0 0.0
        %2906 = vmatprep.subr.mxu0 0.0
        %2907 = vmatpush1.msra.mxu0 0.0
        %2908 = vmatprep.subr.mxu0 0.0
        %2909 = vmatpush1.msra.mxu0 0.0
        %2910 = vmatprep.subr.mxu0 0.0
        %2911 = vmatpush1.msra.mxu0 0.0
        %2912 = vmatprep.subr.mxu0 0.0
        %2913 = vmatpush1.msra.mxu0 0.0
        %2914 = vmatprep.subr.mxu0 0.0
        %2915 = vmatpush1.msra.mxu0 0.0
        %2916 = vmatprep.subr.mxu0 0.0
        %2917 = vmatpush1.msra.mxu0 0.0
        %2918 = vmatprep.subr.mxu0 0.0
        %2919 = vmatpush1.msra.mxu0 0.0
        %2920 = vmatprep.subr.mxu0 0.0
        %2921 = vmatpush1.msra.mxu0 0.0
        %2922 = vmatprep.subr.mxu0 0.0
        %2923 = vmatpush1.msra.mxu0 0.0
        %2924 = vmatprep.subr.mxu0 0.0
        %2925 = vmatpush1.msra.mxu0 0.0
        %2926 = vmatprep.subr.mxu0 0.0
        %2927 = vmatpush1.msra.mxu0 0.0
        %2928 = vmatprep.subr.mxu0 0.0
        %2929 = vmatpush1.msra.mxu0 0.0
        %2930 = vmatprep.subr.mxu0 0.0
        %2931 = vmatpush1.msra.mxu0 0.0
        %2932 = vmatprep.subr.mxu0 0.0
        %2933 = vmatpush1.msra.mxu0 0.0
        %2934 = vmatprep.subr.mxu0 0.0
        %2935 = vmatpush1.msra.mxu0 0.0
        %2936 = vmatprep.mubr.f32.mxu0 0.0
        %2937 = vmatmul.mubr.f32.gmra.mrb[0].mxu0 %v2552
        %v2938 = vpop.f32.mrb[0].mxu0
        %v2939 = vadd.f32 0.0, %v2938
        %v2940 = vpop.f32.mrb[0].mxu0
        %2941 = vmatprep.mubr.f32.mxu0 0.0
        %2942 = vmatmul.mubr.f32.gmra.mrb[0].mxu0 %v2555
        %v2943 = vpop.f32.mrb[0].mxu0
        %v2944 = vadd.f32 0.0, %v2943
        %v2945 = vpop.f32.mrb[0].mxu0
        %2946 = vmatprep.mubr.f32.mxu0 0.0
        %2947 = vmatmul.mubr.f32.gmra.mrb[0].mxu0 %v2558
        %v2948 = vpop.f32.mrb[0].mxu0
        %v2949 = vadd.f32 0.0, %v2948
        %v2950 = vpop.f32.mrb[0].mxu0
        %2951 = vmatprep.mubr.f32.mxu0 0.0
        %2952 = vmatmul.mubr.f32.gmra.mrb[0].mxu0 %v2561
        %v2953 = vpop.f32.mrb[0].mxu0
        %v2954 = vadd.f32 0.0, %v2953
        %v2955 = vpop.f32.mrb[0].mxu0
        %2956 = vmatprep.mubr.f32.mxu0 0.0
        %2957 = vmatmul.mubr.f32.gmra.mrb[0].mxu0 %v2564
        %v2958 = vpop.f32.mrb[0].mxu0
        %v2959 = vadd.f32 0.0, %v2958
        %v2960 = vpop.f32.mrb[0].mxu0
        %2961 = vmatprep.mubr.f32.mxu0 0.0
        %2962 = vmatmul.mubr.f32.gmra.mrb[0].mxu0 %v2567
        %v2963 = vpop.f32.mrb[0].mxu0
        %v2964 = vadd.f32 0.0, %v2963
        %v2965 = vpop.f32.mrb[0].mxu0
        %2966 = vdwg.mxu0
        %2967 = vrot.lane.b32.xlu0 %v2636, 65
        %v2968 = vpop.permute.xlu0 %2967
        %2969 = vrot.lane.b32.xlu0 %v2642, 65
        %v2970 = vpop.permute.xlu0 %2969
        %2971 = vrot.lane.b32.xlu0 %v2638, 65
        %v2972 = vpop.permute.xlu0 %2971
        %2973 = vrot.lane.b32.xlu0 %v2644, 65
        %v2974 = vpop.permute.xlu0 %2973
        %2975 = vrot.lane.b32.xlu0 %v2737, 65
        %v2976 = vpop.permute.xlu0 %2975
        %2977 = vrot.lane.b32.xlu0 %v2743, 65
        %v2978 = vpop.permute.xlu0 %2977
        %2979 = vrot.lane.b32.xlu0 %v2739, 65
        %v2980 = vpop.permute.xlu0 %2979
        %2981 = vrot.lane.b32.xlu0 %v2745, 65
        %v2982 = vpop.permute.xlu0 %2981
        %2983 = vrot.lane.b32.xlu0 %v2838, 65
        %v2984 = vpop.permute.xlu0 %2983
        %2985 = vrot.lane.b32.xlu0 %v2844, 65
        %v2986 = vpop.permute.xlu0 %2985
        %2987 = vrot.lane.b32.xlu0 %v2840, 65
        %v2988 = vpop.permute.xlu0 %2987
        %2989 = vrot.lane.b32.xlu0 %v2846, 65
        %v2990 = vpop.permute.xlu0 %2989
        %2991 = vrot.lane.b32.xlu0 %v2939, 65
        %v2992 = vpop.permute.xlu0 %2991
        %2993 = vrot.lane.b32.xlu0 %v2944, 65
        %v2994 = vpop.permute.xlu0 %2993
        %v2995 = vsel %vm973, %v2988, %v2992
        %v2996 = vsel %vm973, %v2990, %v2994
        %v2997 = vsel %vm973, %v2984, %v2988
        %v2998 = vsel %vm973, %v2986, %v2990
        %v2999 = vsel %vm973, %v2980, %v2984
        %v3000 = vsel %vm973, %v2982, %v2986
        %v3001 = vsel %vm973, %v2976, %v2980
        %v3002 = vsel %vm973, %v2978, %v2982
        %v3003 = vsel %vm973, %v2972, %v2976
        %v3004 = vsel %vm973, %v2974, %v2978
        %v3005 = vsel %vm973, %v2968, %v2972
        %v3006 = vsel %vm973, %v2970, %v2974
        %v3007 = vsel %vm973, %v2992, %v2968
        %v3008 = vsel %vm973, %v2994, %v2970
        %v3009 = vmul.f32 %v3007, %v992
        %v3010 = vmul.f32 %v3005, %v996
        %v3011 = vmul.f32 %v3003, %v1000
        %v3012 = vmul.f32 %v3001, %v1004
        %v3013 = vmul.f32 %v2999, %v1008
        %v3014 = vmul.f32 %v2997, %v1012
        %v3015 = vmul.f32 %v2995, %v1016
        %v3016 = vmul.f32 %v3008, %v992
        %v3017 = vmul.f32 %v3006, %v996
        %v3018 = vmul.f32 %v3004, %v1000
        %v3019 = vmul.f32 %v3002, %v1004
        %v3020 = vmul.f32 %v3000, %v1008
        %v3021 = vmul.f32 %v2998, %v1012
        %v3022 = vmul.f32 %v2996, %v1016
        %v3023 = vld [vmem:[%s7] sm:$0xff]
        %v3024 = vld [vmem:[%s7 + $0x8] sm:$0xff]
        %3026 = vset.pattern.permute.xlu0 0
        %3027 = vperm.xlu0 %3026, %v3023
        %v3028 = vpop.permute.xlu0 %3027
        %3031 = vset.pattern.permute.xlu0 0
        %3032 = vperm.xlu0 %3031, %v3024
        %v3033 = vpop.permute.xlu0 %3032
        %v3035 = vadd.f32 %v3009, %v3028
        %v3036 = vadd.f32 %v3010, %v3028
        %v3037 = vadd.f32 %v3011, %v3028
        %v3038 = vadd.f32 %v3012, %v3028
        %v3039 = vadd.f32 %v3013, %v3028
        %v3040 = vadd.f32 %v3014, %v3028
        %v3041 = vadd.f32 %v3015, %v3028
        %v3042 = vadd.f32 %v3016, %v3033
        %v3043 = vadd.f32 %v3017, %v3033
        %v3044 = vadd.f32 %v3018, %v3033
        %v3045 = vadd.f32 %v3019, %v3033
        %v3046 = vadd.f32 %v3020, %v3033
        %v3047 = vadd.f32 %v3021, %v3033
        %v3048 = vadd.f32 %v3022, %v3033
        %3049 = vrot.lane.b32.xlu0 %v2648, 64
        %v3050 = vpop.permute.xlu0 %3049
        %3051 = vrot.lane.b32.xlu0 %v2654, 64
        %v3052 = vpop.permute.xlu0 %3051
        %3053 = vrot.lane.b32.xlu0 %v2650, 64
        %v3054 = vpop.permute.xlu0 %3053
        %3055 = vrot.lane.b32.xlu0 %v2656, 64
        %v3056 = vpop.permute.xlu0 %3055
        %3057 = vrot.lane.b32.xlu0 %v2749, 64
        %v3058 = vpop.permute.xlu0 %3057
        %3059 = vrot.lane.b32.xlu0 %v2755, 64
        %v3060 = vpop.permute.xlu0 %3059
        %3061 = vrot.lane.b32.xlu0 %v2751, 64
        %v3062 = vpop.permute.xlu0 %3061
        %3063 = vrot.lane.b32.xlu0 %v2757, 64
        %v3064 = vpop.permute.xlu0 %3063
        %3065 = vrot.lane.b32.xlu0 %v2850, 64
        %v3066 = vpop.permute.xlu0 %3065
        %3067 = vrot.lane.b32.xlu0 %v2856, 64
        %v3068 = vpop.permute.xlu0 %3067
        %3069 = vrot.lane.b32.xlu0 %v2852, 64
        %v3070 = vpop.permute.xlu0 %3069
        %3071 = vrot.lane.b32.xlu0 %v2858, 64
        %v3072 = vpop.permute.xlu0 %3071
        %3073 = vrot.lane.b32.xlu0 %v2949, 64
        %v3074 = vpop.permute.xlu0 %3073
        %3075 = vrot.lane.b32.xlu0 %v2954, 64
        %v3076 = vpop.permute.xlu0 %3075
        %v3077 = vsel %vm1092, %v3070, %v3074
        %v3078 = vsel %vm1092, %v3072, %v3076
        %v3079 = vsel %vm1092, %v3066, %v3070
        %v3080 = vsel %vm1092, %v3068, %v3072
        %v3081 = vsel %vm1092, %v3062, %v3066
        %v3082 = vsel %vm1092, %v3064, %v3068
        %v3083 = vsel %vm1092, %v3058, %v3062
        %v3084 = vsel %vm1092, %v3060, %v3064
        %v3085 = vsel %vm1092, %v3054, %v3058
        %v3086 = vsel %vm1092, %v3056, %v3060
        %v3087 = vsel %vm1092, %v3050, %v3054
        %v3088 = vsel %vm1092, %v3052, %v3056
        %v3089 = vsel %vm1092, %v3074, %v3050
        %v3090 = vsel %vm1092, %v3076, %v3052
        %v3091 = vadd.f32 %v3035, %v3089
        %v3092 = vadd.f32 %v3036, %v3087
        %v3093 = vadd.f32 %v3037, %v3085
        %v3094 = vadd.f32 %v3038, %v3083
        %v3095 = vadd.f32 %v3039, %v3081
        %v3096 = vadd.f32 %v3040, %v3079
        %v3097 = vadd.f32 %v3041, %v3077
        %v3098 = vadd.f32 %v3042, %v3090
        %v3099 = vadd.f32 %v3043, %v3088
        %v3100 = vadd.f32 %v3044, %v3086
        %v3101 = vadd.f32 %v3045, %v3084
        %v3102 = vadd.f32 %v3046, %v3082
        %v3103 = vadd.f32 %v3047, %v3080
        %v3104 = vadd.f32 %v3048, %v3078
        %3105 = vrot.lane.b32.xlu0 %v2660, 63
        %v3106 = vpop.permute.xlu0 %3105
        %3107 = vrot.lane.b32.xlu0 %v2666, 63
        %v3108 = vpop.permute.xlu0 %3107
        %3109 = vrot.lane.b32.xlu0 %v2662, 63
        %v3110 = vpop.permute.xlu0 %3109
        %3111 = vrot.lane.b32.xlu0 %v2668, 63
        %v3112 = vpop.permute.xlu0 %3111
        %3113 = vrot.lane.b32.xlu0 %v2761, 63
        %v3114 = vpop.permute.xlu0 %3113
        %3115 = vrot.lane.b32.xlu0 %v2767, 63
        %v3116 = vpop.permute.xlu0 %3115
        %3117 = vrot.lane.b32.xlu0 %v2763, 63
        %v3118 = vpop.permute.xlu0 %3117
        %3119 = vrot.lane.b32.xlu0 %v2769, 63
        %v3120 = vpop.permute.xlu0 %3119
        %3121 = vrot.lane.b32.xlu0 %v2862, 63
        %v3122 = vpop.permute.xlu0 %3121
        %3123 = vrot.lane.b32.xlu0 %v2868, 63
        %v3124 = vpop.permute.xlu0 %3123
        %3125 = vrot.lane.b32.xlu0 %v2864, 63
        %v3126 = vpop.permute.xlu0 %3125
        %3127 = vrot.lane.b32.xlu0 %v2870, 63
        %v3128 = vpop.permute.xlu0 %3127
        %3129 = vrot.lane.b32.xlu0 %v2959, 63
        %v3130 = vpop.permute.xlu0 %3129
        %3131 = vrot.lane.b32.xlu0 %v2964, 63
        %v3132 = vpop.permute.xlu0 %3131
        %v3133 = vsel %vm1149, %v3126, %v3130
        %v3134 = vsel %vm1149, %v3128, %v3132
        %v3135 = vsel %vm1149, %v3122, %v3126
        %v3136 = vsel %vm1149, %v3124, %v3128
        %v3137 = vsel %vm1149, %v3118, %v3122
        %v3138 = vsel %vm1149, %v3120, %v3124
        %v3139 = vsel %vm1149, %v3114, %v3118
        %v3140 = vsel %vm1149, %v3116, %v3120
        %v3141 = vsel %vm1149, %v3110, %v3114
        %v3142 = vsel %vm1149, %v3112, %v3116
        %v3143 = vsel %vm1149, %v3106, %v3110
        %v3144 = vsel %vm1149, %v3108, %v3112
        %v3145 = vsel %vm1149, %v3130, %v3106
        %v3146 = vsel %vm1149, %v3132, %v3108
        %v3147 = vmul.f32 %v3145, %v1168
        %v3148 = vmul.f32 %v3143, %v1172
        %v3149 = vmul.f32 %v3141, %v1176
        %v3150 = vmul.f32 %v3139, %v1180
        %v3151 = vmul.f32 %v3137, %v1184
        %v3152 = vmul.f32 %v3135, %v1188
        %v3153 = vmul.f32 %v3133, %v1192
        %v3154 = vmul.f32 %v3146, %v1168
        %v3155 = vmul.f32 %v3144, %v1172
        %v3156 = vmul.f32 %v3142, %v1176
        %v3157 = vmul.f32 %v3140, %v1180
        %v3158 = vmul.f32 %v3138, %v1184
        %v3159 = vmul.f32 %v3136, %v1188
        %v3160 = vmul.f32 %v3134, %v1192
        %v3161 = vadd.f32 %v3091, %v3147
        %v3162 = vadd.f32 %v3092, %v3148
        %v3163 = vadd.f32 %v3093, %v3149
        %v3164 = vadd.f32 %v3094, %v3150
        %v3165 = vadd.f32 %v3095, %v3151
        %v3166 = vadd.f32 %v3096, %v3152
        %v3167 = vadd.f32 %v3097, %v3153
        %v3168 = vadd.f32 %v3098, %v3154
        %v3169 = vadd.f32 %v3099, %v3155
        %v3170 = vadd.f32 %v3100, %v3156
        %v3171 = vadd.f32 %v3101, %v3157
        %v3172 = vadd.f32 %v3102, %v3158
        %v3173 = vadd.f32 %v3103, %v3159
        %v3174 = vadd.f32 %v3104, %v3160
        %v3175 = vld [vmem:[%s6 + $0x30] sm:$0xff]
        %v3176 = vld [vmem:[%s6 + $0x38] sm:$0xff]
        %v3177 = vld [vmem:[%s6 + $0x40] sm:$0xff]
        %v3178 = vld [vmem:[%s6 + $0x48] sm:$0xff]
        %v3179 = vld [vmem:[%s6 + $0x50] sm:$0xff]
        %v3180 = vld [vmem:[%s6 + $0x58] sm:$0xff]
        %v3182 = vsel %vm2550, %v3175, 0
        %v3185 = vsel %vm2550, %v3176, 0
        %v3188 = vsel %vm2550, %v3177, 0
        %v3191 = vsel %vm2550, %v3178, 0
        %v3194 = vsel %vm2550, %v3179, 0
        %v3197 = vsel %vm2550, %v3180, 0
        %3199 = vmatprep.subr.mxu0 %v2517
        %3200 = vmatpush1.msra.mxu0 %v2516
        %3201 = vmatprep.subr.mxu0 %v2524
        %3202 = vmatpush1.msra.mxu0 %v2523
        %3203 = vmatprep.subr.mxu0 %v2531
        %3204 = vmatpush1.msra.mxu0 %v2530
        %3205 = vmatprep.subr.mxu0 %v2538
        %3206 = vmatpush1.msra.mxu0 %v2537
        %3207 = vmatprep.subr.mxu0 0.0
        %3208 = vmatpush1.msra.mxu0 0.0
        %3209 = vmatprep.subr.mxu0 0.0
        %3210 = vmatpush1.msra.mxu0 0.0
        %3211 = vmatprep.subr.mxu0 0.0
        %3212 = vmatpush1.msra.mxu0 0.0
        %3213 = vmatprep.subr.mxu0 0.0
        %3214 = vmatpush1.msra.mxu0 0.0
        %3215 = vmatprep.subr.mxu0 0.0
        %3216 = vmatpush1.msra.mxu0 0.0
        %3217 = vmatprep.subr.mxu0 0.0
        %3218 = vmatpush1.msra.mxu0 0.0
        %3219 = vmatprep.subr.mxu0 0.0
        %3220 = vmatpush1.msra.mxu0 0.0
        %3221 = vmatprep.subr.mxu0 0.0
        %3222 = vmatpush1.msra.mxu0 0.0
        %3223 = vmatprep.subr.mxu0 0.0
        %3224 = vmatpush1.msra.mxu0 0.0
        %3225 = vmatprep.subr.mxu0 0.0
        %3226 = vmatpush1.msra.mxu0 0.0
        %3227 = vmatprep.subr.mxu0 0.0
        %3228 = vmatpush1.msra.mxu0 0.0
        %3229 = vmatprep.subr.mxu0 0.0
        %3230 = vmatpush1.msra.mxu0 0.0
        %3231 = vmatprep.subr.mxu0 0.0
        %3232 = vmatpush1.msra.mxu0 0.0
        %3233 = vmatprep.subr.mxu0 0.0
        %3234 = vmatpush1.msra.mxu0 0.0
        %3235 = vmatprep.subr.mxu0 0.0
        %3236 = vmatpush1.msra.mxu0 0.0
        %3237 = vmatprep.subr.mxu0 0.0
        %3238 = vmatpush1.msra.mxu0 0.0
        %3239 = vmatprep.subr.mxu0 0.0
        %3240 = vmatpush1.msra.mxu0 0.0
        %3241 = vmatprep.subr.mxu0 0.0
        %3242 = vmatpush1.msra.mxu0 0.0
        %3243 = vmatprep.subr.mxu0 0.0
        %3244 = vmatpush1.msra.mxu0 0.0
        %3245 = vmatprep.subr.mxu0 0.0
        %3246 = vmatpush1.msra.mxu0 0.0
        %3247 = vmatprep.subr.mxu0 0.0
        %3248 = vmatpush1.msra.mxu0 0.0
        %3249 = vmatprep.subr.mxu0 0.0
        %3250 = vmatpush1.msra.mxu0 0.0
        %3251 = vmatprep.subr.mxu0 0.0
        %3252 = vmatpush1.msra.mxu0 0.0
        %3253 = vmatprep.subr.mxu0 0.0
        %3254 = vmatpush1.msra.mxu0 0.0
        %3255 = vmatprep.subr.mxu0 0.0
        %3256 = vmatpush1.msra.mxu0 0.0
        %3257 = vmatprep.subr.mxu0 0.0
        %3258 = vmatpush1.msra.mxu0 0.0
        %3259 = vmatprep.subr.mxu0 0.0
        %3260 = vmatpush1.msra.mxu0 0.0
        %3261 = vmatprep.subr.mxu0 0.0
        %3262 = vmatpush1.msra.mxu0 0.0
        %3263 = vmatprep.mubr.f32.mxu0 0.0
        %3264 = vmatmul.mubr.f32.gmra.mrb[0].mxu0 %v3182
        %v3265 = vpop.f32.mrb[0].mxu0
        %v3266 = vadd.f32 0.0, %v3265
        %v3267 = vpop.f32.mrb[0].mxu0
        %v3268 = vadd.f32 0.0, %v3267
        %3269 = vmatprep.mubr.f32.mxu0 0.0
        %3270 = vmatmul.mubr.f32.gmra.mrb[0].mxu0 %v3185
        %v3271 = vpop.f32.mrb[0].mxu0
        %v3272 = vadd.f32 0.0, %v3271
        %v3273 = vpop.f32.mrb[0].mxu0
        %v3274 = vadd.f32 0.0, %v3273
        %3275 = vmatprep.mubr.f32.mxu0 0.0
        %3276 = vmatmul.mubr.f32.gmra.mrb[0].mxu0 %v3188
        %v3277 = vpop.f32.mrb[0].mxu0
        %v3278 = vadd.f32 0.0, %v3277
        %v3279 = vpop.f32.mrb[0].mxu0
        %v3280 = vadd.f32 0.0, %v3279
        %3281 = vmatprep.mubr.f32.mxu0 0.0
        %3282 = vmatmul.mubr.f32.gmra.mrb[0].mxu0 %v3191
        %v3283 = vpop.f32.mrb[0].mxu0
        %v3284 = vadd.f32 0.0, %v3283
        %v3285 = vpop.f32.mrb[0].mxu0
        %v3286 = vadd.f32 0.0, %v3285
        %3287 = vmatprep.mubr.f32.mxu0 0.0
        %3288 = vmatmul.mubr.f32.gmra.mrb[0].mxu0 %v3194
        %v3289 = vpop.f32.mrb[0].mxu0
        %v3290 = vadd.f32 0.0, %v3289
        %v3291 = vpop.f32.mrb[0].mxu0
        %v3292 = vadd.f32 0.0, %v3291
        %3293 = vmatprep.mubr.f32.mxu0 0.0
        %3294 = vmatmul.mubr.f32.gmra.mrb[0].mxu0 %v3197
        %v3295 = vpop.f32.mrb[0].mxu0
        %v3296 = vadd.f32 0.0, %v3295
        %v3297 = vpop.f32.mrb[0].mxu0
        %v3298 = vadd.f32 0.0, %v3297
        %3299 = vdwg.mxu0
        %3300 = vmatprep.subr.mxu0 %v2519
        %3301 = vmatpush1.msra.mxu0 %v2518
        %3302 = vmatprep.subr.mxu0 %v2526
        %3303 = vmatpush1.msra.mxu0 %v2525
        %3304 = vmatprep.subr.mxu0 %v2533
        %3305 = vmatpush1.msra.mxu0 %v2532
        %3306 = vmatprep.subr.mxu0 %v2540
        %3307 = vmatpush1.msra.mxu0 %v2539
        %3308 = vmatprep.subr.mxu0 0.0
        %3309 = vmatpush1.msra.mxu0 0.0
        %3310 = vmatprep.subr.mxu0 0.0
        %3311 = vmatpush1.msra.mxu0 0.0
        %3312 = vmatprep.subr.mxu0 0.0
        %3313 = vmatpush1.msra.mxu0 0.0
        %3314 = vmatprep.subr.mxu0 0.0
        %3315 = vmatpush1.msra.mxu0 0.0
        %3316 = vmatprep.subr.mxu0 0.0
        %3317 = vmatpush1.msra.mxu0 0.0
        %3318 = vmatprep.subr.mxu0 0.0
        %3319 = vmatpush1.msra.mxu0 0.0
        %3320 = vmatprep.subr.mxu0 0.0
        %3321 = vmatpush1.msra.mxu0 0.0
        %3322 = vmatprep.subr.mxu0 0.0
        %3323 = vmatpush1.msra.mxu0 0.0
        %3324 = vmatprep.subr.mxu0 0.0
        %3325 = vmatpush1.msra.mxu0 0.0
        %3326 = vmatprep.subr.mxu0 0.0
        %3327 = vmatpush1.msra.mxu0 0.0
        %3328 = vmatprep.subr.mxu0 0.0
        %3329 = vmatpush1.msra.mxu0 0.0
        %3330 = vmatprep.subr.mxu0 0.0
        %3331 = vmatpush1.msra.mxu0 0.0
        %3332 = vmatprep.subr.mxu0 0.0
        %3333 = vmatpush1.msra.mxu0 0.0
        %3334 = vmatprep.subr.mxu0 0.0
        %3335 = vmatpush1.msra.mxu0 0.0
        %3336 = vmatprep.subr.mxu0 0.0
        %3337 = vmatpush1.msra.mxu0 0.0
        %3338 = vmatprep.subr.mxu0 0.0
        %3339 = vmatpush1.msra.mxu0 0.0
        %3340 = vmatprep.subr.mxu0 0.0
        %3341 = vmatpush1.msra.mxu0 0.0
        %3342 = vmatprep.subr.mxu0 0.0
        %3343 = vmatpush1.msra.mxu0 0.0
        %3344 = vmatprep.subr.mxu0 0.0
        %3345 = vmatpush1.msra.mxu0 0.0
        %3346 = vmatprep.subr.mxu0 0.0
        %3347 = vmatpush1.msra.mxu0 0.0
        %3348 = vmatprep.subr.mxu0 0.0
        %3349 = vmatpush1.msra.mxu0 0.0
        %3350 = vmatprep.subr.mxu0 0.0
        %3351 = vmatpush1.msra.mxu0 0.0
        %3352 = vmatprep.subr.mxu0 0.0
        %3353 = vmatpush1.msra.mxu0 0.0
        %3354 = vmatprep.subr.mxu0 0.0
        %3355 = vmatpush1.msra.mxu0 0.0
        %3356 = vmatprep.subr.mxu0 0.0
        %3357 = vmatpush1.msra.mxu0 0.0
        %3358 = vmatprep.subr.mxu0 0.0
        %3359 = vmatpush1.msra.mxu0 0.0
        %3360 = vmatprep.subr.mxu0 0.0
        %3361 = vmatpush1.msra.mxu0 0.0
        %3362 = vmatprep.subr.mxu0 0.0
        %3363 = vmatpush1.msra.mxu0 0.0
        %3364 = vmatprep.mubr.f32.mxu0 0.0
        %3365 = vmatmul.mubr.f32.gmra.mrb[0].mxu0 %v3182
        %v3366 = vpop.f32.mrb[0].mxu0
        %v3367 = vadd.f32 0.0, %v3366
        %v3368 = vpop.f32.mrb[0].mxu0
        %v3369 = vadd.f32 0.0, %v3368
        %3370 = vmatprep.mubr.f32.mxu0 0.0
        %3371 = vmatmul.mubr.f32.gmra.mrb[0].mxu0 %v3185
        %v3372 = vpop.f32.mrb[0].mxu0
        %v3373 = vadd.f32 0.0, %v3372
        %v3374 = vpop.f32.mrb[0].mxu0
        %v3375 = vadd.f32 0.0, %v3374
        %3376 = vmatprep.mubr.f32.mxu0 0.0
        %3377 = vmatmul.mubr.f32.gmra.mrb[0].mxu0 %v3188
        %v3378 = vpop.f32.mrb[0].mxu0
        %v3379 = vadd.f32 0.0, %v3378
        %v3380 = vpop.f32.mrb[0].mxu0
        %v3381 = vadd.f32 0.0, %v3380
        %3382 = vmatprep.mubr.f32.mxu0 0.0
        %3383 = vmatmul.mubr.f32.gmra.mrb[0].mxu0 %v3191
        %v3384 = vpop.f32.mrb[0].mxu0
        %v3385 = vadd.f32 0.0, %v3384
        %v3386 = vpop.f32.mrb[0].mxu0
        %v3387 = vadd.f32 0.0, %v3386
        %3388 = vmatprep.mubr.f32.mxu0 0.0
        %3389 = vmatmul.mubr.f32.gmra.mrb[0].mxu0 %v3194
        %v3390 = vpop.f32.mrb[0].mxu0
        %v3391 = vadd.f32 0.0, %v3390
        %v3392 = vpop.f32.mrb[0].mxu0
        %v3393 = vadd.f32 0.0, %v3392
        %3394 = vmatprep.mubr.f32.mxu0 0.0
        %3395 = vmatmul.mubr.f32.gmra.mrb[0].mxu0 %v3197
        %v3396 = vpop.f32.mrb[0].mxu0
        %v3397 = vadd.f32 0.0, %v3396
        %v3398 = vpop.f32.mrb[0].mxu0
        %v3399 = vadd.f32 0.0, %v3398
        %3400 = vdwg.mxu0
        %3401 = vmatprep.subr.mxu0 %v2521
        %3402 = vmatpush1.msra.mxu0 %v2520
        %3403 = vmatprep.subr.mxu0 %v2528
        %3404 = vmatpush1.msra.mxu0 %v2527
        %3405 = vmatprep.subr.mxu0 %v2535
        %3406 = vmatpush1.msra.mxu0 %v2534
        %3407 = vmatprep.subr.mxu0 %v2542
        %3408 = vmatpush1.msra.mxu0 %v2541
        %3409 = vmatprep.subr.mxu0 0.0
        %3410 = vmatpush1.msra.mxu0 0.0
        %3411 = vmatprep.subr.mxu0 0.0
        %3412 = vmatpush1.msra.mxu0 0.0
        %3413 = vmatprep.subr.mxu0 0.0
        %3414 = vmatpush1.msra.mxu0 0.0
        %3415 = vmatprep.subr.mxu0 0.0
        %3416 = vmatpush1.msra.mxu0 0.0
        %3417 = vmatprep.subr.mxu0 0.0
        %3418 = vmatpush1.msra.mxu0 0.0
        %3419 = vmatprep.subr.mxu0 0.0
        %3420 = vmatpush1.msra.mxu0 0.0
        %3421 = vmatprep.subr.mxu0 0.0
        %3422 = vmatpush1.msra.mxu0 0.0
        %3423 = vmatprep.subr.mxu0 0.0
        %3424 = vmatpush1.msra.mxu0 0.0
        %3425 = vmatprep.subr.mxu0 0.0
        %3426 = vmatpush1.msra.mxu0 0.0
        %3427 = vmatprep.subr.mxu0 0.0
        %3428 = vmatpush1.msra.mxu0 0.0
        %3429 = vmatprep.subr.mxu0 0.0
        %3430 = vmatpush1.msra.mxu0 0.0
        %3431 = vmatprep.subr.mxu0 0.0
        %3432 = vmatpush1.msra.mxu0 0.0
        %3433 = vmatprep.subr.mxu0 0.0
        %3434 = vmatpush1.msra.mxu0 0.0
        %3435 = vmatprep.subr.mxu0 0.0
        %3436 = vmatpush1.msra.mxu0 0.0
        %3437 = vmatprep.subr.mxu0 0.0
        %3438 = vmatpush1.msra.mxu0 0.0
        %3439 = vmatprep.subr.mxu0 0.0
        %3440 = vmatpush1.msra.mxu0 0.0
        %3441 = vmatprep.subr.mxu0 0.0
        %3442 = vmatpush1.msra.mxu0 0.0
        %3443 = vmatprep.subr.mxu0 0.0
        %3444 = vmatpush1.msra.mxu0 0.0
        %3445 = vmatprep.subr.mxu0 0.0
        %3446 = vmatpush1.msra.mxu0 0.0
        %3447 = vmatprep.subr.mxu0 0.0
        %3448 = vmatpush1.msra.mxu0 0.0
        %3449 = vmatprep.subr.mxu0 0.0
        %3450 = vmatpush1.msra.mxu0 0.0
        %3451 = vmatprep.subr.mxu0 0.0
        %3452 = vmatpush1.msra.mxu0 0.0
        %3453 = vmatprep.subr.mxu0 0.0
        %3454 = vmatpush1.msra.mxu0 0.0
        %3455 = vmatprep.subr.mxu0 0.0
        %3456 = vmatpush1.msra.mxu0 0.0
        %3457 = vmatprep.subr.mxu0 0.0
        %3458 = vmatpush1.msra.mxu0 0.0
        %3459 = vmatprep.subr.mxu0 0.0
        %3460 = vmatpush1.msra.mxu0 0.0
        %3461 = vmatprep.subr.mxu0 0.0
        %3462 = vmatpush1.msra.mxu0 0.0
        %3463 = vmatprep.subr.mxu0 0.0
        %3464 = vmatpush1.msra.mxu0 0.0
        %3465 = vmatprep.mubr.f32.mxu0 0.0
        %3466 = vmatmul.mubr.f32.gmra.mrb[0].mxu0 %v3182
        %v3467 = vpop.f32.mrb[0].mxu0
        %v3468 = vadd.f32 0.0, %v3467
        %v3469 = vpop.f32.mrb[0].mxu0
        %v3470 = vadd.f32 0.0, %v3469
        %3471 = vmatprep.mubr.f32.mxu0 0.0
        %3472 = vmatmul.mubr.f32.gmra.mrb[0].mxu0 %v3185
        %v3473 = vpop.f32.mrb[0].mxu0
        %v3474 = vadd.f32 0.0, %v3473
        %v3475 = vpop.f32.mrb[0].mxu0
        %v3476 = vadd.f32 0.0, %v3475
        %3477 = vmatprep.mubr.f32.mxu0 0.0
        %3478 = vmatmul.mubr.f32.gmra.mrb[0].mxu0 %v3188
        %v3479 = vpop.f32.mrb[0].mxu0
        %v3480 = vadd.f32 0.0, %v3479
        %v3481 = vpop.f32.mrb[0].mxu0
        %v3482 = vadd.f32 0.0, %v3481
        %3483 = vmatprep.mubr.f32.mxu0 0.0
        %3484 = vmatmul.mubr.f32.gmra.mrb[0].mxu0 %v3191
        %v3485 = vpop.f32.mrb[0].mxu0
        %v3486 = vadd.f32 0.0, %v3485
        %v3487 = vpop.f32.mrb[0].mxu0
        %v3488 = vadd.f32 0.0, %v3487
        %3489 = vmatprep.mubr.f32.mxu0 0.0
        %3490 = vmatmul.mubr.f32.gmra.mrb[0].mxu0 %v3194
        %v3491 = vpop.f32.mrb[0].mxu0
        %v3492 = vadd.f32 0.0, %v3491
        %v3493 = vpop.f32.mrb[0].mxu0
        %v3494 = vadd.f32 0.0, %v3493
        %3495 = vmatprep.mubr.f32.mxu0 0.0
        %3496 = vmatmul.mubr.f32.gmra.mrb[0].mxu0 %v3197
        %v3497 = vpop.f32.mrb[0].mxu0
        %v3498 = vadd.f32 0.0, %v3497
        %v3499 = vpop.f32.mrb[0].mxu0
        %v3500 = vadd.f32 0.0, %v3499
        %3501 = vdwg.mxu0
        %3502 = vmatprep.subr.mxu0 0.0
        %3503 = vmatpush1.msra.mxu0 %v2522
        %3504 = vmatprep.subr.mxu0 0.0
        %3505 = vmatpush1.msra.mxu0 %v2529
        %3506 = vmatprep.subr.mxu0 0.0
        %3507 = vmatpush1.msra.mxu0 %v2536
        %3508 = vmatprep.subr.mxu0 0.0
        %3509 = vmatpush1.msra.mxu0 %v2543
        %3510 = vmatprep.subr.mxu0 0.0
        %3511 = vmatpush1.msra.mxu0 0.0
        %3512 = vmatprep.subr.mxu0 0.0
        %3513 = vmatpush1.msra.mxu0 0.0
        %3514 = vmatprep.subr.mxu0 0.0
        %3515 = vmatpush1.msra.mxu0 0.0
        %3516 = vmatprep.subr.mxu0 0.0
        %3517 = vmatpush1.msra.mxu0 0.0
        %3518 = vmatprep.subr.mxu0 0.0
        %3519 = vmatpush1.msra.mxu0 0.0
        %3520 = vmatprep.subr.mxu0 0.0
        %3521 = vmatpush1.msra.mxu0 0.0
        %3522 = vmatprep.subr.mxu0 0.0
        %3523 = vmatpush1.msra.mxu0 0.0
        %3524 = vmatprep.subr.mxu0 0.0
        %3525 = vmatpush1.msra.mxu0 0.0
        %3526 = vmatprep.subr.mxu0 0.0
        %3527 = vmatpush1.msra.mxu0 0.0
        %3528 = vmatprep.subr.mxu0 0.0
        %3529 = vmatpush1.msra.mxu0 0.0
        %3530 = vmatprep.subr.mxu0 0.0
        %3531 = vmatpush1.msra.mxu0 0.0
        %3532 = vmatprep.subr.mxu0 0.0
        %3533 = vmatpush1.msra.mxu0 0.0
        %3534 = vmatprep.subr.mxu0 0.0
        %3535 = vmatpush1.msra.mxu0 0.0
        %3536 = vmatprep.subr.mxu0 0.0
        %3537 = vmatpush1.msra.mxu0 0.0
        %3538 = vmatprep.subr.mxu0 0.0
        %3539 = vmatpush1.msra.mxu0 0.0
        %3540 = vmatprep.subr.mxu0 0.0
        %3541 = vmatpush1.msra.mxu0 0.0
        %3542 = vmatprep.subr.mxu0 0.0
        %3543 = vmatpush1.msra.mxu0 0.0
        %3544 = vmatprep.subr.mxu0 0.0
        %3545 = vmatpush1.msra.mxu0 0.0
        %3546 = vmatprep.subr.mxu0 0.0
        %3547 = vmatpush1.msra.mxu0 0.0
        %3548 = vmatprep.subr.mxu0 0.0
        %3549 = vmatpush1.msra.mxu0 0.0
        %3550 = vmatprep.subr.mxu0 0.0
        %3551 = vmatpush1.msra.mxu0 0.0
        %3552 = vmatprep.subr.mxu0 0.0
        %3553 = vmatpush1.msra.mxu0 0.0
        %3554 = vmatprep.subr.mxu0 0.0
        %3555 = vmatpush1.msra.mxu0 0.0
        %3556 = vmatprep.subr.mxu0 0.0
        %3557 = vmatpush1.msra.mxu0 0.0
        %3558 = vmatprep.subr.mxu0 0.0
        %3559 = vmatpush1.msra.mxu0 0.0
        %3560 = vmatprep.subr.mxu0 0.0
        %3561 = vmatpush1.msra.mxu0 0.0
        %3562 = vmatprep.subr.mxu0 0.0
        %3563 = vmatpush1.msra.mxu0 0.0
        %3564 = vmatprep.subr.mxu0 0.0
        %3565 = vmatpush1.msra.mxu0 0.0
        %3566 = vmatprep.mubr.f32.mxu0 0.0
        %3567 = vmatmul.mubr.f32.gmra.mrb[0].mxu0 %v3182
        %v3568 = vpop.f32.mrb[0].mxu0
        %v3569 = vadd.f32 0.0, %v3568
        %v3570 = vpop.f32.mrb[0].mxu0
        %3571 = vmatprep.mubr.f32.mxu0 0.0
        %3572 = vmatmul.mubr.f32.gmra.mrb[0].mxu0 %v3185
        %v3573 = vpop.f32.mrb[0].mxu0
        %v3574 = vadd.f32 0.0, %v3573
        %v3575 = vpop.f32.mrb[0].mxu0
        %3576 = vmatprep.mubr.f32.mxu0 0.0
        %3577 = vmatmul.mubr.f32.gmra.mrb[0].mxu0 %v3188
        %v3578 = vpop.f32.mrb[0].mxu0
        %v3579 = vadd.f32 0.0, %v3578
        %v3580 = vpop.f32.mrb[0].mxu0
        %3581 = vmatprep.mubr.f32.mxu0 0.0
        %3582 = vmatmul.mubr.f32.gmra.mrb[0].mxu0 %v3191
        %v3583 = vpop.f32.mrb[0].mxu0
        %v3584 = vadd.f32 0.0, %v3583
        %v3585 = vpop.f32.mrb[0].mxu0
        %3586 = vmatprep.mubr.f32.mxu0 0.0
        %3587 = vmatmul.mubr.f32.gmra.mrb[0].mxu0 %v3194
        %v3588 = vpop.f32.mrb[0].mxu0
        %v3589 = vadd.f32 0.0, %v3588
        %v3590 = vpop.f32.mrb[0].mxu0
        %3591 = vmatprep.mubr.f32.mxu0 0.0
        %3592 = vmatmul.mubr.f32.gmra.mrb[0].mxu0 %v3197
        %v3593 = vpop.f32.mrb[0].mxu0
        %v3594 = vadd.f32 0.0, %v3593
        %v3595 = vpop.f32.mrb[0].mxu0
        %3596 = vdwg.mxu0
        %3597 = vrot.lane.b32.xlu0 %v3266, 1
        %v3598 = vpop.permute.xlu0 %3597
        %3599 = vrot.lane.b32.xlu0 %v3272, 1
        %v3600 = vpop.permute.xlu0 %3599
        %3601 = vrot.lane.b32.xlu0 %v3268, 1
        %v3602 = vpop.permute.xlu0 %3601
        %3603 = vrot.lane.b32.xlu0 %v3274, 1
        %v3604 = vpop.permute.xlu0 %3603
        %3605 = vrot.lane.b32.xlu0 %v3367, 1
        %v3606 = vpop.permute.xlu0 %3605
        %3607 = vrot.lane.b32.xlu0 %v3373, 1
        %v3608 = vpop.permute.xlu0 %3607
        %3609 = vrot.lane.b32.xlu0 %v3369, 1
        %v3610 = vpop.permute.xlu0 %3609
        %3611 = vrot.lane.b32.xlu0 %v3375, 1
        %v3612 = vpop.permute.xlu0 %3611
        %3613 = vrot.lane.b32.xlu0 %v3468, 1
        %v3614 = vpop.permute.xlu0 %3613
        %3615 = vrot.lane.b32.xlu0 %v3474, 1
        %v3616 = vpop.permute.xlu0 %3615
        %3617 = vrot.lane.b32.xlu0 %v3470, 1
        %v3618 = vpop.permute.xlu0 %3617
        %3619 = vrot.lane.b32.xlu0 %v3476, 1
        %v3620 = vpop.permute.xlu0 %3619
        %3621 = vrot.lane.b32.xlu0 %v3569, 1
        %v3622 = vpop.permute.xlu0 %3621
        %3623 = vrot.lane.b32.xlu0 %v3574, 1
        %v3624 = vpop.permute.xlu0 %3623
        %v3625 = vsel %vm1678, %v3618, %v3622
        %v3626 = vsel %vm1678, %v3620, %v3624
        %v3627 = vsel %vm1678, %v3614, %v3618
        %v3628 = vsel %vm1678, %v3616, %v3620
        %v3629 = vsel %vm1678, %v3610, %v3614
        %v3630 = vsel %vm1678, %v3612, %v3616
        %v3631 = vsel %vm1678, %v3606, %v3610
        %v3632 = vsel %vm1678, %v3608, %v3612
        %v3633 = vsel %vm1678, %v3602, %v3606
        %v3634 = vsel %vm1678, %v3604, %v3608
        %v3635 = vsel %vm1678, %v3598, %v3602
        %v3636 = vsel %vm1678, %v3600, %v3604
        %v3637 = vsel %vm1678, %v3622, %v3598
        %v3638 = vsel %vm1678, %v3624, %v3600
        %v3639 = vmul.f32 %v3637, %v992
        %v3640 = vmul.f32 %v3635, %v996
        %v3641 = vmul.f32 %v3633, %v1000
        %v3642 = vmul.f32 %v3631, %v1004
        %v3643 = vmul.f32 %v3629, %v1008
        %v3644 = vmul.f32 %v3627, %v1012
        %v3645 = vmul.f32 %v3625, %v1016
        %v3646 = vmul.f32 %v3638, %v992
        %v3647 = vmul.f32 %v3636, %v996
        %v3648 = vmul.f32 %v3634, %v1000
        %v3649 = vmul.f32 %v3632, %v1004
        %v3650 = vmul.f32 %v3630, %v1008
        %v3651 = vmul.f32 %v3628, %v1012
        %v3652 = vmul.f32 %v3626, %v1016
        %v3653 = vadd.f32 %v3161, %v3639
        %v3654 = vadd.f32 %v3162, %v3640
        %v3655 = vadd.f32 %v3163, %v3641
        %v3656 = vadd.f32 %v3164, %v3642
        %v3657 = vadd.f32 %v3165, %v3643
        %v3658 = vadd.f32 %v3166, %v3644
        %v3659 = vadd.f32 %v3167, %v3645
        %v3660 = vadd.f32 %v3168, %v3646
        %v3661 = vadd.f32 %v3169, %v3647
        %v3662 = vadd.f32 %v3170, %v3648
        %v3663 = vadd.f32 %v3171, %v3649
        %v3664 = vadd.f32 %v3172, %v3650
        %v3665 = vadd.f32 %v3173, %v3651
        %v3666 = vadd.f32 %v3174, %v3652
        %v3667 = vadd.f32 %v3653, %v3278
        %v3668 = vadd.f32 %v3654, %v3280
        %v3669 = vadd.f32 %v3655, %v3379
        %v3670 = vadd.f32 %v3656, %v3381
        %v3671 = vadd.f32 %v3657, %v3480
        %v3672 = vadd.f32 %v3658, %v3482
        %v3673 = vadd.f32 %v3659, %v3579
        %v3674 = vadd.f32 %v3660, %v3284
        %v3675 = vadd.f32 %v3661, %v3286
        %v3676 = vadd.f32 %v3662, %v3385
        %v3677 = vadd.f32 %v3663, %v3387
        %v3678 = vadd.f32 %v3664, %v3486
        %v3679 = vadd.f32 %v3665, %v3488
        %v3680 = vadd.f32 %v3666, %v3584
        %3681 = vrot.lane.b32.xlu0 %v3290, 127
        %v3682 = vpop.permute.xlu0 %3681
        %3683 = vrot.lane.b32.xlu0 %v3296, 127
        %v3684 = vpop.permute.xlu0 %3683
        %3685 = vrot.lane.b32.xlu0 %v3292, 127
        %v3686 = vpop.permute.xlu0 %3685
        %3687 = vrot.lane.b32.xlu0 %v3298, 127
        %v3688 = vpop.permute.xlu0 %3687
        %3689 = vrot.lane.b32.xlu0 %v3391, 127
        %v3690 = vpop.permute.xlu0 %3689
        %3691 = vrot.lane.b32.xlu0 %v3397, 127
        %v3692 = vpop.permute.xlu0 %3691
        %3693 = vrot.lane.b32.xlu0 %v3393, 127
        %v3694 = vpop.permute.xlu0 %3693
        %3695 = vrot.lane.b32.xlu0 %v3399, 127
        %v3696 = vpop.permute.xlu0 %3695
        %3697 = vrot.lane.b32.xlu0 %v3492, 127
        %v3698 = vpop.permute.xlu0 %3697
        %3699 = vrot.lane.b32.xlu0 %v3498, 127
        %v3700 = vpop.permute.xlu0 %3699
        %3701 = vrot.lane.b32.xlu0 %v3494, 127
        %v3702 = vpop.permute.xlu0 %3701
        %3703 = vrot.lane.b32.xlu0 %v3500, 127
        %v3704 = vpop.permute.xlu0 %3703
        %3705 = vrot.lane.b32.xlu0 %v3589, 127
        %v3706 = vpop.permute.xlu0 %3705
        %3707 = vrot.lane.b32.xlu0 %v3594, 127
        %v3708 = vpop.permute.xlu0 %3707
        %v3709 = vsel %vm1763, %v3702, %v3706
        %v3710 = vsel %vm1763, %v3704, %v3708
        %v3711 = vsel %vm1763, %v3698, %v3702
        %v3712 = vsel %vm1763, %v3700, %v3704
        %v3713 = vsel %vm1763, %v3694, %v3698
        %v3714 = vsel %vm1763, %v3696, %v3700
        %v3715 = vsel %vm1763, %v3690, %v3694
        %v3716 = vsel %vm1763, %v3692, %v3696
        %v3717 = vsel %vm1763, %v3686, %v3690
        %v3718 = vsel %vm1763, %v3688, %v3692
        %v3719 = vsel %vm1763, %v3682, %v3686
        %v3720 = vsel %vm1763, %v3684, %v3688
        %v3721 = vsel %vm1763, %v3706, %v3682
        %v3722 = vsel %vm1763, %v3708, %v3684
        %v3723 = vmul.f32 %v3719, %v1168
        %v3724 = vmul.f32 %v3717, %v1172
        %v3725 = vmul.f32 %v3715, %v1176
        %v3726 = vmul.f32 %v3713, %v1180
        %v3727 = vmul.f32 %v3711, %v1184
        %v3728 = vmul.f32 %v3709, %v1188
        %v3729 = vmul.f32 %v3721, %v1192
        %v3730 = vmul.f32 %v3720, %v1168
        %v3731 = vmul.f32 %v3718, %v1172
        %v3732 = vmul.f32 %v3716, %v1176
        %v3733 = vmul.f32 %v3714, %v1180
        %v3734 = vmul.f32 %v3712, %v1184
        %v3735 = vmul.f32 %v3710, %v1188
        %v3736 = vmul.f32 %v3722, %v1192
        %v3737 = vadd.f32 %v3667, %v3723
        %v3738 = vadd.f32 %v3668, %v3724
        %v3739 = vadd.f32 %v3669, %v3725
        %v3740 = vadd.f32 %v3670, %v3726
        %v3741 = vadd.f32 %v3671, %v3727
        %v3742 = vadd.f32 %v3672, %v3728
        %v3743 = vadd.f32 %v3673, %v3729
        %v3744 = vadd.f32 %v3674, %v3730
        %v3745 = vadd.f32 %v3675, %v3731
        %v3746 = vadd.f32 %v3676, %v3732
        %v3747 = vadd.f32 %v3677, %v3733
        %v3748 = vadd.f32 %v3678, %v3734
        %v3749 = vadd.f32 %v3679, %v3735
        %v3750 = vadd.f32 %v3680, %v3736
        %v3751 = vld [vmem:[%s6 + $0x60] sm:$0xff]
        %v3752 = vld [vmem:[%s6 + $0x68] sm:$0xff]
        %v3753 = vld [vmem:[%s6 + $0x70] sm:$0xff]
        %v3754 = vld [vmem:[%s6 + $0x78] sm:$0xff]
        %v3755 = vld [vmem:[%s6 + $0x80] sm:$0xff]
        %v3756 = vld [vmem:[%s6 + $0x88] sm:$0xff]
        %v3758 = vsel %vm2550, %v3751, 0
        %v3761 = vsel %vm2550, %v3752, 0
        %v3764 = vsel %vm2550, %v3753, 0
        %v3767 = vsel %vm2550, %v3754, 0
        %v3770 = vsel %vm2550, %v3755, 0
        %v3773 = vsel %vm2550, %v3756, 0
        %3775 = vmatprep.subr.mxu0 %v2517
        %3776 = vmatpush1.msra.mxu0 %v2516
        %3777 = vmatprep.subr.mxu0 %v2524
        %3778 = vmatpush1.msra.mxu0 %v2523
        %3779 = vmatprep.subr.mxu0 %v2531
        %3780 = vmatpush1.msra.mxu0 %v2530
        %3781 = vmatprep.subr.mxu0 %v2538
        %3782 = vmatpush1.msra.mxu0 %v2537
        %3783 = vmatprep.subr.mxu0 0.0
        %3784 = vmatpush1.msra.mxu0 0.0
        %3785 = vmatprep.subr.mxu0 0.0
        %3786 = vmatpush1.msra.mxu0 0.0
        %3787 = vmatprep.subr.mxu0 0.0
        %3788 = vmatpush1.msra.mxu0 0.0
        %3789 = vmatprep.subr.mxu0 0.0
        %3790 = vmatpush1.msra.mxu0 0.0
        %3791 = vmatprep.subr.mxu0 0.0
        %3792 = vmatpush1.msra.mxu0 0.0
        %3793 = vmatprep.subr.mxu0 0.0
        %3794 = vmatpush1.msra.mxu0 0.0
        %3795 = vmatprep.subr.mxu0 0.0
        %3796 = vmatpush1.msra.mxu0 0.0
        %3797 = vmatprep.subr.mxu0 0.0
        %3798 = vmatpush1.msra.mxu0 0.0
        %3799 = vmatprep.subr.mxu0 0.0
        %3800 = vmatpush1.msra.mxu0 0.0
        %3801 = vmatprep.subr.mxu0 0.0
        %3802 = vmatpush1.msra.mxu0 0.0
        %3803 = vmatprep.subr.mxu0 0.0
        %3804 = vmatpush1.msra.mxu0 0.0
        %3805 = vmatprep.subr.mxu0 0.0
        %3806 = vmatpush1.msra.mxu0 0.0
        %3807 = vmatprep.subr.mxu0 0.0
        %3808 = vmatpush1.msra.mxu0 0.0
        %3809 = vmatprep.subr.mxu0 0.0
        %3810 = vmatpush1.msra.mxu0 0.0
        %3811 = vmatprep.subr.mxu0 0.0
        %3812 = vmatpush1.msra.mxu0 0.0
        %3813 = vmatprep.subr.mxu0 0.0
        %3814 = vmatpush1.msra.mxu0 0.0
        %3815 = vmatprep.subr.mxu0 0.0
        %3816 = vmatpush1.msra.mxu0 0.0
        %3817 = vmatprep.subr.mxu0 0.0
        %3818 = vmatpush1.msra.mxu0 0.0
        %3819 = vmatprep.subr.mxu0 0.0
        %3820 = vmatpush1.msra.mxu0 0.0
        %3821 = vmatprep.subr.mxu0 0.0
        %3822 = vmatpush1.msra.mxu0 0.0
        %3823 = vmatprep.subr.mxu0 0.0
        %3824 = vmatpush1.msra.mxu0 0.0
        %3825 = vmatprep.subr.mxu0 0.0
        %3826 = vmatpush1.msra.mxu0 0.0
        %3827 = vmatprep.subr.mxu0 0.0
        %3828 = vmatpush1.msra.mxu0 0.0
        %3829 = vmatprep.subr.mxu0 0.0
        %3830 = vmatpush1.msra.mxu0 0.0
        %3831 = vmatprep.subr.mxu0 0.0
        %3832 = vmatpush1.msra.mxu0 0.0
        %3833 = vmatprep.subr.mxu0 0.0
        %3834 = vmatpush1.msra.mxu0 0.0
        %3835 = vmatprep.subr.mxu0 0.0
        %3836 = vmatpush1.msra.mxu0 0.0
        %3837 = vmatprep.subr.mxu0 0.0
        %3838 = vmatpush1.msra.mxu0 0.0
        %3839 = vmatprep.mubr.f32.mxu0 0.0
        %3840 = vmatmul.mubr.f32.gmra.mrb[0].mxu0 %v3758
        %v3841 = vpop.f32.mrb[0].mxu0
        %v3842 = vadd.f32 0.0, %v3841
        %v3843 = vpop.f32.mrb[0].mxu0
        %v3844 = vadd.f32 0.0, %v3843
        %3845 = vmatprep.mubr.f32.mxu0 0.0
        %3846 = vmatmul.mubr.f32.gmra.mrb[0].mxu0 %v3761
        %v3847 = vpop.f32.mrb[0].mxu0
        %v3848 = vadd.f32 0.0, %v3847
        %v3849 = vpop.f32.mrb[0].mxu0
        %v3850 = vadd.f32 0.0, %v3849
        %3851 = vmatprep.mubr.f32.mxu0 0.0
        %3852 = vmatmul.mubr.f32.gmra.mrb[0].mxu0 %v3764
        %v3853 = vpop.f32.mrb[0].mxu0
        %v3854 = vadd.f32 0.0, %v3853
        %v3855 = vpop.f32.mrb[0].mxu0
        %v3856 = vadd.f32 0.0, %v3855
        %3857 = vmatprep.mubr.f32.mxu0 0.0
        %3858 = vmatmul.mubr.f32.gmra.mrb[0].mxu0 %v3767
        %v3859 = vpop.f32.mrb[0].mxu0
        %v3860 = vadd.f32 0.0, %v3859
        %v3861 = vpop.f32.mrb[0].mxu0
        %v3862 = vadd.f32 0.0, %v3861
        %3863 = vmatprep.mubr.f32.mxu0 0.0
        %3864 = vmatmul.mubr.f32.gmra.mrb[0].mxu0 %v3770
        %v3865 = vpop.f32.mrb[0].mxu0
        %v3866 = vadd.f32 0.0, %v3865
        %v3867 = vpop.f32.mrb[0].mxu0
        %v3868 = vadd.f32 0.0, %v3867
        %3869 = vmatprep.mubr.f32.mxu0 0.0
        %3870 = vmatmul.mubr.f32.gmra.mrb[0].mxu0 %v3773
        %v3871 = vpop.f32.mrb[0].mxu0
        %v3872 = vadd.f32 0.0, %v3871
        %v3873 = vpop.f32.mrb[0].mxu0
        %v3874 = vadd.f32 0.0, %v3873
        %3875 = vdwg.mxu0
        %3876 = vmatprep.subr.mxu0 %v2519
        %3877 = vmatpush1.msra.mxu0 %v2518
        %3878 = vmatprep.subr.mxu0 %v2526
        %3879 = vmatpush1.msra.mxu0 %v2525
        %3880 = vmatprep.subr.mxu0 %v2533
        %3881 = vmatpush1.msra.mxu0 %v2532
        %3882 = vmatprep.subr.mxu0 %v2540
        %3883 = vmatpush1.msra.mxu0 %v2539
        %3884 = vmatprep.subr.mxu0 0.0
        %3885 = vmatpush1.msra.mxu0 0.0
        %3886 = vmatprep.subr.mxu0 0.0
        %3887 = vmatpush1.msra.mxu0 0.0
        %3888 = vmatprep.subr.mxu0 0.0
        %3889 = vmatpush1.msra.mxu0 0.0
        %3890 = vmatprep.subr.mxu0 0.0
        %3891 = vmatpush1.msra.mxu0 0.0
        %3892 = vmatprep.subr.mxu0 0.0
        %3893 = vmatpush1.msra.mxu0 0.0
        %3894 = vmatprep.subr.mxu0 0.0
        %3895 = vmatpush1.msra.mxu0 0.0
        %3896 = vmatprep.subr.mxu0 0.0
        %3897 = vmatpush1.msra.mxu0 0.0
        %3898 = vmatprep.subr.mxu0 0.0
        %3899 = vmatpush1.msra.mxu0 0.0
        %3900 = vmatprep.subr.mxu0 0.0
        %3901 = vmatpush1.msra.mxu0 0.0
        %3902 = vmatprep.subr.mxu0 0.0
        %3903 = vmatpush1.msra.mxu0 0.0
        %3904 = vmatprep.subr.mxu0 0.0
        %3905 = vmatpush1.msra.mxu0 0.0
        %3906 = vmatprep.subr.mxu0 0.0
        %3907 = vmatpush1.msra.mxu0 0.0
        %3908 = vmatprep.subr.mxu0 0.0
        %3909 = vmatpush1.msra.mxu0 0.0
        %3910 = vmatprep.subr.mxu0 0.0
        %3911 = vmatpush1.msra.mxu0 0.0
        %3912 = vmatprep.subr.mxu0 0.0
        %3913 = vmatpush1.msra.mxu0 0.0
        %3914 = vmatprep.subr.mxu0 0.0
        %3915 = vmatpush1.msra.mxu0 0.0
        %3916 = vmatprep.subr.mxu0 0.0
        %3917 = vmatpush1.msra.mxu0 0.0
        %3918 = vmatprep.subr.mxu0 0.0
        %3919 = vmatpush1.msra.mxu0 0.0
        %3920 = vmatprep.subr.mxu0 0.0
        %3921 = vmatpush1.msra.mxu0 0.0
        %3922 = vmatprep.subr.mxu0 0.0
        %3923 = vmatpush1.msra.mxu0 0.0
        %3924 = vmatprep.subr.mxu0 0.0
        %3925 = vmatpush1.msra.mxu0 0.0
        %3926 = vmatprep.subr.mxu0 0.0
        %3927 = vmatpush1.msra.mxu0 0.0
        %3928 = vmatprep.subr.mxu0 0.0
        %3929 = vmatpush1.msra.mxu0 0.0
        %3930 = vmatprep.subr.mxu0 0.0
        %3931 = vmatpush1.msra.mxu0 0.0
        %3932 = vmatprep.subr.mxu0 0.0
        %3933 = vmatpush1.msra.mxu0 0.0
        %3934 = vmatprep.subr.mxu0 0.0
        %3935 = vmatpush1.msra.mxu0 0.0
        %3936 = vmatprep.subr.mxu0 0.0
        %3937 = vmatpush1.msra.mxu0 0.0
        %3938 = vmatprep.subr.mxu0 0.0
        %3939 = vmatpush1.msra.mxu0 0.0
        %3940 = vmatprep.mubr.f32.mxu0 0.0
        %3941 = vmatmul.mubr.f32.gmra.mrb[0].mxu0 %v3758
        %v3942 = vpop.f32.mrb[0].mxu0
        %v3943 = vadd.f32 0.0, %v3942
        %v3944 = vpop.f32.mrb[0].mxu0
        %v3945 = vadd.f32 0.0, %v3944
        %3946 = vmatprep.mubr.f32.mxu0 0.0
        %3947 = vmatmul.mubr.f32.gmra.mrb[0].mxu0 %v3761
        %v3948 = vpop.f32.mrb[0].mxu0
        %v3949 = vadd.f32 0.0, %v3948
        %v3950 = vpop.f32.mrb[0].mxu0
        %v3951 = vadd.f32 0.0, %v3950
        %3952 = vmatprep.mubr.f32.mxu0 0.0
        %3953 = vmatmul.mubr.f32.gmra.mrb[0].mxu0 %v3764
        %v3954 = vpop.f32.mrb[0].mxu0
        %v3955 = vadd.f32 0.0, %v3954
        %v3956 = vpop.f32.mrb[0].mxu0
        %v3957 = vadd.f32 0.0, %v3956
        %3958 = vmatprep.mubr.f32.mxu0 0.0
        %3959 = vmatmul.mubr.f32.gmra.mrb[0].mxu0 %v3767
        %v3960 = vpop.f32.mrb[0].mxu0
        %v3961 = vadd.f32 0.0, %v3960
        %v3962 = vpop.f32.mrb[0].mxu0
        %v3963 = vadd.f32 0.0, %v3962
        %3964 = vmatprep.mubr.f32.mxu0 0.0
        %3965 = vmatmul.mubr.f32.gmra.mrb[0].mxu0 %v3770
        %v3966 = vpop.f32.mrb[0].mxu0
        %v3967 = vadd.f32 0.0, %v3966
        %v3968 = vpop.f32.mrb[0].mxu0
        %v3969 = vadd.f32 0.0, %v3968
        %3970 = vmatprep.mubr.f32.mxu0 0.0
        %3971 = vmatmul.mubr.f32.gmra.mrb[0].mxu0 %v3773
        %v3972 = vpop.f32.mrb[0].mxu0
        %v3973 = vadd.f32 0.0, %v3972
        %v3974 = vpop.f32.mrb[0].mxu0
        %v3975 = vadd.f32 0.0, %v3974
        %3976 = vdwg.mxu0
        %3977 = vmatprep.subr.mxu0 %v2521
        %3978 = vmatpush1.msra.mxu0 %v2520
        %3979 = vmatprep.subr.mxu0 %v2528
        %3980 = vmatpush1.msra.mxu0 %v2527
        %3981 = vmatprep.subr.mxu0 %v2535
        %3982 = vmatpush1.msra.mxu0 %v2534
        %3983 = vmatprep.subr.mxu0 %v2542
        %3984 = vmatpush1.msra.mxu0 %v2541
        %3985 = vmatprep.subr.mxu0 0.0
        %3986 = vmatpush1.msra.mxu0 0.0
        %3987 = vmatprep.subr.mxu0 0.0
        %3988 = vmatpush1.msra.mxu0 0.0
        %3989 = vmatprep.subr.mxu0 0.0
        %3990 = vmatpush1.msra.mxu0 0.0
        %3991 = vmatprep.subr.mxu0 0.0
        %3992 = vmatpush1.msra.mxu0 0.0
        %3993 = vmatprep.subr.mxu0 0.0
        %3994 = vmatpush1.msra.mxu0 0.0
        %3995 = vmatprep.subr.mxu0 0.0
        %3996 = vmatpush1.msra.mxu0 0.0
        %3997 = vmatprep.subr.mxu0 0.0
        %3998 = vmatpush1.msra.mxu0 0.0
        %3999 = vmatprep.subr.mxu0 0.0
        %4000 = vmatpush1.msra.mxu0 0.0
        %4001 = vmatprep.subr.mxu0 0.0
        %4002 = vmatpush1.msra.mxu0 0.0
        %4003 = vmatprep.subr.mxu0 0.0
        %4004 = vmatpush1.msra.mxu0 0.0
        %4005 = vmatprep.subr.mxu0 0.0
        %4006 = vmatpush1.msra.mxu0 0.0
        %4007 = vmatprep.subr.mxu0 0.0
        %4008 = vmatpush1.msra.mxu0 0.0
        %4009 = vmatprep.subr.mxu0 0.0
        %4010 = vmatpush1.msra.mxu0 0.0
        %4011 = vmatprep.subr.mxu0 0.0
        %4012 = vmatpush1.msra.mxu0 0.0
        %4013 = vmatprep.subr.mxu0 0.0
        %4014 = vmatpush1.msra.mxu0 0.0
        %4015 = vmatprep.subr.mxu0 0.0
        %4016 = vmatpush1.msra.mxu0 0.0
        %4017 = vmatprep.subr.mxu0 0.0
        %4018 = vmatpush1.msra.mxu0 0.0
        %4019 = vmatprep.subr.mxu0 0.0
        %4020 = vmatpush1.msra.mxu0 0.0
        %4021 = vmatprep.subr.mxu0 0.0
        %4022 = vmatpush1.msra.mxu0 0.0
        %4023 = vmatprep.subr.mxu0 0.0
        %4024 = vmatpush1.msra.mxu0 0.0
        %4025 = vmatprep.subr.mxu0 0.0
        %4026 = vmatpush1.msra.mxu0 0.0
        %4027 = vmatprep.subr.mxu0 0.0
        %4028 = vmatpush1.msra.mxu0 0.0
        %4029 = vmatprep.subr.mxu0 0.0
        %4030 = vmatpush1.msra.mxu0 0.0
        %4031 = vmatprep.subr.mxu0 0.0
        %4032 = vmatpush1.msra.mxu0 0.0
        %4033 = vmatprep.subr.mxu0 0.0
        %4034 = vmatpush1.msra.mxu0 0.0
        %4035 = vmatprep.subr.mxu0 0.0
        %4036 = vmatpush1.msra.mxu0 0.0
        %4037 = vmatprep.subr.mxu0 0.0
        %4038 = vmatpush1.msra.mxu0 0.0
        %4039 = vmatprep.subr.mxu0 0.0
        %4040 = vmatpush1.msra.mxu0 0.0
        %4041 = vmatprep.mubr.f32.mxu0 0.0
        %4042 = vmatmul.mubr.f32.gmra.mrb[0].mxu0 %v3758
        %v4043 = vpop.f32.mrb[0].mxu0
        %v4044 = vadd.f32 0.0, %v4043
        %v4045 = vpop.f32.mrb[0].mxu0
        %v4046 = vadd.f32 0.0, %v4045
        %4047 = vmatprep.mubr.f32.mxu0 0.0
        %4048 = vmatmul.mubr.f32.gmra.mrb[0].mxu0 %v3761
        %v4049 = vpop.f32.mrb[0].mxu0
        %v4050 = vadd.f32 0.0, %v4049
        %v4051 = vpop.f32.mrb[0].mxu0
        %v4052 = vadd.f32 0.0, %v4051
        %4053 = vmatprep.mubr.f32.mxu0 0.0
        %4054 = vmatmul.mubr.f32.gmra.mrb[0].mxu0 %v3764
        %v4055 = vpop.f32.mrb[0].mxu0
        %v4056 = vadd.f32 0.0, %v4055
        %v4057 = vpop.f32.mrb[0].mxu0
        %v4058 = vadd.f32 0.0, %v4057
        %4059 = vmatprep.mubr.f32.mxu0 0.0
        %4060 = vmatmul.mubr.f32.gmra.mrb[0].mxu0 %v3767
        %v4061 = vpop.f32.mrb[0].mxu0
        %v4062 = vadd.f32 0.0, %v4061
        %v4063 = vpop.f32.mrb[0].mxu0
        %v4064 = vadd.f32 0.0, %v4063
        %4065 = vmatprep.mubr.f32.mxu0 0.0
        %4066 = vmatmul.mubr.f32.gmra.mrb[0].mxu0 %v3770
        %v4067 = vpop.f32.mrb[0].mxu0
        %v4068 = vadd.f32 0.0, %v4067
        %v4069 = vpop.f32.mrb[0].mxu0
        %v4070 = vadd.f32 0.0, %v4069
        %4071 = vmatprep.mubr.f32.mxu0 0.0
        %4072 = vmatmul.mubr.f32.gmra.mrb[0].mxu0 %v3773
        %v4073 = vpop.f32.mrb[0].mxu0
        %v4074 = vadd.f32 0.0, %v4073
        %v4075 = vpop.f32.mrb[0].mxu0
        %v4076 = vadd.f32 0.0, %v4075
        %4077 = vdwg.mxu0
        %4078 = vmatprep.subr.mxu0 0.0
        %4079 = vmatpush1.msra.mxu0 %v2522
        %4080 = vmatprep.subr.mxu0 0.0
        %4081 = vmatpush1.msra.mxu0 %v2529
        %4082 = vmatprep.subr.mxu0 0.0
        %4083 = vmatpush1.msra.mxu0 %v2536
        %4084 = vmatprep.subr.mxu0 0.0
        %4085 = vmatpush1.msra.mxu0 %v2543
        %4086 = vmatprep.subr.mxu0 0.0
        %4087 = vmatpush1.msra.mxu0 0.0
        %4088 = vmatprep.subr.mxu0 0.0
        %4089 = vmatpush1.msra.mxu0 0.0
        %4090 = vmatprep.subr.mxu0 0.0
        %4091 = vmatpush1.msra.mxu0 0.0
        %4092 = vmatprep.subr.mxu0 0.0
        %4093 = vmatpush1.msra.mxu0 0.0
        %4094 = vmatprep.subr.mxu0 0.0
        %4095 = vmatpush1.msra.mxu0 0.0
        %4096 = vmatprep.subr.mxu0 0.0
        %4097 = vmatpush1.msra.mxu0 0.0
        %4098 = vmatprep.subr.mxu0 0.0
        %4099 = vmatpush1.msra.mxu0 0.0
        %4100 = vmatprep.subr.mxu0 0.0
        %4101 = vmatpush1.msra.mxu0 0.0
        %4102 = vmatprep.subr.mxu0 0.0
        %4103 = vmatpush1.msra.mxu0 0.0
        %4104 = vmatprep.subr.mxu0 0.0
        %4105 = vmatpush1.msra.mxu0 0.0
        %4106 = vmatprep.subr.mxu0 0.0
        %4107 = vmatpush1.msra.mxu0 0.0
        %4108 = vmatprep.subr.mxu0 0.0
        %4109 = vmatpush1.msra.mxu0 0.0
        %4110 = vmatprep.subr.mxu0 0.0
        %4111 = vmatpush1.msra.mxu0 0.0
        %4112 = vmatprep.subr.mxu0 0.0
        %4113 = vmatpush1.msra.mxu0 0.0
        %4114 = vmatprep.subr.mxu0 0.0
        %4115 = vmatpush1.msra.mxu0 0.0
        %4116 = vmatprep.subr.mxu0 0.0
        %4117 = vmatpush1.msra.mxu0 0.0
        %4118 = vmatprep.subr.mxu0 0.0
        %4119 = vmatpush1.msra.mxu0 0.0
        %4120 = vmatprep.subr.mxu0 0.0
        %4121 = vmatpush1.msra.mxu0 0.0
        %4122 = vmatprep.subr.mxu0 0.0
        %4123 = vmatpush1.msra.mxu0 0.0
        %4124 = vmatprep.subr.mxu0 0.0
        %4125 = vmatpush1.msra.mxu0 0.0
        %4126 = vmatprep.subr.mxu0 0.0
        %4127 = vmatpush1.msra.mxu0 0.0
        %4128 = vmatprep.subr.mxu0 0.0
        %4129 = vmatpush1.msra.mxu0 0.0
        %4130 = vmatprep.subr.mxu0 0.0
        %4131 = vmatpush1.msra.mxu0 0.0
        %4132 = vmatprep.subr.mxu0 0.0
        %4133 = vmatpush1.msra.mxu0 0.0
        %4134 = vmatprep.subr.mxu0 0.0
        %4135 = vmatpush1.msra.mxu0 0.0
        %4136 = vmatprep.subr.mxu0 0.0
        %4137 = vmatpush1.msra.mxu0 0.0
        %4138 = vmatprep.subr.mxu0 0.0
        %4139 = vmatpush1.msra.mxu0 0.0
        %4140 = vmatprep.subr.mxu0 0.0
        %4141 = vmatpush1.msra.mxu0 0.0
        %4142 = vmatprep.mubr.f32.mxu0 0.0
        %4143 = vmatmul.mubr.f32.gmra.mrb[0].mxu0 %v3758
        %v4144 = vpop.f32.mrb[0].mxu0
        %v4145 = vadd.f32 0.0, %v4144
        %v4146 = vpop.f32.mrb[0].mxu0
        %4147 = vmatprep.mubr.f32.mxu0 0.0
        %4148 = vmatmul.mubr.f32.gmra.mrb[0].mxu0 %v3761
        %v4149 = vpop.f32.mrb[0].mxu0
        %v4150 = vadd.f32 0.0, %v4149
        %v4151 = vpop.f32.mrb[0].mxu0
        %4152 = vmatprep.mubr.f32.mxu0 0.0
        %4153 = vmatmul.mubr.f32.gmra.mrb[0].mxu0 %v3764
        %v4154 = vpop.f32.mrb[0].mxu0
        %v4155 = vadd.f32 0.0, %v4154
        %v4156 = vpop.f32.mrb[0].mxu0
        %4157 = vmatprep.mubr.f32.mxu0 0.0
        %4158 = vmatmul.mubr.f32.gmra.mrb[0].mxu0 %v3767
        %v4159 = vpop.f32.mrb[0].mxu0
        %v4160 = vadd.f32 0.0, %v4159
        %v4161 = vpop.f32.mrb[0].mxu0
        %4162 = vmatprep.mubr.f32.mxu0 0.0
        %4163 = vmatmul.mubr.f32.gmra.mrb[0].mxu0 %v3770
        %v4164 = vpop.f32.mrb[0].mxu0
        %v4165 = vadd.f32 0.0, %v4164
        %v4166 = vpop.f32.mrb[0].mxu0
        %4167 = vmatprep.mubr.f32.mxu0 0.0
        %4168 = vmatmul.mubr.f32.gmra.mrb[0].mxu0 %v3773
        %v4169 = vpop.f32.mrb[0].mxu0
        %v4170 = vadd.f32 0.0, %v4169
        %v4171 = vpop.f32.mrb[0].mxu0
        %4172 = vdwg.mxu0
        %4173 = vrot.lane.b32.xlu0 %v3842, 65
        %v4174 = vpop.permute.xlu0 %4173
        %4175 = vrot.lane.b32.xlu0 %v3848, 65
        %v4176 = vpop.permute.xlu0 %4175
        %4177 = vrot.lane.b32.xlu0 %v3844, 65
        %v4178 = vpop.permute.xlu0 %4177
        %4179 = vrot.lane.b32.xlu0 %v3850, 65
        %v4180 = vpop.permute.xlu0 %4179
        %4181 = vrot.lane.b32.xlu0 %v3943, 65
        %v4182 = vpop.permute.xlu0 %4181
        %4183 = vrot.lane.b32.xlu0 %v3949, 65
        %v4184 = vpop.permute.xlu0 %4183
        %4185 = vrot.lane.b32.xlu0 %v3945, 65
        %v4186 = vpop.permute.xlu0 %4185
        %4187 = vrot.lane.b32.xlu0 %v3951, 65
        %v4188 = vpop.permute.xlu0 %4187
        %4189 = vrot.lane.b32.xlu0 %v4044, 65
        %v4190 = vpop.permute.xlu0 %4189
        %4191 = vrot.lane.b32.xlu0 %v4050, 65
        %v4192 = vpop.permute.xlu0 %4191
        %4193 = vrot.lane.b32.xlu0 %v4046, 65
        %v4194 = vpop.permute.xlu0 %4193
        %4195 = vrot.lane.b32.xlu0 %v4052, 65
        %v4196 = vpop.permute.xlu0 %4195
        %4197 = vrot.lane.b32.xlu0 %v4145, 65
        %v4198 = vpop.permute.xlu0 %4197
        %4199 = vrot.lane.b32.xlu0 %v4150, 65
        %v4200 = vpop.permute.xlu0 %4199
        %v4201 = vsel %vm973, %v4194, %v4198
        %v4202 = vsel %vm973, %v4196, %v4200
        %v4203 = vsel %vm973, %v4190, %v4194
        %v4204 = vsel %vm973, %v4192, %v4196
        %v4205 = vsel %vm973, %v4186, %v4190
        %v4206 = vsel %vm973, %v4188, %v4192
        %v4207 = vsel %vm973, %v4182, %v4186
        %v4208 = vsel %vm973, %v4184, %v4188
        %v4209 = vsel %vm973, %v4178, %v4182
        %v4210 = vsel %vm973, %v4180, %v4184
        %v4211 = vsel %vm973, %v4174, %v4178
        %v4212 = vsel %vm973, %v4176, %v4180
        %v4213 = vsel %vm973, %v4198, %v4174
        %v4214 = vsel %vm973, %v4200, %v4176
        %v4215 = vmul.f32 %v4211, %v992
        %v4216 = vmul.f32 %v4209, %v996
        %v4217 = vmul.f32 %v4207, %v1000
        %v4218 = vmul.f32 %v4205, %v1004
        %v4219 = vmul.f32 %v4203, %v1008
        %v4220 = vmul.f32 %v4201, %v1012
        %v4221 = vmul.f32 %v4213, %v1016
        %v4222 = vmul.f32 %v4212, %v992
        %v4223 = vmul.f32 %v4210, %v996
        %v4224 = vmul.f32 %v4208, %v1000
        %v4225 = vmul.f32 %v4206, %v1004
        %v4226 = vmul.f32 %v4204, %v1008
        %v4227 = vmul.f32 %v4202, %v1012
        %v4228 = vmul.f32 %v4214, %v1016
        %v4229 = vadd.f32 %v3737, %v4215
        %v4230 = vadd.f32 %v3738, %v4216
        %v4231 = vadd.f32 %v3739, %v4217
        %v4232 = vadd.f32 %v3740, %v4218
        %v4233 = vadd.f32 %v3741, %v4219
        %v4234 = vadd.f32 %v3742, %v4220
        %v4235 = vadd.f32 %v3743, %v4221
        %v4236 = vadd.f32 %v3744, %v4222
        %v4237 = vadd.f32 %v3745, %v4223
        %v4238 = vadd.f32 %v3746, %v4224
        %v4239 = vadd.f32 %v3747, %v4225
        %v4240 = vadd.f32 %v3748, %v4226
        %v4241 = vadd.f32 %v3749, %v4227
        %v4242 = vadd.f32 %v3750, %v4228
        %4243 = vrot.lane.b32.xlu0 %v3854, 64
        %v4244 = vpop.permute.xlu0 %4243
        %4245 = vrot.lane.b32.xlu0 %v3860, 64
        %v4246 = vpop.permute.xlu0 %4245
        %4247 = vrot.lane.b32.xlu0 %v3856, 64
        %v4248 = vpop.permute.xlu0 %4247
        %4249 = vrot.lane.b32.xlu0 %v3862, 64
        %v4250 = vpop.permute.xlu0 %4249
        %4251 = vrot.lane.b32.xlu0 %v3955, 64
        %v4252 = vpop.permute.xlu0 %4251
        %4253 = vrot.lane.b32.xlu0 %v3961, 64
        %v4254 = vpop.permute.xlu0 %4253
        %4255 = vrot.lane.b32.xlu0 %v3957, 64
        %v4256 = vpop.permute.xlu0 %4255
        %4257 = vrot.lane.b32.xlu0 %v3963, 64
        %v4258 = vpop.permute.xlu0 %4257
        %4259 = vrot.lane.b32.xlu0 %v4056, 64
        %v4260 = vpop.permute.xlu0 %4259
        %4261 = vrot.lane.b32.xlu0 %v4062, 64
        %v4262 = vpop.permute.xlu0 %4261
        %4263 = vrot.lane.b32.xlu0 %v4058, 64
        %v4264 = vpop.permute.xlu0 %4263
        %4265 = vrot.lane.b32.xlu0 %v4064, 64
        %v4266 = vpop.permute.xlu0 %4265
        %4267 = vrot.lane.b32.xlu0 %v4155, 64
        %v4268 = vpop.permute.xlu0 %4267
        %4269 = vrot.lane.b32.xlu0 %v4160, 64
        %v4270 = vpop.permute.xlu0 %4269
        %v4271 = vsel %vm1092, %v4264, %v4268
        %v4272 = vsel %vm1092, %v4266, %v4270
        %v4273 = vsel %vm1092, %v4260, %v4264
        %v4274 = vsel %vm1092, %v4262, %v4266
        %v4275 = vsel %vm1092, %v4256, %v4260
        %v4276 = vsel %vm1092, %v4258, %v4262
        %v4277 = vsel %vm1092, %v4252, %v4256
        %v4278 = vsel %vm1092, %v4254, %v4258
        %v4279 = vsel %vm1092, %v4248, %v4252
        %v4280 = vsel %vm1092, %v4250, %v4254
        %v4281 = vsel %vm1092, %v4244, %v4248
        %v4282 = vsel %vm1092, %v4246, %v4250
        %v4283 = vsel %vm1092, %v4268, %v4244
        %v4284 = vsel %vm1092, %v4270, %v4246
        %v4285 = vadd.f32 %v4229, %v4281
        %v4286 = vadd.f32 %v4230, %v4279
        %v4287 = vadd.f32 %v4231, %v4277
        %v4288 = vadd.f32 %v4232, %v4275
        %v4289 = vadd.f32 %v4233, %v4273
        %v4290 = vadd.f32 %v4234, %v4271
        %v4291 = vadd.f32 %v4235, %v4283
        %v4292 = vadd.f32 %v4236, %v4282
        %v4293 = vadd.f32 %v4237, %v4280
        %v4294 = vadd.f32 %v4238, %v4278
        %v4295 = vadd.f32 %v4239, %v4276
        %v4296 = vadd.f32 %v4240, %v4274
        %v4297 = vadd.f32 %v4241, %v4272
        %v4298 = vadd.f32 %v4242, %v4284
        %4299 = vrot.lane.b32.xlu0 %v3866, 63
        %v4300 = vpop.permute.xlu0 %4299
        %4301 = vrot.lane.b32.xlu0 %v3872, 63
        %v4302 = vpop.permute.xlu0 %4301
        %4303 = vrot.lane.b32.xlu0 %v3868, 63
        %v4304 = vpop.permute.xlu0 %4303
        %4305 = vrot.lane.b32.xlu0 %v3874, 63
        %v4306 = vpop.permute.xlu0 %4305
        %4307 = vrot.lane.b32.xlu0 %v3967, 63
        %v4308 = vpop.permute.xlu0 %4307
        %4309 = vrot.lane.b32.xlu0 %v3973, 63
        %v4310 = vpop.permute.xlu0 %4309
        %4311 = vrot.lane.b32.xlu0 %v3969, 63
        %v4312 = vpop.permute.xlu0 %4311
        %4313 = vrot.lane.b32.xlu0 %v3975, 63
        %v4314 = vpop.permute.xlu0 %4313
        %4315 = vrot.lane.b32.xlu0 %v4068, 63
        %v4316 = vpop.permute.xlu0 %4315
        %4317 = vrot.lane.b32.xlu0 %v4074, 63
        %v4318 = vpop.permute.xlu0 %4317
        %4319 = vrot.lane.b32.xlu0 %v4070, 63
        %v4320 = vpop.permute.xlu0 %4319
        %4321 = vrot.lane.b32.xlu0 %v4076, 63
        %v4322 = vpop.permute.xlu0 %4321
        %4323 = vrot.lane.b32.xlu0 %v4165, 63
        %v4324 = vpop.permute.xlu0 %4323
        %4325 = vrot.lane.b32.xlu0 %v4170, 63
        %v4326 = vpop.permute.xlu0 %4325
        %v4327 = vsel %vm1149, %v4320, %v4324
        %v4328 = vsel %vm1149, %v4322, %v4326
        %v4329 = vsel %vm1149, %v4316, %v4320
        %v4330 = vsel %vm1149, %v4318, %v4322
        %v4331 = vsel %vm1149, %v4312, %v4316
        %v4332 = vsel %vm1149, %v4314, %v4318
        %v4333 = vsel %vm1149, %v4308, %v4312
        %v4334 = vsel %vm1149, %v4310, %v4314
        %v4335 = vsel %vm1149, %v4304, %v4308
        %v4336 = vsel %vm1149, %v4306, %v4310
        %v4337 = vsel %vm1149, %v4300, %v4304
        %v4338 = vsel %vm1149, %v4302, %v4306
        %v4339 = vsel %vm1149, %v4324, %v4300
        %v4340 = vsel %vm1149, %v4326, %v4302
        %v4341 = vmul.f32 %v4337, %v1168
        %v4342 = vmul.f32 %v4335, %v1172
        %v4343 = vmul.f32 %v4333, %v1176
        %v4344 = vmul.f32 %v4331, %v1180
        %v4345 = vmul.f32 %v4329, %v1184
        %v4346 = vmul.f32 %v4327, %v1188
        %v4347 = vmul.f32 %v4339, %v1192
        %v4348 = vmul.f32 %v4338, %v1168
        %v4349 = vmul.f32 %v4336, %v1172
        %v4350 = vmul.f32 %v4334, %v1176
        %v4351 = vmul.f32 %v4332, %v1180
        %v4352 = vmul.f32 %v4330, %v1184
        %v4353 = vmul.f32 %v4328, %v1188
        %v4354 = vmul.f32 %v4340, %v1192
        %v4355 = vadd.f32 %v4285, %v4341
        %v4356 = vadd.f32 %v4286, %v4342
        %v4357 = vadd.f32 %v4287, %v4343
        %v4358 = vadd.f32 %v4288, %v4344
        %v4359 = vadd.f32 %v4289, %v4345
        %v4360 = vadd.f32 %v4290, %v4346
        %v4361 = vadd.f32 %v4291, %v4347
        %v4362 = vadd.f32 %v4292, %v4348
        %v4363 = vadd.f32 %v4293, %v4349
        %v4364 = vadd.f32 %v4294, %v4350
        %v4365 = vadd.f32 %v4295, %v4351
        %v4366 = vadd.f32 %v4296, %v4352
        %v4367 = vadd.f32 %v4297, %v4353
        %v4368 = vadd.f32 %v4298, %v4354
        %v4369 = vmul.f32 %v4355, 0.1
        %v4370 = vmul.f32 %v4356, 0.1
        %v4371 = vmul.f32 %v4357, 0.1
        %v4372 = vmul.f32 %v4358, 0.1
        %v4373 = vmul.f32 %v4359, 0.1
        %v4374 = vmul.f32 %v4360, 0.1
        %v4375 = vmul.f32 %v4361, 0.1
        %v4376 = vmul.f32 %v4362, 0.1
        %v4377 = vmul.f32 %v4363, 0.1
        %v4378 = vmul.f32 %v4364, 0.1
        %v4379 = vmul.f32 %v4365, 0.1
        %v4380 = vmul.f32 %v4366, 0.1
        %v4381 = vmul.f32 %v4367, 0.1
        %v4382 = vmul.f32 %v4368, 0.1
        %v4383 = vmax.f32 %v4355, %v4369
        %v4384 = vmax.f32 %v4356, %v4370
        %v4385 = vmax.f32 %v4357, %v4371
        %v4386 = vmax.f32 %v4358, %v4372
        %v4387 = vmax.f32 %v4359, %v4373
        %v4388 = vmax.f32 %v4360, %v4374
        %v4389 = vmax.f32 %v4361, %v4375
        %v4390 = vmax.f32 %v4362, %v4376
        %v4391 = vmax.f32 %v4363, %v4377
        %v4392 = vmax.f32 %v4364, %v4378
        %v4393 = vmax.f32 %v4365, %v4379
        %v4394 = vmax.f32 %v4366, %v4380
        %v4395 = vmax.f32 %v4367, %v4381
        %v4396 = vmax.f32 %v4368, %v4382
        %v4397 = vmul.f32 %v4383, %v2456
        %v4398 = vmul.f32 %v4384, %v2460
        %v4399 = vmul.f32 %v4385, %v2464
        %v4400 = vmul.f32 %v4386, %v2468
        %v4401 = vmul.f32 %v4387, %v2472
        %v4402 = vmul.f32 %v4388, %v2476
        %v4403 = vmul.f32 %v4389, %v2480
        %v4404 = vmul.f32 %v4390, %v2456
        %v4405 = vmul.f32 %v4391, %v2460
        %v4406 = vmul.f32 %v4392, %v2464
        %v4407 = vmul.f32 %v4393, %v2468
        %v4408 = vmul.f32 %v4394, %v2472
        %v4409 = vmul.f32 %v4395, %v2476
        %v4410 = vmul.f32 %v4396, %v2480
        %4411 = vst [vmem:[#allocation2 + $0xe0] sm:$0xff] %v4397
        %4412 = vst [vmem:[#allocation2 + $0xe8] sm:$0xff] %v4398
        %4413 = vst [vmem:[#allocation2 + $0xf0] sm:$0xff] %v4399
        %4414 = vst [vmem:[#allocation2 + $0xf8] sm:$0xff] %v4400
        %4415 = vst [vmem:[#allocation2 + $0x100] sm:$0xff] %v4401
        %4416 = vst [vmem:[#allocation2 + $0x108] sm:$0xff] %v4402
        %4417 = vst [vmem:[#allocation2 + $0x110] sm:$0xff] %v4403
        %4418 = vst [vmem:[#allocation2 + $0x118] sm:$0xff] %v4404
        %4419 = vst [vmem:[#allocation2 + $0x120] sm:$0xff] %v4405
        %4420 = vst [vmem:[#allocation2 + $0x128] sm:$0xff] %v4406
        %4421 = vst [vmem:[#allocation2 + $0x130] sm:$0xff] %v4407
        %4422 = vst [vmem:[#allocation2 + $0x138] sm:$0xff] %v4408
        %4423 = vst [vmem:[#allocation2 + $0x140] sm:$0xff] %v4409
        %4424 = vst [vmem:[#allocation2 + $0x148] sm:$0xff] %v4410
        %v4425 = vld [vmem:[#allocation2] sm:$0xff]
        %v4426 = vld [vmem:[#allocation2 + $0x8] sm:$0xff]
        %v4427 = vld [vmem:[#allocation2 + $0x10] sm:$0xff]
        %v4428 = vld [vmem:[#allocation2 + $0x18] sm:$0xff]
        %v4429 = vld [vmem:[#allocation2 + $0x20] sm:$0xff]
        %v4430 = vld [vmem:[#allocation2 + $0x28] sm:$0xff]
        %v4431 = vld [vmem:[#allocation2 + $0x30] sm:$0xff]
        %v4432 = vld [vmem:[#allocation2 + $0x38] sm:$0xff]
        %v4433 = vld [vmem:[#allocation2 + $0x40] sm:$0xff]
        %v4434 = vld [vmem:[#allocation2 + $0x48] sm:$0xff]
        %v4435 = vld [vmem:[#allocation2 + $0x50] sm:$0xff]
        %v4436 = vld [vmem:[#allocation2 + $0x58] sm:$0xff]
        %v4437 = vld [vmem:[#allocation2 + $0x60] sm:$0xff]
        %v4438 = vld [vmem:[#allocation2 + $0x68] sm:$0xff]
        %v4439 = vld [vmem:[#allocation2 + $0x70] sm:$0xff]
        %v4440 = vld [vmem:[#allocation2 + $0x78] sm:$0xff]
        %v4441 = vld [vmem:[#allocation2 + $0x80] sm:$0xff]
        %v4442 = vld [vmem:[#allocation2 + $0x88] sm:$0xff]
        %v4443 = vld [vmem:[#allocation2 + $0x90] sm:$0xff]
        %v4444 = vld [vmem:[#allocation2 + $0x98] sm:$0xff]
        %v4445 = vld [vmem:[#allocation2 + $0xa0] sm:$0xff]
        %v4446 = vld [vmem:[#allocation2 + $0xa8] sm:$0xff]
        %v4447 = vld [vmem:[#allocation2 + $0xb0] sm:$0xff]
        %v4448 = vld [vmem:[#allocation2 + $0xb8] sm:$0xff]
        %v4449 = vld [vmem:[#allocation2 + $0xc0] sm:$0xff]
        %v4450 = vld [vmem:[#allocation2 + $0xc8] sm:$0xff]
        %v4451 = vld [vmem:[#allocation2 + $0xd0] sm:$0xff]
        %v4452 = vld [vmem:[#allocation2 + $0xd8] sm:$0xff]
        %v4453 = vld [vmem:[#allocation2 + $0xe0] sm:$0xff]
        %v4454 = vld [vmem:[#allocation2 + $0xe8] sm:$0xff]
        %v4455 = vld [vmem:[#allocation2 + $0xf0] sm:$0xff]
        %v4456 = vld [vmem:[#allocation2 + $0xf8] sm:$0xff]
        %v4457 = vld [vmem:[#allocation2 + $0x100] sm:$0xff]
        %v4458 = vld [vmem:[#allocation2 + $0x108] sm:$0xff]
        %v4459 = vld [vmem:[#allocation2 + $0x110] sm:$0xff]
        %v4460 = vld [vmem:[#allocation2 + $0x118] sm:$0xff]
        %v4461 = vld [vmem:[#allocation2 + $0x120] sm:$0xff]
        %v4462 = vld [vmem:[#allocation2 + $0x128] sm:$0xff]
        %v4463 = vld [vmem:[#allocation2 + $0x130] sm:$0xff]
        %v4464 = vld [vmem:[#allocation2 + $0x138] sm:$0xff]
        %v4465 = vld [vmem:[#allocation2 + $0x140] sm:$0xff]
        %v4466 = vld [vmem:[#allocation2 + $0x148] sm:$0xff]
        %v4467 = vld [vmem:[%s8] sm:$0xff]
        %v4468 = vld [vmem:[%s8 + $0x8] sm:$0xff]
        %v4469 = vld [vmem:[%s8 + $0x10] sm:$0xff]
        %v4470 = vld [vmem:[%s8 + $0x18] sm:$0xff]
        %v4471 = vld [vmem:[%s8 + $0x20] sm:$0xff]
        %v4472 = vld [vmem:[%s8 + $0x28] sm:$0xff]
        %vm4473 = vcmask 392192
        %v4475 = vsel %vm4473, %v4467, 0
        %v4478 = vsel %vm4473, %v4468, 0
        %v4481 = vsel %vm4473, %v4469, 0
        %v4484 = vsel %vm4473, %v4470, 0
        %v4487 = vsel %vm4473, %v4471, 0
        %v4490 = vsel %vm4473, %v4472, 0
        %4492 = vmatprep.subr.mxu0 %v4426
        %4493 = vmatpush1.msra.mxu0 %v4425
        %4494 = vmatprep.subr.mxu0 %v4433
        %4495 = vmatpush1.msra.mxu0 %v4432
        %4496 = vmatprep.subr.mxu0 %v4440
        %4497 = vmatpush1.msra.mxu0 %v4439
        %4498 = vmatprep.subr.mxu0 %v4447
        %4499 = vmatpush1.msra.mxu0 %v4446
        %4500 = vmatprep.subr.mxu0 %v4454
        %4501 = vmatpush1.msra.mxu0 %v4453
        %4502 = vmatprep.subr.mxu0 %v4461
        %4503 = vmatpush1.msra.mxu0 %v4460
        %4504 = vmatprep.subr.mxu0 0.0
        %4505 = vmatpush1.msra.mxu0 0.0
        %4506 = vmatprep.subr.mxu0 0.0
        %4507 = vmatpush1.msra.mxu0 0.0
        %4508 = vmatprep.subr.mxu0 0.0
        %4509 = vmatpush1.msra.mxu0 0.0
        %4510 = vmatprep.subr.mxu0 0.0
        %4511 = vmatpush1.msra.mxu0 0.0
        %4512 = vmatprep.subr.mxu0 0.0
        %4513 = vmatpush1.msra.mxu0 0.0
        %4514 = vmatprep.subr.mxu0 0.0
        %4515 = vmatpush1.msra.mxu0 0.0
        %4516 = vmatprep.subr.mxu0 0.0
        %4517 = vmatpush1.msra.mxu0 0.0
        %4518 = vmatprep.subr.mxu0 0.0
        %4519 = vmatpush1.msra.mxu0 0.0
        %4520 = vmatprep.subr.mxu0 0.0
        %4521 = vmatpush1.msra.mxu0 0.0
        %4522 = vmatprep.subr.mxu0 0.0
        %4523 = vmatpush1.msra.mxu0 0.0
        %4524 = vmatprep.subr.mxu0 0.0
        %4525 = vmatpush1.msra.mxu0 0.0
        %4526 = vmatprep.subr.mxu0 0.0
        %4527 = vmatpush1.msra.mxu0 0.0
        %4528 = vmatprep.subr.mxu0 0.0
        %4529 = vmatpush1.msra.mxu0 0.0
        %4530 = vmatprep.subr.mxu0 0.0
        %4531 = vmatpush1.msra.mxu0 0.0
        %4532 = vmatprep.subr.mxu0 0.0
        %4533 = vmatpush1.msra.mxu0 0.0
        %4534 = vmatprep.subr.mxu0 0.0
        %4535 = vmatpush1.msra.mxu0 0.0
        %4536 = vmatprep.subr.mxu0 0.0
        %4537 = vmatpush1.msra.mxu0 0.0
        %4538 = vmatprep.subr.mxu0 0.0
        %4539 = vmatpush1.msra.mxu0 0.0
        %4540 = vmatprep.subr.mxu0 0.0
        %4541 = vmatpush1.msra.mxu0 0.0
        %4542 = vmatprep.subr.mxu0 0.0
        %4543 = vmatpush1.msra.mxu0 0.0
        %4544 = vmatprep.subr.mxu0 0.0
        %4545 = vmatpush1.msra.mxu0 0.0
        %4546 = vmatprep.subr.mxu0 0.0
        %4547 = vmatpush1.msra.mxu0 0.0
        %4548 = vmatprep.subr.mxu0 0.0
        %4549 = vmatpush1.msra.mxu0 0.0
        %4550 = vmatprep.subr.mxu0 0.0
        %4551 = vmatpush1.msra.mxu0 0.0
        %4552 = vmatprep.subr.mxu0 0.0
        %4553 = vmatpush1.msra.mxu0 0.0
        %4554 = vmatprep.subr.mxu0 0.0
        %4555 = vmatpush1.msra.mxu0 0.0
        %4556 = vmatprep.mubr.f32.mxu0 0.0
        %4557 = vmatmul.mubr.f32.gmra.mrb[0].mxu0 %v4475
        %v4558 = vpop.f32.mrb[0].mxu0
        %v4559 = vadd.f32 0.0, %v4558
        %v4560 = vpop.f32.mrb[0].mxu0
        %v4561 = vadd.f32 0.0, %v4560
        %4562 = vmatprep.mubr.f32.mxu0 0.0
        %4563 = vmatmul.mubr.f32.gmra.mrb[0].mxu0 %v4478
        %v4564 = vpop.f32.mrb[0].mxu0
        %v4565 = vadd.f32 0.0, %v4564
        %v4566 = vpop.f32.mrb[0].mxu0
        %v4567 = vadd.f32 0.0, %v4566
        %4568 = vmatprep.mubr.f32.mxu0 0.0
        %4569 = vmatmul.mubr.f32.gmra.mrb[0].mxu0 %v4481
        %v4570 = vpop.f32.mrb[0].mxu0
        %v4571 = vadd.f32 0.0, %v4570
        %v4572 = vpop.f32.mrb[0].mxu0
        %v4573 = vadd.f32 0.0, %v4572
        %4574 = vmatprep.mubr.f32.mxu0 0.0
        %4575 = vmatmul.mubr.f32.gmra.mrb[0].mxu0 %v4484
        %v4576 = vpop.f32.mrb[0].mxu0
        %v4577 = vadd.f32 0.0, %v4576
        %v4578 = vpop.f32.mrb[0].mxu0
        %v4579 = vadd.f32 0.0, %v4578
        %4580 = vmatprep.mubr.f32.mxu0 0.0
        %4581 = vmatmul.mubr.f32.gmra.mrb[0].mxu0 %v4487
        %v4582 = vpop.f32.mrb[0].mxu0
        %v4583 = vadd.f32 0.0, %v4582
        %v4584 = vpop.f32.mrb[0].mxu0
        %v4585 = vadd.f32 0.0, %v4584
        %4586 = vmatprep.mubr.f32.mxu0 0.0
        %4587 = vmatmul.mubr.f32.gmra.mrb[0].mxu0 %v4490
        %v4588 = vpop.f32.mrb[0].mxu0
        %v4589 = vadd.f32 0.0, %v4588
        %v4590 = vpop.f32.mrb[0].mxu0
        %v4591 = vadd.f32 0.0, %v4590
        %4592 = vdwg.mxu0
        %4593 = vmatprep.subr.mxu0 %v4428
        %4594 = vmatpush1.msra.mxu0 %v4427
        %4595 = vmatprep.subr.mxu0 %v4435
        %4596 = vmatpush1.msra.mxu0 %v4434
        %4597 = vmatprep.subr.mxu0 %v4442
        %4598 = vmatpush1.msra.mxu0 %v4441
        %4599 = vmatprep.subr.mxu0 %v4449
        %4600 = vmatpush1.msra.mxu0 %v4448
        %4601 = vmatprep.subr.mxu0 %v4456
        %4602 = vmatpush1.msra.mxu0 %v4455
        %4603 = vmatprep.subr.mxu0 %v4463
        %4604 = vmatpush1.msra.mxu0 %v4462
        %4605 = vmatprep.subr.mxu0 0.0
        %4606 = vmatpush1.msra.mxu0 0.0
        %4607 = vmatprep.subr.mxu0 0.0
        %4608 = vmatpush1.msra.mxu0 0.0
        %4609 = vmatprep.subr.mxu0 0.0
        %4610 = vmatpush1.msra.mxu0 0.0
        %4611 = vmatprep.subr.mxu0 0.0
        %4612 = vmatpush1.msra.mxu0 0.0
        %4613 = vmatprep.subr.mxu0 0.0
        %4614 = vmatpush1.msra.mxu0 0.0
        %4615 = vmatprep.subr.mxu0 0.0
        %4616 = vmatpush1.msra.mxu0 0.0
        %4617 = vmatprep.subr.mxu0 0.0
        %4618 = vmatpush1.msra.mxu0 0.0
        %4619 = vmatprep.subr.mxu0 0.0
        %4620 = vmatpush1.msra.mxu0 0.0
        %4621 = vmatprep.subr.mxu0 0.0
        %4622 = vmatpush1.msra.mxu0 0.0
        %4623 = vmatprep.subr.mxu0 0.0
        %4624 = vmatpush1.msra.mxu0 0.0
        %4625 = vmatprep.subr.mxu0 0.0
        %4626 = vmatpush1.msra.mxu0 0.0
        %4627 = vmatprep.subr.mxu0 0.0
        %4628 = vmatpush1.msra.mxu0 0.0
        %4629 = vmatprep.subr.mxu0 0.0
        %4630 = vmatpush1.msra.mxu0 0.0
        %4631 = vmatprep.subr.mxu0 0.0
        %4632 = vmatpush1.msra.mxu0 0.0
        %4633 = vmatprep.subr.mxu0 0.0
        %4634 = vmatpush1.msra.mxu0 0.0
        %4635 = vmatprep.subr.mxu0 0.0
        %4636 = vmatpush1.msra.mxu0 0.0
        %4637 = vmatprep.subr.mxu0 0.0
        %4638 = vmatpush1.msra.mxu0 0.0
        %4639 = vmatprep.subr.mxu0 0.0
        %4640 = vmatpush1.msra.mxu0 0.0
        %4641 = vmatprep.subr.mxu0 0.0
        %4642 = vmatpush1.msra.mxu0 0.0
        %4643 = vmatprep.subr.mxu0 0.0
        %4644 = vmatpush1.msra.mxu0 0.0
        %4645 = vmatprep.subr.mxu0 0.0
        %4646 = vmatpush1.msra.mxu0 0.0
        %4647 = vmatprep.subr.mxu0 0.0
        %4648 = vmatpush1.msra.mxu0 0.0
        %4649 = vmatprep.subr.mxu0 0.0
        %4650 = vmatpush1.msra.mxu0 0.0
        %4651 = vmatprep.subr.mxu0 0.0
        %4652 = vmatpush1.msra.mxu0 0.0
        %4653 = vmatprep.subr.mxu0 0.0
        %4654 = vmatpush1.msra.mxu0 0.0
        %4655 = vmatprep.subr.mxu0 0.0
        %4656 = vmatpush1.msra.mxu0 0.0
        %4657 = vmatprep.mubr.f32.mxu0 0.0
        %4658 = vmatmul.mubr.f32.gmra.mrb[0].mxu0 %v4475
        %v4659 = vpop.f32.mrb[0].mxu0
        %v4660 = vadd.f32 0.0, %v4659
        %v4661 = vpop.f32.mrb[0].mxu0
        %v4662 = vadd.f32 0.0, %v4661
        %4663 = vmatprep.mubr.f32.mxu0 0.0
        %4664 = vmatmul.mubr.f32.gmra.mrb[0].mxu0 %v4478
        %v4665 = vpop.f32.mrb[0].mxu0
        %v4666 = vadd.f32 0.0, %v4665
        %v4667 = vpop.f32.mrb[0].mxu0
        %v4668 = vadd.f32 0.0, %v4667
        %4669 = vmatprep.mubr.f32.mxu0 0.0
        %4670 = vmatmul.mubr.f32.gmra.mrb[0].mxu0 %v4481
        %v4671 = vpop.f32.mrb[0].mxu0
        %v4672 = vadd.f32 0.0, %v4671
        %v4673 = vpop.f32.mrb[0].mxu0
        %v4674 = vadd.f32 0.0, %v4673
        %4675 = vmatprep.mubr.f32.mxu0 0.0
        %4676 = vmatmul.mubr.f32.gmra.mrb[0].mxu0 %v4484
        %v4677 = vpop.f32.mrb[0].mxu0
        %v4678 = vadd.f32 0.0, %v4677
        %v4679 = vpop.f32.mrb[0].mxu0
        %v4680 = vadd.f32 0.0, %v4679
        %4681 = vmatprep.mubr.f32.mxu0 0.0
        %4682 = vmatmul.mubr.f32.gmra.mrb[0].mxu0 %v4487
        %v4683 = vpop.f32.mrb[0].mxu0
        %v4684 = vadd.f32 0.0, %v4683
        %v4685 = vpop.f32.mrb[0].mxu0
        %v4686 = vadd.f32 0.0, %v4685
        %4687 = vmatprep.mubr.f32.mxu0 0.0
        %4688 = vmatmul.mubr.f32.gmra.mrb[0].mxu0 %v4490
        %v4689 = vpop.f32.mrb[0].mxu0
        %v4690 = vadd.f32 0.0, %v4689
        %v4691 = vpop.f32.mrb[0].mxu0
        %v4692 = vadd.f32 0.0, %v4691
        %4693 = vdwg.mxu0
        %4694 = vmatprep.subr.mxu0 %v4430
        %4695 = vmatpush1.msra.mxu0 %v4429
        %4696 = vmatprep.subr.mxu0 %v4437
        %4697 = vmatpush1.msra.mxu0 %v4436
        %4698 = vmatprep.subr.mxu0 %v4444
        %4699 = vmatpush1.msra.mxu0 %v4443
        %4700 = vmatprep.subr.mxu0 %v4451
        %4701 = vmatpush1.msra.mxu0 %v4450
        %4702 = vmatprep.subr.mxu0 %v4458
        %4703 = vmatpush1.msra.mxu0 %v4457
        %4704 = vmatprep.subr.mxu0 %v4465
        %4705 = vmatpush1.msra.mxu0 %v4464
        %4706 = vmatprep.subr.mxu0 0.0
        %4707 = vmatpush1.msra.mxu0 0.0
        %4708 = vmatprep.subr.mxu0 0.0
        %4709 = vmatpush1.msra.mxu0 0.0
        %4710 = vmatprep.subr.mxu0 0.0
        %4711 = vmatpush1.msra.mxu0 0.0
        %4712 = vmatprep.subr.mxu0 0.0
        %4713 = vmatpush1.msra.mxu0 0.0
        %4714 = vmatprep.subr.mxu0 0.0
        %4715 = vmatpush1.msra.mxu0 0.0
        %4716 = vmatprep.subr.mxu0 0.0
        %4717 = vmatpush1.msra.mxu0 0.0
        %4718 = vmatprep.subr.mxu0 0.0
        %4719 = vmatpush1.msra.mxu0 0.0
        %4720 = vmatprep.subr.mxu0 0.0
        %4721 = vmatpush1.msra.mxu0 0.0
        %4722 = vmatprep.subr.mxu0 0.0
        %4723 = vmatpush1.msra.mxu0 0.0
        %4724 = vmatprep.subr.mxu0 0.0
        %4725 = vmatpush1.msra.mxu0 0.0
        %4726 = vmatprep.subr.mxu0 0.0
        %4727 = vmatpush1.msra.mxu0 0.0
        %4728 = vmatprep.subr.mxu0 0.0
        %4729 = vmatpush1.msra.mxu0 0.0
        %4730 = vmatprep.subr.mxu0 0.0
        %4731 = vmatpush1.msra.mxu0 0.0
        %4732 = vmatprep.subr.mxu0 0.0
        %4733 = vmatpush1.msra.mxu0 0.0
        %4734 = vmatprep.subr.mxu0 0.0
        %4735 = vmatpush1.msra.mxu0 0.0
        %4736 = vmatprep.subr.mxu0 0.0
        %4737 = vmatpush1.msra.mxu0 0.0
        %4738 = vmatprep.subr.mxu0 0.0
        %4739 = vmatpush1.msra.mxu0 0.0
        %4740 = vmatprep.subr.mxu0 0.0
        %4741 = vmatpush1.msra.mxu0 0.0
        %4742 = vmatprep.subr.mxu0 0.0
        %4743 = vmatpush1.msra.mxu0 0.0
        %4744 = vmatprep.subr.mxu0 0.0
        %4745 = vmatpush1.msra.mxu0 0.0
        %4746 = vmatprep.subr.mxu0 0.0
        %4747 = vmatpush1.msra.mxu0 0.0
        %4748 = vmatprep.subr.mxu0 0.0
        %4749 = vmatpush1.msra.mxu0 0.0
        %4750 = vmatprep.subr.mxu0 0.0
        %4751 = vmatpush1.msra.mxu0 0.0
        %4752 = vmatprep.subr.mxu0 0.0
        %4753 = vmatpush1.msra.mxu0 0.0
        %4754 = vmatprep.subr.mxu0 0.0
        %4755 = vmatpush1.msra.mxu0 0.0
        %4756 = vmatprep.subr.mxu0 0.0
        %4757 = vmatpush1.msra.mxu0 0.0
        %4758 = vmatprep.mubr.f32.mxu0 0.0
        %4759 = vmatmul.mubr.f32.gmra.mrb[0].mxu0 %v4475
        %v4760 = vpop.f32.mrb[0].mxu0
        %v4761 = vadd.f32 0.0, %v4760
        %v4762 = vpop.f32.mrb[0].mxu0
        %v4763 = vadd.f32 0.0, %v4762
        %4764 = vmatprep.mubr.f32.mxu0 0.0
        %4765 = vmatmul.mubr.f32.gmra.mrb[0].mxu0 %v4478
        %v4766 = vpop.f32.mrb[0].mxu0
        %v4767 = vadd.f32 0.0, %v4766
        %v4768 = vpop.f32.mrb[0].mxu0
        %v4769 = vadd.f32 0.0, %v4768
        %4770 = vmatprep.mubr.f32.mxu0 0.0
        %4771 = vmatmul.mubr.f32.gmra.mrb[0].mxu0 %v4481
        %v4772 = vpop.f32.mrb[0].mxu0
        %v4773 = vadd.f32 0.0, %v4772
        %v4774 = vpop.f32.mrb[0].mxu0
        %v4775 = vadd.f32 0.0, %v4774
        %4776 = vmatprep.mubr.f32.mxu0 0.0
        %4777 = vmatmul.mubr.f32.gmra.mrb[0].mxu0 %v4484
        %v4778 = vpop.f32.mrb[0].mxu0
        %v4779 = vadd.f32 0.0, %v4778
        %v4780 = vpop.f32.mrb[0].mxu0
        %v4781 = vadd.f32 0.0, %v4780
        %4782 = vmatprep.mubr.f32.mxu0 0.0
        %4783 = vmatmul.mubr.f32.gmra.mrb[0].mxu0 %v4487
        %v4784 = vpop.f32.mrb[0].mxu0
        %v4785 = vadd.f32 0.0, %v4784
        %v4786 = vpop.f32.mrb[0].mxu0
        %v4787 = vadd.f32 0.0, %v4786
        %4788 = vmatprep.mubr.f32.mxu0 0.0
        %4789 = vmatmul.mubr.f32.gmra.mrb[0].mxu0 %v4490
        %v4790 = vpop.f32.mrb[0].mxu0
        %v4791 = vadd.f32 0.0, %v4790
        %v4792 = vpop.f32.mrb[0].mxu0
        %v4793 = vadd.f32 0.0, %v4792
        %4794 = vdwg.mxu0
        %4795 = vmatprep.subr.mxu0 0.0
        %4796 = vmatpush1.msra.mxu0 %v4431
        %4797 = vmatprep.subr.mxu0 0.0
        %4798 = vmatpush1.msra.mxu0 %v4438
        %4799 = vmatprep.subr.mxu0 0.0
        %4800 = vmatpush1.msra.mxu0 %v4445
        %4801 = vmatprep.subr.mxu0 0.0
        %4802 = vmatpush1.msra.mxu0 %v4452
        %4803 = vmatprep.subr.mxu0 0.0
        %4804 = vmatpush1.msra.mxu0 %v4459
        %4805 = vmatprep.subr.mxu0 0.0
        %4806 = vmatpush1.msra.mxu0 %v4466
        %4807 = vmatprep.subr.mxu0 0.0
        %4808 = vmatpush1.msra.mxu0 0.0
        %4809 = vmatprep.subr.mxu0 0.0
        %4810 = vmatpush1.msra.mxu0 0.0
        %4811 = vmatprep.subr.mxu0 0.0
        %4812 = vmatpush1.msra.mxu0 0.0
        %4813 = vmatprep.subr.mxu0 0.0
        %4814 = vmatpush1.msra.mxu0 0.0
        %4815 = vmatprep.subr.mxu0 0.0
        %4816 = vmatpush1.msra.mxu0 0.0
        %4817 = vmatprep.subr.mxu0 0.0
        %4818 = vmatpush1.msra.mxu0 0.0
        %4819 = vmatprep.subr.mxu0 0.0
        %4820 = vmatpush1.msra.mxu0 0.0
        %4821 = vmatprep.subr.mxu0 0.0
        %4822 = vmatpush1.msra.mxu0 0.0
        %4823 = vmatprep.subr.mxu0 0.0
        %4824 = vmatpush1.msra.mxu0 0.0
        %4825 = vmatprep.subr.mxu0 0.0
        %4826 = vmatpush1.msra.mxu0 0.0
        %4827 = vmatprep.subr.mxu0 0.0
        %4828 = vmatpush1.msra.mxu0 0.0
        %4829 = vmatprep.subr.mxu0 0.0
        %4830 = vmatpush1.msra.mxu0 0.0
        %4831 = vmatprep.subr.mxu0 0.0
        %4832 = vmatpush1.msra.mxu0 0.0
        %4833 = vmatprep.subr.mxu0 0.0
        %4834 = vmatpush1.msra.mxu0 0.0
        %4835 = vmatprep.subr.mxu0 0.0
        %4836 = vmatpush1.msra.mxu0 0.0
        %4837 = vmatprep.subr.mxu0 0.0
        %4838 = vmatpush1.msra.mxu0 0.0
        %4839 = vmatprep.subr.mxu0 0.0
        %4840 = vmatpush1.msra.mxu0 0.0
        %4841 = vmatprep.subr.mxu0 0.0
        %4842 = vmatpush1.msra.mxu0 0.0
        %4843 = vmatprep.subr.mxu0 0.0
        %4844 = vmatpush1.msra.mxu0 0.0
        %4845 = vmatprep.subr.mxu0 0.0
        %4846 = vmatpush1.msra.mxu0 0.0
        %4847 = vmatprep.subr.mxu0 0.0
        %4848 = vmatpush1.msra.mxu0 0.0
        %4849 = vmatprep.subr.mxu0 0.0
        %4850 = vmatpush1.msra.mxu0 0.0
        %4851 = vmatprep.subr.mxu0 0.0
        %4852 = vmatpush1.msra.mxu0 0.0
        %4853 = vmatprep.subr.mxu0 0.0
        %4854 = vmatpush1.msra.mxu0 0.0
        %4855 = vmatprep.subr.mxu0 0.0
        %4856 = vmatpush1.msra.mxu0 0.0
        %4857 = vmatprep.subr.mxu0 0.0
        %4858 = vmatpush1.msra.mxu0 0.0
        %4859 = vmatprep.mubr.f32.mxu0 0.0
        %4860 = vmatmul.mubr.f32.gmra.mrb[0].mxu0 %v4475
        %v4861 = vpop.f32.mrb[0].mxu0
        %v4862 = vadd.f32 0.0, %v4861
        %v4863 = vpop.f32.mrb[0].mxu0
        %4864 = vmatprep.mubr.f32.mxu0 0.0
        %4865 = vmatmul.mubr.f32.gmra.mrb[0].mxu0 %v4478
        %v4866 = vpop.f32.mrb[0].mxu0
        %v4867 = vadd.f32 0.0, %v4866
        %v4868 = vpop.f32.mrb[0].mxu0
        %4869 = vmatprep.mubr.f32.mxu0 0.0
        %4870 = vmatmul.mubr.f32.gmra.mrb[0].mxu0 %v4481
        %v4871 = vpop.f32.mrb[0].mxu0
        %v4872 = vadd.f32 0.0, %v4871
        %v4873 = vpop.f32.mrb[0].mxu0
        %4874 = vmatprep.mubr.f32.mxu0 0.0
        %4875 = vmatmul.mubr.f32.gmra.mrb[0].mxu0 %v4484
        %v4876 = vpop.f32.mrb[0].mxu0
        %v4877 = vadd.f32 0.0, %v4876
        %v4878 = vpop.f32.mrb[0].mxu0
        %4879 = vmatprep.mubr.f32.mxu0 0.0
        %4880 = vmatmul.mubr.f32.gmra.mrb[0].mxu0 %v4487
        %v4881 = vpop.f32.mrb[0].mxu0
        %v4882 = vadd.f32 0.0, %v4881
        %v4883 = vpop.f32.mrb[0].mxu0
        %4884 = vmatprep.mubr.f32.mxu0 0.0
        %4885 = vmatmul.mubr.f32.gmra.mrb[0].mxu0 %v4490
        %v4886 = vpop.f32.mrb[0].mxu0
        %v4887 = vadd.f32 0.0, %v4886
        %v4888 = vpop.f32.mrb[0].mxu0
        %4889 = vdwg.mxu0
        %4890 = vrot.lane.b32.xlu0 %v4559, 65
        %v4891 = vpop.permute.xlu0 %4890
        %4892 = vrot.lane.b32.xlu0 %v4565, 65
        %v4893 = vpop.permute.xlu0 %4892
        %4894 = vrot.lane.b32.xlu0 %v4561, 65
        %v4895 = vpop.permute.xlu0 %4894
        %4896 = vrot.lane.b32.xlu0 %v4567, 65
        %v4897 = vpop.permute.xlu0 %4896
        %4898 = vrot.lane.b32.xlu0 %v4660, 65
        %v4899 = vpop.permute.xlu0 %4898
        %4900 = vrot.lane.b32.xlu0 %v4666, 65
        %v4901 = vpop.permute.xlu0 %4900
        %4902 = vrot.lane.b32.xlu0 %v4662, 65
        %v4903 = vpop.permute.xlu0 %4902
        %4904 = vrot.lane.b32.xlu0 %v4668, 65
        %v4905 = vpop.permute.xlu0 %4904
        %4906 = vrot.lane.b32.xlu0 %v4761, 65
        %v4907 = vpop.permute.xlu0 %4906
        %4908 = vrot.lane.b32.xlu0 %v4767, 65
        %v4909 = vpop.permute.xlu0 %4908
        %4910 = vrot.lane.b32.xlu0 %v4763, 65
        %v4911 = vpop.permute.xlu0 %4910
        %4912 = vrot.lane.b32.xlu0 %v4769, 65
        %v4913 = vpop.permute.xlu0 %4912
        %4914 = vrot.lane.b32.xlu0 %v4862, 65
        %v4915 = vpop.permute.xlu0 %4914
        %4916 = vrot.lane.b32.xlu0 %v4867, 65
        %v4917 = vpop.permute.xlu0 %4916
        %v4918 = vsel %vm973, %v4911, %v4915
        %v4919 = vsel %vm973, %v4913, %v4917
        %v4920 = vsel %vm973, %v4907, %v4911
        %v4921 = vsel %vm973, %v4909, %v4913
        %v4922 = vsel %vm973, %v4903, %v4907
        %v4923 = vsel %vm973, %v4905, %v4909
        %v4924 = vsel %vm973, %v4899, %v4903
        %v4925 = vsel %vm973, %v4901, %v4905
        %v4926 = vsel %vm973, %v4895, %v4899
        %v4927 = vsel %vm973, %v4897, %v4901
        %v4928 = vsel %vm973, %v4891, %v4895
        %v4929 = vsel %vm973, %v4893, %v4897
        %v4930 = vsel %vm973, %v4915, %v4891
        %v4931 = vsel %vm973, %v4917, %v4893
        %v4932 = vmul.f32 %v4930, %v992
        %v4933 = vmul.f32 %v4928, %v996
        %v4934 = vmul.f32 %v4926, %v1000
        %v4935 = vmul.f32 %v4924, %v1004
        %v4936 = vmul.f32 %v4922, %v1008
        %v4937 = vmul.f32 %v4920, %v1012
        %v4938 = vmul.f32 %v4918, %v1016
        %v4939 = vmul.f32 %v4931, %v992
        %v4940 = vmul.f32 %v4929, %v996
        %v4941 = vmul.f32 %v4927, %v1000
        %v4942 = vmul.f32 %v4925, %v1004
        %v4943 = vmul.f32 %v4923, %v1008
        %v4944 = vmul.f32 %v4921, %v1012
        %v4945 = vmul.f32 %v4919, %v1016
        %v4946 = vld [vmem:[%s9] sm:$0xff]
        %v4947 = vld [vmem:[%s9 + $0x8] sm:$0xff]
        %4949 = vset.pattern.permute.xlu0 0
        %4950 = vperm.xlu0 %4949, %v4946
        %v4951 = vpop.permute.xlu0 %4950
        %4954 = vset.pattern.permute.xlu0 0
        %4955 = vperm.xlu0 %4954, %v4947
        %v4956 = vpop.permute.xlu0 %4955
        %v4958 = vadd.f32 %v4932, %v4951
        %v4959 = vadd.f32 %v4933, %v4951
        %v4960 = vadd.f32 %v4934, %v4951
        %v4961 = vadd.f32 %v4935, %v4951
        %v4962 = vadd.f32 %v4936, %v4951
        %v4963 = vadd.f32 %v4937, %v4951
        %v4964 = vadd.f32 %v4938, %v4951
        %v4965 = vadd.f32 %v4939, %v4956
        %v4966 = vadd.f32 %v4940, %v4956
        %v4967 = vadd.f32 %v4941, %v4956
        %v4968 = vadd.f32 %v4942, %v4956
        %v4969 = vadd.f32 %v4943, %v4956
        %v4970 = vadd.f32 %v4944, %v4956
        %v4971 = vadd.f32 %v4945, %v4956
        %4972 = vrot.lane.b32.xlu0 %v4571, 64
        %v4973 = vpop.permute.xlu0 %4972
        %4974 = vrot.lane.b32.xlu0 %v4577, 64
        %v4975 = vpop.permute.xlu0 %4974
        %4976 = vrot.lane.b32.xlu0 %v4573, 64
        %v4977 = vpop.permute.xlu0 %4976
        %4978 = vrot.lane.b32.xlu0 %v4579, 64
        %v4979 = vpop.permute.xlu0 %4978
        %4980 = vrot.lane.b32.xlu0 %v4672, 64
        %v4981 = vpop.permute.xlu0 %4980
        %4982 = vrot.lane.b32.xlu0 %v4678, 64
        %v4983 = vpop.permute.xlu0 %4982
        %4984 = vrot.lane.b32.xlu0 %v4674, 64
        %v4985 = vpop.permute.xlu0 %4984
        %4986 = vrot.lane.b32.xlu0 %v4680, 64
        %v4987 = vpop.permute.xlu0 %4986
        %4988 = vrot.lane.b32.xlu0 %v4773, 64
        %v4989 = vpop.permute.xlu0 %4988
        %4990 = vrot.lane.b32.xlu0 %v4779, 64
        %v4991 = vpop.permute.xlu0 %4990
        %4992 = vrot.lane.b32.xlu0 %v4775, 64
        %v4993 = vpop.permute.xlu0 %4992
        %4994 = vrot.lane.b32.xlu0 %v4781, 64
        %v4995 = vpop.permute.xlu0 %4994
        %4996 = vrot.lane.b32.xlu0 %v4872, 64
        %v4997 = vpop.permute.xlu0 %4996
        %4998 = vrot.lane.b32.xlu0 %v4877, 64
        %v4999 = vpop.permute.xlu0 %4998
        %v5000 = vsel %vm1092, %v4993, %v4997
        %v5001 = vsel %vm1092, %v4995, %v4999
        %v5002 = vsel %vm1092, %v4989, %v4993
        %v5003 = vsel %vm1092, %v4991, %v4995
        %v5004 = vsel %vm1092, %v4985, %v4989
        %v5005 = vsel %vm1092, %v4987, %v4991
        %v5006 = vsel %vm1092, %v4981, %v4985
        %v5007 = vsel %vm1092, %v4983, %v4987
        %v5008 = vsel %vm1092, %v4977, %v4981
        %v5009 = vsel %vm1092, %v4979, %v4983
        %v5010 = vsel %vm1092, %v4973, %v4977
        %v5011 = vsel %vm1092, %v4975, %v4979
        %v5012 = vsel %vm1092, %v4997, %v4973
        %v5013 = vsel %vm1092, %v4999, %v4975
        %v5014 = vadd.f32 %v4958, %v5012
        %v5015 = vadd.f32 %v4959, %v5010
        %v5016 = vadd.f32 %v4960, %v5008
        %v5017 = vadd.f32 %v4961, %v5006
        %v5018 = vadd.f32 %v4962, %v5004
        %v5019 = vadd.f32 %v4963, %v5002
        %v5020 = vadd.f32 %v4964, %v5000
        %v5021 = vadd.f32 %v4965, %v5013
        %v5022 = vadd.f32 %v4966, %v5011
        %v5023 = vadd.f32 %v4967, %v5009
        %v5024 = vadd.f32 %v4968, %v5007
        %v5025 = vadd.f32 %v4969, %v5005
        %v5026 = vadd.f32 %v4970, %v5003
        %v5027 = vadd.f32 %v4971, %v5001
        %5028 = vrot.lane.b32.xlu0 %v4583, 63
        %v5029 = vpop.permute.xlu0 %5028
        %5030 = vrot.lane.b32.xlu0 %v4589, 63
        %v5031 = vpop.permute.xlu0 %5030
        %5032 = vrot.lane.b32.xlu0 %v4585, 63
        %v5033 = vpop.permute.xlu0 %5032
        %5034 = vrot.lane.b32.xlu0 %v4591, 63
        %v5035 = vpop.permute.xlu0 %5034
        %5036 = vrot.lane.b32.xlu0 %v4684, 63
        %v5037 = vpop.permute.xlu0 %5036
        %5038 = vrot.lane.b32.xlu0 %v4690, 63
        %v5039 = vpop.permute.xlu0 %5038
        %5040 = vrot.lane.b32.xlu0 %v4686, 63
        %v5041 = vpop.permute.xlu0 %5040
        %5042 = vrot.lane.b32.xlu0 %v4692, 63
        %v5043 = vpop.permute.xlu0 %5042
        %5044 = vrot.lane.b32.xlu0 %v4785, 63
        %v5045 = vpop.permute.xlu0 %5044
        %5046 = vrot.lane.b32.xlu0 %v4791, 63
        %v5047 = vpop.permute.xlu0 %5046
        %5048 = vrot.lane.b32.xlu0 %v4787, 63
        %v5049 = vpop.permute.xlu0 %5048
        %5050 = vrot.lane.b32.xlu0 %v4793, 63
        %v5051 = vpop.permute.xlu0 %5050
        %5052 = vrot.lane.b32.xlu0 %v4882, 63
        %v5053 = vpop.permute.xlu0 %5052
        %5054 = vrot.lane.b32.xlu0 %v4887, 63
        %v5055 = vpop.permute.xlu0 %5054
        %v5056 = vsel %vm1149, %v5049, %v5053
        %v5057 = vsel %vm1149, %v5051, %v5055
        %v5058 = vsel %vm1149, %v5045, %v5049
        %v5059 = vsel %vm1149, %v5047, %v5051
        %v5060 = vsel %vm1149, %v5041, %v5045
        %v5061 = vsel %vm1149, %v5043, %v5047
        %v5062 = vsel %vm1149, %v5037, %v5041
        %v5063 = vsel %vm1149, %v5039, %v5043
        %v5064 = vsel %vm1149, %v5033, %v5037
        %v5065 = vsel %vm1149, %v5035, %v5039
        %v5066 = vsel %vm1149, %v5029, %v5033
        %v5067 = vsel %vm1149, %v5031, %v5035
        %v5068 = vsel %vm1149, %v5053, %v5029
        %v5069 = vsel %vm1149, %v5055, %v5031
        %v5070 = vmul.f32 %v5068, %v1168
        %v5071 = vmul.f32 %v5066, %v1172
        %v5072 = vmul.f32 %v5064, %v1176
        %v5073 = vmul.f32 %v5062, %v1180
        %v5074 = vmul.f32 %v5060, %v1184
        %v5075 = vmul.f32 %v5058, %v1188
        %v5076 = vmul.f32 %v5056, %v1192
        %v5077 = vmul.f32 %v5069, %v1168
        %v5078 = vmul.f32 %v5067, %v1172
        %v5079 = vmul.f32 %v5065, %v1176
        %v5080 = vmul.f32 %v5063, %v1180
        %v5081 = vmul.f32 %v5061, %v1184
        %v5082 = vmul.f32 %v5059, %v1188
        %v5083 = vmul.f32 %v5057, %v1192
        %v5084 = vadd.f32 %v5014, %v5070
        %v5085 = vadd.f32 %v5015, %v5071
        %v5086 = vadd.f32 %v5016, %v5072
        %v5087 = vadd.f32 %v5017, %v5073
        %v5088 = vadd.f32 %v5018, %v5074
        %v5089 = vadd.f32 %v5019, %v5075
        %v5090 = vadd.f32 %v5020, %v5076
        %v5091 = vadd.f32 %v5021, %v5077
        %v5092 = vadd.f32 %v5022, %v5078
        %v5093 = vadd.f32 %v5023, %v5079
        %v5094 = vadd.f32 %v5024, %v5080
        %v5095 = vadd.f32 %v5025, %v5081
        %v5096 = vadd.f32 %v5026, %v5082
        %v5097 = vadd.f32 %v5027, %v5083
        %v5098 = vld [vmem:[%s8 + $0x30] sm:$0xff]
        %v5099 = vld [vmem:[%s8 + $0x38] sm:$0xff]
        %v5100 = vld [vmem:[%s8 + $0x40] sm:$0xff]
        %v5101 = vld [vmem:[%s8 + $0x48] sm:$0xff]
        %v5102 = vld [vmem:[%s8 + $0x50] sm:$0xff]
        %v5103 = vld [vmem:[%s8 + $0x58] sm:$0xff]
        %v5105 = vsel %vm4473, %v5098, 0
        %v5108 = vsel %vm4473, %v5099, 0
        %v5111 = vsel %vm4473, %v5100, 0
        %v5114 = vsel %vm4473, %v5101, 0
        %v5117 = vsel %vm4473, %v5102, 0
        %v5120 = vsel %vm4473, %v5103, 0
        %5122 = vmatprep.subr.mxu0 %v4426
        %5123 = vmatpush1.msra.mxu0 %v4425
        %5124 = vmatprep.subr.mxu0 %v4433
        %5125 = vmatpush1.msra.mxu0 %v4432
        %5126 = vmatprep.subr.mxu0 %v4440
        %5127 = vmatpush1.msra.mxu0 %v4439
        %5128 = vmatprep.subr.mxu0 %v4447
        %5129 = vmatpush1.msra.mxu0 %v4446
        %5130 = vmatprep.subr.mxu0 %v4454
        %5131 = vmatpush1.msra.mxu0 %v4453
        %5132 = vmatprep.subr.mxu0 %v4461
        %5133 = vmatpush1.msra.mxu0 %v4460
        %5134 = vmatprep.subr.mxu0 0.0
        %5135 = vmatpush1.msra.mxu0 0.0
        %5136 = vmatprep.subr.mxu0 0.0
        %5137 = vmatpush1.msra.mxu0 0.0
        %5138 = vmatprep.subr.mxu0 0.0
        %5139 = vmatpush1.msra.mxu0 0.0
        %5140 = vmatprep.subr.mxu0 0.0
        %5141 = vmatpush1.msra.mxu0 0.0
        %5142 = vmatprep.subr.mxu0 0.0
        %5143 = vmatpush1.msra.mxu0 0.0
        %5144 = vmatprep.subr.mxu0 0.0
        %5145 = vmatpush1.msra.mxu0 0.0
        %5146 = vmatprep.subr.mxu0 0.0
        %5147 = vmatpush1.msra.mxu0 0.0
        %5148 = vmatprep.subr.mxu0 0.0
        %5149 = vmatpush1.msra.mxu0 0.0
        %5150 = vmatprep.subr.mxu0 0.0
        %5151 = vmatpush1.msra.mxu0 0.0
        %5152 = vmatprep.subr.mxu0 0.0
        %5153 = vmatpush1.msra.mxu0 0.0
        %5154 = vmatprep.subr.mxu0 0.0
        %5155 = vmatpush1.msra.mxu0 0.0
        %5156 = vmatprep.subr.mxu0 0.0
        %5157 = vmatpush1.msra.mxu0 0.0
        %5158 = vmatprep.subr.mxu0 0.0
        %5159 = vmatpush1.msra.mxu0 0.0
        %5160 = vmatprep.subr.mxu0 0.0
        %5161 = vmatpush1.msra.mxu0 0.0
        %5162 = vmatprep.subr.mxu0 0.0
        %5163 = vmatpush1.msra.mxu0 0.0
        %5164 = vmatprep.subr.mxu0 0.0
        %5165 = vmatpush1.msra.mxu0 0.0
        %5166 = vmatprep.subr.mxu0 0.0
        %5167 = vmatpush1.msra.mxu0 0.0
        %5168 = vmatprep.subr.mxu0 0.0
        %5169 = vmatpush1.msra.mxu0 0.0
        %5170 = vmatprep.subr.mxu0 0.0
        %5171 = vmatpush1.msra.mxu0 0.0
        %5172 = vmatprep.subr.mxu0 0.0
        %5173 = vmatpush1.msra.mxu0 0.0
        %5174 = vmatprep.subr.mxu0 0.0
        %5175 = vmatpush1.msra.mxu0 0.0
        %5176 = vmatprep.subr.mxu0 0.0
        %5177 = vmatpush1.msra.mxu0 0.0
        %5178 = vmatprep.subr.mxu0 0.0
        %5179 = vmatpush1.msra.mxu0 0.0
        %5180 = vmatprep.subr.mxu0 0.0
        %5181 = vmatpush1.msra.mxu0 0.0
        %5182 = vmatprep.subr.mxu0 0.0
        %5183 = vmatpush1.msra.mxu0 0.0
        %5184 = vmatprep.subr.mxu0 0.0
        %5185 = vmatpush1.msra.mxu0 0.0
        %5186 = vmatprep.mubr.f32.mxu0 0.0
        %5187 = vmatmul.mubr.f32.gmra.mrb[0].mxu0 %v5105
        %v5188 = vpop.f32.mrb[0].mxu0
        %v5189 = vadd.f32 0.0, %v5188
        %v5190 = vpop.f32.mrb[0].mxu0
        %v5191 = vadd.f32 0.0, %v5190
        %5192 = vmatprep.mubr.f32.mxu0 0.0
        %5193 = vmatmul.mubr.f32.gmra.mrb[0].mxu0 %v5108
        %v5194 = vpop.f32.mrb[0].mxu0
        %v5195 = vadd.f32 0.0, %v5194
        %v5196 = vpop.f32.mrb[0].mxu0
        %v5197 = vadd.f32 0.0, %v5196
        %5198 = vmatprep.mubr.f32.mxu0 0.0
        %5199 = vmatmul.mubr.f32.gmra.mrb[0].mxu0 %v5111
        %v5200 = vpop.f32.mrb[0].mxu0
        %v5201 = vadd.f32 0.0, %v5200
        %v5202 = vpop.f32.mrb[0].mxu0
        %v5203 = vadd.f32 0.0, %v5202
        %5204 = vmatprep.mubr.f32.mxu0 0.0
        %5205 = vmatmul.mubr.f32.gmra.mrb[0].mxu0 %v5114
        %v5206 = vpop.f32.mrb[0].mxu0
        %v5207 = vadd.f32 0.0, %v5206
        %v5208 = vpop.f32.mrb[0].mxu0
        %v5209 = vadd.f32 0.0, %v5208
        %5210 = vmatprep.mubr.f32.mxu0 0.0
        %5211 = vmatmul.mubr.f32.gmra.mrb[0].mxu0 %v5117
        %v5212 = vpop.f32.mrb[0].mxu0
        %v5213 = vadd.f32 0.0, %v5212
        %v5214 = vpop.f32.mrb[0].mxu0
        %v5215 = vadd.f32 0.0, %v5214
        %5216 = vmatprep.mubr.f32.mxu0 0.0
        %5217 = vmatmul.mubr.f32.gmra.mrb[0].mxu0 %v5120
        %v5218 = vpop.f32.mrb[0].mxu0
        %v5219 = vadd.f32 0.0, %v5218
        %v5220 = vpop.f32.mrb[0].mxu0
        %v5221 = vadd.f32 0.0, %v5220
        %5222 = vdwg.mxu0
        %5223 = vmatprep.subr.mxu0 %v4428
        %5224 = vmatpush1.msra.mxu0 %v4427
        %5225 = vmatprep.subr.mxu0 %v4435
        %5226 = vmatpush1.msra.mxu0 %v4434
        %5227 = vmatprep.subr.mxu0 %v4442
        %5228 = vmatpush1.msra.mxu0 %v4441
        %5229 = vmatprep.subr.mxu0 %v4449
        %5230 = vmatpush1.msra.mxu0 %v4448
        %5231 = vmatprep.subr.mxu0 %v4456
        %5232 = vmatpush1.msra.mxu0 %v4455
        %5233 = vmatprep.subr.mxu0 %v4463
        %5234 = vmatpush1.msra.mxu0 %v4462
        %5235 = vmatprep.subr.mxu0 0.0
        %5236 = vmatpush1.msra.mxu0 0.0
        %5237 = vmatprep.subr.mxu0 0.0
        %5238 = vmatpush1.msra.mxu0 0.0
        %5239 = vmatprep.subr.mxu0 0.0
        %5240 = vmatpush1.msra.mxu0 0.0
        %5241 = vmatprep.subr.mxu0 0.0
        %5242 = vmatpush1.msra.mxu0 0.0
        %5243 = vmatprep.subr.mxu0 0.0
        %5244 = vmatpush1.msra.mxu0 0.0
        %5245 = vmatprep.subr.mxu0 0.0
        %5246 = vmatpush1.msra.mxu0 0.0
        %5247 = vmatprep.subr.mxu0 0.0
        %5248 = vmatpush1.msra.mxu0 0.0
        %5249 = vmatprep.subr.mxu0 0.0
        %5250 = vmatpush1.msra.mxu0 0.0
        %5251 = vmatprep.subr.mxu0 0.0
        %5252 = vmatpush1.msra.mxu0 0.0
        %5253 = vmatprep.subr.mxu0 0.0
        %5254 = vmatpush1.msra.mxu0 0.0
        %5255 = vmatprep.subr.mxu0 0.0
        %5256 = vmatpush1.msra.mxu0 0.0
        %5257 = vmatprep.subr.mxu0 0.0
        %5258 = vmatpush1.msra.mxu0 0.0
        %5259 = vmatprep.subr.mxu0 0.0
        %5260 = vmatpush1.msra.mxu0 0.0
        %5261 = vmatprep.subr.mxu0 0.0
        %5262 = vmatpush1.msra.mxu0 0.0
        %5263 = vmatprep.subr.mxu0 0.0
        %5264 = vmatpush1.msra.mxu0 0.0
        %5265 = vmatprep.subr.mxu0 0.0
        %5266 = vmatpush1.msra.mxu0 0.0
        %5267 = vmatprep.subr.mxu0 0.0
        %5268 = vmatpush1.msra.mxu0 0.0
        %5269 = vmatprep.subr.mxu0 0.0
        %5270 = vmatpush1.msra.mxu0 0.0
        %5271 = vmatprep.subr.mxu0 0.0
        %5272 = vmatpush1.msra.mxu0 0.0
        %5273 = vmatprep.subr.mxu0 0.0
        %5274 = vmatpush1.msra.mxu0 0.0
        %5275 = vmatprep.subr.mxu0 0.0
        %5276 = vmatpush1.msra.mxu0 0.0
        %5277 = vmatprep.subr.mxu0 0.0
        %5278 = vmatpush1.msra.mxu0 0.0
        %5279 = vmatprep.subr.mxu0 0.0
        %5280 = vmatpush1.msra.mxu0 0.0
        %5281 = vmatprep.subr.mxu0 0.0
        %5282 = vmatpush1.msra.mxu0 0.0
        %5283 = vmatprep.subr.mxu0 0.0
        %5284 = vmatpush1.msra.mxu0 0.0
        %5285 = vmatprep.subr.mxu0 0.0
        %5286 = vmatpush1.msra.mxu0 0.0
        %5287 = vmatprep.mubr.f32.mxu0 0.0
        %5288 = vmatmul.mubr.f32.gmra.mrb[0].mxu0 %v5105
        %v5289 = vpop.f32.mrb[0].mxu0
        %v5290 = vadd.f32 0.0, %v5289
        %v5291 = vpop.f32.mrb[0].mxu0
        %v5292 = vadd.f32 0.0, %v5291
        %5293 = vmatprep.mubr.f32.mxu0 0.0
        %5294 = vmatmul.mubr.f32.gmra.mrb[0].mxu0 %v5108
        %v5295 = vpop.f32.mrb[0].mxu0
        %v5296 = vadd.f32 0.0, %v5295
        %v5297 = vpop.f32.mrb[0].mxu0
        %v5298 = vadd.f32 0.0, %v5297
        %5299 = vmatprep.mubr.f32.mxu0 0.0
        %5300 = vmatmul.mubr.f32.gmra.mrb[0].mxu0 %v5111
        %v5301 = vpop.f32.mrb[0].mxu0
        %v5302 = vadd.f32 0.0, %v5301
        %v5303 = vpop.f32.mrb[0].mxu0
        %v5304 = vadd.f32 0.0, %v5303
        %5305 = vmatprep.mubr.f32.mxu0 0.0
        %5306 = vmatmul.mubr.f32.gmra.mrb[0].mxu0 %v5114
        %v5307 = vpop.f32.mrb[0].mxu0
        %v5308 = vadd.f32 0.0, %v5307
        %v5309 = vpop.f32.mrb[0].mxu0
        %v5310 = vadd.f32 0.0, %v5309
        %5311 = vmatprep.mubr.f32.mxu0 0.0
        %5312 = vmatmul.mubr.f32.gmra.mrb[0].mxu0 %v5117
        %v5313 = vpop.f32.mrb[0].mxu0
        %v5314 = vadd.f32 0.0, %v5313
        %v5315 = vpop.f32.mrb[0].mxu0
        %v5316 = vadd.f32 0.0, %v5315
        %5317 = vmatprep.mubr.f32.mxu0 0.0
        %5318 = vmatmul.mubr.f32.gmra.mrb[0].mxu0 %v5120
        %v5319 = vpop.f32.mrb[0].mxu0
        %v5320 = vadd.f32 0.0, %v5319
        %v5321 = vpop.f32.mrb[0].mxu0
        %v5322 = vadd.f32 0.0, %v5321
        %5323 = vdwg.mxu0
        %5324 = vmatprep.subr.mxu0 %v4430
        %5325 = vmatpush1.msra.mxu0 %v4429
        %5326 = vmatprep.subr.mxu0 %v4437
        %5327 = vmatpush1.msra.mxu0 %v4436
        %5328 = vmatprep.subr.mxu0 %v4444
        %5329 = vmatpush1.msra.mxu0 %v4443
        %5330 = vmatprep.subr.mxu0 %v4451
        %5331 = vmatpush1.msra.mxu0 %v4450
        %5332 = vmatprep.subr.mxu0 %v4458
        %5333 = vmatpush1.msra.mxu0 %v4457
        %5334 = vmatprep.subr.mxu0 %v4465
        %5335 = vmatpush1.msra.mxu0 %v4464
        %5336 = vmatprep.subr.mxu0 0.0
        %5337 = vmatpush1.msra.mxu0 0.0
        %5338 = vmatprep.subr.mxu0 0.0
        %5339 = vmatpush1.msra.mxu0 0.0
        %5340 = vmatprep.subr.mxu0 0.0
        %5341 = vmatpush1.msra.mxu0 0.0
        %5342 = vmatprep.subr.mxu0 0.0
        %5343 = vmatpush1.msra.mxu0 0.0
        %5344 = vmatprep.subr.mxu0 0.0
        %5345 = vmatpush1.msra.mxu0 0.0
        %5346 = vmatprep.subr.mxu0 0.0
        %5347 = vmatpush1.msra.mxu0 0.0
        %5348 = vmatprep.subr.mxu0 0.0
        %5349 = vmatpush1.msra.mxu0 0.0
        %5350 = vmatprep.subr.mxu0 0.0
        %5351 = vmatpush1.msra.mxu0 0.0
        %5352 = vmatprep.subr.mxu0 0.0
        %5353 = vmatpush1.msra.mxu0 0.0
        %5354 = vmatprep.subr.mxu0 0.0
        %5355 = vmatpush1.msra.mxu0 0.0
        %5356 = vmatprep.subr.mxu0 0.0
        %5357 = vmatpush1.msra.mxu0 0.0
        %5358 = vmatprep.subr.mxu0 0.0
        %5359 = vmatpush1.msra.mxu0 0.0
        %5360 = vmatprep.subr.mxu0 0.0
        %5361 = vmatpush1.msra.mxu0 0.0
        %5362 = vmatprep.subr.mxu0 0.0
        %5363 = vmatpush1.msra.mxu0 0.0
        %5364 = vmatprep.subr.mxu0 0.0
        %5365 = vmatpush1.msra.mxu0 0.0
        %5366 = vmatprep.subr.mxu0 0.0
        %5367 = vmatpush1.msra.mxu0 0.0
        %5368 = vmatprep.subr.mxu0 0.0
        %5369 = vmatpush1.msra.mxu0 0.0
        %5370 = vmatprep.subr.mxu0 0.0
        %5371 = vmatpush1.msra.mxu0 0.0
        %5372 = vmatprep.subr.mxu0 0.0
        %5373 = vmatpush1.msra.mxu0 0.0
        %5374 = vmatprep.subr.mxu0 0.0
        %5375 = vmatpush1.msra.mxu0 0.0
        %5376 = vmatprep.subr.mxu0 0.0
        %5377 = vmatpush1.msra.mxu0 0.0
        %5378 = vmatprep.subr.mxu0 0.0
        %5379 = vmatpush1.msra.mxu0 0.0
        %5380 = vmatprep.subr.mxu0 0.0
        %5381 = vmatpush1.msra.mxu0 0.0
        %5382 = vmatprep.subr.mxu0 0.0
        %5383 = vmatpush1.msra.mxu0 0.0
        %5384 = vmatprep.subr.mxu0 0.0
        %5385 = vmatpush1.msra.mxu0 0.0
        %5386 = vmatprep.subr.mxu0 0.0
        %5387 = vmatpush1.msra.mxu0 0.0
        %5388 = vmatprep.mubr.f32.mxu0 0.0
        %5389 = vmatmul.mubr.f32.gmra.mrb[0].mxu0 %v5105
        %v5390 = vpop.f32.mrb[0].mxu0
        %v5391 = vadd.f32 0.0, %v5390
        %v5392 = vpop.f32.mrb[0].mxu0
        %v5393 = vadd.f32 0.0, %v5392
        %5394 = vmatprep.mubr.f32.mxu0 0.0
        %5395 = vmatmul.mubr.f32.gmra.mrb[0].mxu0 %v5108
        %v5396 = vpop.f32.mrb[0].mxu0
        %v5397 = vadd.f32 0.0, %v5396
        %v5398 = vpop.f32.mrb[0].mxu0
        %v5399 = vadd.f32 0.0, %v5398
        %5400 = vmatprep.mubr.f32.mxu0 0.0
        %5401 = vmatmul.mubr.f32.gmra.mrb[0].mxu0 %v5111
        %v5402 = vpop.f32.mrb[0].mxu0
        %v5403 = vadd.f32 0.0, %v5402
        %v5404 = vpop.f32.mrb[0].mxu0
        %v5405 = vadd.f32 0.0, %v5404
        %5406 = vmatprep.mubr.f32.mxu0 0.0
        %5407 = vmatmul.mubr.f32.gmra.mrb[0].mxu0 %v5114
        %v5408 = vpop.f32.mrb[0].mxu0
        %v5409 = vadd.f32 0.0, %v5408
        %v5410 = vpop.f32.mrb[0].mxu0
        %v5411 = vadd.f32 0.0, %v5410
        %5412 = vmatprep.mubr.f32.mxu0 0.0
        %5413 = vmatmul.mubr.f32.gmra.mrb[0].mxu0 %v5117
        %v5414 = vpop.f32.mrb[0].mxu0
        %v5415 = vadd.f32 0.0, %v5414
        %v5416 = vpop.f32.mrb[0].mxu0
        %v5417 = vadd.f32 0.0, %v5416
        %5418 = vmatprep.mubr.f32.mxu0 0.0
        %5419 = vmatmul.mubr.f32.gmra.mrb[0].mxu0 %v5120
        %v5420 = vpop.f32.mrb[0].mxu0
        %v5421 = vadd.f32 0.0, %v5420
        %v5422 = vpop.f32.mrb[0].mxu0
        %v5423 = vadd.f32 0.0, %v5422
        %5424 = vdwg.mxu0
        %5425 = vmatprep.subr.mxu0 0.0
        %5426 = vmatpush1.msra.mxu0 %v4431
        %5427 = vmatprep.subr.mxu0 0.0
        %5428 = vmatpush1.msra.mxu0 %v4438
        %5429 = vmatprep.subr.mxu0 0.0
        %5430 = vmatpush1.msra.mxu0 %v4445
        %5431 = vmatprep.subr.mxu0 0.0
        %5432 = vmatpush1.msra.mxu0 %v4452
        %5433 = vmatprep.subr.mxu0 0.0
        %5434 = vmatpush1.msra.mxu0 %v4459
        %5435 = vmatprep.subr.mxu0 0.0
        %5436 = vmatpush1.msra.mxu0 %v4466
        %5437 = vmatprep.subr.mxu0 0.0
        %5438 = vmatpush1.msra.mxu0 0.0
        %5439 = vmatprep.subr.mxu0 0.0
        %5440 = vmatpush1.msra.mxu0 0.0
        %5441 = vmatprep.subr.mxu0 0.0
        %5442 = vmatpush1.msra.mxu0 0.0
        %5443 = vmatprep.subr.mxu0 0.0
        %5444 = vmatpush1.msra.mxu0 0.0
        %5445 = vmatprep.subr.mxu0 0.0
        %5446 = vmatpush1.msra.mxu0 0.0
        %5447 = vmatprep.subr.mxu0 0.0
        %5448 = vmatpush1.msra.mxu0 0.0
        %5449 = vmatprep.subr.mxu0 0.0
        %5450 = vmatpush1.msra.mxu0 0.0
        %5451 = vmatprep.subr.mxu0 0.0
        %5452 = vmatpush1.msra.mxu0 0.0
        %5453 = vmatprep.subr.mxu0 0.0
        %5454 = vmatpush1.msra.mxu0 0.0
        %5455 = vmatprep.subr.mxu0 0.0
        %5456 = vmatpush1.msra.mxu0 0.0
        %5457 = vmatprep.subr.mxu0 0.0
        %5458 = vmatpush1.msra.mxu0 0.0
        %5459 = vmatprep.subr.mxu0 0.0
        %5460 = vmatpush1.msra.mxu0 0.0
        %5461 = vmatprep.subr.mxu0 0.0
        %5462 = vmatpush1.msra.mxu0 0.0
        %5463 = vmatprep.subr.mxu0 0.0
        %5464 = vmatpush1.msra.mxu0 0.0
        %5465 = vmatprep.subr.mxu0 0.0
        %5466 = vmatpush1.msra.mxu0 0.0
        %5467 = vmatprep.subr.mxu0 0.0
        %5468 = vmatpush1.msra.mxu0 0.0
        %5469 = vmatprep.subr.mxu0 0.0
        %5470 = vmatpush1.msra.mxu0 0.0
        %5471 = vmatprep.subr.mxu0 0.0
        %5472 = vmatpush1.msra.mxu0 0.0
        %5473 = vmatprep.subr.mxu0 0.0
        %5474 = vmatpush1.msra.mxu0 0.0
        %5475 = vmatprep.subr.mxu0 0.0
        %5476 = vmatpush1.msra.mxu0 0.0
        %5477 = vmatprep.subr.mxu0 0.0
        %5478 = vmatpush1.msra.mxu0 0.0
        %5479 = vmatprep.subr.mxu0 0.0
        %5480 = vmatpush1.msra.mxu0 0.0
        %5481 = vmatprep.subr.mxu0 0.0
        %5482 = vmatpush1.msra.mxu0 0.0
        %5483 = vmatprep.subr.mxu0 0.0
        %5484 = vmatpush1.msra.mxu0 0.0
        %5485 = vmatprep.subr.mxu0 0.0
        %5486 = vmatpush1.msra.mxu0 0.0
        %5487 = vmatprep.subr.mxu0 0.0
        %5488 = vmatpush1.msra.mxu0 0.0
        %5489 = vmatprep.mubr.f32.mxu0 0.0
        %5490 = vmatmul.mubr.f32.gmra.mrb[0].mxu0 %v5105
        %v5491 = vpop.f32.mrb[0].mxu0
        %v5492 = vadd.f32 0.0, %v5491
        %v5493 = vpop.f32.mrb[0].mxu0
        %5494 = vmatprep.mubr.f32.mxu0 0.0
        %5495 = vmatmul.mubr.f32.gmra.mrb[0].mxu0 %v5108
        %v5496 = vpop.f32.mrb[0].mxu0
        %v5497 = vadd.f32 0.0, %v5496
        %v5498 = vpop.f32.mrb[0].mxu0
        %5499 = vmatprep.mubr.f32.mxu0 0.0
        %5500 = vmatmul.mubr.f32.gmra.mrb[0].mxu0 %v5111
        %v5501 = vpop.f32.mrb[0].mxu0
        %v5502 = vadd.f32 0.0, %v5501
        %v5503 = vpop.f32.mrb[0].mxu0
        %5504 = vmatprep.mubr.f32.mxu0 0.0
        %5505 = vmatmul.mubr.f32.gmra.mrb[0].mxu0 %v5114
        %v5506 = vpop.f32.mrb[0].mxu0
        %v5507 = vadd.f32 0.0, %v5506
        %v5508 = vpop.f32.mrb[0].mxu0
        %5509 = vmatprep.mubr.f32.mxu0 0.0
        %5510 = vmatmul.mubr.f32.gmra.mrb[0].mxu0 %v5117
        %v5511 = vpop.f32.mrb[0].mxu0
        %v5512 = vadd.f32 0.0, %v5511
        %v5513 = vpop.f32.mrb[0].mxu0
        %5514 = vmatprep.mubr.f32.mxu0 0.0
        %5515 = vmatmul.mubr.f32.gmra.mrb[0].mxu0 %v5120
        %v5516 = vpop.f32.mrb[0].mxu0
        %v5517 = vadd.f32 0.0, %v5516
        %v5518 = vpop.f32.mrb[0].mxu0
        %5519 = vdwg.mxu0
        %5520 = vrot.lane.b32.xlu0 %v5189, 1
        %v5521 = vpop.permute.xlu0 %5520
        %5522 = vrot.lane.b32.xlu0 %v5195, 1
        %v5523 = vpop.permute.xlu0 %5522
        %5524 = vrot.lane.b32.xlu0 %v5191, 1
        %v5525 = vpop.permute.xlu0 %5524
        %5526 = vrot.lane.b32.xlu0 %v5197, 1
        %v5527 = vpop.permute.xlu0 %5526
        %5528 = vrot.lane.b32.xlu0 %v5290, 1
        %v5529 = vpop.permute.xlu0 %5528
        %5530 = vrot.lane.b32.xlu0 %v5296, 1
        %v5531 = vpop.permute.xlu0 %5530
        %5532 = vrot.lane.b32.xlu0 %v5292, 1
        %v5533 = vpop.permute.xlu0 %5532
        %5534 = vrot.lane.b32.xlu0 %v5298, 1
        %v5535 = vpop.permute.xlu0 %5534
        %5536 = vrot.lane.b32.xlu0 %v5391, 1
        %v5537 = vpop.permute.xlu0 %5536
        %5538 = vrot.lane.b32.xlu0 %v5397, 1
        %v5539 = vpop.permute.xlu0 %5538
        %5540 = vrot.lane.b32.xlu0 %v5393, 1
        %v5541 = vpop.permute.xlu0 %5540
        %5542 = vrot.lane.b32.xlu0 %v5399, 1
        %v5543 = vpop.permute.xlu0 %5542
        %5544 = vrot.lane.b32.xlu0 %v5492, 1
        %v5545 = vpop.permute.xlu0 %5544
        %5546 = vrot.lane.b32.xlu0 %v5497, 1
        %v5547 = vpop.permute.xlu0 %5546
        %v5548 = vsel %vm1678, %v5541, %v5545
        %v5549 = vsel %vm1678, %v5543, %v5547
        %v5550 = vsel %vm1678, %v5537, %v5541
        %v5551 = vsel %vm1678, %v5539, %v5543
        %v5552 = vsel %vm1678, %v5533, %v5537
        %v5553 = vsel %vm1678, %v5535, %v5539
        %v5554 = vsel %vm1678, %v5529, %v5533
        %v5555 = vsel %vm1678, %v5531, %v5535
        %v5556 = vsel %vm1678, %v5525, %v5529
        %v5557 = vsel %vm1678, %v5527, %v5531
        %v5558 = vsel %vm1678, %v5521, %v5525
        %v5559 = vsel %vm1678, %v5523, %v5527
        %v5560 = vsel %vm1678, %v5545, %v5521
        %v5561 = vsel %vm1678, %v5547, %v5523
        %v5562 = vmul.f32 %v5560, %v992
        %v5563 = vmul.f32 %v5558, %v996
        %v5564 = vmul.f32 %v5556, %v1000
        %v5565 = vmul.f32 %v5554, %v1004
        %v5566 = vmul.f32 %v5552, %v1008
        %v5567 = vmul.f32 %v5550, %v1012
        %v5568 = vmul.f32 %v5548, %v1016
        %v5569 = vmul.f32 %v5561, %v992
        %v5570 = vmul.f32 %v5559, %v996
        %v5571 = vmul.f32 %v5557, %v1000
        %v5572 = vmul.f32 %v5555, %v1004
        %v5573 = vmul.f32 %v5553, %v1008
        %v5574 = vmul.f32 %v5551, %v1012
        %v5575 = vmul.f32 %v5549, %v1016
        %v5576 = vadd.f32 %v5084, %v5562
        %v5577 = vadd.f32 %v5085, %v5563
        %v5578 = vadd.f32 %v5086, %v5564
        %v5579 = vadd.f32 %v5087, %v5565
        %v5580 = vadd.f32 %v5088, %v5566
        %v5581 = vadd.f32 %v5089, %v5567
        %v5582 = vadd.f32 %v5090, %v5568
        %v5583 = vadd.f32 %v5091, %v5569
        %v5584 = vadd.f32 %v5092, %v5570
        %v5585 = vadd.f32 %v5093, %v5571
        %v5586 = vadd.f32 %v5094, %v5572
        %v5587 = vadd.f32 %v5095, %v5573
        %v5588 = vadd.f32 %v5096, %v5574
        %v5589 = vadd.f32 %v5097, %v5575
        %v5590 = vadd.f32 %v5576, %v5201
        %v5591 = vadd.f32 %v5577, %v5203
        %v5592 = vadd.f32 %v5578, %v5302
        %v5593 = vadd.f32 %v5579, %v5304
        %v5594 = vadd.f32 %v5580, %v5403
        %v5595 = vadd.f32 %v5581, %v5405
        %v5596 = vadd.f32 %v5582, %v5502
        %v5597 = vadd.f32 %v5583, %v5207
        %v5598 = vadd.f32 %v5584, %v5209
        %v5599 = vadd.f32 %v5585, %v5308
        %v5600 = vadd.f32 %v5586, %v5310
        %v5601 = vadd.f32 %v5587, %v5409
        %v5602 = vadd.f32 %v5588, %v5411
        %v5603 = vadd.f32 %v5589, %v5507
        %5604 = vrot.lane.b32.xlu0 %v5213, 127
        %v5605 = vpop.permute.xlu0 %5604
        %5606 = vrot.lane.b32.xlu0 %v5219, 127
        %v5607 = vpop.permute.xlu0 %5606
        %5608 = vrot.lane.b32.xlu0 %v5215, 127
        %v5609 = vpop.permute.xlu0 %5608
        %5610 = vrot.lane.b32.xlu0 %v5221, 127
        %v5611 = vpop.permute.xlu0 %5610
        %5612 = vrot.lane.b32.xlu0 %v5314, 127
        %v5613 = vpop.permute.xlu0 %5612
        %5614 = vrot.lane.b32.xlu0 %v5320, 127
        %v5615 = vpop.permute.xlu0 %5614
        %5616 = vrot.lane.b32.xlu0 %v5316, 127
        %v5617 = vpop.permute.xlu0 %5616
        %5618 = vrot.lane.b32.xlu0 %v5322, 127
        %v5619 = vpop.permute.xlu0 %5618
        %5620 = vrot.lane.b32.xlu0 %v5415, 127
        %v5621 = vpop.permute.xlu0 %5620
        %5622 = vrot.lane.b32.xlu0 %v5421, 127
        %v5623 = vpop.permute.xlu0 %5622
        %5624 = vrot.lane.b32.xlu0 %v5417, 127
        %v5625 = vpop.permute.xlu0 %5624
        %5626 = vrot.lane.b32.xlu0 %v5423, 127
        %v5627 = vpop.permute.xlu0 %5626
        %5628 = vrot.lane.b32.xlu0 %v5512, 127
        %v5629 = vpop.permute.xlu0 %5628
        %5630 = vrot.lane.b32.xlu0 %v5517, 127
        %v5631 = vpop.permute.xlu0 %5630
        %v5632 = vsel %vm1763, %v5625, %v5629
        %v5633 = vsel %vm1763, %v5627, %v5631
        %v5634 = vsel %vm1763, %v5621, %v5625
        %v5635 = vsel %vm1763, %v5623, %v5627
        %v5636 = vsel %vm1763, %v5617, %v5621
        %v5637 = vsel %vm1763, %v5619, %v5623
        %v5638 = vsel %vm1763, %v5613, %v5617
        %v5639 = vsel %vm1763, %v5615, %v5619
        %v5640 = vsel %vm1763, %v5609, %v5613
        %v5641 = vsel %vm1763, %v5611, %v5615
        %v5642 = vsel %vm1763, %v5605, %v5609
        %v5643 = vsel %vm1763, %v5607, %v5611
        %v5644 = vsel %vm1763, %v5629, %v5605
        %v5645 = vsel %vm1763, %v5631, %v5607
        %v5646 = vmul.f32 %v5642, %v1168
        %v5647 = vmul.f32 %v5640, %v1172
        %v5648 = vmul.f32 %v5638, %v1176
        %v5649 = vmul.f32 %v5636, %v1180
        %v5650 = vmul.f32 %v5634, %v1184
        %v5651 = vmul.f32 %v5632, %v1188
        %v5652 = vmul.f32 %v5644, %v1192
        %v5653 = vmul.f32 %v5643, %v1168
        %v5654 = vmul.f32 %v5641, %v1172
        %v5655 = vmul.f32 %v5639, %v1176
        %v5656 = vmul.f32 %v5637, %v1180
        %v5657 = vmul.f32 %v5635, %v1184
        %v5658 = vmul.f32 %v5633, %v1188
        %v5659 = vmul.f32 %v5645, %v1192
        %v5660 = vadd.f32 %v5590, %v5646
        %v5661 = vadd.f32 %v5591, %v5647
        %v5662 = vadd.f32 %v5592, %v5648
        %v5663 = vadd.f32 %v5593, %v5649
        %v5664 = vadd.f32 %v5594, %v5650
        %v5665 = vadd.f32 %v5595, %v5651
        %v5666 = vadd.f32 %v5596, %v5652
        %v5667 = vadd.f32 %v5597, %v5653
        %v5668 = vadd.f32 %v5598, %v5654
        %v5669 = vadd.f32 %v5599, %v5655
        %v5670 = vadd.f32 %v5600, %v5656
        %v5671 = vadd.f32 %v5601, %v5657
        %v5672 = vadd.f32 %v5602, %v5658
        %v5673 = vadd.f32 %v5603, %v5659
        %v5674 = vld [vmem:[%s8 + $0x60] sm:$0xff]
        %v5675 = vld [vmem:[%s8 + $0x68] sm:$0xff]
        %v5676 = vld [vmem:[%s8 + $0x70] sm:$0xff]
        %v5677 = vld [vmem:[%s8 + $0x78] sm:$0xff]
        %v5678 = vld [vmem:[%s8 + $0x80] sm:$0xff]
        %v5679 = vld [vmem:[%s8 + $0x88] sm:$0xff]
        %v5681 = vsel %vm4473, %v5674, 0
        %v5684 = vsel %vm4473, %v5675, 0
        %v5687 = vsel %vm4473, %v5676, 0
        %v5690 = vsel %vm4473, %v5677, 0
        %v5693 = vsel %vm4473, %v5678, 0
        %v5696 = vsel %vm4473, %v5679, 0
        %5698 = vmatprep.subr.mxu0 %v4426
        %5699 = vmatpush1.msra.mxu0 %v4425
        %5700 = vmatprep.subr.mxu0 %v4433
        %5701 = vmatpush1.msra.mxu0 %v4432
        %5702 = vmatprep.subr.mxu0 %v4440
        %5703 = vmatpush1.msra.mxu0 %v4439
        %5704 = vmatprep.subr.mxu0 %v4447
        %5705 = vmatpush1.msra.mxu0 %v4446
        %5706 = vmatprep.subr.mxu0 %v4454
        %5707 = vmatpush1.msra.mxu0 %v4453
        %5708 = vmatprep.subr.mxu0 %v4461
        %5709 = vmatpush1.msra.mxu0 %v4460
        %5710 = vmatprep.subr.mxu0 0.0
        %5711 = vmatpush1.msra.mxu0 0.0
        %5712 = vmatprep.subr.mxu0 0.0
        %5713 = vmatpush1.msra.mxu0 0.0
        %5714 = vmatprep.subr.mxu0 0.0
        %5715 = vmatpush1.msra.mxu0 0.0
        %5716 = vmatprep.subr.mxu0 0.0
        %5717 = vmatpush1.msra.mxu0 0.0
        %5718 = vmatprep.subr.mxu0 0.0
        %5719 = vmatpush1.msra.mxu0 0.0
        %5720 = vmatprep.subr.mxu0 0.0
        %5721 = vmatpush1.msra.mxu0 0.0
        %5722 = vmatprep.subr.mxu0 0.0
        %5723 = vmatpush1.msra.mxu0 0.0
        %5724 = vmatprep.subr.mxu0 0.0
        %5725 = vmatpush1.msra.mxu0 0.0
        %5726 = vmatprep.subr.mxu0 0.0
        %5727 = vmatpush1.msra.mxu0 0.0
        %5728 = vmatprep.subr.mxu0 0.0
        %5729 = vmatpush1.msra.mxu0 0.0
        %5730 = vmatprep.subr.mxu0 0.0
        %5731 = vmatpush1.msra.mxu0 0.0
        %5732 = vmatprep.subr.mxu0 0.0
        %5733 = vmatpush1.msra.mxu0 0.0
        %5734 = vmatprep.subr.mxu0 0.0
        %5735 = vmatpush1.msra.mxu0 0.0
        %5736 = vmatprep.subr.mxu0 0.0
        %5737 = vmatpush1.msra.mxu0 0.0
        %5738 = vmatprep.subr.mxu0 0.0
        %5739 = vmatpush1.msra.mxu0 0.0
        %5740 = vmatprep.subr.mxu0 0.0
        %5741 = vmatpush1.msra.mxu0 0.0
        %5742 = vmatprep.subr.mxu0 0.0
        %5743 = vmatpush1.msra.mxu0 0.0
        %5744 = vmatprep.subr.mxu0 0.0
        %5745 = vmatpush1.msra.mxu0 0.0
        %5746 = vmatprep.subr.mxu0 0.0
        %5747 = vmatpush1.msra.mxu0 0.0
        %5748 = vmatprep.subr.mxu0 0.0
        %5749 = vmatpush1.msra.mxu0 0.0
        %5750 = vmatprep.subr.mxu0 0.0
        %5751 = vmatpush1.msra.mxu0 0.0
        %5752 = vmatprep.subr.mxu0 0.0
        %5753 = vmatpush1.msra.mxu0 0.0
        %5754 = vmatprep.subr.mxu0 0.0
        %5755 = vmatpush1.msra.mxu0 0.0
        %5756 = vmatprep.subr.mxu0 0.0
        %5757 = vmatpush1.msra.mxu0 0.0
        %5758 = vmatprep.subr.mxu0 0.0
        %5759 = vmatpush1.msra.mxu0 0.0
        %5760 = vmatprep.subr.mxu0 0.0
        %5761 = vmatpush1.msra.mxu0 0.0
        %5762 = vmatprep.mubr.f32.mxu0 0.0
        %5763 = vmatmul.mubr.f32.gmra.mrb[0].mxu0 %v5681
        %v5764 = vpop.f32.mrb[0].mxu0
        %v5765 = vadd.f32 0.0, %v5764
        %v5766 = vpop.f32.mrb[0].mxu0
        %v5767 = vadd.f32 0.0, %v5766
        %5768 = vmatprep.mubr.f32.mxu0 0.0
        %5769 = vmatmul.mubr.f32.gmra.mrb[0].mxu0 %v5684
        %v5770 = vpop.f32.mrb[0].mxu0
        %v5771 = vadd.f32 0.0, %v5770
        %v5772 = vpop.f32.mrb[0].mxu0
        %v5773 = vadd.f32 0.0, %v5772
        %5774 = vmatprep.mubr.f32.mxu0 0.0
        %5775 = vmatmul.mubr.f32.gmra.mrb[0].mxu0 %v5687
        %v5776 = vpop.f32.mrb[0].mxu0
        %v5777 = vadd.f32 0.0, %v5776
        %v5778 = vpop.f32.mrb[0].mxu0
        %v5779 = vadd.f32 0.0, %v5778
        %5780 = vmatprep.mubr.f32.mxu0 0.0
        %5781 = vmatmul.mubr.f32.gmra.mrb[0].mxu0 %v5690
        %v5782 = vpop.f32.mrb[0].mxu0
        %v5783 = vadd.f32 0.0, %v5782
        %v5784 = vpop.f32.mrb[0].mxu0
        %v5785 = vadd.f32 0.0, %v5784
        %5786 = vmatprep.mubr.f32.mxu0 0.0
        %5787 = vmatmul.mubr.f32.gmra.mrb[0].mxu0 %v5693
        %v5788 = vpop.f32.mrb[0].mxu0
        %v5789 = vadd.f32 0.0, %v5788
        %v5790 = vpop.f32.mrb[0].mxu0
        %v5791 = vadd.f32 0.0, %v5790
        %5792 = vmatprep.mubr.f32.mxu0 0.0
        %5793 = vmatmul.mubr.f32.gmra.mrb[0].mxu0 %v5696
        %v5794 = vpop.f32.mrb[0].mxu0
        %v5795 = vadd.f32 0.0, %v5794
        %v5796 = vpop.f32.mrb[0].mxu0
        %v5797 = vadd.f32 0.0, %v5796
        %5798 = vdwg.mxu0
        %5799 = vmatprep.subr.mxu0 %v4428
        %5800 = vmatpush1.msra.mxu0 %v4427
        %5801 = vmatprep.subr.mxu0 %v4435
        %5802 = vmatpush1.msra.mxu0 %v4434
        %5803 = vmatprep.subr.mxu0 %v4442
        %5804 = vmatpush1.msra.mxu0 %v4441
        %5805 = vmatprep.subr.mxu0 %v4449
        %5806 = vmatpush1.msra.mxu0 %v4448
        %5807 = vmatprep.subr.mxu0 %v4456
        %5808 = vmatpush1.msra.mxu0 %v4455
        %5809 = vmatprep.subr.mxu0 %v4463
        %5810 = vmatpush1.msra.mxu0 %v4462
        %5811 = vmatprep.subr.mxu0 0.0
        %5812 = vmatpush1.msra.mxu0 0.0
        %5813 = vmatprep.subr.mxu0 0.0
        %5814 = vmatpush1.msra.mxu0 0.0
        %5815 = vmatprep.subr.mxu0 0.0
        %5816 = vmatpush1.msra.mxu0 0.0
        %5817 = vmatprep.subr.mxu0 0.0
        %5818 = vmatpush1.msra.mxu0 0.0
        %5819 = vmatprep.subr.mxu0 0.0
        %5820 = vmatpush1.msra.mxu0 0.0
        %5821 = vmatprep.subr.mxu0 0.0
        %5822 = vmatpush1.msra.mxu0 0.0
        %5823 = vmatprep.subr.mxu0 0.0
        %5824 = vmatpush1.msra.mxu0 0.0
        %5825 = vmatprep.subr.mxu0 0.0
        %5826 = vmatpush1.msra.mxu0 0.0
        %5827 = vmatprep.subr.mxu0 0.0
        %5828 = vmatpush1.msra.mxu0 0.0
        %5829 = vmatprep.subr.mxu0 0.0
        %5830 = vmatpush1.msra.mxu0 0.0
        %5831 = vmatprep.subr.mxu0 0.0
        %5832 = vmatpush1.msra.mxu0 0.0
        %5833 = vmatprep.subr.mxu0 0.0
        %5834 = vmatpush1.msra.mxu0 0.0
        %5835 = vmatprep.subr.mxu0 0.0
        %5836 = vmatpush1.msra.mxu0 0.0
        %5837 = vmatprep.subr.mxu0 0.0
        %5838 = vmatpush1.msra.mxu0 0.0
        %5839 = vmatprep.subr.mxu0 0.0
        %5840 = vmatpush1.msra.mxu0 0.0
        %5841 = vmatprep.subr.mxu0 0.0
        %5842 = vmatpush1.msra.mxu0 0.0
        %5843 = vmatprep.subr.mxu0 0.0
        %5844 = vmatpush1.msra.mxu0 0.0
        %5845 = vmatprep.subr.mxu0 0.0
        %5846 = vmatpush1.msra.mxu0 0.0
        %5847 = vmatprep.subr.mxu0 0.0
        %5848 = vmatpush1.msra.mxu0 0.0
        %5849 = vmatprep.subr.mxu0 0.0
        %5850 = vmatpush1.msra.mxu0 0.0
        %5851 = vmatprep.subr.mxu0 0.0
        %5852 = vmatpush1.msra.mxu0 0.0
        %5853 = vmatprep.subr.mxu0 0.0
        %5854 = vmatpush1.msra.mxu0 0.0
        %5855 = vmatprep.subr.mxu0 0.0
        %5856 = vmatpush1.msra.mxu0 0.0
        %5857 = vmatprep.subr.mxu0 0.0
        %5858 = vmatpush1.msra.mxu0 0.0
        %5859 = vmatprep.subr.mxu0 0.0
        %5860 = vmatpush1.msra.mxu0 0.0
        %5861 = vmatprep.subr.mxu0 0.0
        %5862 = vmatpush1.msra.mxu0 0.0
        %5863 = vmatprep.mubr.f32.mxu0 0.0
        %5864 = vmatmul.mubr.f32.gmra.mrb[0].mxu0 %v5681
        %v5865 = vpop.f32.mrb[0].mxu0
        %v5866 = vadd.f32 0.0, %v5865
        %v5867 = vpop.f32.mrb[0].mxu0
        %v5868 = vadd.f32 0.0, %v5867
        %5869 = vmatprep.mubr.f32.mxu0 0.0
        %5870 = vmatmul.mubr.f32.gmra.mrb[0].mxu0 %v5684
        %v5871 = vpop.f32.mrb[0].mxu0
        %v5872 = vadd.f32 0.0, %v5871
        %v5873 = vpop.f32.mrb[0].mxu0
        %v5874 = vadd.f32 0.0, %v5873
        %5875 = vmatprep.mubr.f32.mxu0 0.0
        %5876 = vmatmul.mubr.f32.gmra.mrb[0].mxu0 %v5687
        %v5877 = vpop.f32.mrb[0].mxu0
        %v5878 = vadd.f32 0.0, %v5877
        %v5879 = vpop.f32.mrb[0].mxu0
        %v5880 = vadd.f32 0.0, %v5879
        %5881 = vmatprep.mubr.f32.mxu0 0.0
        %5882 = vmatmul.mubr.f32.gmra.mrb[0].mxu0 %v5690
        %v5883 = vpop.f32.mrb[0].mxu0
        %v5884 = vadd.f32 0.0, %v5883
        %v5885 = vpop.f32.mrb[0].mxu0
        %v5886 = vadd.f32 0.0, %v5885
        %5887 = vmatprep.mubr.f32.mxu0 0.0
        %5888 = vmatmul.mubr.f32.gmra.mrb[0].mxu0 %v5693
        %v5889 = vpop.f32.mrb[0].mxu0
        %v5890 = vadd.f32 0.0, %v5889
        %v5891 = vpop.f32.mrb[0].mxu0
        %v5892 = vadd.f32 0.0, %v5891
        %5893 = vmatprep.mubr.f32.mxu0 0.0
        %5894 = vmatmul.mubr.f32.gmra.mrb[0].mxu0 %v5696
        %v5895 = vpop.f32.mrb[0].mxu0
        %v5896 = vadd.f32 0.0, %v5895
        %v5897 = vpop.f32.mrb[0].mxu0
        %v5898 = vadd.f32 0.0, %v5897
        %5899 = vdwg.mxu0
        %5900 = vmatprep.subr.mxu0 %v4430
        %5901 = vmatpush1.msra.mxu0 %v4429
        %5902 = vmatprep.subr.mxu0 %v4437
        %5903 = vmatpush1.msra.mxu0 %v4436
        %5904 = vmatprep.subr.mxu0 %v4444
        %5905 = vmatpush1.msra.mxu0 %v4443
        %5906 = vmatprep.subr.mxu0 %v4451
        %5907 = vmatpush1.msra.mxu0 %v4450
        %5908 = vmatprep.subr.mxu0 %v4458
        %5909 = vmatpush1.msra.mxu0 %v4457
        %5910 = vmatprep.subr.mxu0 %v4465
        %5911 = vmatpush1.msra.mxu0 %v4464
        %5912 = vmatprep.subr.mxu0 0.0
        %5913 = vmatpush1.msra.mxu0 0.0
        %5914 = vmatprep.subr.mxu0 0.0
        %5915 = vmatpush1.msra.mxu0 0.0
        %5916 = vmatprep.subr.mxu0 0.0
        %5917 = vmatpush1.msra.mxu0 0.0
        %5918 = vmatprep.subr.mxu0 0.0
        %5919 = vmatpush1.msra.mxu0 0.0
        %5920 = vmatprep.subr.mxu0 0.0
        %5921 = vmatpush1.msra.mxu0 0.0
        %5922 = vmatprep.subr.mxu0 0.0
        %5923 = vmatpush1.msra.mxu0 0.0
        %5924 = vmatprep.subr.mxu0 0.0
        %5925 = vmatpush1.msra.mxu0 0.0
        %5926 = vmatprep.subr.mxu0 0.0
        %5927 = vmatpush1.msra.mxu0 0.0
        %5928 = vmatprep.subr.mxu0 0.0
        %5929 = vmatpush1.msra.mxu0 0.0
        %5930 = vmatprep.subr.mxu0 0.0
        %5931 = vmatpush1.msra.mxu0 0.0
        %5932 = vmatprep.subr.mxu0 0.0
        %5933 = vmatpush1.msra.mxu0 0.0
        %5934 = vmatprep.subr.mxu0 0.0
        %5935 = vmatpush1.msra.mxu0 0.0
        %5936 = vmatprep.subr.mxu0 0.0
        %5937 = vmatpush1.msra.mxu0 0.0
        %5938 = vmatprep.subr.mxu0 0.0
        %5939 = vmatpush1.msra.mxu0 0.0
        %5940 = vmatprep.subr.mxu0 0.0
        %5941 = vmatpush1.msra.mxu0 0.0
        %5942 = vmatprep.subr.mxu0 0.0
        %5943 = vmatpush1.msra.mxu0 0.0
        %5944 = vmatprep.subr.mxu0 0.0
        %5945 = vmatpush1.msra.mxu0 0.0
        %5946 = vmatprep.subr.mxu0 0.0
        %5947 = vmatpush1.msra.mxu0 0.0
        %5948 = vmatprep.subr.mxu0 0.0
        %5949 = vmatpush1.msra.mxu0 0.0
        %5950 = vmatprep.subr.mxu0 0.0
        %5951 = vmatpush1.msra.mxu0 0.0
        %5952 = vmatprep.subr.mxu0 0.0
        %5953 = vmatpush1.msra.mxu0 0.0
        %5954 = vmatprep.subr.mxu0 0.0
        %5955 = vmatpush1.msra.mxu0 0.0
        %5956 = vmatprep.subr.mxu0 0.0
        %5957 = vmatpush1.msra.mxu0 0.0
        %5958 = vmatprep.subr.mxu0 0.0
        %5959 = vmatpush1.msra.mxu0 0.0
        %5960 = vmatprep.subr.mxu0 0.0
        %5961 = vmatpush1.msra.mxu0 0.0
        %5962 = vmatprep.subr.mxu0 0.0
        %5963 = vmatpush1.msra.mxu0 0.0
        %5964 = vmatprep.mubr.f32.mxu0 0.0
        %5965 = vmatmul.mubr.f32.gmra.mrb[0].mxu0 %v5681
        %v5966 = vpop.f32.mrb[0].mxu0
        %v5967 = vadd.f32 0.0, %v5966
        %v5968 = vpop.f32.mrb[0].mxu0
        %v5969 = vadd.f32 0.0, %v5968
        %5970 = vmatprep.mubr.f32.mxu0 0.0
        %5971 = vmatmul.mubr.f32.gmra.mrb[0].mxu0 %v5684
        %v5972 = vpop.f32.mrb[0].mxu0
        %v5973 = vadd.f32 0.0, %v5972
        %v5974 = vpop.f32.mrb[0].mxu0
        %v5975 = vadd.f32 0.0, %v5974
        %5976 = vmatprep.mubr.f32.mxu0 0.0
        %5977 = vmatmul.mubr.f32.gmra.mrb[0].mxu0 %v5687
        %v5978 = vpop.f32.mrb[0].mxu0
        %v5979 = vadd.f32 0.0, %v5978
        %v5980 = vpop.f32.mrb[0].mxu0
        %v5981 = vadd.f32 0.0, %v5980
        %5982 = vmatprep.mubr.f32.mxu0 0.0
        %5983 = vmatmul.mubr.f32.gmra.mrb[0].mxu0 %v5690
        %v5984 = vpop.f32.mrb[0].mxu0
        %v5985 = vadd.f32 0.0, %v5984
        %v5986 = vpop.f32.mrb[0].mxu0
        %v5987 = vadd.f32 0.0, %v5986
        %5988 = vmatprep.mubr.f32.mxu0 0.0
        %5989 = vmatmul.mubr.f32.gmra.mrb[0].mxu0 %v5693
        %v5990 = vpop.f32.mrb[0].mxu0
        %v5991 = vadd.f32 0.0, %v5990
        %v5992 = vpop.f32.mrb[0].mxu0
        %v5993 = vadd.f32 0.0, %v5992
        %5994 = vmatprep.mubr.f32.mxu0 0.0
        %5995 = vmatmul.mubr.f32.gmra.mrb[0].mxu0 %v5696
        %v5996 = vpop.f32.mrb[0].mxu0
        %v5997 = vadd.f32 0.0, %v5996
        %v5998 = vpop.f32.mrb[0].mxu0
        %v5999 = vadd.f32 0.0, %v5998
        %6000 = vdwg.mxu0
        %6001 = vmatprep.subr.mxu0 0.0
        %6002 = vmatpush1.msra.mxu0 %v4431
        %6003 = vmatprep.subr.mxu0 0.0
        %6004 = vmatpush1.msra.mxu0 %v4438
        %6005 = vmatprep.subr.mxu0 0.0
        %6006 = vmatpush1.msra.mxu0 %v4445
        %6007 = vmatprep.subr.mxu0 0.0
        %6008 = vmatpush1.msra.mxu0 %v4452
        %6009 = vmatprep.subr.mxu0 0.0
        %6010 = vmatpush1.msra.mxu0 %v4459
        %6011 = vmatprep.subr.mxu0 0.0
        %6012 = vmatpush1.msra.mxu0 %v4466
        %6013 = vmatprep.subr.mxu0 0.0
        %6014 = vmatpush1.msra.mxu0 0.0
        %6015 = vmatprep.subr.mxu0 0.0
        %6016 = vmatpush1.msra.mxu0 0.0
        %6017 = vmatprep.subr.mxu0 0.0
        %6018 = vmatpush1.msra.mxu0 0.0
        %6019 = vmatprep.subr.mxu0 0.0
        %6020 = vmatpush1.msra.mxu0 0.0
        %6021 = vmatprep.subr.mxu0 0.0
        %6022 = vmatpush1.msra.mxu0 0.0
        %6023 = vmatprep.subr.mxu0 0.0
        %6024 = vmatpush1.msra.mxu0 0.0
        %6025 = vmatprep.subr.mxu0 0.0
        %6026 = vmatpush1.msra.mxu0 0.0
        %6027 = vmatprep.subr.mxu0 0.0
        %6028 = vmatpush1.msra.mxu0 0.0
        %6029 = vmatprep.subr.mxu0 0.0
        %6030 = vmatpush1.msra.mxu0 0.0
        %6031 = vmatprep.subr.mxu0 0.0
        %6032 = vmatpush1.msra.mxu0 0.0
        %6033 = vmatprep.subr.mxu0 0.0
        %6034 = vmatpush1.msra.mxu0 0.0
        %6035 = vmatprep.subr.mxu0 0.0
        %6036 = vmatpush1.msra.mxu0 0.0
        %6037 = vmatprep.subr.mxu0 0.0
        %6038 = vmatpush1.msra.mxu0 0.0
        %6039 = vmatprep.subr.mxu0 0.0
        %6040 = vmatpush1.msra.mxu0 0.0
        %6041 = vmatprep.subr.mxu0 0.0
        %6042 = vmatpush1.msra.mxu0 0.0
        %6043 = vmatprep.subr.mxu0 0.0
        %6044 = vmatpush1.msra.mxu0 0.0
        %6045 = vmatprep.subr.mxu0 0.0
        %6046 = vmatpush1.msra.mxu0 0.0
        %6047 = vmatprep.subr.mxu0 0.0
        %6048 = vmatpush1.msra.mxu0 0.0
        %6049 = vmatprep.subr.mxu0 0.0
        %6050 = vmatpush1.msra.mxu0 0.0
        %6051 = vmatprep.subr.mxu0 0.0
        %6052 = vmatpush1.msra.mxu0 0.0
        %6053 = vmatprep.subr.mxu0 0.0
        %6054 = vmatpush1.msra.mxu0 0.0
        %6055 = vmatprep.subr.mxu0 0.0
        %6056 = vmatpush1.msra.mxu0 0.0
        %6057 = vmatprep.subr.mxu0 0.0
        %6058 = vmatpush1.msra.mxu0 0.0
        %6059 = vmatprep.subr.mxu0 0.0
        %6060 = vmatpush1.msra.mxu0 0.0
        %6061 = vmatprep.subr.mxu0 0.0
        %6062 = vmatpush1.msra.mxu0 0.0
        %6063 = vmatprep.subr.mxu0 0.0
        %6064 = vmatpush1.msra.mxu0 0.0
        %6065 = vmatprep.mubr.f32.mxu0 0.0
        %6066 = vmatmul.mubr.f32.gmra.mrb[0].mxu0 %v5681
        %v6067 = vpop.f32.mrb[0].mxu0
        %v6068 = vadd.f32 0.0, %v6067
        %v6069 = vpop.f32.mrb[0].mxu0
        %6070 = vmatprep.mubr.f32.mxu0 0.0
        %6071 = vmatmul.mubr.f32.gmra.mrb[0].mxu0 %v5684
        %v6072 = vpop.f32.mrb[0].mxu0
        %v6073 = vadd.f32 0.0, %v6072
        %v6074 = vpop.f32.mrb[0].mxu0
        %6075 = vmatprep.mubr.f32.mxu0 0.0
        %6076 = vmatmul.mubr.f32.gmra.mrb[0].mxu0 %v5687
        %v6077 = vpop.f32.mrb[0].mxu0
        %v6078 = vadd.f32 0.0, %v6077
        %v6079 = vpop.f32.mrb[0].mxu0
        %6080 = vmatprep.mubr.f32.mxu0 0.0
        %6081 = vmatmul.mubr.f32.gmra.mrb[0].mxu0 %v5690
        %v6082 = vpop.f32.mrb[0].mxu0
        %v6083 = vadd.f32 0.0, %v6082
        %v6084 = vpop.f32.mrb[0].mxu0
        %6085 = vmatprep.mubr.f32.mxu0 0.0
        %6086 = vmatmul.mubr.f32.gmra.mrb[0].mxu0 %v5693
        %v6087 = vpop.f32.mrb[0].mxu0
        %v6088 = vadd.f32 0.0, %v6087
        %v6089 = vpop.f32.mrb[0].mxu0
        %6090 = vmatprep.mubr.f32.mxu0 0.0
        %6091 = vmatmul.mubr.f32.gmra.mrb[0].mxu0 %v5696
        %v6092 = vpop.f32.mrb[0].mxu0
        %v6093 = vadd.f32 0.0, %v6092
        %v6094 = vpop.f32.mrb[0].mxu0
        %6095 = vdwg.mxu0
        %6096 = vrot.lane.b32.xlu0 %v5765, 65
        %v6097 = vpop.permute.xlu0 %6096
        %6098 = vrot.lane.b32.xlu0 %v5771, 65
        %v6099 = vpop.permute.xlu0 %6098
        %6100 = vrot.lane.b32.xlu0 %v5767, 65
        %v6101 = vpop.permute.xlu0 %6100
        %6102 = vrot.lane.b32.xlu0 %v5773, 65
        %v6103 = vpop.permute.xlu0 %6102
        %6104 = vrot.lane.b32.xlu0 %v5866, 65
        %v6105 = vpop.permute.xlu0 %6104
        %6106 = vrot.lane.b32.xlu0 %v5872, 65
        %v6107 = vpop.permute.xlu0 %6106
        %6108 = vrot.lane.b32.xlu0 %v5868, 65
        %v6109 = vpop.permute.xlu0 %6108
        %6110 = vrot.lane.b32.xlu0 %v5874, 65
        %v6111 = vpop.permute.xlu0 %6110
        %6112 = vrot.lane.b32.xlu0 %v5967, 65
        %v6113 = vpop.permute.xlu0 %6112
        %6114 = vrot.lane.b32.xlu0 %v5973, 65
        %v6115 = vpop.permute.xlu0 %6114
        %6116 = vrot.lane.b32.xlu0 %v5969, 65
        %v6117 = vpop.permute.xlu0 %6116
        %6118 = vrot.lane.b32.xlu0 %v5975, 65
        %v6119 = vpop.permute.xlu0 %6118
        %6120 = vrot.lane.b32.xlu0 %v6068, 65
        %v6121 = vpop.permute.xlu0 %6120
        %6122 = vrot.lane.b32.xlu0 %v6073, 65
        %v6123 = vpop.permute.xlu0 %6122
        %v6124 = vsel %vm973, %v6117, %v6121
        %v6125 = vsel %vm973, %v6119, %v6123
        %v6126 = vsel %vm973, %v6113, %v6117
        %v6127 = vsel %vm973, %v6115, %v6119
        %v6128 = vsel %vm973, %v6109, %v6113
        %v6129 = vsel %vm973, %v6111, %v6115
        %v6130 = vsel %vm973, %v6105, %v6109
        %v6131 = vsel %vm973, %v6107, %v6111
        %v6132 = vsel %vm973, %v6101, %v6105
        %v6133 = vsel %vm973, %v6103, %v6107
        %v6134 = vsel %vm973, %v6097, %v6101
        %v6135 = vsel %vm973, %v6099, %v6103
        %v6136 = vsel %vm973, %v6121, %v6097
        %v6137 = vsel %vm973, %v6123, %v6099
        %v6138 = vmul.f32 %v6134, %v992
        %v6139 = vmul.f32 %v6132, %v996
        %v6140 = vmul.f32 %v6130, %v1000
        %v6141 = vmul.f32 %v6128, %v1004
        %v6142 = vmul.f32 %v6126, %v1008
        %v6143 = vmul.f32 %v6124, %v1012
        %v6144 = vmul.f32 %v6136, %v1016
        %v6145 = vmul.f32 %v6135, %v992
        %v6146 = vmul.f32 %v6133, %v996
        %v6147 = vmul.f32 %v6131, %v1000
        %v6148 = vmul.f32 %v6129, %v1004
        %v6149 = vmul.f32 %v6127, %v1008
        %v6150 = vmul.f32 %v6125, %v1012
        %v6151 = vmul.f32 %v6137, %v1016
        %v6152 = vadd.f32 %v5660, %v6138
        %v6153 = vadd.f32 %v5661, %v6139
        %v6154 = vadd.f32 %v5662, %v6140
        %v6155 = vadd.f32 %v5663, %v6141
        %v6156 = vadd.f32 %v5664, %v6142
        %v6157 = vadd.f32 %v5665, %v6143
        %v6158 = vadd.f32 %v5666, %v6144
        %v6159 = vadd.f32 %v5667, %v6145
        %v6160 = vadd.f32 %v5668, %v6146
        %v6161 = vadd.f32 %v5669, %v6147
        %v6162 = vadd.f32 %v5670, %v6148
        %v6163 = vadd.f32 %v5671, %v6149
        %v6164 = vadd.f32 %v5672, %v6150
        %v6165 = vadd.f32 %v5673, %v6151
        %6166 = vrot.lane.b32.xlu0 %v5777, 64
        %v6167 = vpop.permute.xlu0 %6166
        %6168 = vrot.lane.b32.xlu0 %v5783, 64
        %v6169 = vpop.permute.xlu0 %6168
        %6170 = vrot.lane.b32.xlu0 %v5779, 64
        %v6171 = vpop.permute.xlu0 %6170
        %6172 = vrot.lane.b32.xlu0 %v5785, 64
        %v6173 = vpop.permute.xlu0 %6172
        %6174 = vrot.lane.b32.xlu0 %v5878, 64
        %v6175 = vpop.permute.xlu0 %6174
        %6176 = vrot.lane.b32.xlu0 %v5884, 64
        %v6177 = vpop.permute.xlu0 %6176
        %6178 = vrot.lane.b32.xlu0 %v5880, 64
        %v6179 = vpop.permute.xlu0 %6178
        %6180 = vrot.lane.b32.xlu0 %v5886, 64
        %v6181 = vpop.permute.xlu0 %6180
        %6182 = vrot.lane.b32.xlu0 %v5979, 64
        %v6183 = vpop.permute.xlu0 %6182
        %6184 = vrot.lane.b32.xlu0 %v5985, 64
        %v6185 = vpop.permute.xlu0 %6184
        %6186 = vrot.lane.b32.xlu0 %v5981, 64
        %v6187 = vpop.permute.xlu0 %6186
        %6188 = vrot.lane.b32.xlu0 %v5987, 64
        %v6189 = vpop.permute.xlu0 %6188
        %6190 = vrot.lane.b32.xlu0 %v6078, 64
        %v6191 = vpop.permute.xlu0 %6190
        %6192 = vrot.lane.b32.xlu0 %v6083, 64
        %v6193 = vpop.permute.xlu0 %6192
        %v6194 = vsel %vm1092, %v6187, %v6191
        %v6195 = vsel %vm1092, %v6189, %v6193
        %v6196 = vsel %vm1092, %v6183, %v6187
        %v6197 = vsel %vm1092, %v6185, %v6189
        %v6198 = vsel %vm1092, %v6179, %v6183
        %v6199 = vsel %vm1092, %v6181, %v6185
        %v6200 = vsel %vm1092, %v6175, %v6179
        %v6201 = vsel %vm1092, %v6177, %v6181
        %v6202 = vsel %vm1092, %v6171, %v6175
        %v6203 = vsel %vm1092, %v6173, %v6177
        %v6204 = vsel %vm1092, %v6167, %v6171
        %v6205 = vsel %vm1092, %v6169, %v6173
        %v6206 = vsel %vm1092, %v6191, %v6167
        %v6207 = vsel %vm1092, %v6193, %v6169
        %v6208 = vadd.f32 %v6152, %v6204
        %v6209 = vadd.f32 %v6153, %v6202
        %v6210 = vadd.f32 %v6154, %v6200
        %v6211 = vadd.f32 %v6155, %v6198
        %v6212 = vadd.f32 %v6156, %v6196
        %v6213 = vadd.f32 %v6157, %v6194
        %v6214 = vadd.f32 %v6158, %v6206
        %v6215 = vadd.f32 %v6159, %v6205
        %v6216 = vadd.f32 %v6160, %v6203
        %v6217 = vadd.f32 %v6161, %v6201
        %v6218 = vadd.f32 %v6162, %v6199
        %v6219 = vadd.f32 %v6163, %v6197
        %v6220 = vadd.f32 %v6164, %v6195
        %v6221 = vadd.f32 %v6165, %v6207
        %6222 = vrot.lane.b32.xlu0 %v5789, 63
        %v6223 = vpop.permute.xlu0 %6222
        %6224 = vrot.lane.b32.xlu0 %v5795, 63
        %v6225 = vpop.permute.xlu0 %6224
        %6226 = vrot.lane.b32.xlu0 %v5791, 63
        %v6227 = vpop.permute.xlu0 %6226
        %6228 = vrot.lane.b32.xlu0 %v5797, 63
        %v6229 = vpop.permute.xlu0 %6228
        %6230 = vrot.lane.b32.xlu0 %v5890, 63
        %v6231 = vpop.permute.xlu0 %6230
        %6232 = vrot.lane.b32.xlu0 %v5896, 63
        %v6233 = vpop.permute.xlu0 %6232
        %6234 = vrot.lane.b32.xlu0 %v5892, 63
        %v6235 = vpop.permute.xlu0 %6234
        %6236 = vrot.lane.b32.xlu0 %v5898, 63
        %v6237 = vpop.permute.xlu0 %6236
        %6238 = vrot.lane.b32.xlu0 %v5991, 63
        %v6239 = vpop.permute.xlu0 %6238
        %6240 = vrot.lane.b32.xlu0 %v5997, 63
        %v6241 = vpop.permute.xlu0 %6240
        %6242 = vrot.lane.b32.xlu0 %v5993, 63
        %v6243 = vpop.permute.xlu0 %6242
        %6244 = vrot.lane.b32.xlu0 %v5999, 63
        %v6245 = vpop.permute.xlu0 %6244
        %6246 = vrot.lane.b32.xlu0 %v6088, 63
        %v6247 = vpop.permute.xlu0 %6246
        %6248 = vrot.lane.b32.xlu0 %v6093, 63
        %v6249 = vpop.permute.xlu0 %6248
        %v6250 = vsel %vm1149, %v6243, %v6247
        %v6251 = vsel %vm1149, %v6245, %v6249
        %v6252 = vsel %vm1149, %v6239, %v6243
        %v6253 = vsel %vm1149, %v6241, %v6245
        %v6254 = vsel %vm1149, %v6235, %v6239
        %v6255 = vsel %vm1149, %v6237, %v6241
        %v6256 = vsel %vm1149, %v6231, %v6235
        %v6257 = vsel %vm1149, %v6233, %v6237
        %v6258 = vsel %vm1149, %v6227, %v6231
        %v6259 = vsel %vm1149, %v6229, %v6233
        %v6260 = vsel %vm1149, %v6223, %v6227
        %v6261 = vsel %vm1149, %v6225, %v6229
        %v6262 = vsel %vm1149, %v6247, %v6223
        %v6263 = vsel %vm1149, %v6249, %v6225
        %v6264 = vmul.f32 %v6260, %v1168
        %v6265 = vmul.f32 %v6258, %v1172
        %v6266 = vmul.f32 %v6256, %v1176
        %v6267 = vmul.f32 %v6254, %v1180
        %v6268 = vmul.f32 %v6252, %v1184
        %v6269 = vmul.f32 %v6250, %v1188
        %v6270 = vmul.f32 %v6262, %v1192
        %v6271 = vmul.f32 %v6261, %v1168
        %v6272 = vmul.f32 %v6259, %v1172
        %v6273 = vmul.f32 %v6257, %v1176
        %v6274 = vmul.f32 %v6255, %v1180
        %v6275 = vmul.f32 %v6253, %v1184
        %v6276 = vmul.f32 %v6251, %v1188
        %v6277 = vmul.f32 %v6263, %v1192
        %v6278 = vadd.f32 %v6208, %v6264
        %v6279 = vadd.f32 %v6209, %v6265
        %v6280 = vadd.f32 %v6210, %v6266
        %v6281 = vadd.f32 %v6211, %v6267
        %v6282 = vadd.f32 %v6212, %v6268
        %v6283 = vadd.f32 %v6213, %v6269
        %v6284 = vadd.f32 %v6214, %v6270
        %v6285 = vadd.f32 %v6215, %v6271
        %v6286 = vadd.f32 %v6216, %v6272
        %v6287 = vadd.f32 %v6217, %v6273
        %v6288 = vadd.f32 %v6218, %v6274
        %v6289 = vadd.f32 %v6219, %v6275
        %v6290 = vadd.f32 %v6220, %v6276
        %v6291 = vadd.f32 %v6221, %v6277
        %v6292 = vmul.f32 %v6278, 0.1
        %v6293 = vmul.f32 %v6279, 0.1
        %v6294 = vmul.f32 %v6280, 0.1
        %v6295 = vmul.f32 %v6281, 0.1
        %v6296 = vmul.f32 %v6282, 0.1
        %v6297 = vmul.f32 %v6283, 0.1
        %v6298 = vmul.f32 %v6284, 0.1
        %v6299 = vmul.f32 %v6285, 0.1
        %v6300 = vmul.f32 %v6286, 0.1
        %v6301 = vmul.f32 %v6287, 0.1
        %v6302 = vmul.f32 %v6288, 0.1
        %v6303 = vmul.f32 %v6289, 0.1
        %v6304 = vmul.f32 %v6290, 0.1
        %v6305 = vmul.f32 %v6291, 0.1
        %v6306 = vmax.f32 %v6278, %v6292
        %v6307 = vmax.f32 %v6279, %v6293
        %v6308 = vmax.f32 %v6280, %v6294
        %v6309 = vmax.f32 %v6281, %v6295
        %v6310 = vmax.f32 %v6282, %v6296
        %v6311 = vmax.f32 %v6283, %v6297
        %v6312 = vmax.f32 %v6284, %v6298
        %v6313 = vmax.f32 %v6285, %v6299
        %v6314 = vmax.f32 %v6286, %v6300
        %v6315 = vmax.f32 %v6287, %v6301
        %v6316 = vmax.f32 %v6288, %v6302
        %v6317 = vmax.f32 %v6289, %v6303
        %v6318 = vmax.f32 %v6290, %v6304
        %v6319 = vmax.f32 %v6291, %v6305
        %v6320 = vmul.f32 %v6306, %v2456
        %v6321 = vmul.f32 %v6307, %v2460
        %v6322 = vmul.f32 %v6308, %v2464
        %v6323 = vmul.f32 %v6309, %v2468
        %v6324 = vmul.f32 %v6310, %v2472
        %v6325 = vmul.f32 %v6311, %v2476
        %v6326 = vmul.f32 %v6312, %v2480
        %v6327 = vmul.f32 %v6313, %v2456
        %v6328 = vmul.f32 %v6314, %v2460
        %v6329 = vmul.f32 %v6315, %v2464
        %v6330 = vmul.f32 %v6316, %v2468
        %v6331 = vmul.f32 %v6317, %v2472
        %v6332 = vmul.f32 %v6318, %v2476
        %v6333 = vmul.f32 %v6319, %v2480
        %6334 = vst [vmem:[#allocation2 + $0x150] sm:$0xff] %v6320
        %6335 = vst [vmem:[#allocation2 + $0x158] sm:$0xff] %v6321
        %6336 = vst [vmem:[#allocation2 + $0x160] sm:$0xff] %v6322
        %6337 = vst [vmem:[#allocation2 + $0x168] sm:$0xff] %v6323
        %6338 = vst [vmem:[#allocation2 + $0x170] sm:$0xff] %v6324
        %6339 = vst [vmem:[#allocation2 + $0x178] sm:$0xff] %v6325
        %6340 = vst [vmem:[#allocation2 + $0x180] sm:$0xff] %v6326
        %6341 = vst [vmem:[#allocation2 + $0x188] sm:$0xff] %v6327
        %6342 = vst [vmem:[#allocation2 + $0x190] sm:$0xff] %v6328
        %6343 = vst [vmem:[#allocation2 + $0x198] sm:$0xff] %v6329
        %6344 = vst [vmem:[#allocation2 + $0x1a0] sm:$0xff] %v6330
        %6345 = vst [vmem:[#allocation2 + $0x1a8] sm:$0xff] %v6331
        %6346 = vst [vmem:[#allocation2 + $0x1b0] sm:$0xff] %v6332
        %6347 = vst [vmem:[#allocation2 + $0x1b8] sm:$0xff] %v6333
        %v6348 = vld [vmem:[#allocation2 + $0x8] sm:$0xff]
        %v6349 = vld [vmem:[#allocation2 + $0x10] sm:$0xff]
        %v6350 = vld [vmem:[#allocation2 + $0x18] sm:$0xff]
        %v6351 = vld [vmem:[#allocation2 + $0x20] sm:$0xff]
        %v6352 = vld [vmem:[#allocation2 + $0x28] sm:$0xff]
        %v6353 = vld [vmem:[#allocation2 + $0x40] sm:$0xff]
        %v6354 = vld [vmem:[#allocation2 + $0x48] sm:$0xff]
        %v6355 = vld [vmem:[#allocation2 + $0x50] sm:$0xff]
        %v6356 = vld [vmem:[#allocation2 + $0x58] sm:$0xff]
        %v6357 = vld [vmem:[#allocation2 + $0x60] sm:$0xff]
        %v6358 = vld [vmem:[#allocation2 + $0x78] sm:$0xff]
        %v6359 = vld [vmem:[#allocation2 + $0x80] sm:$0xff]
        %v6360 = vld [vmem:[#allocation2 + $0x88] sm:$0xff]
        %v6361 = vld [vmem:[#allocation2 + $0x90] sm:$0xff]
        %v6362 = vld [vmem:[#allocation2 + $0x98] sm:$0xff]
        %v6363 = vld [vmem:[#allocation2 + $0xb0] sm:$0xff]
        %v6364 = vld [vmem:[#allocation2 + $0xb8] sm:$0xff]
        %v6365 = vld [vmem:[#allocation2 + $0xc0] sm:$0xff]
        %v6366 = vld [vmem:[#allocation2 + $0xc8] sm:$0xff]
        %v6367 = vld [vmem:[#allocation2 + $0xd0] sm:$0xff]
        %v6368 = vld [vmem:[#allocation2 + $0xe8] sm:$0xff]
        %v6369 = vld [vmem:[#allocation2 + $0xf0] sm:$0xff]
        %v6370 = vld [vmem:[#allocation2 + $0xf8] sm:$0xff]
        %v6371 = vld [vmem:[#allocation2 + $0x100] sm:$0xff]
        %v6372 = vld [vmem:[#allocation2 + $0x108] sm:$0xff]
        %v6373 = vld [vmem:[#allocation2 + $0x120] sm:$0xff]
        %v6374 = vld [vmem:[#allocation2 + $0x128] sm:$0xff]
        %v6375 = vld [vmem:[#allocation2 + $0x130] sm:$0xff]
        %v6376 = vld [vmem:[#allocation2 + $0x138] sm:$0xff]
        %v6377 = vld [vmem:[#allocation2 + $0x140] sm:$0xff]
        %v6378 = vld [vmem:[#allocation2 + $0x158] sm:$0xff]
        %v6379 = vld [vmem:[#allocation2 + $0x160] sm:$0xff]
        %v6380 = vld [vmem:[#allocation2 + $0x168] sm:$0xff]
        %v6381 = vld [vmem:[#allocation2 + $0x170] sm:$0xff]
        %v6382 = vld [vmem:[#allocation2 + $0x178] sm:$0xff]
        %v6383 = vld [vmem:[#allocation2 + $0x190] sm:$0xff]
        %v6384 = vld [vmem:[#allocation2 + $0x198] sm:$0xff]
        %v6385 = vld [vmem:[#allocation2 + $0x1a0] sm:$0xff]
        %v6386 = vld [vmem:[#allocation2 + $0x1a8] sm:$0xff]
        %v6387 = vld [vmem:[#allocation2 + $0x1b0] sm:$0xff]
        %v6388 = vld [vmem:[%s10] sm:$0xff]
        %v6389 = vld [vmem:[%s10 + $0x8] sm:$0xff]
        %v6390 = vld [vmem:[%s11] sm:$0xff]
        %v6391 = vld [vmem:[%s11 + $0x8] sm:$0xff]
        %6393 = vset.pattern.permute.xlu0 0
        %6394 = vperm.xlu0 %6393, %v6390
        %v6395 = vpop.permute.xlu0 %6394
        %6398 = vset.pattern.permute.xlu0 0
        %6399 = vperm.xlu0 %6398, %v6391
        %v6400 = vpop.permute.xlu0 %6399
        %6442 = vrot.lane.b32.xlu0 %v6348, 64
        %v6443 = vpop.permute.xlu0 %6442
        %6444 = vrot.lane.b32.xlu0 %v6349, 64
        %v6445 = vpop.permute.xlu0 %6444
        %6446 = vrot.lane.b32.xlu0 %v6350, 64
        %v6447 = vpop.permute.xlu0 %6446
        %6448 = vrot.lane.b32.xlu0 %v6351, 64
        %v6449 = vpop.permute.xlu0 %6448
        %6450 = vrot.lane.b32.xlu0 %v6352, 64
        %v6451 = vpop.permute.xlu0 %6450
        %6452 = vrot.lane.b32.xlu0 %v6353, 64
        %v6453 = vpop.permute.xlu0 %6452
        %6454 = vrot.lane.b32.xlu0 %v6354, 64
        %v6455 = vpop.permute.xlu0 %6454
        %6456 = vrot.lane.b32.xlu0 %v6355, 64
        %v6457 = vpop.permute.xlu0 %6456
        %6458 = vrot.lane.b32.xlu0 %v6356, 64
        %v6459 = vpop.permute.xlu0 %6458
        %6460 = vrot.lane.b32.xlu0 %v6357, 64
        %v6461 = vpop.permute.xlu0 %6460
        %6462 = vrot.lane.b32.xlu0 %v6358, 64
        %v6463 = vpop.permute.xlu0 %6462
        %6464 = vrot.lane.b32.xlu0 %v6359, 64
        %v6465 = vpop.permute.xlu0 %6464
        %6466 = vrot.lane.b32.xlu0 %v6360, 64
        %v6467 = vpop.permute.xlu0 %6466
        %6468 = vrot.lane.b32.xlu0 %v6361, 64
        %v6469 = vpop.permute.xlu0 %6468
        %6470 = vrot.lane.b32.xlu0 %v6362, 64
        %v6471 = vpop.permute.xlu0 %6470
        %6472 = vrot.lane.b32.xlu0 %v6363, 64
        %v6473 = vpop.permute.xlu0 %6472
        %6474 = vrot.lane.b32.xlu0 %v6364, 64
        %v6475 = vpop.permute.xlu0 %6474
        %6476 = vrot.lane.b32.xlu0 %v6365, 64
        %v6477 = vpop.permute.xlu0 %6476
        %6478 = vrot.lane.b32.xlu0 %v6366, 64
        %v6479 = vpop.permute.xlu0 %6478
        %6480 = vrot.lane.b32.xlu0 %v6367, 64
        %v6481 = vpop.permute.xlu0 %6480
        %6482 = vrot.lane.b32.xlu0 %v6368, 64
        %v6483 = vpop.permute.xlu0 %6482
        %6484 = vrot.lane.b32.xlu0 %v6369, 64
        %v6485 = vpop.permute.xlu0 %6484
        %6486 = vrot.lane.b32.xlu0 %v6370, 64
        %v6487 = vpop.permute.xlu0 %6486
        %6488 = vrot.lane.b32.xlu0 %v6371, 64
        %v6489 = vpop.permute.xlu0 %6488
        %6490 = vrot.lane.b32.xlu0 %v6372, 64
        %v6491 = vpop.permute.xlu0 %6490
        %6492 = vrot.lane.b32.xlu0 %v6373, 64
        %v6493 = vpop.permute.xlu0 %6492
        %6494 = vrot.lane.b32.xlu0 %v6374, 64
        %v6495 = vpop.permute.xlu0 %6494
        %6496 = vrot.lane.b32.xlu0 %v6375, 64
        %v6497 = vpop.permute.xlu0 %6496
        %6498 = vrot.lane.b32.xlu0 %v6376, 64
        %v6499 = vpop.permute.xlu0 %6498
        %6500 = vrot.lane.b32.xlu0 %v6377, 64
        %v6501 = vpop.permute.xlu0 %6500
        %6502 = vrot.lane.b32.xlu0 %v6378, 64
        %v6503 = vpop.permute.xlu0 %6502
        %6504 = vrot.lane.b32.xlu0 %v6379, 64
        %v6505 = vpop.permute.xlu0 %6504
        %6506 = vrot.lane.b32.xlu0 %v6380, 64
        %v6507 = vpop.permute.xlu0 %6506
        %6508 = vrot.lane.b32.xlu0 %v6381, 64
        %v6509 = vpop.permute.xlu0 %6508
        %6510 = vrot.lane.b32.xlu0 %v6382, 64
        %v6511 = vpop.permute.xlu0 %6510
        %6512 = vrot.lane.b32.xlu0 %v6383, 64
        %v6513 = vpop.permute.xlu0 %6512
        %6514 = vrot.lane.b32.xlu0 %v6384, 64
        %v6515 = vpop.permute.xlu0 %6514
        %6516 = vrot.lane.b32.xlu0 %v6385, 64
        %v6517 = vpop.permute.xlu0 %6516
        %6518 = vrot.lane.b32.xlu0 %v6386, 64
        %v6519 = vpop.permute.xlu0 %6518
        %6520 = vrot.lane.b32.xlu0 %v6387, 64
        %v6521 = vpop.permute.xlu0 %6520
        %vm6522 = vcmask 523264
        %v6523 = vsel %vm6522, %v6443, %v6445
        %v6524 = vsel %vm6522, %v6445, %v6447
        %v6525 = vsel %vm6522, %v6447, %v6449
        %v6526 = vsel %vm6522, %v6449, %v6451
        %v6527 = vsel %vm6522, %v6453, %v6455
        %v6528 = vsel %vm6522, %v6455, %v6457
        %v6529 = vsel %vm6522, %v6457, %v6459
        %v6530 = vsel %vm6522, %v6459, %v6461
        %v6531 = vsel %vm6522, %v6463, %v6465
        %v6532 = vsel %vm6522, %v6465, %v6467
        %v6533 = vsel %vm6522, %v6467, %v6469
        %v6534 = vsel %vm6522, %v6469, %v6471
        %v6535 = vsel %vm6522, %v6473, %v6475
        %v6536 = vsel %vm6522, %v6475, %v6477
        %v6537 = vsel %vm6522, %v6477, %v6479
        %v6538 = vsel %vm6522, %v6479, %v6481
        %v6539 = vsel %vm6522, %v6483, %v6485
        %v6540 = vsel %vm6522, %v6485, %v6487
        %v6541 = vsel %vm6522, %v6487, %v6489
        %v6542 = vsel %vm6522, %v6489, %v6491
        %v6543 = vsel %vm6522, %v6493, %v6495
        %v6544 = vsel %vm6522, %v6495, %v6497
        %v6545 = vsel %vm6522, %v6497, %v6499
        %v6546 = vsel %vm6522, %v6499, %v6501
        %v6547 = vsel %vm6522, %v6503, %v6505
        %v6548 = vsel %vm6522, %v6505, %v6507
        %v6549 = vsel %vm6522, %v6507, %v6509
        %v6550 = vsel %vm6522, %v6509, %v6511
        %v6551 = vsel %vm6522, %v6513, %v6515
        %v6552 = vsel %vm6522, %v6515, %v6517
        %v6553 = vsel %vm6522, %v6517, %v6519
        %v6554 = vsel %vm6522, %v6519, %v6521
        %v6588 = vsel %vm6522, %v6388, 0
        %v6591 = vsel %vm6522, %v6389, 0
        %6593 = vmatprep.subr.mxu0 %v6524
        %6594 = vmatpush1.msra.mxu0 %v6523
        %6595 = vmatprep.subr.mxu0 %v6528
        %6596 = vmatpush1.msra.mxu0 %v6527
        %6597 = vmatprep.subr.mxu0 %v6532
        %6598 = vmatpush1.msra.mxu0 %v6531
        %6599 = vmatprep.subr.mxu0 %v6536
        %6600 = vmatpush1.msra.mxu0 %v6535
        %6601 = vmatprep.subr.mxu0 %v6540
        %6602 = vmatpush1.msra.mxu0 %v6539
        %6603 = vmatprep.subr.mxu0 %v6544
        %6604 = vmatpush1.msra.mxu0 %v6543
        %6605 = vmatprep.subr.mxu0 %v6548
        %6606 = vmatpush1.msra.mxu0 %v6547
        %6607 = vmatprep.subr.mxu0 %v6552
        %6608 = vmatpush1.msra.mxu0 %v6551
        %6609 = vmatprep.subr.mxu0 0.0
        %6610 = vmatpush1.msra.mxu0 0.0
        %6611 = vmatprep.subr.mxu0 0.0
        %6612 = vmatpush1.msra.mxu0 0.0
        %6613 = vmatprep.subr.mxu0 0.0
        %6614 = vmatpush1.msra.mxu0 0.0
        %6615 = vmatprep.subr.mxu0 0.0
        %6616 = vmatpush1.msra.mxu0 0.0
        %6617 = vmatprep.subr.mxu0 0.0
        %6618 = vmatpush1.msra.mxu0 0.0
        %6619 = vmatprep.subr.mxu0 0.0
        %6620 = vmatpush1.msra.mxu0 0.0
        %6621 = vmatprep.subr.mxu0 0.0
        %6622 = vmatpush1.msra.mxu0 0.0
        %6623 = vmatprep.subr.mxu0 0.0
        %6624 = vmatpush1.msra.mxu0 0.0
        %6625 = vmatprep.subr.mxu0 0.0
        %6626 = vmatpush1.msra.mxu0 0.0
        %6627 = vmatprep.subr.mxu0 0.0
        %6628 = vmatpush1.msra.mxu0 0.0
        %6629 = vmatprep.subr.mxu0 0.0
        %6630 = vmatpush1.msra.mxu0 0.0
        %6631 = vmatprep.subr.mxu0 0.0
        %6632 = vmatpush1.msra.mxu0 0.0
        %6633 = vmatprep.subr.mxu0 0.0
        %6634 = vmatpush1.msra.mxu0 0.0
        %6635 = vmatprep.subr.mxu0 0.0
        %6636 = vmatpush1.msra.mxu0 0.0
        %6637 = vmatprep.subr.mxu0 0.0
        %6638 = vmatpush1.msra.mxu0 0.0
        %6639 = vmatprep.subr.mxu0 0.0
        %6640 = vmatpush1.msra.mxu0 0.0
        %6641 = vmatprep.subr.mxu0 0.0
        %6642 = vmatpush1.msra.mxu0 0.0
        %6643 = vmatprep.subr.mxu0 0.0
        %6644 = vmatpush1.msra.mxu0 0.0
        %6645 = vmatprep.subr.mxu0 0.0
        %6646 = vmatpush1.msra.mxu0 0.0
        %6647 = vmatprep.subr.mxu0 0.0
        %6648 = vmatpush1.msra.mxu0 0.0
        %6649 = vmatprep.subr.mxu0 0.0
        %6650 = vmatpush1.msra.mxu0 0.0
        %6651 = vmatprep.subr.mxu0 0.0
        %6652 = vmatpush1.msra.mxu0 0.0
        %6653 = vmatprep.subr.mxu0 0.0
        %6654 = vmatpush1.msra.mxu0 0.0
        %6655 = vmatprep.subr.mxu0 0.0
        %6656 = vmatpush1.msra.mxu0 0.0
        %6657 = vmatprep.mubr.f32.mxu0 0.0
        %6658 = vmatmul.mubr.f32.gmra.mrb[0].mxu0 %v6588
        %v6659 = vpop.f32.mrb[0].mxu0
        %v6660 = vadd.f32 %v6395, %v6659
        %v6661 = vpop.f32.mrb[0].mxu0
        %v6662 = vadd.f32 %v6395, %v6661
        %6663 = vmatprep.mubr.f32.mxu0 0.0
        %6664 = vmatmul.mubr.f32.gmra.mrb[0].mxu0 %v6591
        %v6665 = vpop.f32.mrb[0].mxu0
        %v6666 = vadd.f32 %v6400, %v6665
        %v6667 = vpop.f32.mrb[0].mxu0
        %v6668 = vadd.f32 %v6400, %v6667
        %6669 = vdwg.mxu0
        %6670 = vmatprep.subr.mxu0 %v6526
        %6671 = vmatpush1.msra.mxu0 %v6525
        %6672 = vmatprep.subr.mxu0 %v6530
        %6673 = vmatpush1.msra.mxu0 %v6529
        %6674 = vmatprep.subr.mxu0 %v6534
        %6675 = vmatpush1.msra.mxu0 %v6533
        %6676 = vmatprep.subr.mxu0 %v6538
        %6677 = vmatpush1.msra.mxu0 %v6537
        %6678 = vmatprep.subr.mxu0 %v6542
        %6679 = vmatpush1.msra.mxu0 %v6541
        %6680 = vmatprep.subr.mxu0 %v6546
        %6681 = vmatpush1.msra.mxu0 %v6545
        %6682 = vmatprep.subr.mxu0 %v6550
        %6683 = vmatpush1.msra.mxu0 %v6549
        %6684 = vmatprep.subr.mxu0 %v6554
        %6685 = vmatpush1.msra.mxu0 %v6553
        %6686 = vmatprep.subr.mxu0 0.0
        %6687 = vmatpush1.msra.mxu0 0.0
        %6688 = vmatprep.subr.mxu0 0.0
        %6689 = vmatpush1.msra.mxu0 0.0
        %6690 = vmatprep.subr.mxu0 0.0
        %6691 = vmatpush1.msra.mxu0 0.0
        %6692 = vmatprep.subr.mxu0 0.0
        %6693 = vmatpush1.msra.mxu0 0.0
        %6694 = vmatprep.subr.mxu0 0.0
        %6695 = vmatpush1.msra.mxu0 0.0
        %6696 = vmatprep.subr.mxu0 0.0
        %6697 = vmatpush1.msra.mxu0 0.0
        %6698 = vmatprep.subr.mxu0 0.0
        %6699 = vmatpush1.msra.mxu0 0.0
        %6700 = vmatprep.subr.mxu0 0.0
        %6701 = vmatpush1.msra.mxu0 0.0
        %6702 = vmatprep.subr.mxu0 0.0
        %6703 = vmatpush1.msra.mxu0 0.0
        %6704 = vmatprep.subr.mxu0 0.0
        %6705 = vmatpush1.msra.mxu0 0.0
        %6706 = vmatprep.subr.mxu0 0.0
        %6707 = vmatpush1.msra.mxu0 0.0
        %6708 = vmatprep.subr.mxu0 0.0
        %6709 = vmatpush1.msra.mxu0 0.0
        %6710 = vmatprep.subr.mxu0 0.0
        %6711 = vmatpush1.msra.mxu0 0.0
        %6712 = vmatprep.subr.mxu0 0.0
        %6713 = vmatpush1.msra.mxu0 0.0
        %6714 = vmatprep.subr.mxu0 0.0
        %6715 = vmatpush1.msra.mxu0 0.0
        %6716 = vmatprep.subr.mxu0 0.0
        %6717 = vmatpush1.msra.mxu0 0.0
        %6718 = vmatprep.subr.mxu0 0.0
        %6719 = vmatpush1.msra.mxu0 0.0
        %6720 = vmatprep.subr.mxu0 0.0
        %6721 = vmatpush1.msra.mxu0 0.0
        %6722 = vmatprep.subr.mxu0 0.0
        %6723 = vmatpush1.msra.mxu0 0.0
        %6724 = vmatprep.subr.mxu0 0.0
        %6725 = vmatpush1.msra.mxu0 0.0
        %6726 = vmatprep.subr.mxu0 0.0
        %6727 = vmatpush1.msra.mxu0 0.0
        %6728 = vmatprep.subr.mxu0 0.0
        %6729 = vmatpush1.msra.mxu0 0.0
        %6730 = vmatprep.subr.mxu0 0.0
        %6731 = vmatpush1.msra.mxu0 0.0
        %6732 = vmatprep.subr.mxu0 0.0
        %6733 = vmatpush1.msra.mxu0 0.0
        %6734 = vmatprep.mubr.f32.mxu0 0.0
        %6735 = vmatmul.mubr.f32.gmra.mrb[0].mxu0 %v6588
        %v6736 = vpop.f32.mrb[0].mxu0
        %v6737 = vadd.f32 %v6395, %v6736
        %v6738 = vpop.f32.mrb[0].mxu0
        %v6739 = vadd.f32 %v6395, %v6738
        %6740 = vmatprep.mubr.f32.mxu0 0.0
        %6741 = vmatmul.mubr.f32.gmra.mrb[0].mxu0 %v6591
        %v6742 = vpop.f32.mrb[0].mxu0
        %v6743 = vadd.f32 %v6400, %v6742
        %v6744 = vpop.f32.mrb[0].mxu0
        %v6745 = vadd.f32 %v6400, %v6744
        %6746 = vdwg.mxu0
        %6757 = vrot.lane.b32.xlu0 %v479, 64
        %v6758 = vpop.permute.xlu0 %6757
        %6759 = vrot.lane.b32.xlu0 %v480, 64
        %v6760 = vpop.permute.xlu0 %6759
        %6761 = vrot.lane.b32.xlu0 %v481, 64
        %v6762 = vpop.permute.xlu0 %6761
        %6763 = vrot.lane.b32.xlu0 %v482, 64
        %v6764 = vpop.permute.xlu0 %6763
        %6765 = vrot.lane.b32.xlu0 %v483, 64
        %v6766 = vpop.permute.xlu0 %6765
        %6767 = vrot.lane.b32.xlu0 %v486, 64
        %v6768 = vpop.permute.xlu0 %6767
        %6769 = vrot.lane.b32.xlu0 %v487, 64
        %v6770 = vpop.permute.xlu0 %6769
        %6771 = vrot.lane.b32.xlu0 %v488, 64
        %v6772 = vpop.permute.xlu0 %6771
        %6773 = vrot.lane.b32.xlu0 %v489, 64
        %v6774 = vpop.permute.xlu0 %6773
        %6775 = vrot.lane.b32.xlu0 %v490, 64
        %v6776 = vpop.permute.xlu0 %6775
        %v6777 = vsel %vm6522, %v6758, %v6760
        %v6778 = vsel %vm6522, %v6760, %v6762
        %v6779 = vsel %vm6522, %v6762, %v6764
        %v6780 = vsel %vm6522, %v6764, %v6766
        %v6781 = vsel %vm6522, %v6768, %v6770
        %v6782 = vsel %vm6522, %v6770, %v6772
        %v6783 = vsel %vm6522, %v6772, %v6774
        %v6784 = vsel %vm6522, %v6774, %v6776
        %v6793 = vadd.f32 %v6660, %v6777
        %v6794 = vadd.f32 %v6662, %v6778
        %v6795 = vadd.f32 %v6737, %v6779
        %v6796 = vadd.f32 %v6739, %v6780
        %v6797 = vadd.f32 %v6666, %v6781
        %v6798 = vadd.f32 %v6668, %v6782
        %v6799 = vadd.f32 %v6743, %v6783
        %v6800 = vadd.f32 %v6745, %v6784
        %6801 = vst [vmem:[%s388] sm:$0xff] %v6793
        %6802 = vst [vmem:[%s388 + $0x8] sm:$0xff] %v6794
        %6803 = vst [vmem:[%s388 + $0x10] sm:$0xff] %v6795
        %6804 = vst [vmem:[%s388 + $0x18] sm:$0xff] %v6796
        %6805 = vst [vmem:[%s388 + $0x20] sm:$0xff] %v6797
        %6806 = vst [vmem:[%s388 + $0x28] sm:$0xff] %v6798
        %6807 = vst [vmem:[%s388 + $0x30] sm:$0xff] %v6799
        %6808 = vst [vmem:[%s388 + $0x38] sm:$0xff] %v6800
        %s6809 = sand.u32 %s281, 1
        %s6810 = sand.u32 %s281, 1
        %s6811 = smul.addr %s6810, 64
        %s6812 = scalar_lea.vmem [#allocation4], %s6811
        // Predicated region
        $region100: #{rdb_forward_nchw.1} parent=63 // pred_check
          %p6813 = pneg %p291
        $region101: #{rdb_forward_nchw.1} parent=63 // pred_check_branch
          %6815 = sbr.rel (%p6813) target = $region103
        $region102: #{rdb_forward_nchw.1} parent=63 // pred_region
          %s6816 = smul.u32 4, %s28
          %s6817 = smul.addr %s27, 16
          %s6818 = sadd.s32 %s6816, %s6817
          %s6819 = smul.addr %s6818, 8
          %s6820 = scalar_lea.vmem %s12, %s6819
          // Predicated region
          $region104: #{rdb_forward_nchw.1} parent=102 // pred_check
            _
          $region105: #{rdb_forward_nchw.1} parent=102 // pred_check_branch
            %6822 = sbr.rel (0) target = $region107
          $region106: #{rdb_forward_nchw.1} parent=102 // pred_region
            // Predicated region
            $region108: #{rdb_forward_nchw.1} parent=106 // pred_check
              _
            $region109: #{rdb_forward_nchw.1} parent=106 // pred_check_branch
              %6824 = sbr.rel (0) target = $region111
            $region110: #{rdb_forward_nchw.1} parent=106 // pred_region
              loop: start=0, step=1, limit=1
              $region112: #{rdb_forward_nchw.1} parent=110 // loop_pre_header
                _
              $region113: #{rdb_forward_nchw.1} parent=110 // loop_header
                %s6826 = sphi 0, %s6830
                %p6827 = scmp.ge.s32.totalorder %s6826, 1
                %s6831 = sphi %s6812, %s6812
                %s6832 = sphi %s6820, %s6820
              $region114: #{rdb_forward_nchw.1} parent=110 // loop_header_branch
                %6829 = sbr.rel (%p6827) target = $region118
              $region115: #{rdb_forward_nchw.1} parent=110 // loop_body
                %v6833 = vld [vmem:[%s6831] sm:$0xff]
                %6834 = vst [vmem:[%s6832] sm:$0xff] %v6833
                %v6835 = vld [vmem:[%s6831 + $0x8] sm:$0xff]
                %6836 = vst [vmem:[%s6832 + $0x8] sm:$0xff] %v6835
                %v6837 = vld [vmem:[%s6831 + $0x10] sm:$0xff]
                %6838 = vst [vmem:[%s6832 + $0x10] sm:$0xff] %v6837
                %v6839 = vld [vmem:[%s6831 + $0x18] sm:$0xff]
                %6840 = vst [vmem:[%s6832 + $0x18] sm:$0xff] %v6839
                %v6841 = vld [vmem:[%s6831 + $0x20] sm:$0xff]
                %6842 = vst [vmem:[%s6832 + $0x40] sm:$0xff] %v6841
                %v6843 = vld [vmem:[%s6831 + $0x28] sm:$0xff]
                %6844 = vst [vmem:[%s6832 + $0x48] sm:$0xff] %v6843
                %v6845 = vld [vmem:[%s6831 + $0x30] sm:$0xff]
                %6846 = vst [vmem:[%s6832 + $0x50] sm:$0xff] %v6845
                %v6847 = vld [vmem:[%s6831 + $0x38] sm:$0xff]
                %6848 = vst [vmem:[%s6832 + $0x58] sm:$0xff] %v6847
              $region116: #{rdb_forward_nchw.1} parent=110 // loop_footer
                %s6830 = sadd.s32 1, %s6826
              $region117: #{rdb_forward_nchw.1} parent=110 // loop_footer_branch
                %6825 = sbr.rel target = $region113
              $region118: #{rdb_forward_nchw.1} parent=110 // loop_exit
                _
            $region111: #{rdb_forward_nchw.1} parent=106 // pred_fallthru
              _
            // Predicated region
            $region119: #{rdb_forward_nchw.1} parent=106 // pred_check
              _
            $region120: #{rdb_forward_nchw.1} parent=106 // pred_check_branch
              %6850 = sbr.rel target = $region122
            $region121: #{rdb_forward_nchw.1} parent=106 // pred_region
              _
            $region122: #{rdb_forward_nchw.1} parent=106 // pred_fallthru
              _
          $region107: #{rdb_forward_nchw.1} parent=102 // pred_fallthru
            _
          %6851 = vnop
        $region103: #{rdb_forward_nchw.1} parent=63 // pred_fallthru
          _
      $region64: #{rdb_forward_nchw.1} parent=5 // pred_fallthru
        _
      %p6852 = scmp.le.s32.totalorder 2, %s18
      // Predicated region
      $region123: #{rdb_forward_nchw.1} parent=5 // pred_check
        %p6853 = pneg %p6852
      $region124: #{rdb_forward_nchw.1} parent=5 // pred_check_branch
        %6855 = sbr.rel (%p6853) target = $region126
      $region125: #{rdb_forward_nchw.1} parent=5 // pred_region
        %s6856 = ssub.s32 %s18, 2
        // Predicated region
        $region127: #{rdb_forward_nchw.1} parent=125 // pred_check
          %p6857 = pneg %p297
        $region128: #{rdb_forward_nchw.1} parent=125 // pred_check_branch
          %6859 = sbr.rel (%p6857) target = $region130
        $region129: #{rdb_forward_nchw.1} parent=125 // pred_region
          %s6860 = sand.u32 %s282, 1
          %s6861 = sand.u32 %s282, 1
          %s6862 = smul.addr %s6861, 64
          %s6863 = scalar_lea.vmem [#allocation4], %s6862
        $region130: #{rdb_forward_nchw.1} parent=125 // pred_fallthru
          _
      $region126: #{rdb_forward_nchw.1} parent=5 // pred_fallthru
        _
    $region6: #{rdb_forward_nchw.1} parent=1 // loop_footer
      %s22 = sadd.s32 1, %s18
    $region7: #{rdb_forward_nchw.1} parent=1 // loop_footer_branch
      %17 = sbr.rel target = $region3
    $region8: #{rdb_forward_nchw.1} parent=1 // loop_exit
      _

</llo_original>
